<compile_context>
chip_gen: v7x
topology: tpu7x:2x2x1
jax: 0.10.0
libtpu: 0.0.40
codegen_flags: <defaults>
</compile_context>

<pallas_src>
import math
from functools import partial

import numpy as np
import jax
import jax.numpy as jnp
from jax import lax
from jax.experimental import pallas as pl
from jax.experimental.pallas import tpu as pltpu  # noqa: F401  (TPU backend)


# ------------------------------ Pallas kernels ------------------------------
def _mm_kernel(a_ref, b_ref, o_ref):
    o_ref[...] = jnp.dot(a_ref[...], b_ref[...], preferred_element_type=jnp.float32)


def _mm_bias_kernel(a_ref, b_ref, bias_ref, o_ref, *, activation):
    y = jnp.dot(a_ref[...], b_ref[...], preferred_element_type=jnp.float32)
    y = y + bias_ref[...]
    if activation == "relu":
        y = jnp.maximum(y, 0.0)
    o_ref[...] = y


def matmul_plain(a, b):
    """(M, K) @ (K, N), full-array blocks."""
    a = a.astype(jnp.float32)
    b = b.astype(jnp.float32)
    M, K = a.shape
    _, N = b.shape
    return pl.pallas_call(
        _mm_kernel,
        out_shape=jax.ShapeDtypeStruct((M, N), jnp.float32),
        grid=(1,),
        in_specs=[pl.BlockSpec((M, K), lambda i: (0, 0)),
                  pl.BlockSpec((K, N), lambda i: (0, 0))],
        out_specs=pl.BlockSpec((M, N), lambda i: (0, 0)),
    )(a, b)


def matmul_bias(a, b, bias, activation=None):
    """(M, K) @ (K, N) + bias (fused), full-array blocks, no padding."""
    a = a.astype(jnp.float32)
    b = b.astype(jnp.float32)
    M, K = a.shape
    _, N = b.shape
    bias2 = bias.reshape(1, N).astype(jnp.float32)
    return pl.pallas_call(
        partial(_mm_bias_kernel, activation=activation),
        out_shape=jax.ShapeDtypeStruct((M, N), jnp.float32),
        grid=(1,),
        in_specs=[pl.BlockSpec((M, K), lambda i: (0, 0)),
                  pl.BlockSpec((K, N), lambda i: (0, 0)),
                  pl.BlockSpec((1, N), lambda i: (0, 0))],
        out_specs=pl.BlockSpec((M, N), lambda i: (0, 0)),
    )(a, b, bias2)


def _supports_kernel(we1_ref, we2_ref, mem_ref, eye_ref, s_ref, *, cheb_k):
    """node embeddings -> relu -> softmax graphs -> Chebyshev stack, fused."""
    ne1 = jnp.dot(we1_ref[...], mem_ref[...], preferred_element_type=jnp.float32)
    ne2 = jnp.dot(we2_ref[...], mem_ref[...], preferred_element_type=jnp.float32)

    def _softmax(z):
        m = jnp.max(z, axis=-1, keepdims=True)
        e = jnp.exp(z - m)
        return e / jnp.sum(e, axis=-1, keepdims=True)

    dn = (((1,), (1,)), ((), ()))    # contract on dim 1 of both (== A @ B.T)
    g1 = _softmax(jnp.maximum(
        lax.dot_general(ne1, ne2, dn, preferred_element_type=jnp.float32), 0.0))
    g2 = _softmax(jnp.maximum(
        lax.dot_general(ne2, ne1, dn, preferred_element_type=jnp.float32), 0.0))
    eye = eye_ref[...]
    n = we1_ref.shape[0]
    blocks = []
    for A in (g1, g2):
        ks = [eye, A]
        for _ in range(2, cheb_k):
            ks.append(2.0 * jnp.dot(A, ks[-1], preferred_element_type=jnp.float32)
                      - ks[-2])
        blocks.extend(ks)
    for idx, blk in enumerate(blocks):            # static slices, sublane-aligned
        s_ref[idx * n:(idx + 1) * n, :] = blk


def build_supports(mem, cfg):
    N, cheb_k = cfg['num_nodes'], cfg['cheb_k']
    mn, md = mem['Memory'].shape
    eye = jnp.eye(N, dtype=jnp.float32)
    return pl.pallas_call(
        partial(_supports_kernel, cheb_k=cheb_k),
        out_shape=jax.ShapeDtypeStruct((2 * cheb_k * N, N), jnp.float32),
        grid=(1,),
        in_specs=[pl.BlockSpec((N, mn), lambda i: (0, 0)),
                  pl.BlockSpec((N, mn), lambda i: (0, 0)),
                  pl.BlockSpec((mn, md), lambda i: (0, 0)),
                  pl.BlockSpec((N, N), lambda i: (0, 0))],
        out_specs=pl.BlockSpec((2 * cheb_k * N, N), lambda i: (0, 0)),
    )(mem['We1'].astype(jnp.float32), mem['We2'].astype(jnp.float32),
      mem['Memory'].astype(jnp.float32), eye)


def _dft_amp_kernel(x_ref, cos_ref, sin_ref, amp_ref):
    """Exact rDFT over the (static) time axis + magnitude, fused."""
    x = x_ref[...]
    re = jnp.dot(x, cos_ref[...], preferred_element_type=jnp.float32)
    im = jnp.dot(x, sin_ref[...], preferred_element_type=jnp.float32)
    amp_ref[...] = jnp.sqrt(re * re + im * im)


def _times_ln_kernel(x_ref, w_ref, b_ref, s_ref, g_ref, bb_ref, o_ref):
    """1x1-conv(ReLU) stand-in * period-weight + residual + LayerNorm, fused."""
    x = x_ref[...]
    y = jnp.dot(x, w_ref[...], preferred_element_type=jnp.float32) + b_ref[...]
    y = jnp.maximum(y, 0.0)
    r = y * s_ref[...] + x
    mean = jnp.mean(r, axis=-1, keepdims=True)
    var = jnp.mean((r - mean) ** 2, axis=-1, keepdims=True)
    inv = lax.rsqrt(var + 1e-5)
    o_ref[...] = (r - mean) * inv * g_ref[...] + bb_ref[...]


def _memory_kernel(x_ref, wq_ref, mem_ref, val_ref, q_ref, att_ref):
    """query = x@Wq ; att = softmax(query@Memory.T) ; value = att@Memory."""
    q = jnp.dot(x_ref[...], wq_ref[...], preferred_element_type=jnp.float32)
    logits = lax.dot_general(q, mem_ref[...], (((1,), (1,)), ((), ())),
                             preferred_element_type=jnp.float32)
    m = jnp.max(logits, axis=-1, keepdims=True)
    e = jnp.exp(logits - m)
    att = e / jnp.sum(e, axis=-1, keepdims=True)
    val_ref[...] = jnp.dot(att, mem_ref[...], preferred_element_type=jnp.float32)
    q_ref[...] = q
    att_ref[...] = att


def _residual_proj_kernel(hde_ref, hb_ref, xres_ref, w_ref, b_ref, o_ref):
    """(h_de + h_b + x_res) @ W + b, fused."""
    s = hde_ref[...] + hb_ref[...] + xres_ref[...]
    o_ref[...] = jnp.dot(s, w_ref[...], preferred_element_type=jnp.float32) + b_ref[...]


# ----------------------------- reference helpers ----------------------------
def spilt(x, f):
    B, T, N, C = x.shape
    if f == 0:   # split dim 1, cat dim 0 -> index t*B + b
        return jnp.transpose(x, (1, 0, 2, 3)).reshape(T * B, N, C)
    else:        # split dim 2, cat dim 0 -> index n*B + b
        return jnp.transpose(x, (2, 0, 1, 3)).reshape(N * B, T, C)


def concat(b, x, f):
    M, D1, C = x.shape
    n_chunks = M // b
    if f == 0:
        return jnp.transpose(x.reshape(n_chunks, b, D1, C), (1, 0, 2, 3))
    else:
        return jnp.transpose(x.reshape(n_chunks, b, D1, C), (1, 2, 0, 3))


def fft_period_softmax_scale(x3, k):
    """sum(softmax(FFT_for_Period weights)) fully on-device.

    TODO(synk): no Pallas FFT primitive; rfft over the (static) time axis is an
    exact DFT-by-matmul inside one fused Pallas kernel; means / top-k / gather
    stay in jnp inside the jit.
    """
    B_t, T, C = x3.shape
    F = T // 2 + 1
    t = np.arange(T, dtype=np.float64)[:, None]
    f = np.arange(F, dtype=np.float64)[None, :]
    ang = 2.0 * np.pi * t * f / T
    cos = jnp.asarray(np.cos(ang), jnp.float32)
    sin = jnp.asarray(np.sin(ang), jnp.float32)
    xt = jnp.transpose(x3, (0, 2, 1)).reshape(B_t * C, T)
    amp = pl.pallas_call(
        _dft_amp_kernel,
        out_shape=jax.ShapeDtypeStruct((B_t * C, F), jnp.float32),
        grid=(1,),
        in_specs=[pl.BlockSpec((B_t * C, T), lambda i: (0, 0)),
                  pl.BlockSpec((T, F), lambda i: (0, 0)),
                  pl.BlockSpec((T, F), lambda i: (0, 0))],
        out_specs=pl.BlockSpec((B_t * C, F), lambda i: (0, 0)),
    )(xt.astype(jnp.float32), cos, sin).reshape(B_t, C, F)
    freq = amp.mean(axis=(0, 1)).at[0].set(0.0)
    _, top = jax.lax.top_k(freq, k)
    period_weight = jnp.take(amp.mean(axis=1), top, axis=1)     # (B_t, k)
    pw = jax.nn.softmax(period_weight, axis=1)
    return jnp.sum(pw, axis=1)                                   # (B_t,) == 1


# ------------------------------- sub-modules --------------------------------
def times_layernorm(tp, x3, ln_g, ln_b, cfg):
    """Times block + LayerNorm, fused into one Pallas kernel.

    TODO(synk): MobileNetV1_LABAY source not provided; stand-in is a 1x1
    pointwise conv + ReLU.  With no spatial extent every period branch yields
    the same tensor, so the period fold/unfold collapses and only the softmax
    period-weight sum (== 1) scales the branch.
    """
    B_t, T, C = x3.shape
    scale = fft_period_softmax_scale(x3, cfg['top_k'])           # (B_t,)
    scale_rows = jnp.broadcast_to(scale[:, None, None], (B_t, T, 1)).reshape(B_t * T, 1)
    rows = B_t * T
    out = pl.pallas_call(
        _times_ln_kernel,
        out_shape=jax.ShapeDtypeStruct((rows, C), jnp.float32),
        grid=(1,),
        in_specs=[pl.BlockSpec((rows, C), lambda i: (0, 0)),
                  pl.BlockSpec((C, C), lambda i: (0, 0)),
                  pl.BlockSpec((1, C), lambda i: (0, 0)),
                  pl.BlockSpec((rows, 1), lambda i: (0, 0)),
                  pl.BlockSpec((1, C), lambda i: (0, 0)),
                  pl.BlockSpec((1, C), lambda i: (0, 0))],
        out_specs=pl.BlockSpec((rows, C), lambda i: (0, 0)),
    )(x3.reshape(rows, C).astype(jnp.float32),
      tp['conv_w'].astype(jnp.float32),
      tp['conv_b'].reshape(1, C).astype(jnp.float32),
      scale_rows.astype(jnp.float32),
      ln_g.reshape(1, C).astype(jnp.float32),
      ln_b.reshape(1, C).astype(jnp.float32))
    return out.reshape(B_t, T, C)


def agcn_forward(ap, x, s_stack):
    """All 2*cheb_k support applications batched into one matmul + fused proj."""
    Bp, N, Cin = x.shape
    S = s_stack.shape[0] // N
    xt = jnp.transpose(x, (1, 0, 2)).reshape(N, Bp * Cin)
    y = matmul_plain(s_stack, xt)                                # (S*N, Bp*Cin)
    x_g = jnp.transpose(y.reshape(S, N, Bp, Cin), (2, 1, 0, 3)).reshape(Bp * N, S * Cin)
    out = matmul_bias(x_g, ap['weights'], ap['bias'])            # fused bias
    return out.reshape(Bp, N, -1)


def apply_predict_linear_pair(Wt, b, cur, x):
    """predict_linear applied to both the embedded input and raw x in one call.

    Wt is stored pre-transposed (T, Tp) -> no runtime weight transpose.
    """
    B, T, N, C = cur.shape
    Cin = x.shape[-1]
    Tp = Wt.shape[1]
    rows_cur = jnp.transpose(cur, (0, 3, 2, 1)).reshape(B * C * N, T)
    rows_x = jnp.transpose(x, (0, 3, 2, 1)).reshape(B * Cin * N, T)
    y = matmul_bias(jnp.concatenate([rows_cur, rows_x], axis=0), Wt, b)
    n_cur = B * C * N
    y_cur = jnp.transpose(y[:n_cur].reshape(B, C, N, Tp), (0, 3, 2, 1))
    y_x = jnp.transpose(y[n_cur:].reshape(B, Cin, N, Tp), (0, 3, 2, 1))
    return y_cur, y_x


def gct_enc_forward(ep, x, s_stack, cfg):
    B, T, N, Cin = x.shape
    d = cfg['d_model']
    # TODO(synk): DataEmbedding source not provided; stand-in = value linear
    # Cin->d_model.  input_dim == 1 => pure broadcast, kept in jnp (XLA fuses it
    # into the adjacent transpose; a Pallas launch here is pure overhead).
    emb = jnp.tensordot(x, ep['emb_w'], axes=([3], [0])) + ep['emb_b']
    cur, x_res = apply_predict_linear_pair(ep['pl_w'], ep['pl_b'], emb, x)
    for i in range(cfg['b_layers']):
        cur = spilt(cur, 0)
        state = agcn_forward(ep['agcn'][i], cur, s_stack)
        state = concat(B, state, 0)
        t_enc = spilt(state, 1)
        t_enc = times_layernorm(ep['times'][i], t_enc, ep['ln_g'], ep['ln_b'], cfg)
        cur = concat(B, t_enc, 1)
    return cur, x_res


def gct_dec_forward(dp, h_b, s_stack, cfg):
    B = h_b.shape[0]
    cur = h_b
    for i in range(cfg['b_layers']):
        cur = spilt(cur, 0)
        state = agcn_forward(dp['agcn'][i], cur, s_stack)
        state = concat(B, state, 0)
        t_dec = spilt(state, 1)
        t_dec = times_layernorm(dp['times'][i], t_dec, dp['ln_g'], dp['ln_b'], cfg)
        cur = concat(B, t_dec, 1)
    return cur


def query_memory(mem, m_t):
    Bp, N, D = m_t.shape
    mn, md = mem['Memory'].shape
    rows = Bp * N
    value, query, att = pl.pallas_call(
        _memory_kernel,
        out_shape=(jax.ShapeDtypeStruct((rows, md), jnp.float32),
                   jax.ShapeDtypeStruct((rows, md), jnp.float32),
                   jax.ShapeDtypeStruct((rows, mn), jnp.float32)),
        grid=(1,),
        in_specs=[pl.BlockSpec((rows, D), lambda i: (0, 0)),
                  pl.BlockSpec((D, md), lambda i: (0, 0)),
                  pl.BlockSpec((mn, md), lambda i: (0, 0))],
        out_specs=(pl.BlockSpec((rows, md), lambda i: (0, 0)),
                   pl.BlockSpec((rows, md), lambda i: (0, 0)),
                   pl.BlockSpec((rows, mn), lambda i: (0, 0))),
    )(m_t.reshape(rows, D).astype(jnp.float32),
      mem['Wq'].astype(jnp.float32),
      mem['Memory'].astype(jnp.float32))
    value = value.reshape(Bp, N, md)
    query = query.reshape(Bp, N, md)
    att = att.reshape(Bp, N, mn)
    _, ind = jax.lax.top_k(att, 2)          # tiny top-k / gathers stay in jnp
    pos = mem['Memory'][ind[..., 0]]
    neg = mem['Memory'][ind[..., 1]]
    return value, query, pos, neg


# -------------------------------- full model --------------------------------
def mggltn_forward(params, x, y_cov, cfg):
    mem = params['memory']
    s_stack = build_supports(mem, cfg)            # fused graphs + Chebyshev stack
    bat = x.shape[0]

    hm_t, x_res = gct_enc_forward(params['enc'], x, s_stack, cfg)
    hm_t = hm_t + x_res                           # broadcast (input_dim == 1), as in torch
    m_t = spilt(hm_t, 0)
    h_att, query, pos, neg = query_memory(mem, m_t)
    h_t = jnp.concatenate([m_t, h_att], axis=-1)
    h_b = concat(bat, h_t, 0)
    h_de = gct_dec_forward(params['dec'], h_b, s_stack, cfg)

    # (h_de + h_b + x_res) @ proj_w + proj_b, fused into one kernel
    dd = h_de.shape[-1]
    rows = bat * (cfg['seq_len'] + cfg['out_len']) * cfg['num_nodes']
    odim = cfg['output_dim']
    go = pl.pallas_call(
        _residual_proj_kernel,
        out_shape=jax.ShapeDtypeStruct((rows, odim), jnp.float32),
        grid=(1,),
        in_specs=[pl.BlockSpec((rows, dd), lambda i: (0, 0)),
                  pl.BlockSpec((rows, dd), lambda i: (0, 0)),
                  pl.BlockSpec((rows, 1), lambda i: (0, 0)),
                  pl.BlockSpec((dd, odim), lambda i: (0, 0)),
                  pl.BlockSpec((1, odim), lambda i: (0, 0))],
        out_specs=pl.BlockSpec((rows, odim), lambda i: (0, 0)),
    )(h_de.reshape(rows, dd).astype(jnp.float32),
      h_b.reshape(rows, dd).astype(jnp.float32),
      x_res.reshape(rows, 1).astype(jnp.float32),
      params['proj_w'].astype(jnp.float32),
      params['proj_b'].reshape(1, odim).astype(jnp.float32))
    go = go.reshape(bat, cfg['seq_len'] + cfg['out_len'], cfg['num_nodes'], odim)
    output = go[:, -cfg['out_len']:, :, :]
    return output, h_att, query, pos, neg


# ------------------------------ parameter init -------------------------------
def init_params(key, cfg):
    keys = iter(jax.random.split(key, 64))

    def xav(shape):
        fi, fo = shape[0], shape[-1]
        std = math.sqrt(2.0 / (fi + fo))
        return std * jax.random.normal(next(keys), shape, jnp.float32)

    d, N = cfg['d_model'], cfg['num_nodes']
    mn, md = cfg['mem_num'], cfg['mem_dim']
    Cin, T = cfg['input_dim'], cfg['seq_len']
    Tp = cfg['seq_len'] + cfg['out_len']
    cheb, L = cfg['cheb_k'], cfg['b_layers']
    dd = d + md                                   # decoder dim (== 2*d_model)

    params = {
        'memory': {'Memory': xav((mn, md)), 'Wq': xav((d, md)),
                   'We1': xav((N, mn)), 'We2': xav((N, mn))},
        'enc': {
            'emb_w': xav((Cin, d)), 'emb_b': jnp.zeros((d,), jnp.float32),
            # pl_w stored pre-transposed (T, Tp): x @ pl_w + pl_b
            'pl_w': xav((T, Tp)), 'pl_b': jnp.zeros((Tp,), jnp.float32),
            'ln_g': jnp.ones((d,), jnp.float32), 'ln_b': jnp.zeros((d,), jnp.float32),
            'agcn': [{'weights': xav((2 * cheb * d, d)),
                      'bias': jnp.zeros((d,), jnp.float32)} for _ in range(L)],
            'times': [{'conv_w': xav((d, d)),
                       'conv_b': jnp.zeros((d,), jnp.float32)} for _ in range(L)],
        },
        'dec': {
            'ln_g': jnp.ones((2 * d,), jnp.float32),
            'ln_b': jnp.zeros((2 * d,), jnp.float32),
            'agcn': [{'weights': xav((2 * cheb * dd, dd)),
                      'bias': jnp.zeros((dd,), jnp.float32)} for _ in range(L)],
            'times': [{'conv_w': xav((2 * d, 2 * d)),
                       'conv_b': jnp.zeros((2 * d,), jnp.float32)} for _ in range(L)],
        },
        'proj_w': xav((dd, cfg['output_dim'])),
        'proj_b': jnp.zeros((cfg['output_dim'],), jnp.float32),
    }
    return params


CFG = dict(num_nodes=8, input_dim=1, output_dim=1, seq_len=8, out_len=4,
           b_layers=1, d_model=16, top_k=2, d_ff=32, num_kernels=2,
           cheb_k=3, ycov_dim=1, mem_num=8, mem_dim=16)  # mem_dim == d_model


@jax.jit
def forward(params, x, y_cov):
    return mggltn_forward(params, x, y_cov, CFG)


if __name__ == "__main__":
    key = jax.random.PRNGKey(0)
    kp, kx, ky = jax.random.split(key, 3)
    params = init_params(kp, CFG)
    B = 2
    x = jax.random.normal(
        kx, (B, CFG['seq_len'], CFG['num_nodes'], CFG['input_dim']), jnp.float32)
    y_cov = jax.random.normal(
        ky, (B, CFG['out_len'], CFG['num_nodes'], CFG['ycov_dim']), jnp.float32)

    outs = forward(params, x, y_cov)
    outs = jax.block_until_ready(outs)
    output, h_att, query, pos, neg = outs
    assert output.shape == (B, CFG['out_len'], CFG['num_nodes'], CFG['output_dim'])
    assert bool(jnp.all(jnp.isfinite(output)))
    print("KERNEL_OK")
</pallas_src>

<mosaic_0001>
module attributes {stable_mosaic.version = 11 : i64} {
  func.func @_mm_bias_kernel(%arg0: i32, %arg1: memref<272x8xf32, #tpu.memory_space<vmem>>, %arg2: memref<8x12xf32, #tpu.memory_space<vmem>>, %arg3: memref<1x12xf32, #tpu.memory_space<vmem>>, %arg4: memref<272x12xf32, #tpu.memory_space<vmem>>) attributes {dimension_semantics = [#tpu.dimension_semantics<arbitrary>], iteration_bounds = array<i64: 1>, scalar_prefetch = 0 : i64, scratch_operands = 0 : i64, tpu.core_type = #tpu.core_type<tc>, window_params = [{pipeline_mode = #tpu.pipeline_mode<synchronous>, transform_indices = @transform_0, window_bounds = array<i64: 272, 8>}, {pipeline_mode = #tpu.pipeline_mode<synchronous>, transform_indices = @transform_1, window_bounds = array<i64: 8, 12>}, {pipeline_mode = #tpu.pipeline_mode<synchronous>, transform_indices = @transform_2, window_bounds = array<i64: 1, 12>}, {pipeline_mode = #tpu.pipeline_mode<synchronous>, transform_indices = @transform_3, window_bounds = array<i64: 272, 12>}]} {
    %c0 = arith.constant 0 : index
    %c0_0 = arith.constant 0 : index
    %0 = vector.load %arg1[%c0, %c0_0] : memref<272x8xf32, #tpu.memory_space<vmem>>, vector<272x8xf32>
    %c0_1 = arith.constant 0 : index
    %c0_2 = arith.constant 0 : index
    %1 = vector.load %arg2[%c0_1, %c0_2] : memref<8x12xf32, #tpu.memory_space<vmem>>, vector<8x12xf32>
    %cst = arith.constant dense<0.000000e+00> : vector<272x12xf32>
    %2 = tpu.matmul %0, %1, %cst {dimension_numbers = #tpu.dot_dimension_numbers<[1], [0], [0], [1], [0, 0, 1, 1], [], []>} : vector<272x8xf32>, vector<8x12xf32>, vector<272x12xf32> -> vector<272x12xf32>
    %c0_3 = arith.constant 0 : index
    %c0_4 = arith.constant 0 : index
    %3 = vector.load %arg3[%c0_3, %c0_4] : memref<1x12xf32, #tpu.memory_space<vmem>>, vector<1x12xf32>
    %4 = vector.broadcast %3 : vector<1x12xf32> to vector<272x12xf32>
    %5 = arith.addf %2, %4 : vector<272x12xf32>
    %c0_5 = arith.constant 0 : index
    %c0_6 = arith.constant 0 : index
    %6 = vector.load %arg4[%c0_5, %c0_6] : memref<272x12xf32, #tpu.memory_space<vmem>>, vector<272x12xf32>
    tpu.vector_store %arg4[%c0_5, %c0_6], %5 {strides = array<i32>} : memref<272x12xf32, #tpu.memory_space<vmem>>, vector<272x12xf32>,
    return
  }
  func.func @transform_0(%arg0: i32) -> (i32, i32) {
    %c0_i32 = arith.constant 0 : i32
    %c0_i32_0 = arith.constant 0 : i32
    %c0_i32_1 = arith.constant 0 : i32
    return %c0_i32, %c0_i32_0 : i32, i32
  }
  func.func @transform_1(%arg0: i32) -> (i32, i32) {
    %c0_i32 = arith.constant 0 : i32
    %c0_i32_0 = arith.constant 0 : i32
    %c0_i32_1 = arith.constant 0 : i32
    return %c0_i32, %c0_i32_0 : i32, i32
  }
  func.func @transform_2(%arg0: i32) -> (i32, i32) {
    %c0_i32 = arith.constant 0 : i32
    %c0_i32_0 = arith.constant 0 : i32
    %c0_i32_1 = arith.constant 0 : i32
    return %c0_i32, %c0_i32_0 : i32, i32
  }
  func.func @transform_3(%arg0: i32) -> (i32, i32) {
    %c0_i32 = arith.constant 0 : i32
    %c0_i32_0 = arith.constant 0 : i32
    %c0_i32_1 = arith.constant 0 : i32
    return %c0_i32, %c0_i32_0 : i32, i32
  }
}

module attributes {stable_mosaic.version = 11 : i64} {
  func.func @_supports_kernel(%arg0: i32, %arg1: memref<8x8xf32, #tpu.memory_space<vmem>>, %arg2: memref<8x8xf32, #tpu.memory_space<vmem>>, %arg3: memref<8x16xf32, #tpu.memory_space<vmem>>, %arg4: memref<8x8xf32, #tpu.memory_space<vmem>>, %arg5: memref<48x8xf32, #tpu.memory_space<vmem>>) attributes {dimension_semantics = [#tpu.dimension_semantics<arbitrary>], iteration_bounds = array<i64: 1>, scalar_prefetch = 0 : i64, scratch_operands = 0 : i64, tpu.core_type = #tpu.core_type<tc>, window_params = [{pipeline_mode = #tpu.pipeline_mode<synchronous>, transform_indices = @transform_0, window_bounds = array<i64: 8, 8>}, {pipeline_mode = #tpu.pipeline_mode<synchronous>, transform_indices = @transform_1, window_bounds = array<i64: 8, 8>}, {pipeline_mode = #tpu.pipeline_mode<synchronous>, transform_indices = @transform_2, window_bounds = array<i64: 8, 16>}, {pipeline_mode = #tpu.pipeline_mode<synchronous>, transform_indices = @transform_3, window_bounds = array<i64: 8, 8>}, {pipeline_mode = #tpu.pipeline_mode<synchronous>, transform_indices = @transform_4, window_bounds = array<i64: 48, 8>}]} {
    %c0 = arith.constant 0 : index
    %c0_0 = arith.constant 0 : index
    %0 = vector.load %arg1[%c0, %c0_0] : memref<8x8xf32, #tpu.memory_space<vmem>>, vector<8x8xf32>
    %c0_1 = arith.constant 0 : index
    %c0_2 = arith.constant 0 : index
    %1 = vector.load %arg3[%c0_1, %c0_2] : memref<8x16xf32, #tpu.memory_space<vmem>>, vector<8x16xf32>
    %cst = arith.constant dense<0.000000e+00> : vector<8x16xf32>
    %2 = tpu.matmul %0, %1, %cst {dimension_numbers = #tpu.dot_dimension_numbers<[1], [0], [0], [1], [0, 0, 1, 1], [], []>} : vector<8x8xf32>, vector<8x16xf32>, vector<8x16xf32> -> vector<8x16xf32>
    %c0_3 = arith.constant 0 : index
    %c0_4 = arith.constant 0 : index
    %3 = vector.load %arg2[%c0_3, %c0_4] : memref<8x8xf32, #tpu.memory_space<vmem>>, vector<8x8xf32>
    %c0_5 = arith.constant 0 : index
    %c0_6 = arith.constant 0 : index
    %4 = vector.load %arg3[%c0_5, %c0_6] : memref<8x16xf32, #tpu.memory_space<vmem>>, vector<8x16xf32>
    %cst_7 = arith.constant dense<0.000000e+00> : vector<8x16xf32>
    %5 = tpu.matmul %3, %4, %cst_7 {dimension_numbers = #tpu.dot_dimension_numbers<[1], [0], [0], [1], [0, 0, 1, 1], [], []>} : vector<8x8xf32>, vector<8x16xf32>, vector<8x16xf32> -> vector<8x16xf32>
    %cst_8 = arith.constant dense<0.000000e+00> : vector<8x8xf32>
    %6 = tpu.matmul %2, %5, %cst_8 {dimension_numbers = #tpu.dot_dimension_numbers<[1], [1], [0], [0], [0, 0, 1, 0], [], []>} : vector<8x16xf32>, vector<8x16xf32>, vector<8x8xf32> -> vector<8x8xf32>
    %cst_9 = arith.constant 0.000000e+00 : f32
    %7 = vector.broadcast %cst_9 : f32 to vector<8x8xf32>
    %8 = arith.maximumf %6, %7 : vector<8x8xf32>
    %cst_10 = arith.constant dense<0xFF800000> : vector<8xf32>
    %9 = vector.multi_reduction <maximumf>, %8, %cst_10 [1] : vector<8x8xf32> to vector<8xf32>
    %10 = vector.shape_cast %9 : vector<8xf32> to vector<8x1xf32>
    %11 = vector.broadcast %10 : vector<8x1xf32> to vector<8x8xf32>
    %12 = arith.subf %8, %11 : vector<8x8xf32>
    %13 = math.exp %12 : vector<8x8xf32>
    %cst_11 = arith.constant dense<0.000000e+00> : vector<8xf32>
    %14 = vector.multi_reduction <add>, %13, %cst_11 [1] : vector<8x8xf32> to vector<8xf32>
    %15 = vector.shape_cast %14 : vector<8xf32> to vector<8x1xf32>
    %16 = vector.broadcast %15 : vector<8x1xf32> to vector<8x8xf32>
    %17 = arith.divf %13, %16 : vector<8x8xf32>
    %cst_12 = arith.constant dense<0.000000e+00> : vector<8x8xf32>
    %18 = tpu.matmul %5, %2, %cst_12 {dimension_numbers = #tpu.dot_dimension_numbers<[1], [1], [0], [0], [0, 0, 1, 0], [], []>} : vector<8x16xf32>, vector<8x16xf32>, vector<8x8xf32> -> vector<8x8xf32>
    %cst_13 = arith.constant 0.000000e+00 : f32
    %19 = vector.broadcast %cst_13 : f32 to vector<8x8xf32>
    %20 = arith.maximumf %18, %19 : vector<8x8xf32>
    %cst_14 = arith.constant dense<0xFF800000> : vector<8xf32>
    %21 = vector.multi_reduction <maximumf>, %20, %cst_14 [1] : vector<8x8xf32> to vector<8xf32>
    %22 = vector.shape_cast %21 : vector<8xf32> to vector<8x1xf32>
    %23 = vector.broadcast %22 : vector<8x1xf32> to vector<8x8xf32>
    %24 = arith.subf %20, %23 : vector<8x8xf32>
    %25 = math.exp %24 : vector<8x8xf32>
    %cst_15 = arith.constant dense<0.000000e+00> : vector<8xf32>
    %26 = vector.multi_reduction <add>, %25, %cst_15 [1] : vector<8x8xf32> to vector<8xf32>
    %27 = vector.shape_cast %26 : vector<8xf32> to vector<8x1xf32>
    %28 = vector.broadcast %27 : vector<8x1xf32> to vector<8x8xf32>
    %29 = arith.divf %25, %28 : vector<8x8xf32>
    %c0_16 = arith.constant 0 : index
    %c0_17 = arith.constant 0 : index
    %30 = vector.load %arg4[%c0_16, %c0_17] : memref<8x8xf32, #tpu.memory_space<vmem>>, vector<8x8xf32>
    %cst_18 = arith.constant dense<0.000000e+00> : vector<8x8xf32>
    %31 = tpu.matmul %17, %17, %cst_18 {dimension_numbers = #tpu.dot_dimension_numbers<[1], [0], [0], [1], [0, 0, 1, 1], [], []>} : vector<8x8xf32>, vector<8x8xf32>, vector<8x8xf32> -> vector<8x8xf32>
    %cst_19 = arith.constant 2.000000e+00 : f32
    %32 = vector.broadcast %cst_19 : f32 to vector<8x8xf32>
    %33 = arith.mulf %32, %31 : vector<8x8xf32>
    %34 = arith.subf %33, %30 : vector<8x8xf32>
    %cst_20 = arith.constant dense<0.000000e+00> : vector<8x8xf32>
    %35 = tpu.matmul %29, %29, %cst_20 {dimension_numbers = #tpu.dot_dimension_numbers<[1], [0], [0], [1], [0, 0, 1, 1], [], []>} : vector<8x8xf32>, vector<8x8xf32>, vector<8x8xf32> -> vector<8x8xf32>
    %cst_21 = arith.constant 2.000000e+00 : f32
    %36 = vector.broadcast %cst_21 : f32 to vector<8x8xf32>
    %37 = arith.mulf %36, %35 : vector<8x8xf32>
    %38 = arith.subf %37, %30 : vector<8x8xf32>
    %c0_22 = arith.constant 0 : index
    %c0_23 = arith.constant 0 : index
    %39 = vector.load %arg5[%c0_22, %c0_23] : memref<48x8xf32, #tpu.memory_space<vmem>>, vector<8x8xf32>
    tpu.vector_store %arg5[%c0_22, %c0_23], %30 {strides = array<i32>} : memref<48x8xf32, #tpu.memory_space<vmem>>, vector<8x8xf32>,
    %c8 = arith.constant 8 : index
    %c0_24 = arith.constant 0 : index
    %40 = vector.load %arg5[%c8, %c0_24] : memref<48x8xf32, #tpu.memory_space<vmem>>, vector<8x8xf32>
    tpu.vector_store %arg5[%c8, %c0_24], %17 {strides = array<i32>} : memref<48x8xf32, #tpu.memory_space<vmem>>, vector<8x8xf32>,
    %c16 = arith.constant 16 : index
    %c0_25 = arith.constant 0 : index
    %41 = vector.load %arg5[%c16, %c0_25] : memref<48x8xf32, #tpu.memory_space<vmem>>, vector<8x8xf32>
    tpu.vector_store %arg5[%c16, %c0_25], %34 {strides = array<i32>} : memref<48x8xf32, #tpu.memory_space<vmem>>, vector<8x8xf32>,
    %c24 = arith.constant 24 : index
    %c0_26 = arith.constant 0 : index
    %42 = vector.load %arg5[%c24, %c0_26] : memref<48x8xf32, #tpu.memory_space<vmem>>, vector<8x8xf32>
    tpu.vector_store %arg5[%c24, %c0_26], %30 {strides = array<i32>} : memref<48x8xf32, #tpu.memory_space<vmem>>, vector<8x8xf32>,
    %c32 = arith.constant 32 : index
    %c0_27 = arith.constant 0 : index
    %43 = vector.load %arg5[%c32, %c0_27] : memref<48x8xf32, #tpu.memory_space<vmem>>, vector<8x8xf32>
    tpu.vector_store %arg5[%c32, %c0_27], %29 {strides = array<i32>} : memref<48x8xf32, #tpu.memory_space<vmem>>, vector<8x8xf32>,
    %c40 = arith.constant 40 : index
    %c0_28 = arith.constant 0 : index
    %44 = vector.load %arg5[%c40, %c0_28] : memref<48x8xf32, #tpu.memory_space<vmem>>, vector<8x8xf32>
    tpu.vector_store %arg5[%c40, %c0_28], %38 {strides = array<i32>} : memref<48x8xf32, #tpu.memory_space<vmem>>, vector<8x8xf32>,
    return
  }
  func.func @transform_0(%arg0: i32) -> (i32, i32) {
    %c0_i32 = arith.constant 0 : i32
    %c0_i32_0 = arith.constant 0 : i32
    %c0_i32_1 = arith.constant 0 : i32
    return %c0_i32, %c0_i32_0 : i32, i32
  }
  func.func @transform_1(%arg0: i32) -> (i32, i32) {
    %c0_i32 = arith.constant 0 : i32
    %c0_i32_0 = arith.constant 0 : i32
    %c0_i32_1 = arith.constant 0 : i32
    return %c0_i32, %c0_i32_0 : i32, i32
  }
  func.func @transform_2(%arg0: i32) -> (i32, i32) {
    %c0_i32 = arith.constant 0 : i32
    %c0_i32_0 = arith.constant 0 : i32
    %c0_i32_1 = arith.constant 0 : i32
    return %c0_i32, %c0_i32_0 : i32, i32
  }
  func.func @transform_3(%arg0: i32) -> (i32, i32) {
    %c0_i32 = arith.constant 0 : i32
    %c0_i32_0 = arith.constant 0 : i32
    %c0_i32_1 = arith.constant 0 : i32
    return %c0_i32, %c0_i32_0 : i32, i32
  }
  func.func @transform_4(%arg0: i32) -> (i32, i32) {
    %c0_i32 = arith.constant 0 : i32
    %c0_i32_0 = arith.constant 0 : i32
    %c0_i32_1 = arith.constant 0 : i32
    return %c0_i32, %c0_i32_0 : i32, i32
  }
}

module attributes {stable_mosaic.version = 11 : i64} {
  func.func @_mm_kernel(%arg0: i32, %arg1: memref<48x8xf32, #tpu.memory_space<vmem>>, %arg2: memref<8x384xf32, #tpu.memory_space<vmem>>, %arg3: memref<48x384xf32, #tpu.memory_space<vmem>>) attributes {dimension_semantics = [#tpu.dimension_semantics<arbitrary>], iteration_bounds = array<i64: 1>, scalar_prefetch = 0 : i64, scratch_operands = 0 : i64, tpu.core_type = #tpu.core_type<tc>, window_params = [{pipeline_mode = #tpu.pipeline_mode<synchronous>, transform_indices = @transform_0, window_bounds = array<i64: 48, 8>}, {pipeline_mode = #tpu.pipeline_mode<synchronous>, transform_indices = @transform_1, window_bounds = array<i64: 8, 384>}, {pipeline_mode = #tpu.pipeline_mode<synchronous>, transform_indices = @transform_2, window_bounds = array<i64: 48, 384>}]} {
    %c0 = arith.constant 0 : index
    %c0_0 = arith.constant 0 : index
    %0 = vector.load %arg1[%c0, %c0_0] : memref<48x8xf32, #tpu.memory_space<vmem>>, vector<48x8xf32>
    %c0_1 = arith.constant 0 : index
    %c0_2 = arith.constant 0 : index
    %1 = vector.load %arg2[%c0_1, %c0_2] : memref<8x384xf32, #tpu.memory_space<vmem>>, vector<8x384xf32>
    %cst = arith.constant dense<0.000000e+00> : vector<48x384xf32>
    %2 = tpu.matmul %0, %1, %cst {dimension_numbers = #tpu.dot_dimension_numbers<[1], [0], [0], [1], [0, 0, 1, 1], [], []>} : vector<48x8xf32>, vector<8x384xf32>, vector<48x384xf32> -> vector<48x384xf32>
    %c0_3 = arith.constant 0 : index
    %c0_4 = arith.constant 0 : index
    %3 = vector.load %arg3[%c0_3, %c0_4] : memref<48x384xf32, #tpu.memory_space<vmem>>, vector<48x384xf32>
    tpu.vector_store %arg3[%c0_3, %c0_4], %2 {strides = array<i32>} : memref<48x384xf32, #tpu.memory_space<vmem>>, vector<48x384xf32>,
    return
  }
  func.func @transform_0(%arg0: i32) -> (i32, i32) {
    %c0_i32 = arith.constant 0 : i32
    %c0_i32_0 = arith.constant 0 : i32
    %c0_i32_1 = arith.constant 0 : i32
    return %c0_i32, %c0_i32_0 : i32, i32
  }
  func.func @transform_1(%arg0: i32) -> (i32, i32) {
    %c0_i32 = arith.constant 0 : i32
    %c0_i32_0 = arith.constant 0 : i32
    %c0_i32_1 = arith.constant 0 : i32
    return %c0_i32, %c0_i32_0 : i32, i32
  }
  func.func @transform_2(%arg0: i32) -> (i32, i32) {
    %c0_i32 = arith.constant 0 : i32
    %c0_i32_0 = arith.constant 0 : i32
    %c0_i32_1 = arith.constant 0 : i32
    return %c0_i32, %c0_i32_0 : i32, i32
  }
}

module attributes {stable_mosaic.version = 11 : i64} {
  func.func @_mm_bias_kernel(%arg0: i32, %arg1: memref<192x96xf32, #tpu.memory_space<vmem>>, %arg2: memref<96x16xf32, #tpu.memory_space<vmem>>, %arg3: memref<1x16xf32, #tpu.memory_space<vmem>>, %arg4: memref<192x16xf32, #tpu.memory_space<vmem>>) attributes {dimension_semantics = [#tpu.dimension_semantics<arbitrary>], iteration_bounds = array<i64: 1>, scalar_prefetch = 0 : i64, scratch_operands = 0 : i64, tpu.core_type = #tpu.core_type<tc>, window_params = [{pipeline_mode = #tpu.pipeline_mode<synchronous>, transform_indices = @transform_0, window_bounds = array<i64: 192, 96>}, {pipeline_mode = #tpu.pipeline_mode<synchronous>, transform_indices = @transform_1, window_bounds = array<i64: 96, 16>}, {pipeline_mode = #tpu.pipeline_mode<synchronous>, transform_indices = @transform_2, window_bounds = array<i64: 1, 16>}, {pipeline_mode = #tpu.pipeline_mode<synchronous>, transform_indices = @transform_3, window_bounds = array<i64: 192, 16>}]} {
    %c0 = arith.constant 0 : index
    %c0_0 = arith.constant 0 : index
    %0 = vector.load %arg1[%c0, %c0_0] : memref<192x96xf32, #tpu.memory_space<vmem>>, vector<192x96xf32>
    %c0_1 = arith.constant 0 : index
    %c0_2 = arith.constant 0 : index
    %1 = vector.load %arg2[%c0_1, %c0_2] : memref<96x16xf32, #tpu.memory_space<vmem>>, vector<96x16xf32>
    %cst = arith.constant dense<0.000000e+00> : vector<192x16xf32>
    %2 = tpu.matmul %0, %1, %cst {dimension_numbers = #tpu.dot_dimension_numbers<[1], [0], [0], [1], [0, 0, 1, 1], [], []>} : vector<192x96xf32>, vector<96x16xf32>, vector<192x16xf32> -> vector<192x16xf32>
    %c0_3 = arith.constant 0 : index
    %c0_4 = arith.constant 0 : index
    %3 = vector.load %arg3[%c0_3, %c0_4] : memref<1x16xf32, #tpu.memory_space<vmem>>, vector<1x16xf32>
    %4 = vector.broadcast %3 : vector<1x16xf32> to vector<192x16xf32>
    %5 = arith.addf %2, %4 : vector<192x16xf32>
    %c0_5 = arith.constant 0 : index
    %c0_6 = arith.constant 0 : index
    %6 = vector.load %arg4[%c0_5, %c0_6] : memref<192x16xf32, #tpu.memory_space<vmem>>, vector<192x16xf32>
    tpu.vector_store %arg4[%c0_5, %c0_6], %5 {strides = array<i32>} : memref<192x16xf32, #tpu.memory_space<vmem>>, vector<192x16xf32>,
    return
  }
  func.func @transform_0(%arg0: i32) -> (i32, i32) {
    %c0_i32 = arith.constant 0 : i32
    %c0_i32_0 = arith.constant 0 : i32
    %c0_i32_1 = arith.constant 0 : i32
    return %c0_i32, %c0_i32_0 : i32, i32
  }
  func.func @transform_1(%arg0: i32) -> (i32, i32) {
    %c0_i32 = arith.constant 0 : i32
    %c0_i32_0 = arith.constant 0 : i32
    %c0_i32_1 = arith.constant 0 : i32
    return %c0_i32, %c0_i32_0 : i32, i32
  }
  func.func @transform_2(%arg0: i32) -> (i32, i32) {
    %c0_i32 = arith.constant 0 : i32
    %c0_i32_0 = arith.constant 0 : i32
    %c0_i32_1 = arith.constant 0 : i32
    return %c0_i32, %c0_i32_0 : i32, i32
  }
  func.func @transform_3(%arg0: i32) -> (i32, i32) {
    %c0_i32 = arith.constant 0 : i32
    %c0_i32_0 = arith.constant 0 : i32
    %c0_i32_1 = arith.constant 0 : i32
    return %c0_i32, %c0_i32_0 : i32, i32
  }
}

module attributes {stable_mosaic.version = 11 : i64} {
  func.func @_dft_amp_kernel(%arg0: i32, %arg1: memref<256x12xf32, #tpu.memory_space<vmem>>, %arg2: memref<12x7xf32, #tpu.memory_space<vmem>>, %arg3: memref<12x7xf32, #tpu.memory_space<vmem>>, %arg4: memref<256x7xf32, #tpu.memory_space<vmem>>) attributes {dimension_semantics = [#tpu.dimension_semantics<arbitrary>], iteration_bounds = array<i64: 1>, scalar_prefetch = 0 : i64, scratch_operands = 0 : i64, tpu.core_type = #tpu.core_type<tc>, window_params = [{pipeline_mode = #tpu.pipeline_mode<synchronous>, transform_indices = @transform_0, window_bounds = array<i64: 256, 12>}, {pipeline_mode = #tpu.pipeline_mode<synchronous>, transform_indices = @transform_1, window_bounds = array<i64: 12, 7>}, {pipeline_mode = #tpu.pipeline_mode<synchronous>, transform_indices = @transform_2, window_bounds = array<i64: 12, 7>}, {pipeline_mode = #tpu.pipeline_mode<synchronous>, transform_indices = @transform_3, window_bounds = array<i64: 256, 7>}]} {
    %c0 = arith.constant 0 : index
    %c0_0 = arith.constant 0 : index
    %0 = vector.load %arg1[%c0, %c0_0] : memref<256x12xf32, #tpu.memory_space<vmem>>, vector<256x12xf32>
    %c0_1 = arith.constant 0 : index
    %c0_2 = arith.constant 0 : index
    %1 = vector.load %arg2[%c0_1, %c0_2] : memref<12x7xf32, #tpu.memory_space<vmem>>, vector<12x7xf32>
    %cst = arith.constant dense<0.000000e+00> : vector<256x7xf32>
    %2 = tpu.matmul %0, %1, %cst {dimension_numbers = #tpu.dot_dimension_numbers<[1], [0], [0], [1], [0, 0, 1, 1], [], []>} : vector<256x12xf32>, vector<12x7xf32>, vector<256x7xf32> -> vector<256x7xf32>
    %c0_3 = arith.constant 0 : index
    %c0_4 = arith.constant 0 : index
    %3 = vector.load %arg3[%c0_3, %c0_4] : memref<12x7xf32, #tpu.memory_space<vmem>>, vector<12x7xf32>
    %cst_5 = arith.constant dense<0.000000e+00> : vector<256x7xf32>
    %4 = tpu.matmul %0, %3, %cst_5 {dimension_numbers = #tpu.dot_dimension_numbers<[1], [0], [0], [1], [0, 0, 1, 1], [], []>} : vector<256x12xf32>, vector<12x7xf32>, vector<256x7xf32> -> vector<256x7xf32>
    %5 = arith.mulf %2, %2 : vector<256x7xf32>
    %6 = arith.mulf %4, %4 : vector<256x7xf32>
    %7 = arith.addf %5, %6 : vector<256x7xf32>
    %8 = math.sqrt %7 : vector<256x7xf32>
    %c0_6 = arith.constant 0 : index
    %c0_7 = arith.constant 0 : index
    %9 = vector.load %arg4[%c0_6, %c0_7] : memref<256x7xf32, #tpu.memory_space<vmem>>, vector<256x7xf32>
    tpu.vector_store %arg4[%c0_6, %c0_7], %8 {strides = array<i32>} : memref<256x7xf32, #tpu.memory_space<vmem>>, vector<256x7xf32>,
    return
  }
  func.func @transform_0(%arg0: i32) -> (i32, i32) {
    %c0_i32 = arith.constant 0 : i32
    %c0_i32_0 = arith.constant 0 : i32
    %c0_i32_1 = arith.constant 0 : i32
    return %c0_i32, %c0_i32_0 : i32, i32
  }
  func.func @transform_1(%arg0: i32) -> (i32, i32) {
    %c0_i32 = arith.constant 0 : i32
    %c0_i32_0 = arith.constant 0 : i32
    %c0_i32_1 = arith.constant 0 : i32
    return %c0_i32, %c0_i32_0 : i32, i32
  }
  func.func @transform_2(%arg0: i32) -> (i32, i32) {
    %c0_i32 = arith.constant 0 : i32
    %c0_i32_0 = arith.constant 0 : i32
    %c0_i32_1 = arith.constant 0 : i32
    return %c0_i32, %c0_i32_0 : i32, i32
  }
  func.func @transform_3(%arg0: i32) -> (i32, i32) {
    %c0_i32 = arith.constant 0 : i32
    %c0_i32_0 = arith.constant 0 : i32
    %c0_i32_1 = arith.constant 0 : i32
    return %c0_i32, %c0_i32_0 : i32, i32
  }
}

module attributes {stable_mosaic.version = 11 : i64} {
  func.func @_times_ln_kernel(%arg0: i32, %arg1: memref<192x16xf32, #tpu.memory_space<vmem>>, %arg2: memref<16x16xf32, #tpu.memory_space<vmem>>, %arg3: memref<1x16xf32, #tpu.memory_space<vmem>>, %arg4: memref<192x1xf32, #tpu.memory_space<vmem>>, %arg5: memref<1x16xf32, #tpu.memory_space<vmem>>, %arg6: memref<1x16xf32, #tpu.memory_space<vmem>>, %arg7: memref<192x16xf32, #tpu.memory_space<vmem>>) attributes {dimension_semantics = [#tpu.dimension_semantics<arbitrary>], iteration_bounds = array<i64: 1>, scalar_prefetch = 0 : i64, scratch_operands = 0 : i64, tpu.core_type = #tpu.core_type<tc>, window_params = [{pipeline_mode = #tpu.pipeline_mode<synchronous>, transform_indices = @transform_0, window_bounds = array<i64: 192, 16>}, {pipeline_mode = #tpu.pipeline_mode<synchronous>, transform_indices = @transform_1, window_bounds = array<i64: 16, 16>}, {pipeline_mode = #tpu.pipeline_mode<synchronous>, transform_indices = @transform_2, window_bounds = array<i64: 1, 16>}, {pipeline_mode = #tpu.pipeline_mode<synchronous>, transform_indices = @transform_3, window_bounds = array<i64: 192, 1>}, {pipeline_mode = #tpu.pipeline_mode<synchronous>, transform_indices = @transform_4, window_bounds = array<i64: 1, 16>}, {pipeline_mode = #tpu.pipeline_mode<synchronous>, transform_indices = @transform_5, window_bounds = array<i64: 1, 16>}, {pipeline_mode = #tpu.pipeline_mode<synchronous>, transform_indices = @transform_6, window_bounds = array<i64: 192, 16>}]} {
    %c0 = arith.constant 0 : index
    %c0_0 = arith.constant 0 : index
    %0 = vector.load %arg1[%c0, %c0_0] : memref<192x16xf32, #tpu.memory_space<vmem>>, vector<192x16xf32>
    %c0_1 = arith.constant 0 : index
    %c0_2 = arith.constant 0 : index
    %1 = vector.load %arg2[%c0_1, %c0_2] : memref<16x16xf32, #tpu.memory_space<vmem>>, vector<16x16xf32>
    %cst = arith.constant dense<0.000000e+00> : vector<192x16xf32>
    %2 = tpu.matmul %0, %1, %cst {dimension_numbers = #tpu.dot_dimension_numbers<[1], [0], [0], [1], [0, 0, 1, 1], [], []>} : vector<192x16xf32>, vector<16x16xf32>, vector<192x16xf32> -> vector<192x16xf32>
    %c0_3 = arith.constant 0 : index
    %c0_4 = arith.constant 0 : index
    %3 = vector.load %arg3[%c0_3, %c0_4] : memref<1x16xf32, #tpu.memory_space<vmem>>, vector<1x16xf32>
    %4 = vector.broadcast %3 : vector<1x16xf32> to vector<192x16xf32>
    %5 = arith.addf %2, %4 : vector<192x16xf32>
    %cst_5 = arith.constant 0.000000e+00 : f32
    %6 = vector.broadcast %cst_5 : f32 to vector<192x16xf32>
    %7 = arith.maximumf %5, %6 : vector<192x16xf32>
    %c0_6 = arith.constant 0 : index
    %c0_7 = arith.constant 0 : index
    %8 = vector.load %arg4[%c0_6, %c0_7] : memref<192x1xf32, #tpu.memory_space<vmem>>, vector<192x1xf32>
    %9 = vector.broadcast %8 : vector<192x1xf32> to vector<192x16xf32>
    %10 = arith.mulf %7, %9 : vector<192x16xf32>
    %11 = arith.addf %10, %0 : vector<192x16xf32>
    %cst_8 = arith.constant dense<0.000000e+00> : vector<192xf32>
    %12 = vector.multi_reduction <add>, %11, %cst_8 [1] : vector<192x16xf32> to vector<192xf32>
    %13 = vector.shape_cast %12 : vector<192xf32> to vector<192x1xf32>
    %cst_9 = arith.constant 1.600000e+01 : f32
    %14 = vector.broadcast %cst_9 : f32 to vector<192x1xf32>
    %15 = arith.divf %13, %14 : vector<192x1xf32>
    %16 = vector.broadcast %15 : vector<192x1xf32> to vector<192x16xf32>
    %17 = arith.subf %11, %16 : vector<192x16xf32>
    %18 = arith.mulf %17, %17 : vector<192x16xf32>
    %cst_10 = arith.constant dense<0.000000e+00> : vector<192xf32>
    %19 = vector.multi_reduction <add>, %18, %cst_10 [1] : vector<192x16xf32> to vector<192xf32>
    %20 = vector.shape_cast %19 : vector<192xf32> to vector<192x1xf32>
    %cst_11 = arith.constant 1.600000e+01 : f32
    %21 = vector.broadcast %cst_11 : f32 to vector<192x1xf32>
    %22 = arith.divf %20, %21 : vector<192x1xf32>
    %cst_12 = arith.constant 9.99999974E-6 : f32
    %23 = vector.broadcast %cst_12 : f32 to vector<192x1xf32>
    %24 = arith.addf %22, %23 : vector<192x1xf32>
    %25 = math.rsqrt %24 : vector<192x1xf32>
    %26 = vector.broadcast %15 : vector<192x1xf32> to vector<192x16xf32>
    %27 = arith.subf %11, %26 : vector<192x16xf32>
    %28 = vector.broadcast %25 : vector<192x1xf32> to vector<192x16xf32>
    %29 = arith.mulf %27, %28 : vector<192x16xf32>
    %c0_13 = arith.constant 0 : index
    %c0_14 = arith.constant 0 : index
    %30 = vector.load %arg5[%c0_13, %c0_14] : memref<1x16xf32, #tpu.memory_space<vmem>>, vector<1x16xf32>
    %31 = vector.broadcast %30 : vector<1x16xf32> to vector<192x16xf32>
    %32 = arith.mulf %29, %31 : vector<192x16xf32>
    %c0_15 = arith.constant 0 : index
    %c0_16 = arith.constant 0 : index
    %33 = vector.load %arg6[%c0_15, %c0_16] : memref<1x16xf32, #tpu.memory_space<vmem>>, vector<1x16xf32>
    %34 = vector.broadcast %33 : vector<1x16xf32> to vector<192x16xf32>
    %35 = arith.addf %32, %34 : vector<192x16xf32>
    %c0_17 = arith.constant 0 : index
    %c0_18 = arith.constant 0 : index
    %36 = vector.load %arg7[%c0_17, %c0_18] : memref<192x16xf32, #tpu.memory_space<vmem>>, vector<192x16xf32>
    tpu.vector_store %arg7[%c0_17, %c0_18], %35 {strides = array<i32>} : memref<192x16xf32, #tpu.memory_space<vmem>>, vector<192x16xf32>,
    return
  }
  func.func @transform_0(%arg0: i32) -> (i32, i32) {
    %c0_i32 = arith.constant 0 : i32
    %c0_i32_0 = arith.constant 0 : i32
    %c0_i32_1 = arith.constant 0 : i32
    return %c0_i32, %c0_i32_0 : i32, i32
  }
  func.func @transform_1(%arg0: i32) -> (i32, i32) {
    %c0_i32 = arith.constant 0 : i32
    %c0_i32_0 = arith.constant 0 : i32
    %c0_i32_1 = arith.constant 0 : i32
    return %c0_i32, %c0_i32_0 : i32, i32
  }
  func.func @transform_2(%arg0: i32) -> (i32, i32) {
    %c0_i32 = arith.constant 0 : i32
    %c0_i32_0 = arith.constant 0 : i32
    %c0_i32_1 = arith.constant 0 : i32
    return %c0_i32, %c0_i32_0 : i32, i32
  }
  func.func @transform_3(%arg0: i32) -> (i32, i32) {
    %c0_i32 = arith.constant 0 : i32
    %c0_i32_0 = arith.constant 0 : i32
    %c0_i32_1 = arith.constant 0 : i32
    return %c0_i32, %c0_i32_0 : i32, i32
  }
  func.func @transform_4(%arg0: i32) -> (i32, i32) {
    %c0_i32 = arith.constant 0 : i32
    %c0_i32_0 = arith.constant 0 : i32
    %c0_i32_1 = arith.constant 0 : i32
    return %c0_i32, %c0_i32_0 : i32, i32
  }
  func.func @transform_5(%arg0: i32) -> (i32, i32) {
    %c0_i32 = arith.constant 0 : i32
    %c0_i32_0 = arith.constant 0 : i32
    %c0_i32_1 = arith.constant 0 : i32
    return %c0_i32, %c0_i32_0 : i32, i32
  }
  func.func @transform_6(%arg0: i32) -> (i32, i32) {
    %c0_i32 = arith.constant 0 : i32
    %c0_i32_0 = arith.constant 0 : i32
    %c0_i32_1 = arith.constant 0 : i32
    return %c0_i32, %c0_i32_0 : i32, i32
  }
}

module attributes {stable_mosaic.version = 11 : i64} {
  func.func @_mm_kernel(%arg0: i32, %arg1: memref<48x8xf32, #tpu.memory_space<vmem>>, %arg2: memref<8x768xf32, #tpu.memory_space<vmem>>, %arg3: memref<48x768xf32, #tpu.memory_space<vmem>>) attributes {dimension_semantics = [#tpu.dimension_semantics<arbitrary>], iteration_bounds = array<i64: 1>, scalar_prefetch = 0 : i64, scratch_operands = 0 : i64, tpu.core_type = #tpu.core_type<tc>, window_params = [{pipeline_mode = #tpu.pipeline_mode<synchronous>, transform_indices = @transform_0, window_bounds = array<i64: 48, 8>}, {pipeline_mode = #tpu.pipeline_mode<synchronous>, transform_indices = @transform_1, window_bounds = array<i64: 8, 768>}, {pipeline_mode = #tpu.pipeline_mode<synchronous>, transform_indices = @transform_2, window_bounds = array<i64: 48, 768>}]} {
    %c0 = arith.constant 0 : index
    %c0_0 = arith.constant 0 : index
    %0 = vector.load %arg1[%c0, %c0_0] : memref<48x8xf32, #tpu.memory_space<vmem>>, vector<48x8xf32>
    %c0_1 = arith.constant 0 : index
    %c0_2 = arith.constant 0 : index
    %1 = vector.load %arg2[%c0_1, %c0_2] : memref<8x768xf32, #tpu.memory_space<vmem>>, vector<8x768xf32>
    %cst = arith.constant dense<0.000000e+00> : vector<48x768xf32>
    %2 = tpu.matmul %0, %1, %cst {dimension_numbers = #tpu.dot_dimension_numbers<[1], [0], [0], [1], [0, 0, 1, 1], [], []>} : vector<48x8xf32>, vector<8x768xf32>, vector<48x768xf32> -> vector<48x768xf32>
    %c0_3 = arith.constant 0 : index
    %c0_4 = arith.constant 0 : index
    %3 = vector.load %arg3[%c0_3, %c0_4] : memref<48x768xf32, #tpu.memory_space<vmem>>, vector<48x768xf32>
    tpu.vector_store %arg3[%c0_3, %c0_4], %2 {strides = array<i32>} : memref<48x768xf32, #tpu.memory_space<vmem>>, vector<48x768xf32>,
    return
  }
  func.func @transform_0(%arg0: i32) -> (i32, i32) {
    %c0_i32 = arith.constant 0 : i32
    %c0_i32_0 = arith.constant 0 : i32
    %c0_i32_1 = arith.constant 0 : i32
    return %c0_i32, %c0_i32_0 : i32, i32
  }
  func.func @transform_1(%arg0: i32) -> (i32, i32) {
    %c0_i32 = arith.constant 0 : i32
    %c0_i32_0 = arith.constant 0 : i32
    %c0_i32_1 = arith.constant 0 : i32
    return %c0_i32, %c0_i32_0 : i32, i32
  }
  func.func @transform_2(%arg0: i32) -> (i32, i32) {
    %c0_i32 = arith.constant 0 : i32
    %c0_i32_0 = arith.constant 0 : i32
    %c0_i32_1 = arith.constant 0 : i32
    return %c0_i32, %c0_i32_0 : i32, i32
  }
}

module attributes {stable_mosaic.version = 11 : i64} {
  func.func @_memory_kernel(%arg0: i32, %arg1: memref<192x16xf32, #tpu.memory_space<vmem>>, %arg2: memref<16x16xf32, #tpu.memory_space<vmem>>, %arg3: memref<8x16xf32, #tpu.memory_space<vmem>>, %arg4: memref<192x16xf32, #tpu.memory_space<vmem>>, %arg5: memref<192x16xf32, #tpu.memory_space<vmem>>, %arg6: memref<192x8xf32, #tpu.memory_space<vmem>>) attributes {dimension_semantics = [#tpu.dimension_semantics<arbitrary>], iteration_bounds = array<i64: 1>, scalar_prefetch = 0 : i64, scratch_operands = 0 : i64, tpu.core_type = #tpu.core_type<tc>, window_params = [{pipeline_mode = #tpu.pipeline_mode<synchronous>, transform_indices = @transform_0, window_bounds = array<i64: 192, 16>}, {pipeline_mode = #tpu.pipeline_mode<synchronous>, transform_indices = @transform_1, window_bounds = array<i64: 16, 16>}, {pipeline_mode = #tpu.pipeline_mode<synchronous>, transform_indices = @transform_2, window_bounds = array<i64: 8, 16>}, {pipeline_mode = #tpu.pipeline_mode<synchronous>, transform_indices = @transform_3, window_bounds = array<i64: 192, 16>}, {pipeline_mode = #tpu.pipeline_mode<synchronous>, transform_indices = @transform_4, window_bounds = array<i64: 192, 16>}, {pipeline_mode = #tpu.pipeline_mode<synchronous>, transform_indices = @transform_5, window_bounds = array<i64: 192, 8>}]} {
    %c0 = arith.constant 0 : index
    %c0_0 = arith.constant 0 : index
    %0 = vector.load %arg1[%c0, %c0_0] : memref<192x16xf32, #tpu.memory_space<vmem>>, vector<192x16xf32>
    %c0_1 = arith.constant 0 : index
    %c0_2 = arith.constant 0 : index
    %1 = vector.load %arg2[%c0_1, %c0_2] : memref<16x16xf32, #tpu.memory_space<vmem>>, vector<16x16xf32>
    %cst = arith.constant dense<0.000000e+00> : vector<192x16xf32>
    %2 = tpu.matmul %0, %1, %cst {dimension_numbers = #tpu.dot_dimension_numbers<[1], [0], [0], [1], [0, 0, 1, 1], [], []>} : vector<192x16xf32>, vector<16x16xf32>, vector<192x16xf32> -> vector<192x16xf32>
    %c0_3 = arith.constant 0 : index
    %c0_4 = arith.constant 0 : index
    %3 = vector.load %arg3[%c0_3, %c0_4] : memref<8x16xf32, #tpu.memory_space<vmem>>, vector<8x16xf32>
    %cst_5 = arith.constant dense<0.000000e+00> : vector<192x8xf32>
    %4 = tpu.matmul %2, %3, %cst_5 {dimension_numbers = #tpu.dot_dimension_numbers<[1], [1], [0], [0], [0, 0, 1, 0], [], []>} : vector<192x16xf32>, vector<8x16xf32>, vector<192x8xf32> -> vector<192x8xf32>
    %cst_6 = arith.constant dense<0xFF800000> : vector<192xf32>
    %5 = vector.multi_reduction <maximumf>, %4, %cst_6 [1] : vector<192x8xf32> to vector<192xf32>
    %6 = vector.shape_cast %5 : vector<192xf32> to vector<192x1xf32>
    %7 = vector.broadcast %6 : vector<192x1xf32> to vector<192x8xf32>
    %8 = arith.subf %4, %7 : vector<192x8xf32>
    %9 = math.exp %8 : vector<192x8xf32>
    %cst_7 = arith.constant dense<0.000000e+00> : vector<192xf32>
    %10 = vector.multi_reduction <add>, %9, %cst_7 [1] : vector<192x8xf32> to vector<192xf32>
    %11 = vector.shape_cast %10 : vector<192xf32> to vector<192x1xf32>
    %12 = vector.broadcast %11 : vector<192x1xf32> to vector<192x8xf32>
    %13 = arith.divf %9, %12 : vector<192x8xf32>
    %c0_8 = arith.constant 0 : index
    %c0_9 = arith.constant 0 : index
    %14 = vector.load %arg3[%c0_8, %c0_9] : memref<8x16xf32, #tpu.memory_space<vmem>>, vector<8x16xf32>
    %cst_10 = arith.constant dense<0.000000e+00> : vector<192x16xf32>
    %15 = tpu.matmul %13, %14, %cst_10 {dimension_numbers = #tpu.dot_dimension_numbers<[1], [0], [0], [1], [0, 0, 1, 1], [], []>} : vector<192x8xf32>, vector<8x16xf32>, vector<192x16xf32> -> vector<192x16xf32>
    %c0_11 = arith.constant 0 : index
    %c0_12 = arith.constant 0 : index
    %16 = vector.load %arg4[%c0_11, %c0_12] : memref<192x16xf32, #tpu.memory_space<vmem>>, vector<192x16xf32>
    tpu.vector_store %arg4[%c0_11, %c0_12], %15 {strides = array<i32>} : memref<192x16xf32, #tpu.memory_space<vmem>>, vector<192x16xf32>,
    %c0_13 = arith.constant 0 : index
    %c0_14 = arith.constant 0 : index
    %17 = vector.load %arg5[%c0_13, %c0_14] : memref<192x16xf32, #tpu.memory_space<vmem>>, vector<192x16xf32>
    tpu.vector_store %arg5[%c0_13, %c0_14], %2 {strides = array<i32>} : memref<192x16xf32, #tpu.memory_space<vmem>>, vector<192x16xf32>,
    %c0_15 = arith.constant 0 : index
    %c0_16 = arith.constant 0 : index
    %18 = vector.load %arg6[%c0_15, %c0_16] : memref<192x8xf32, #tpu.memory_space<vmem>>, vector<192x8xf32>
    tpu.vector_store %arg6[%c0_15, %c0_16], %13 {strides = array<i32>} : memref<192x8xf32, #tpu.memory_space<vmem>>, vector<192x8xf32>,
    return
  }
  func.func @transform_0(%arg0: i32) -> (i32, i32) {
    %c0_i32 = arith.constant 0 : i32
    %c0_i32_0 = arith.constant 0 : i32
    %c0_i32_1 = arith.constant 0 : i32
    return %c0_i32, %c0_i32_0 : i32, i32
  }
  func.func @transform_1(%arg0: i32) -> (i32, i32) {
    %c0_i32 = arith.constant 0 : i32
    %c0_i32_0 = arith.constant 0 : i32
    %c0_i32_1 = arith.constant 0 : i32
    return %c0_i32, %c0_i32_0 : i32, i32
  }
  func.func @transform_2(%arg0: i32) -> (i32, i32) {
    %c0_i32 = arith.constant 0 : i32
    %c0_i32_0 = arith.constant 0 : i32
    %c0_i32_1 = arith.constant 0 : i32
    return %c0_i32, %c0_i32_0 : i32, i32
  }
  func.func @transform_3(%arg0: i32) -> (i32, i32) {
    %c0_i32 = arith.constant 0 : i32
    %c0_i32_0 = arith.constant 0 : i32
    %c0_i32_1 = arith.constant 0 : i32
    return %c0_i32, %c0_i32_0 : i32, i32
  }
  func.func @transform_4(%arg0: i32) -> (i32, i32) {
    %c0_i32 = arith.constant 0 : i32
    %c0_i32_0 = arith.constant 0 : i32
    %c0_i32_1 = arith.constant 0 : i32
    return %c0_i32, %c0_i32_0 : i32, i32
  }
  func.func @transform_5(%arg0: i32) -> (i32, i32) {
    %c0_i32 = arith.constant 0 : i32
    %c0_i32_0 = arith.constant 0 : i32
    %c0_i32_1 = arith.constant 0 : i32
    return %c0_i32, %c0_i32_0 : i32, i32
  }
}

module attributes {stable_mosaic.version = 11 : i64} {
  func.func @_mm_bias_kernel(%arg0: i32, %arg1: memref<192x192xf32, #tpu.memory_space<vmem>>, %arg2: memref<192x32xf32, #tpu.memory_space<vmem>>, %arg3: memref<1x32xf32, #tpu.memory_space<vmem>>, %arg4: memref<192x32xf32, #tpu.memory_space<vmem>>) attributes {dimension_semantics = [#tpu.dimension_semantics<arbitrary>], iteration_bounds = array<i64: 1>, scalar_prefetch = 0 : i64, scratch_operands = 0 : i64, tpu.core_type = #tpu.core_type<tc>, window_params = [{pipeline_mode = #tpu.pipeline_mode<synchronous>, transform_indices = @transform_0, window_bounds = array<i64: 192, 192>}, {pipeline_mode = #tpu.pipeline_mode<synchronous>, transform_indices = @transform_1, window_bounds = array<i64: 192, 32>}, {pipeline_mode = #tpu.pipeline_mode<synchronous>, transform_indices = @transform_2, window_bounds = array<i64: 1, 32>}, {pipeline_mode = #tpu.pipeline_mode<synchronous>, transform_indices = @transform_3, window_bounds = array<i64: 192, 32>}]} {
    %c0 = arith.constant 0 : index
    %c0_0 = arith.constant 0 : index
    %0 = vector.load %arg1[%c0, %c0_0] : memref<192x192xf32, #tpu.memory_space<vmem>>, vector<192x192xf32>
    %c0_1 = arith.constant 0 : index
    %c0_2 = arith.constant 0 : index
    %1 = vector.load %arg2[%c0_1, %c0_2] : memref<192x32xf32, #tpu.memory_space<vmem>>, vector<192x32xf32>
    %cst = arith.constant dense<0.000000e+00> : vector<192x32xf32>
    %2 = tpu.matmul %0, %1, %cst {dimension_numbers = #tpu.dot_dimension_numbers<[1], [0], [0], [1], [0, 0, 1, 1], [], []>} : vector<192x192xf32>, vector<192x32xf32>, vector<192x32xf32> -> vector<192x32xf32>
    %c0_3 = arith.constant 0 : index
    %c0_4 = arith.constant 0 : index
    %3 = vector.load %arg3[%c0_3, %c0_4] : memref<1x32xf32, #tpu.memory_space<vmem>>, vector<1x32xf32>
    %4 = vector.broadcast %3 : vector<1x32xf32> to vector<192x32xf32>
    %5 = arith.addf %2, %4 : vector<192x32xf32>
    %c0_5 = arith.constant 0 : index
    %c0_6 = arith.constant 0 : index
    %6 = vector.load %arg4[%c0_5, %c0_6] : memref<192x32xf32, #tpu.memory_space<vmem>>, vector<192x32xf32>
    tpu.vector_store %arg4[%c0_5, %c0_6], %5 {strides = array<i32>} : memref<192x32xf32, #tpu.memory_space<vmem>>, vector<192x32xf32>,
    return
  }
  func.func @transform_0(%arg0: i32) -> (i32, i32) {
    %c0_i32 = arith.constant 0 : i32
    %c0_i32_0 = arith.constant 0 : i32
    %c0_i32_1 = arith.constant 0 : i32
    return %c0_i32, %c0_i32_0 : i32, i32
  }
  func.func @transform_1(%arg0: i32) -> (i32, i32) {
    %c0_i32 = arith.constant 0 : i32
    %c0_i32_0 = arith.constant 0 : i32
    %c0_i32_1 = arith.constant 0 : i32
    return %c0_i32, %c0_i32_0 : i32, i32
  }
  func.func @transform_2(%arg0: i32) -> (i32, i32) {
    %c0_i32 = arith.constant 0 : i32
    %c0_i32_0 = arith.constant 0 : i32
    %c0_i32_1 = arith.constant 0 : i32
    return %c0_i32, %c0_i32_0 : i32, i32
  }
  func.func @transform_3(%arg0: i32) -> (i32, i32) {
    %c0_i32 = arith.constant 0 : i32
    %c0_i32_0 = arith.constant 0 : i32
    %c0_i32_1 = arith.constant 0 : i32
    return %c0_i32, %c0_i32_0 : i32, i32
  }
}

module attributes {stable_mosaic.version = 11 : i64} {
  func.func @_dft_amp_kernel(%arg0: i32, %arg1: memref<512x12xf32, #tpu.memory_space<vmem>>, %arg2: memref<12x7xf32, #tpu.memory_space<vmem>>, %arg3: memref<12x7xf32, #tpu.memory_space<vmem>>, %arg4: memref<512x7xf32, #tpu.memory_space<vmem>>) attributes {dimension_semantics = [#tpu.dimension_semantics<arbitrary>], iteration_bounds = array<i64: 1>, scalar_prefetch = 0 : i64, scratch_operands = 0 : i64, tpu.core_type = #tpu.core_type<tc>, window_params = [{pipeline_mode = #tpu.pipeline_mode<synchronous>, transform_indices = @transform_0, window_bounds = array<i64: 512, 12>}, {pipeline_mode = #tpu.pipeline_mode<synchronous>, transform_indices = @transform_1, window_bounds = array<i64: 12, 7>}, {pipeline_mode = #tpu.pipeline_mode<synchronous>, transform_indices = @transform_2, window_bounds = array<i64: 12, 7>}, {pipeline_mode = #tpu.pipeline_mode<synchronous>, transform_indices = @transform_3, window_bounds = array<i64: 512, 7>}]} {
    %c0 = arith.constant 0 : index
    %c0_0 = arith.constant 0 : index
    %0 = vector.load %arg1[%c0, %c0_0] : memref<512x12xf32, #tpu.memory_space<vmem>>, vector<512x12xf32>
    %c0_1 = arith.constant 0 : index
    %c0_2 = arith.constant 0 : index
    %1 = vector.load %arg2[%c0_1, %c0_2] : memref<12x7xf32, #tpu.memory_space<vmem>>, vector<12x7xf32>
    %cst = arith.constant dense<0.000000e+00> : vector<512x7xf32>
    %2 = tpu.matmul %0, %1, %cst {dimension_numbers = #tpu.dot_dimension_numbers<[1], [0], [0], [1], [0, 0, 1, 1], [], []>} : vector<512x12xf32>, vector<12x7xf32>, vector<512x7xf32> -> vector<512x7xf32>
    %c0_3 = arith.constant 0 : index
    %c0_4 = arith.constant 0 : index
    %3 = vector.load %arg3[%c0_3, %c0_4] : memref<12x7xf32, #tpu.memory_space<vmem>>, vector<12x7xf32>
    %cst_5 = arith.constant dense<0.000000e+00> : vector<512x7xf32>
    %4 = tpu.matmul %0, %3, %cst_5 {dimension_numbers = #tpu.dot_dimension_numbers<[1], [0], [0], [1], [0, 0, 1, 1], [], []>} : vector<512x12xf32>, vector<12x7xf32>, vector<512x7xf32> -> vector<512x7xf32>
    %5 = arith.mulf %2, %2 : vector<512x7xf32>
    %6 = arith.mulf %4, %4 : vector<512x7xf32>
    %7 = arith.addf %5, %6 : vector<512x7xf32>
    %8 = math.sqrt %7 : vector<512x7xf32>
    %c0_6 = arith.constant 0 : index
    %c0_7 = arith.constant 0 : index
    %9 = vector.load %arg4[%c0_6, %c0_7] : memref<512x7xf32, #tpu.memory_space<vmem>>, vector<512x7xf32>
    tpu.vector_store %arg4[%c0_6, %c0_7], %8 {strides = array<i32>} : memref<512x7xf32, #tpu.memory_space<vmem>>, vector<512x7xf32>,
    return
  }
  func.func @transform_0(%arg0: i32) -> (i32, i32) {
    %c0_i32 = arith.constant 0 : i32
    %c0_i32_0 = arith.constant 0 : i32
    %c0_i32_1 = arith.constant 0 : i32
    return %c0_i32, %c0_i32_0 : i32, i32
  }
  func.func @transform_1(%arg0: i32) -> (i32, i32) {
    %c0_i32 = arith.constant 0 : i32
    %c0_i32_0 = arith.constant 0 : i32
    %c0_i32_1 = arith.constant 0 : i32
    return %c0_i32, %c0_i32_0 : i32, i32
  }
  func.func @transform_2(%arg0: i32) -> (i32, i32) {
    %c0_i32 = arith.constant 0 : i32
    %c0_i32_0 = arith.constant 0 : i32
    %c0_i32_1 = arith.constant 0 : i32
    return %c0_i32, %c0_i32_0 : i32, i32
  }
  func.func @transform_3(%arg0: i32) -> (i32, i32) {
    %c0_i32 = arith.constant 0 : i32
    %c0_i32_0 = arith.constant 0 : i32
    %c0_i32_1 = arith.constant 0 : i32
    return %c0_i32, %c0_i32_0 : i32, i32
  }
}

module attributes {stable_mosaic.version = 11 : i64} {
  func.func @_times_ln_kernel(%arg0: i32, %arg1: memref<192x32xf32, #tpu.memory_space<vmem>>, %arg2: memref<32x32xf32, #tpu.memory_space<vmem>>, %arg3: memref<1x32xf32, #tpu.memory_space<vmem>>, %arg4: memref<192x1xf32, #tpu.memory_space<vmem>>, %arg5: memref<1x32xf32, #tpu.memory_space<vmem>>, %arg6: memref<1x32xf32, #tpu.memory_space<vmem>>, %arg7: memref<192x32xf32, #tpu.memory_space<vmem>>) attributes {dimension_semantics = [#tpu.dimension_semantics<arbitrary>], iteration_bounds = array<i64: 1>, scalar_prefetch = 0 : i64, scratch_operands = 0 : i64, tpu.core_type = #tpu.core_type<tc>, window_params = [{pipeline_mode = #tpu.pipeline_mode<synchronous>, transform_indices = @transform_0, window_bounds = array<i64: 192, 32>}, {pipeline_mode = #tpu.pipeline_mode<synchronous>, transform_indices = @transform_1, window_bounds = array<i64: 32, 32>}, {pipeline_mode = #tpu.pipeline_mode<synchronous>, transform_indices = @transform_2, window_bounds = array<i64: 1, 32>}, {pipeline_mode = #tpu.pipeline_mode<synchronous>, transform_indices = @transform_3, window_bounds = array<i64: 192, 1>}, {pipeline_mode = #tpu.pipeline_mode<synchronous>, transform_indices = @transform_4, window_bounds = array<i64: 1, 32>}, {pipeline_mode = #tpu.pipeline_mode<synchronous>, transform_indices = @transform_5, window_bounds = array<i64: 1, 32>}, {pipeline_mode = #tpu.pipeline_mode<synchronous>, transform_indices = @transform_6, window_bounds = array<i64: 192, 32>}]} {
    %c0 = arith.constant 0 : index
    %c0_0 = arith.constant 0 : index
    %0 = vector.load %arg1[%c0, %c0_0] : memref<192x32xf32, #tpu.memory_space<vmem>>, vector<192x32xf32>
    %c0_1 = arith.constant 0 : index
    %c0_2 = arith.constant 0 : index
    %1 = vector.load %arg2[%c0_1, %c0_2] : memref<32x32xf32, #tpu.memory_space<vmem>>, vector<32x32xf32>
    %cst = arith.constant dense<0.000000e+00> : vector<192x32xf32>
    %2 = tpu.matmul %0, %1, %cst {dimension_numbers = #tpu.dot_dimension_numbers<[1], [0], [0], [1], [0, 0, 1, 1], [], []>} : vector<192x32xf32>, vector<32x32xf32>, vector<192x32xf32> -> vector<192x32xf32>
    %c0_3 = arith.constant 0 : index
    %c0_4 = arith.constant 0 : index
    %3 = vector.load %arg3[%c0_3, %c0_4] : memref<1x32xf32, #tpu.memory_space<vmem>>, vector<1x32xf32>
    %4 = vector.broadcast %3 : vector<1x32xf32> to vector<192x32xf32>
    %5 = arith.addf %2, %4 : vector<192x32xf32>
    %cst_5 = arith.constant 0.000000e+00 : f32
    %6 = vector.broadcast %cst_5 : f32 to vector<192x32xf32>
    %7 = arith.maximumf %5, %6 : vector<192x32xf32>
    %c0_6 = arith.constant 0 : index
    %c0_7 = arith.constant 0 : index
    %8 = vector.load %arg4[%c0_6, %c0_7] : memref<192x1xf32, #tpu.memory_space<vmem>>, vector<192x1xf32>
    %9 = vector.broadcast %8 : vector<192x1xf32> to vector<192x32xf32>
    %10 = arith.mulf %7, %9 : vector<192x32xf32>
    %11 = arith.addf %10, %0 : vector<192x32xf32>
    %cst_8 = arith.constant dense<0.000000e+00> : vector<192xf32>
    %12 = vector.multi_reduction <add>, %11, %cst_8 [1] : vector<192x32xf32> to vector<192xf32>
    %13 = vector.shape_cast %12 : vector<192xf32> to vector<192x1xf32>
    %cst_9 = arith.constant 3.200000e+01 : f32
    %14 = vector.broadcast %cst_9 : f32 to vector<192x1xf32>
    %15 = arith.divf %13, %14 : vector<192x1xf32>
    %16 = vector.broadcast %15 : vector<192x1xf32> to vector<192x32xf32>
    %17 = arith.subf %11, %16 : vector<192x32xf32>
    %18 = arith.mulf %17, %17 : vector<192x32xf32>
    %cst_10 = arith.constant dense<0.000000e+00> : vector<192xf32>
    %19 = vector.multi_reduction <add>, %18, %cst_10 [1] : vector<192x32xf32> to vector<192xf32>
    %20 = vector.shape_cast %19 : vector<192xf32> to vector<192x1xf32>
    %cst_11 = arith.constant 3.200000e+01 : f32
    %21 = vector.broadcast %cst_11 : f32 to vector<192x1xf32>
    %22 = arith.divf %20, %21 : vector<192x1xf32>
    %cst_12 = arith.constant 9.99999974E-6 : f32
    %23 = vector.broadcast %cst_12 : f32 to vector<192x1xf32>
    %24 = arith.addf %22, %23 : vector<192x1xf32>
    %25 = math.rsqrt %24 : vector<192x1xf32>
    %26 = vector.broadcast %15 : vector<192x1xf32> to vector<192x32xf32>
    %27 = arith.subf %11, %26 : vector<192x32xf32>
    %28 = vector.broadcast %25 : vector<192x1xf32> to vector<192x32xf32>
    %29 = arith.mulf %27, %28 : vector<192x32xf32>
    %c0_13 = arith.constant 0 : index
    %c0_14 = arith.constant 0 : index
    %30 = vector.load %arg5[%c0_13, %c0_14] : memref<1x32xf32, #tpu.memory_space<vmem>>, vector<1x32xf32>
    %31 = vector.broadcast %30 : vector<1x32xf32> to vector<192x32xf32>
    %32 = arith.mulf %29, %31 : vector<192x32xf32>
    %c0_15 = arith.constant 0 : index
    %c0_16 = arith.constant 0 : index
    %33 = vector.load %arg6[%c0_15, %c0_16] : memref<1x32xf32, #tpu.memory_space<vmem>>, vector<1x32xf32>
    %34 = vector.broadcast %33 : vector<1x32xf32> to vector<192x32xf32>
    %35 = arith.addf %32, %34 : vector<192x32xf32>
    %c0_17 = arith.constant 0 : index
    %c0_18 = arith.constant 0 : index
    %36 = vector.load %arg7[%c0_17, %c0_18] : memref<192x32xf32, #tpu.memory_space<vmem>>, vector<192x32xf32>
    tpu.vector_store %arg7[%c0_17, %c0_18], %35 {strides = array<i32>} : memref<192x32xf32, #tpu.memory_space<vmem>>, vector<192x32xf32>,
    return
  }
  func.func @transform_0(%arg0: i32) -> (i32, i32) {
    %c0_i32 = arith.constant 0 : i32
    %c0_i32_0 = arith.constant 0 : i32
    %c0_i32_1 = arith.constant 0 : i32
    return %c0_i32, %c0_i32_0 : i32, i32
  }
  func.func @transform_1(%arg0: i32) -> (i32, i32) {
    %c0_i32 = arith.constant 0 : i32
    %c0_i32_0 = arith.constant 0 : i32
    %c0_i32_1 = arith.constant 0 : i32
    return %c0_i32, %c0_i32_0 : i32, i32
  }
  func.func @transform_2(%arg0: i32) -> (i32, i32) {
    %c0_i32 = arith.constant 0 : i32
    %c0_i32_0 = arith.constant 0 : i32
    %c0_i32_1 = arith.constant 0 : i32
    return %c0_i32, %c0_i32_0 : i32, i32
  }
  func.func @transform_3(%arg0: i32) -> (i32, i32) {
    %c0_i32 = arith.constant 0 : i32
    %c0_i32_0 = arith.constant 0 : i32
    %c0_i32_1 = arith.constant 0 : i32
    return %c0_i32, %c0_i32_0 : i32, i32
  }
  func.func @transform_4(%arg0: i32) -> (i32, i32) {
    %c0_i32 = arith.constant 0 : i32
    %c0_i32_0 = arith.constant 0 : i32
    %c0_i32_1 = arith.constant 0 : i32
    return %c0_i32, %c0_i32_0 : i32, i32
  }
  func.func @transform_5(%arg0: i32) -> (i32, i32) {
    %c0_i32 = arith.constant 0 : i32
    %c0_i32_0 = arith.constant 0 : i32
    %c0_i32_1 = arith.constant 0 : i32
    return %c0_i32, %c0_i32_0 : i32, i32
  }
  func.func @transform_6(%arg0: i32) -> (i32, i32) {
    %c0_i32 = arith.constant 0 : i32
    %c0_i32_0 = arith.constant 0 : i32
    %c0_i32_1 = arith.constant 0 : i32
    return %c0_i32, %c0_i32_0 : i32, i32
  }
}

module attributes {stable_mosaic.version = 11 : i64} {
  func.func @_residual_proj_kernel(%arg0: i32, %arg1: memref<192x32xf32, #tpu.memory_space<vmem>>, %arg2: memref<192x32xf32, #tpu.memory_space<vmem>>, %arg3: memref<192x1xf32, #tpu.memory_space<vmem>>, %arg4: memref<32x1xf32, #tpu.memory_space<vmem>>, %arg5: memref<1x1xf32, #tpu.memory_space<vmem>>, %arg6: memref<192x1xf32, #tpu.memory_space<vmem>>) attributes {dimension_semantics = [#tpu.dimension_semantics<arbitrary>], iteration_bounds = array<i64: 1>, scalar_prefetch = 0 : i64, scratch_operands = 0 : i64, tpu.core_type = #tpu.core_type<tc>, window_params = [{pipeline_mode = #tpu.pipeline_mode<synchronous>, transform_indices = @transform_0, window_bounds = array<i64: 192, 32>}, {pipeline_mode = #tpu.pipeline_mode<synchronous>, transform_indices = @transform_1, window_bounds = array<i64: 192, 32>}, {pipeline_mode = #tpu.pipeline_mode<synchronous>, transform_indices = @transform_2, window_bounds = array<i64: 192, 1>}, {pipeline_mode = #tpu.pipeline_mode<synchronous>, transform_indices = @transform_3, window_bounds = array<i64: 32, 1>}, {pipeline_mode = #tpu.pipeline_mode<synchronous>, transform_indices = @transform_4, window_bounds = array<i64: 1, 1>}, {pipeline_mode = #tpu.pipeline_mode<synchronous>, transform_indices = @transform_5, window_bounds = array<i64: 192, 1>}]} {
    %c0 = arith.constant 0 : index
    %c0_0 = arith.constant 0 : index
    %0 = vector.load %arg1[%c0, %c0_0] : memref<192x32xf32, #tpu.memory_space<vmem>>, vector<192x32xf32>
    %c0_1 = arith.constant 0 : index
    %c0_2 = arith.constant 0 : index
    %1 = vector.load %arg2[%c0_1, %c0_2] : memref<192x32xf32, #tpu.memory_space<vmem>>, vector<192x32xf32>
    %2 = arith.addf %0, %1 : vector<192x32xf32>
    %c0_3 = arith.constant 0 : index
    %c0_4 = arith.constant 0 : index
    %3 = vector.load %arg3[%c0_3, %c0_4] : memref<192x1xf32, #tpu.memory_space<vmem>>, vector<192x1xf32>
    %4 = vector.broadcast %3 : vector<192x1xf32> to vector<192x32xf32>
    %5 = arith.addf %2, %4 : vector<192x32xf32>
    %c0_5 = arith.constant 0 : index
    %c0_6 = arith.constant 0 : index
    %6 = vector.load %arg4[%c0_5, %c0_6] : memref<32x1xf32, #tpu.memory_space<vmem>>, vector<32x1xf32>
    %cst = arith.constant dense<0.000000e+00> : vector<192x1xf32>
    %7 = tpu.matmul %5, %6, %cst {dimension_numbers = #tpu.dot_dimension_numbers<[1], [0], [0], [1], [0, 0, 1, 1], [], []>} : vector<192x32xf32>, vector<32x1xf32>, vector<192x1xf32> -> vector<192x1xf32>
    %c0_7 = arith.constant 0 : index
    %c0_8 = arith.constant 0 : index
    %8 = vector.load %arg5[%c0_7, %c0_8] : memref<1x1xf32, #tpu.memory_space<vmem>>, vector<1x1xf32>
    %9 = vector.broadcast %8 : vector<1x1xf32> to vector<192x1xf32>
    %10 = arith.addf %7, %9 : vector<192x1xf32>
    %c0_9 = arith.constant 0 : index
    %c0_10 = arith.constant 0 : index
    %11 = vector.load %arg6[%c0_9, %c0_10] : memref<192x1xf32, #tpu.memory_space<vmem>>, vector<192x1xf32>
    tpu.vector_store %arg6[%c0_9, %c0_10], %10 {strides = array<i32>} : memref<192x1xf32, #tpu.memory_space<vmem>>, vector<192x1xf32>,
    return
  }
  func.func @transform_0(%arg0: i32) -> (i32, i32) {
    %c0_i32 = arith.constant 0 : i32
    %c0_i32_0 = arith.constant 0 : i32
    %c0_i32_1 = arith.constant 0 : i32
    return %c0_i32, %c0_i32_0 : i32, i32
  }
  func.func @transform_1(%arg0: i32) -> (i32, i32) {
    %c0_i32 = arith.constant 0 : i32
    %c0_i32_0 = arith.constant 0 : i32
    %c0_i32_1 = arith.constant 0 : i32
    return %c0_i32, %c0_i32_0 : i32, i32
  }
  func.func @transform_2(%arg0: i32) -> (i32, i32) {
    %c0_i32 = arith.constant 0 : i32
    %c0_i32_0 = arith.constant 0 : i32
    %c0_i32_1 = arith.constant 0 : i32
    return %c0_i32, %c0_i32_0 : i32, i32
  }
  func.func @transform_3(%arg0: i32) -> (i32, i32) {
    %c0_i32 = arith.constant 0 : i32
    %c0_i32_0 = arith.constant 0 : i32
    %c0_i32_1 = arith.constant 0 : i32
    return %c0_i32, %c0_i32_0 : i32, i32
  }
  func.func @transform_4(%arg0: i32) -> (i32, i32) {
    %c0_i32 = arith.constant 0 : i32
    %c0_i32_0 = arith.constant 0 : i32
    %c0_i32_1 = arith.constant 0 : i32
    return %c0_i32, %c0_i32_0 : i32, i32
  }
  func.func @transform_5(%arg0: i32) -> (i32, i32) {
    %c0_i32 = arith.constant 0 : i32
    %c0_i32_0 = arith.constant 0 : i32
    %c0_i32_1 = arith.constant 0 : i32
    return %c0_i32, %c0_i32_0 : i32, i32
  }
}

</mosaic_0001>

<llo_original>
// kernel: forward.14
$region0: #{forward.14}
  #allocation0 [shape = 'u32[]', space=smem, size = 0x4, offset = 0x4, fixed_abs, tag = 'smem constant byte address 0x4 - core index']
  #allocation1 [shape = 'u32[144,128]{1,0:T(1,128)}', space=vmem, size = 0x12000, scoped, tag = 'internal scratch']
  %s0 = inlined_call_operand.vmem [shape: f32[48,8], index: 0, kind: input, shape index: {}]
  %s1 = inlined_call_operand.vmem [shape: f32[8,384], index: 1, kind: input, shape index: {}]
  %s2 = inlined_call_operand.vmem [shape: f32[48,384], index: 2, kind: output, shape index: {}]
  %s3 = sld [smem:[#allocation0]]
  $region18: #{forward.14} parent=0
    _
  %s5 = ssub.s32 1, %s3
  %s6 = scalar_select 0, %s5, %s3
  // Predicated region
  $region2: #{forward.14} parent=0 // pred_check
    _
  $region3: #{forward.14} parent=0 // pred_check_branch
    %8 = sbr.rel (0) target = $region5
  $region4: #{forward.14} parent=0 // pred_region
    _
  $region5: #{forward.14} parent=0 // pred_fallthru
    _
  // Predicated region
  $region6: #{forward.14} parent=0 // pred_check
    _
  $region7: #{forward.14} parent=0 // pred_check_branch
    %10 = sbr.rel (0) target = $region9
  $region8: #{forward.14} parent=0 // pred_region
    _
  $region9: #{forward.14} parent=0 // pred_fallthru
    _
  %v11 = vld [vmem:[%s0] sm:$0xff]
  %v12 = vld [vmem:[%s0 + $0x8] sm:$0xff]
  %v13 = vld [vmem:[%s0 + $0x10] sm:$0xff]
  %v14 = vld [vmem:[%s0 + $0x18] sm:$0xff]
  %v15 = vld [vmem:[%s0 + $0x20] sm:$0xff]
  %v16 = vld [vmem:[%s0 + $0x28] sm:$0xff]
  %v17 = vld [vmem:[%s1] sm:$0xff]
  %v18 = vld [vmem:[%s1 + $0x8] sm:$0xff]
  %v19 = vld [vmem:[%s1 + $0x10] sm:$0xff]
  %vm20 = vcmask 64512
  %v22 = vsel %vm20, %v11, 0
  %v25 = vsel %vm20, %v12, 0
  %v28 = vsel %vm20, %v13, 0
  %v31 = vsel %vm20, %v14, 0
  %v34 = vsel %vm20, %v15, 0
  %v37 = vsel %vm20, %v16, 0
  %39 = vmatprep.subr.mxu0 %v18
  %40 = vmatpush1.msra.mxu0 %v17
  %41 = vmatprep.subr.mxu0 0.0
  %42 = vmatpush1.msra.mxu0 0.0
  %43 = vmatprep.subr.mxu0 0.0
  %44 = vmatpush1.msra.mxu0 0.0
  %45 = vmatprep.subr.mxu0 0.0
  %46 = vmatpush1.msra.mxu0 0.0
  %47 = vmatprep.subr.mxu0 0.0
  %48 = vmatpush1.msra.mxu0 0.0
  %49 = vmatprep.subr.mxu0 0.0
  %50 = vmatpush1.msra.mxu0 0.0
  %51 = vmatprep.subr.mxu0 0.0
  %52 = vmatpush1.msra.mxu0 0.0
  %53 = vmatprep.subr.mxu0 0.0
  %54 = vmatpush1.msra.mxu0 0.0
  %55 = vmatprep.subr.mxu0 0.0
  %56 = vmatpush1.msra.mxu0 0.0
  %57 = vmatprep.subr.mxu0 0.0
  %58 = vmatpush1.msra.mxu0 0.0
  %59 = vmatprep.subr.mxu0 0.0
  %60 = vmatpush1.msra.mxu0 0.0
  %61 = vmatprep.subr.mxu0 0.0
  %62 = vmatpush1.msra.mxu0 0.0
  %63 = vmatprep.subr.mxu0 0.0
  %64 = vmatpush1.msra.mxu0 0.0
  %65 = vmatprep.subr.mxu0 0.0
  %66 = vmatpush1.msra.mxu0 0.0
  %67 = vmatprep.subr.mxu0 0.0
  %68 = vmatpush1.msra.mxu0 0.0
  %69 = vmatprep.subr.mxu0 0.0
  %70 = vmatpush1.msra.mxu0 0.0
  %71 = vmatprep.subr.mxu0 0.0
  %72 = vmatpush1.msra.mxu0 0.0
  %73 = vmatprep.subr.mxu0 0.0
  %74 = vmatpush1.msra.mxu0 0.0
  %75 = vmatprep.subr.mxu0 0.0
  %76 = vmatpush1.msra.mxu0 0.0
  %77 = vmatprep.subr.mxu0 0.0
  %78 = vmatpush1.msra.mxu0 0.0
  %79 = vmatprep.subr.mxu0 0.0
  %80 = vmatpush1.msra.mxu0 0.0
  %81 = vmatprep.subr.mxu0 0.0
  %82 = vmatpush1.msra.mxu0 0.0
  %83 = vmatprep.subr.mxu0 0.0
  %84 = vmatpush1.msra.mxu0 0.0
  %85 = vmatprep.subr.mxu0 0.0
  %86 = vmatpush1.msra.mxu0 0.0
  %87 = vmatprep.subr.mxu0 0.0
  %88 = vmatpush1.msra.mxu0 0.0
  %89 = vmatprep.subr.mxu0 0.0
  %90 = vmatpush1.msra.mxu0 0.0
  %91 = vmatprep.subr.mxu0 0.0
  %92 = vmatpush1.msra.mxu0 0.0
  %93 = vmatprep.subr.mxu0 0.0
  %94 = vmatpush1.msra.mxu0 0.0
  %95 = vmatprep.subr.mxu0 0.0
  %96 = vmatpush1.msra.mxu0 0.0
  %97 = vmatprep.subr.mxu0 0.0
  %98 = vmatpush1.msra.mxu0 0.0
  %99 = vmatprep.subr.mxu0 0.0
  %100 = vmatpush1.msra.mxu0 0.0
  %101 = vmatprep.subr.mxu0 0.0
  %102 = vmatpush1.msra.mxu0 0.0
  %103 = vmatprep.mubr.f32.mxu0 0.0
  %104 = vmatmul.mubr.f32.gmra.mrb[0].mxu0 %v22
  %v105 = vpop.f32.mrb[0].mxu0
  %v106 = vadd.f32 0.0, %v105
  %v107 = vpop.f32.mrb[0].mxu0
  %v108 = vadd.f32 0.0, %v107
  %109 = vmatprep.mubr.f32.mxu0 0.0
  %110 = vmatmul.mubr.f32.gmra.mrb[0].mxu0 %v25
  %v111 = vpop.f32.mrb[0].mxu0
  %v112 = vadd.f32 0.0, %v111
  %v113 = vpop.f32.mrb[0].mxu0
  %v114 = vadd.f32 0.0, %v113
  %115 = vmatprep.mubr.f32.mxu0 0.0
  %116 = vmatmul.mubr.f32.gmra.mrb[0].mxu0 %v28
  %v117 = vpop.f32.mrb[0].mxu0
  %v118 = vadd.f32 0.0, %v117
  %v119 = vpop.f32.mrb[0].mxu0
  %v120 = vadd.f32 0.0, %v119
  %121 = vmatprep.mubr.f32.mxu0 0.0
  %122 = vmatmul.mubr.f32.gmra.mrb[0].mxu0 %v31
  %v123 = vpop.f32.mrb[0].mxu0
  %v124 = vadd.f32 0.0, %v123
  %v125 = vpop.f32.mrb[0].mxu0
  %v126 = vadd.f32 0.0, %v125
  %127 = vmatprep.mubr.f32.mxu0 0.0
  %128 = vmatmul.mubr.f32.gmra.mrb[0].mxu0 %v34
  %v129 = vpop.f32.mrb[0].mxu0
  %v130 = vadd.f32 0.0, %v129
  %v131 = vpop.f32.mrb[0].mxu0
  %v132 = vadd.f32 0.0, %v131
  %133 = vmatprep.mubr.f32.mxu0 0.0
  %134 = vmatmul.mubr.f32.gmra.mrb[0].mxu0 %v37
  %v135 = vpop.f32.mrb[0].mxu0
  %v136 = vadd.f32 0.0, %v135
  %v137 = vpop.f32.mrb[0].mxu0
  %v138 = vadd.f32 0.0, %v137
  %139 = vdwg.mxu0
  %140 = vmatprep.subr.mxu0 0.0
  %141 = vmatpush1.msra.mxu0 %v19
  %142 = vmatprep.subr.mxu0 0.0
  %143 = vmatpush1.msra.mxu0 0.0
  %144 = vmatprep.subr.mxu0 0.0
  %145 = vmatpush1.msra.mxu0 0.0
  %146 = vmatprep.subr.mxu0 0.0
  %147 = vmatpush1.msra.mxu0 0.0
  %148 = vmatprep.subr.mxu0 0.0
  %149 = vmatpush1.msra.mxu0 0.0
  %150 = vmatprep.subr.mxu0 0.0
  %151 = vmatpush1.msra.mxu0 0.0
  %152 = vmatprep.subr.mxu0 0.0
  %153 = vmatpush1.msra.mxu0 0.0
  %154 = vmatprep.subr.mxu0 0.0
  %155 = vmatpush1.msra.mxu0 0.0
  %156 = vmatprep.subr.mxu0 0.0
  %157 = vmatpush1.msra.mxu0 0.0
  %158 = vmatprep.subr.mxu0 0.0
  %159 = vmatpush1.msra.mxu0 0.0
  %160 = vmatprep.subr.mxu0 0.0
  %161 = vmatpush1.msra.mxu0 0.0
  %162 = vmatprep.subr.mxu0 0.0
  %163 = vmatpush1.msra.mxu0 0.0
  %164 = vmatprep.subr.mxu0 0.0
  %165 = vmatpush1.msra.mxu0 0.0
  %166 = vmatprep.subr.mxu0 0.0
  %167 = vmatpush1.msra.mxu0 0.0
  %168 = vmatprep.subr.mxu0 0.0
  %169 = vmatpush1.msra.mxu0 0.0
  %170 = vmatprep.subr.mxu0 0.0
  %171 = vmatpush1.msra.mxu0 0.0
  %172 = vmatprep.subr.mxu0 0.0
  %173 = vmatpush1.msra.mxu0 0.0
  %174 = vmatprep.subr.mxu0 0.0
  %175 = vmatpush1.msra.mxu0 0.0
  %176 = vmatprep.subr.mxu0 0.0
  %177 = vmatpush1.msra.mxu0 0.0
  %178 = vmatprep.subr.mxu0 0.0
  %179 = vmatpush1.msra.mxu0 0.0
  %180 = vmatprep.subr.mxu0 0.0
  %181 = vmatpush1.msra.mxu0 0.0
  %182 = vmatprep.subr.mxu0 0.0
  %183 = vmatpush1.msra.mxu0 0.0
  %184 = vmatprep.subr.mxu0 0.0
  %185 = vmatpush1.msra.mxu0 0.0
  %186 = vmatprep.subr.mxu0 0.0
  %187 = vmatpush1.msra.mxu0 0.0
  %188 = vmatprep.subr.mxu0 0.0
  %189 = vmatpush1.msra.mxu0 0.0
  %190 = vmatprep.subr.mxu0 0.0
  %191 = vmatpush1.msra.mxu0 0.0
  %192 = vmatprep.subr.mxu0 0.0
  %193 = vmatpush1.msra.mxu0 0.0
  %194 = vmatprep.subr.mxu0 0.0
  %195 = vmatpush1.msra.mxu0 0.0
  %196 = vmatprep.subr.mxu0 0.0
  %197 = vmatpush1.msra.mxu0 0.0
  %198 = vmatprep.subr.mxu0 0.0
  %199 = vmatpush1.msra.mxu0 0.0
  %200 = vmatprep.subr.mxu0 0.0
  %201 = vmatpush1.msra.mxu0 0.0
  %202 = vmatprep.subr.mxu0 0.0
  %203 = vmatpush1.msra.mxu0 0.0
  %204 = vmatprep.mubr.f32.mxu0 0.0
  %205 = vmatmul.mubr.f32.gmra.mrb[0].mxu0 %v22
  %v206 = vpop.f32.mrb[0].mxu0
  %v207 = vadd.f32 0.0, %v206
  %v208 = vpop.f32.mrb[0].mxu0
  %209 = vmatprep.mubr.f32.mxu0 0.0
  %210 = vmatmul.mubr.f32.gmra.mrb[0].mxu0 %v25
  %v211 = vpop.f32.mrb[0].mxu0
  %v212 = vadd.f32 0.0, %v211
  %v213 = vpop.f32.mrb[0].mxu0
  %214 = vmatprep.mubr.f32.mxu0 0.0
  %215 = vmatmul.mubr.f32.gmra.mrb[0].mxu0 %v28
  %v216 = vpop.f32.mrb[0].mxu0
  %v217 = vadd.f32 0.0, %v216
  %v218 = vpop.f32.mrb[0].mxu0
  %219 = vmatprep.mubr.f32.mxu0 0.0
  %220 = vmatmul.mubr.f32.gmra.mrb[0].mxu0 %v31
  %v221 = vpop.f32.mrb[0].mxu0
  %v222 = vadd.f32 0.0, %v221
  %v223 = vpop.f32.mrb[0].mxu0
  %224 = vmatprep.mubr.f32.mxu0 0.0
  %225 = vmatmul.mubr.f32.gmra.mrb[0].mxu0 %v34
  %v226 = vpop.f32.mrb[0].mxu0
  %v227 = vadd.f32 0.0, %v226
  %v228 = vpop.f32.mrb[0].mxu0
  %229 = vmatprep.mubr.f32.mxu0 0.0
  %230 = vmatmul.mubr.f32.gmra.mrb[0].mxu0 %v37
  %v231 = vpop.f32.mrb[0].mxu0
  %v232 = vadd.f32 0.0, %v231
  %v233 = vpop.f32.mrb[0].mxu0
  %234 = vdwg.mxu0
  %235 = vst [vmem:[%s2] sm:$0xff] %v106
  %236 = vst [vmem:[%s2 + $0x8] sm:$0xff] %v108
  %237 = vst [vmem:[%s2 + $0x10] sm:$0xff] %v207
  %238 = vst [vmem:[%s2 + $0x18] sm:$0xff] %v112
  %239 = vst [vmem:[%s2 + $0x20] sm:$0xff] %v114
  %240 = vst [vmem:[%s2 + $0x28] sm:$0xff] %v212
  %241 = vst [vmem:[%s2 + $0x30] sm:$0xff] %v118
  %242 = vst [vmem:[%s2 + $0x38] sm:$0xff] %v120
  %243 = vst [vmem:[%s2 + $0x40] sm:$0xff] %v217
  %244 = vst [vmem:[%s2 + $0x48] sm:$0xff] %v124
  %245 = vst [vmem:[%s2 + $0x50] sm:$0xff] %v126
  %246 = vst [vmem:[%s2 + $0x58] sm:$0xff] %v222
  %247 = vst [vmem:[%s2 + $0x60] sm:$0xff] %v130
  %248 = vst [vmem:[%s2 + $0x68] sm:$0xff] %v132
  %249 = vst [vmem:[%s2 + $0x70] sm:$0xff] %v227
  %250 = vst [vmem:[%s2 + $0x78] sm:$0xff] %v136
  %251 = vst [vmem:[%s2 + $0x80] sm:$0xff] %v138
  %252 = vst [vmem:[%s2 + $0x88] sm:$0xff] %v232
  // Predicated region
  $region10: #{forward.14} parent=0 // pred_check
    _
  $region11: #{forward.14} parent=0 // pred_check_branch
    %254 = sbr.rel (0) target = $region13
  $region12: #{forward.14} parent=0 // pred_region
    _
  $region13: #{forward.14} parent=0 // pred_fallthru
    _
  // Predicated region
  $region14: #{forward.14} parent=0 // pred_check
    _
  $region15: #{forward.14} parent=0 // pred_check_branch
    %256 = sbr.rel (0) target = $region17
  $region16: #{forward.14} parent=0 // pred_region
    _
  $region17: #{forward.14} parent=0 // pred_fallthru
    _

// kernel: forward.12
$region0: #{forward.12}
  #allocation0 [shape = 'u32[]', space=smem, size = 0x4, offset = 0x4, fixed_abs, tag = 'smem constant byte address 0x4 - core index']
  #allocation1 [shape = 'u32[144,128]{1,0:T(1,128)}', space=vmem, size = 0x12000, scoped, tag = 'internal scratch']
  %s0 = inlined_call_operand.vmem [shape: f32[8,8], index: 0, kind: input, shape index: {}]
  %s1 = inlined_call_operand.vmem [shape: f32[8,8], index: 1, kind: input, shape index: {}]
  %s2 = inlined_call_operand.vmem [shape: f32[8,16], index: 2, kind: input, shape index: {}]
  %s3 = inlined_call_operand.vmem [shape: f32[8,8], index: 3, kind: input, shape index: {}]
  %s4 = inlined_call_operand.vmem [shape: f32[48,8], index: 4, kind: output, shape index: {}]
  %s5 = sld [smem:[#allocation0]]
  $region26: #{forward.12} parent=0
    _
  %s7 = ssub.s32 1, %s5
  %s8 = scalar_select 0, %s7, %s5
  // Predicated region
  $region2: #{forward.12} parent=0 // pred_check
    _
  $region3: #{forward.12} parent=0 // pred_check_branch
    %10 = sbr.rel (0) target = $region5
  $region4: #{forward.12} parent=0 // pred_region
    _
  $region5: #{forward.12} parent=0 // pred_fallthru
    _
  // Predicated region
  $region6: #{forward.12} parent=0 // pred_check
    _
  $region7: #{forward.12} parent=0 // pred_check_branch
    %12 = sbr.rel (0) target = $region9
  $region8: #{forward.12} parent=0 // pred_region
    _
  $region9: #{forward.12} parent=0 // pred_fallthru
    _
  // Predicated region
  $region10: #{forward.12} parent=0 // pred_check
    _
  $region11: #{forward.12} parent=0 // pred_check_branch
    %14 = sbr.rel (0) target = $region13
  $region12: #{forward.12} parent=0 // pred_region
    _
  $region13: #{forward.12} parent=0 // pred_fallthru
    _
  // Predicated region
  $region14: #{forward.12} parent=0 // pred_check
    _
  $region15: #{forward.12} parent=0 // pred_check_branch
    %16 = sbr.rel (0) target = $region17
  $region16: #{forward.12} parent=0 // pred_region
    _
  $region17: #{forward.12} parent=0 // pred_fallthru
    _
  %v17 = vld [vmem:[%s0] sm:$0xff]
  %v18 = vld [vmem:[%s2] sm:$0xff]
  %vm19 = vcmask 64512
  %v21 = vsel %vm19, %v17, 0
  %23 = vmatprep.subr.mxu0 0.0
  %24 = vmatpush1.msra.mxu0 %v18
  %25 = vmatprep.subr.mxu0 0.0
  %26 = vmatpush1.msra.mxu0 0.0
  %27 = vmatprep.subr.mxu0 0.0
  %28 = vmatpush1.msra.mxu0 0.0
  %29 = vmatprep.subr.mxu0 0.0
  %30 = vmatpush1.msra.mxu0 0.0
  %31 = vmatprep.subr.mxu0 0.0
  %32 = vmatpush1.msra.mxu0 0.0
  %33 = vmatprep.subr.mxu0 0.0
  %34 = vmatpush1.msra.mxu0 0.0
  %35 = vmatprep.subr.mxu0 0.0
  %36 = vmatpush1.msra.mxu0 0.0
  %37 = vmatprep.subr.mxu0 0.0
  %38 = vmatpush1.msra.mxu0 0.0
  %39 = vmatprep.subr.mxu0 0.0
  %40 = vmatpush1.msra.mxu0 0.0
  %41 = vmatprep.subr.mxu0 0.0
  %42 = vmatpush1.msra.mxu0 0.0
  %43 = vmatprep.subr.mxu0 0.0
  %44 = vmatpush1.msra.mxu0 0.0
  %45 = vmatprep.subr.mxu0 0.0
  %46 = vmatpush1.msra.mxu0 0.0
  %47 = vmatprep.subr.mxu0 0.0
  %48 = vmatpush1.msra.mxu0 0.0
  %49 = vmatprep.subr.mxu0 0.0
  %50 = vmatpush1.msra.mxu0 0.0
  %51 = vmatprep.subr.mxu0 0.0
  %52 = vmatpush1.msra.mxu0 0.0
  %53 = vmatprep.subr.mxu0 0.0
  %54 = vmatpush1.msra.mxu0 0.0
  %55 = vmatprep.subr.mxu0 0.0
  %56 = vmatpush1.msra.mxu0 0.0
  %57 = vmatprep.subr.mxu0 0.0
  %58 = vmatpush1.msra.mxu0 0.0
  %59 = vmatprep.subr.mxu0 0.0
  %60 = vmatpush1.msra.mxu0 0.0
  %61 = vmatprep.subr.mxu0 0.0
  %62 = vmatpush1.msra.mxu0 0.0
  %63 = vmatprep.subr.mxu0 0.0
  %64 = vmatpush1.msra.mxu0 0.0
  %65 = vmatprep.subr.mxu0 0.0
  %66 = vmatpush1.msra.mxu0 0.0
  %67 = vmatprep.subr.mxu0 0.0
  %68 = vmatpush1.msra.mxu0 0.0
  %69 = vmatprep.subr.mxu0 0.0
  %70 = vmatpush1.msra.mxu0 0.0
  %71 = vmatprep.subr.mxu0 0.0
  %72 = vmatpush1.msra.mxu0 0.0
  %73 = vmatprep.subr.mxu0 0.0
  %74 = vmatpush1.msra.mxu0 0.0
  %75 = vmatprep.subr.mxu0 0.0
  %76 = vmatpush1.msra.mxu0 0.0
  %77 = vmatprep.subr.mxu0 0.0
  %78 = vmatpush1.msra.mxu0 0.0
  %79 = vmatprep.subr.mxu0 0.0
  %80 = vmatpush1.msra.mxu0 0.0
  %81 = vmatprep.subr.mxu0 0.0
  %82 = vmatpush1.msra.mxu0 0.0
  %83 = vmatprep.subr.mxu0 0.0
  %84 = vmatpush1.msra.mxu0 0.0
  %85 = vmatprep.subr.mxu0 0.0
  %86 = vmatpush1.msra.mxu0 0.0
  %87 = vmatprep.mubr.f32.mxu0 0.0
  %88 = vmatmul.mubr.f32.gmra.mrb[0].mxu0 %v21
  %v89 = vpop.f32.mrb[0].mxu0
  %v90 = vadd.f32 0.0, %v89
  %v91 = vpop.f32.mrb[0].mxu0
  %92 = vdwg.mxu0
  %v93 = vld [vmem:[%s1] sm:$0xff]
  %v95 = vsel %vm19, %v93, 0
  %97 = vmatprep.subr.mxu0 0.0
  %98 = vmatpush1.msra.mxu0 %v18
  %99 = vmatprep.subr.mxu0 0.0
  %100 = vmatpush1.msra.mxu0 0.0
  %101 = vmatprep.subr.mxu0 0.0
  %102 = vmatpush1.msra.mxu0 0.0
  %103 = vmatprep.subr.mxu0 0.0
  %104 = vmatpush1.msra.mxu0 0.0
  %105 = vmatprep.subr.mxu0 0.0
  %106 = vmatpush1.msra.mxu0 0.0
  %107 = vmatprep.subr.mxu0 0.0
  %108 = vmatpush1.msra.mxu0 0.0
  %109 = vmatprep.subr.mxu0 0.0
  %110 = vmatpush1.msra.mxu0 0.0
  %111 = vmatprep.subr.mxu0 0.0
  %112 = vmatpush1.msra.mxu0 0.0
  %113 = vmatprep.subr.mxu0 0.0
  %114 = vmatpush1.msra.mxu0 0.0
  %115 = vmatprep.subr.mxu0 0.0
  %116 = vmatpush1.msra.mxu0 0.0
  %117 = vmatprep.subr.mxu0 0.0
  %118 = vmatpush1.msra.mxu0 0.0
  %119 = vmatprep.subr.mxu0 0.0
  %120 = vmatpush1.msra.mxu0 0.0
  %121 = vmatprep.subr.mxu0 0.0
  %122 = vmatpush1.msra.mxu0 0.0
  %123 = vmatprep.subr.mxu0 0.0
  %124 = vmatpush1.msra.mxu0 0.0
  %125 = vmatprep.subr.mxu0 0.0
  %126 = vmatpush1.msra.mxu0 0.0
  %127 = vmatprep.subr.mxu0 0.0
  %128 = vmatpush1.msra.mxu0 0.0
  %129 = vmatprep.subr.mxu0 0.0
  %130 = vmatpush1.msra.mxu0 0.0
  %131 = vmatprep.subr.mxu0 0.0
  %132 = vmatpush1.msra.mxu0 0.0
  %133 = vmatprep.subr.mxu0 0.0
  %134 = vmatpush1.msra.mxu0 0.0
  %135 = vmatprep.subr.mxu0 0.0
  %136 = vmatpush1.msra.mxu0 0.0
  %137 = vmatprep.subr.mxu0 0.0
  %138 = vmatpush1.msra.mxu0 0.0
  %139 = vmatprep.subr.mxu0 0.0
  %140 = vmatpush1.msra.mxu0 0.0
  %141 = vmatprep.subr.mxu0 0.0
  %142 = vmatpush1.msra.mxu0 0.0
  %143 = vmatprep.subr.mxu0 0.0
  %144 = vmatpush1.msra.mxu0 0.0
  %145 = vmatprep.subr.mxu0 0.0
  %146 = vmatpush1.msra.mxu0 0.0
  %147 = vmatprep.subr.mxu0 0.0
  %148 = vmatpush1.msra.mxu0 0.0
  %149 = vmatprep.subr.mxu0 0.0
  %150 = vmatpush1.msra.mxu0 0.0
  %151 = vmatprep.subr.mxu0 0.0
  %152 = vmatpush1.msra.mxu0 0.0
  %153 = vmatprep.subr.mxu0 0.0
  %154 = vmatpush1.msra.mxu0 0.0
  %155 = vmatprep.subr.mxu0 0.0
  %156 = vmatpush1.msra.mxu0 0.0
  %157 = vmatprep.subr.mxu0 0.0
  %158 = vmatpush1.msra.mxu0 0.0
  %159 = vmatprep.subr.mxu0 0.0
  %160 = vmatpush1.msra.mxu0 0.0
  %161 = vmatprep.mubr.f32.mxu0 0.0
  %162 = vmatmul.mubr.f32.gmra.mrb[0].mxu0 %v95
  %v163 = vpop.f32.mrb[0].mxu0
  %v164 = vadd.f32 0.0, %v163
  %v165 = vpop.f32.mrb[0].mxu0
  %166 = vdwg.mxu0
  %vm167 = vcmask 130048
  %v169 = vsel %vm167, %v90, 0
  %v172 = vsel %vm167, %v164, 0
  %174 = vmatprep.subr.mxu0 0.0
  %175 = vmatpush1.xpose.msra.mxu0 %v172
  %176 = vmatprep.subr.mxu0 0.0
  %177 = vmatpush1.xpose.msra.mxu0 0.0
  %178 = vmatprep.subr.mxu0 0.0
  %179 = vmatpush1.xpose.msra.mxu0 0.0
  %180 = vmatprep.subr.mxu0 0.0
  %181 = vmatpush1.xpose.msra.mxu0 0.0
  %182 = vmatprep.subr.mxu0 0.0
  %183 = vmatpush1.xpose.msra.mxu0 0.0
  %184 = vmatprep.subr.mxu0 0.0
  %185 = vmatpush1.xpose.msra.mxu0 0.0
  %186 = vmatprep.subr.mxu0 0.0
  %187 = vmatpush1.xpose.msra.mxu0 0.0
  %188 = vmatprep.subr.mxu0 0.0
  %189 = vmatpush1.xpose.msra.mxu0 0.0
  %190 = vmatprep.subr.mxu0 0.0
  %191 = vmatpush1.xpose.msra.mxu0 0.0
  %192 = vmatprep.subr.mxu0 0.0
  %193 = vmatpush1.xpose.msra.mxu0 0.0
  %194 = vmatprep.subr.mxu0 0.0
  %195 = vmatpush1.xpose.msra.mxu0 0.0
  %196 = vmatprep.subr.mxu0 0.0
  %197 = vmatpush1.xpose.msra.mxu0 0.0
  %198 = vmatprep.subr.mxu0 0.0
  %199 = vmatpush1.xpose.msra.mxu0 0.0
  %200 = vmatprep.subr.mxu0 0.0
  %201 = vmatpush1.xpose.msra.mxu0 0.0
  %202 = vmatprep.subr.mxu0 0.0
  %203 = vmatpush1.xpose.msra.mxu0 0.0
  %204 = vmatprep.subr.mxu0 0.0
  %205 = vmatpush1.xpose.msra.mxu0 0.0
  %206 = vmatprep.subr.mxu0 0.0
  %207 = vmatpush1.xpose.msra.mxu0 0.0
  %208 = vmatprep.subr.mxu0 0.0
  %209 = vmatpush1.xpose.msra.mxu0 0.0
  %210 = vmatprep.subr.mxu0 0.0
  %211 = vmatpush1.xpose.msra.mxu0 0.0
  %212 = vmatprep.subr.mxu0 0.0
  %213 = vmatpush1.xpose.msra.mxu0 0.0
  %214 = vmatprep.subr.mxu0 0.0
  %215 = vmatpush1.xpose.msra.mxu0 0.0
  %216 = vmatprep.subr.mxu0 0.0
  %217 = vmatpush1.xpose.msra.mxu0 0.0
  %218 = vmatprep.subr.mxu0 0.0
  %219 = vmatpush1.xpose.msra.mxu0 0.0
  %220 = vmatprep.subr.mxu0 0.0
  %221 = vmatpush1.xpose.msra.mxu0 0.0
  %222 = vmatprep.subr.mxu0 0.0
  %223 = vmatpush1.xpose.msra.mxu0 0.0
  %224 = vmatprep.subr.mxu0 0.0
  %225 = vmatpush1.xpose.msra.mxu0 0.0
  %226 = vmatprep.subr.mxu0 0.0
  %227 = vmatpush1.xpose.msra.mxu0 0.0
  %228 = vmatprep.subr.mxu0 0.0
  %229 = vmatpush1.xpose.msra.mxu0 0.0
  %230 = vmatprep.subr.mxu0 0.0
  %231 = vmatpush1.xpose.msra.mxu0 0.0
  %232 = vmatprep.subr.mxu0 0.0
  %233 = vmatpush1.xpose.msra.mxu0 0.0
  %234 = vmatprep.subr.mxu0 0.0
  %235 = vmatpush1.xpose.msra.mxu0 0.0
  %236 = vmatprep.subr.mxu0 0.0
  %237 = vmatpush1.xpose.msra.mxu0 0.0
  %238 = vmatprep.mubr.f32.mxu0 0.0
  %239 = vmatmul.mubr.f32.gmra.mrb[0].mxu0 %v169
  %v240 = vpop.f32.mrb[0].mxu0
  %v241 = vadd.f32 0.0, %v240
  %v242 = vpop.f32.mrb[0].mxu0
  %243 = vdwg.mxu0
  %v244 = vmax.f32 %v241, 0.0
  %v245 = vsel %vm19, %v244, -inf
  %246 = vmax.xlane.f32.xlu0 %v245
  %v247 = vpop.xlane.xlu0 %246
  %v248 = vsub.f32 %v244, %v247
  %v249 = vmul.f32 %v248, 1.442695
  %v250 = vpow.pop %v249
  %v251 = vsel %vm19, %v250, 0.0
  %252 = vadd.xlane.f32.xlu0 %v251
  %v253 = vpop.xlane.xlu0 %252
  %v254 = vrcp.pop %v253
  %v255 = vmul.f32 %v250, %v254
  %256 = vmatprep.subr.mxu0 0.0
  %257 = vmatpush1.xpose.msra.mxu0 %v169
  %258 = vmatprep.subr.mxu0 0.0
  %259 = vmatpush1.xpose.msra.mxu0 0.0
  %260 = vmatprep.subr.mxu0 0.0
  %261 = vmatpush1.xpose.msra.mxu0 0.0
  %262 = vmatprep.subr.mxu0 0.0
  %263 = vmatpush1.xpose.msra.mxu0 0.0
  %264 = vmatprep.subr.mxu0 0.0
  %265 = vmatpush1.xpose.msra.mxu0 0.0
  %266 = vmatprep.subr.mxu0 0.0
  %267 = vmatpush1.xpose.msra.mxu0 0.0
  %268 = vmatprep.subr.mxu0 0.0
  %269 = vmatpush1.xpose.msra.mxu0 0.0
  %270 = vmatprep.subr.mxu0 0.0
  %271 = vmatpush1.xpose.msra.mxu0 0.0
  %272 = vmatprep.subr.mxu0 0.0
  %273 = vmatpush1.xpose.msra.mxu0 0.0
  %274 = vmatprep.subr.mxu0 0.0
  %275 = vmatpush1.xpose.msra.mxu0 0.0
  %276 = vmatprep.subr.mxu0 0.0
  %277 = vmatpush1.xpose.msra.mxu0 0.0
  %278 = vmatprep.subr.mxu0 0.0
  %279 = vmatpush1.xpose.msra.mxu0 0.0
  %280 = vmatprep.subr.mxu0 0.0
  %281 = vmatpush1.xpose.msra.mxu0 0.0
  %282 = vmatprep.subr.mxu0 0.0
  %283 = vmatpush1.xpose.msra.mxu0 0.0
  %284 = vmatprep.subr.mxu0 0.0
  %285 = vmatpush1.xpose.msra.mxu0 0.0
  %286 = vmatprep.subr.mxu0 0.0
  %287 = vmatpush1.xpose.msra.mxu0 0.0
  %288 = vmatprep.subr.mxu0 0.0
  %289 = vmatpush1.xpose.msra.mxu0 0.0
  %290 = vmatprep.subr.mxu0 0.0
  %291 = vmatpush1.xpose.msra.mxu0 0.0
  %292 = vmatprep.subr.mxu0 0.0
  %293 = vmatpush1.xpose.msra.mxu0 0.0
  %294 = vmatprep.subr.mxu0 0.0
  %295 = vmatpush1.xpose.msra.mxu0 0.0
  %296 = vmatprep.subr.mxu0 0.0
  %297 = vmatpush1.xpose.msra.mxu0 0.0
  %298 = vmatprep.subr.mxu0 0.0
  %299 = vmatpush1.xpose.msra.mxu0 0.0
  %300 = vmatprep.subr.mxu0 0.0
  %301 = vmatpush1.xpose.msra.mxu0 0.0
  %302 = vmatprep.subr.mxu0 0.0
  %303 = vmatpush1.xpose.msra.mxu0 0.0
  %304 = vmatprep.subr.mxu0 0.0
  %305 = vmatpush1.xpose.msra.mxu0 0.0
  %306 = vmatprep.subr.mxu0 0.0
  %307 = vmatpush1.xpose.msra.mxu0 0.0
  %308 = vmatprep.subr.mxu0 0.0
  %309 = vmatpush1.xpose.msra.mxu0 0.0
  %310 = vmatprep.subr.mxu0 0.0
  %311 = vmatpush1.xpose.msra.mxu0 0.0
  %312 = vmatprep.subr.mxu0 0.0
  %313 = vmatpush1.xpose.msra.mxu0 0.0
  %314 = vmatprep.subr.mxu0 0.0
  %315 = vmatpush1.xpose.msra.mxu0 0.0
  %316 = vmatprep.subr.mxu0 0.0
  %317 = vmatpush1.xpose.msra.mxu0 0.0
  %318 = vmatprep.subr.mxu0 0.0
  %319 = vmatpush1.xpose.msra.mxu0 0.0
  %320 = vmatprep.mubr.f32.mxu0 0.0
  %321 = vmatmul.mubr.f32.gmra.mrb[0].mxu0 %v172
  %v322 = vpop.f32.mrb[0].mxu0
  %v323 = vadd.f32 0.0, %v322
  %v324 = vpop.f32.mrb[0].mxu0
  %325 = vdwg.mxu0
  %v326 = vmax.f32 %v323, 0.0
  %v327 = vsel %vm19, %v326, -inf
  %328 = vmax.xlane.f32.xlu0 %v327
  %v329 = vpop.xlane.xlu0 %328
  %v330 = vsub.f32 %v326, %v329
  %v331 = vmul.f32 %v330, 1.442695
  %v332 = vpow.pop %v331
  %v333 = vsel %vm19, %v332, 0.0
  %334 = vadd.xlane.f32.xlu0 %v333
  %v335 = vpop.xlane.xlu0 %334
  %v336 = vrcp.pop %v335
  %v337 = vmul.f32 %v332, %v336
  %v338 = vld [vmem:[%s3] sm:$0xff]
  %v340 = vsel %vm19, %v255, 0
  %342 = vmatprep.subr.mxu0 0.0
  %343 = vmatpush1.msra.mxu0 %v255
  %344 = vmatprep.subr.mxu0 0.0
  %345 = vmatpush1.msra.mxu0 0.0
  %346 = vmatprep.subr.mxu0 0.0
  %347 = vmatpush1.msra.mxu0 0.0
  %348 = vmatprep.subr.mxu0 0.0
  %349 = vmatpush1.msra.mxu0 0.0
  %350 = vmatprep.subr.mxu0 0.0
  %351 = vmatpush1.msra.mxu0 0.0
  %352 = vmatprep.subr.mxu0 0.0
  %353 = vmatpush1.msra.mxu0 0.0
  %354 = vmatprep.subr.mxu0 0.0
  %355 = vmatpush1.msra.mxu0 0.0
  %356 = vmatprep.subr.mxu0 0.0
  %357 = vmatpush1.msra.mxu0 0.0
  %358 = vmatprep.subr.mxu0 0.0
  %359 = vmatpush1.msra.mxu0 0.0
  %360 = vmatprep.subr.mxu0 0.0
  %361 = vmatpush1.msra.mxu0 0.0
  %362 = vmatprep.subr.mxu0 0.0
  %363 = vmatpush1.msra.mxu0 0.0
  %364 = vmatprep.subr.mxu0 0.0
  %365 = vmatpush1.msra.mxu0 0.0
  %366 = vmatprep.subr.mxu0 0.0
  %367 = vmatpush1.msra.mxu0 0.0
  %368 = vmatprep.subr.mxu0 0.0
  %369 = vmatpush1.msra.mxu0 0.0
  %370 = vmatprep.subr.mxu0 0.0
  %371 = vmatpush1.msra.mxu0 0.0
  %372 = vmatprep.subr.mxu0 0.0
  %373 = vmatpush1.msra.mxu0 0.0
  %374 = vmatprep.subr.mxu0 0.0
  %375 = vmatpush1.msra.mxu0 0.0
  %376 = vmatprep.subr.mxu0 0.0
  %377 = vmatpush1.msra.mxu0 0.0
  %378 = vmatprep.subr.mxu0 0.0
  %379 = vmatpush1.msra.mxu0 0.0
  %380 = vmatprep.subr.mxu0 0.0
  %381 = vmatpush1.msra.mxu0 0.0
  %382 = vmatprep.subr.mxu0 0.0
  %383 = vmatpush1.msra.mxu0 0.0
  %384 = vmatprep.subr.mxu0 0.0
  %385 = vmatpush1.msra.mxu0 0.0
  %386 = vmatprep.subr.mxu0 0.0
  %387 = vmatpush1.msra.mxu0 0.0
  %388 = vmatprep.subr.mxu0 0.0
  %389 = vmatpush1.msra.mxu0 0.0
  %390 = vmatprep.subr.mxu0 0.0
  %391 = vmatpush1.msra.mxu0 0.0
  %392 = vmatprep.subr.mxu0 0.0
  %393 = vmatpush1.msra.mxu0 0.0
  %394 = vmatprep.subr.mxu0 0.0
  %395 = vmatpush1.msra.mxu0 0.0
  %396 = vmatprep.subr.mxu0 0.0
  %397 = vmatpush1.msra.mxu0 0.0
  %398 = vmatprep.subr.mxu0 0.0
  %399 = vmatpush1.msra.mxu0 0.0
  %400 = vmatprep.subr.mxu0 0.0
  %401 = vmatpush1.msra.mxu0 0.0
  %402 = vmatprep.subr.mxu0 0.0
  %403 = vmatpush1.msra.mxu0 0.0
  %404 = vmatprep.subr.mxu0 0.0
  %405 = vmatpush1.msra.mxu0 0.0
  %406 = vmatprep.mubr.f32.mxu0 0.0
  %407 = vmatmul.mubr.f32.gmra.mrb[0].mxu0 %v340
  %v408 = vpop.f32.mrb[0].mxu0
  %v409 = vadd.f32 0.0, %v408
  %v410 = vpop.f32.mrb[0].mxu0
  %411 = vdwg.mxu0
  %v412 = vmul.f32 %v409, 2.0
  %v413 = vsub.f32 %v412, %v338
  %v415 = vsel %vm19, %v337, 0
  %417 = vmatprep.subr.mxu0 0.0
  %418 = vmatpush1.msra.mxu0 %v337
  %419 = vmatprep.subr.mxu0 0.0
  %420 = vmatpush1.msra.mxu0 0.0
  %421 = vmatprep.subr.mxu0 0.0
  %422 = vmatpush1.msra.mxu0 0.0
  %423 = vmatprep.subr.mxu0 0.0
  %424 = vmatpush1.msra.mxu0 0.0
  %425 = vmatprep.subr.mxu0 0.0
  %426 = vmatpush1.msra.mxu0 0.0
  %427 = vmatprep.subr.mxu0 0.0
  %428 = vmatpush1.msra.mxu0 0.0
  %429 = vmatprep.subr.mxu0 0.0
  %430 = vmatpush1.msra.mxu0 0.0
  %431 = vmatprep.subr.mxu0 0.0
  %432 = vmatpush1.msra.mxu0 0.0
  %433 = vmatprep.subr.mxu0 0.0
  %434 = vmatpush1.msra.mxu0 0.0
  %435 = vmatprep.subr.mxu0 0.0
  %436 = vmatpush1.msra.mxu0 0.0
  %437 = vmatprep.subr.mxu0 0.0
  %438 = vmatpush1.msra.mxu0 0.0
  %439 = vmatprep.subr.mxu0 0.0
  %440 = vmatpush1.msra.mxu0 0.0
  %441 = vmatprep.subr.mxu0 0.0
  %442 = vmatpush1.msra.mxu0 0.0
  %443 = vmatprep.subr.mxu0 0.0
  %444 = vmatpush1.msra.mxu0 0.0
  %445 = vmatprep.subr.mxu0 0.0
  %446 = vmatpush1.msra.mxu0 0.0
  %447 = vmatprep.subr.mxu0 0.0
  %448 = vmatpush1.msra.mxu0 0.0
  %449 = vmatprep.subr.mxu0 0.0
  %450 = vmatpush1.msra.mxu0 0.0
  %451 = vmatprep.subr.mxu0 0.0
  %452 = vmatpush1.msra.mxu0 0.0
  %453 = vmatprep.subr.mxu0 0.0
  %454 = vmatpush1.msra.mxu0 0.0
  %455 = vmatprep.subr.mxu0 0.0
  %456 = vmatpush1.msra.mxu0 0.0
  %457 = vmatprep.subr.mxu0 0.0
  %458 = vmatpush1.msra.mxu0 0.0
  %459 = vmatprep.subr.mxu0 0.0
  %460 = vmatpush1.msra.mxu0 0.0
  %461 = vmatprep.subr.mxu0 0.0
  %462 = vmatpush1.msra.mxu0 0.0
  %463 = vmatprep.subr.mxu0 0.0
  %464 = vmatpush1.msra.mxu0 0.0
  %465 = vmatprep.subr.mxu0 0.0
  %466 = vmatpush1.msra.mxu0 0.0
  %467 = vmatprep.subr.mxu0 0.0
  %468 = vmatpush1.msra.mxu0 0.0
  %469 = vmatprep.subr.mxu0 0.0
  %470 = vmatpush1.msra.mxu0 0.0
  %471 = vmatprep.subr.mxu0 0.0
  %472 = vmatpush1.msra.mxu0 0.0
  %473 = vmatprep.subr.mxu0 0.0
  %474 = vmatpush1.msra.mxu0 0.0
  %475 = vmatprep.subr.mxu0 0.0
  %476 = vmatpush1.msra.mxu0 0.0
  %477 = vmatprep.subr.mxu0 0.0
  %478 = vmatpush1.msra.mxu0 0.0
  %479 = vmatprep.subr.mxu0 0.0
  %480 = vmatpush1.msra.mxu0 0.0
  %481 = vmatprep.mubr.f32.mxu0 0.0
  %482 = vmatmul.mubr.f32.gmra.mrb[0].mxu0 %v415
  %v483 = vpop.f32.mrb[0].mxu0
  %v484 = vadd.f32 0.0, %v483
  %v485 = vpop.f32.mrb[0].mxu0
  %486 = vdwg.mxu0
  %v487 = vmul.f32 %v484, 2.0
  %v488 = vsub.f32 %v487, %v338
  %489 = vst.msk [vmem:[%s4] sm:$0xff] %vm19, %v338
  %490 = vst.msk [vmem:[%s4 + $0x8] sm:$0xff] %vm19, %v255
  %491 = vst.msk [vmem:[%s4 + $0x10] sm:$0xff] %vm19, %v413
  %492 = vst.msk [vmem:[%s4 + $0x18] sm:$0xff] %vm19, %v338
  %493 = vst.msk [vmem:[%s4 + $0x20] sm:$0xff] %vm19, %v337
  %494 = vst.msk [vmem:[%s4 + $0x28] sm:$0xff] %vm19, %v488
  // Predicated region
  $region18: #{forward.12} parent=0 // pred_check
    _
  $region19: #{forward.12} parent=0 // pred_check_branch
    %496 = sbr.rel (0) target = $region21
  $region20: #{forward.12} parent=0 // pred_region
    _
  $region21: #{forward.12} parent=0 // pred_fallthru
    _
  // Predicated region
  $region22: #{forward.12} parent=0 // pred_check
    _
  $region23: #{forward.12} parent=0 // pred_check_branch
    %498 = sbr.rel (0) target = $region25
  $region24: #{forward.12} parent=0 // pred_region
    _
  $region25: #{forward.12} parent=0 // pred_fallthru
    _

// kernel: forward.13
$region0: #{forward.13}
  #allocation0 [shape = 'u32[]', space=smem, size = 0x4, offset = 0x4, fixed_abs, tag = 'smem constant byte address 0x4 - core index']
  #allocation1 [shape = 'u32[144,128]{1,0:T(1,128)}', space=vmem, size = 0x12000, scoped, tag = 'internal scratch']
  %s0 = inlined_call_operand.vmem [shape: f32[272,8], index: 0, kind: input, shape index: {}]
  %s1 = inlined_call_operand.vmem [shape: f32[8,12], index: 1, kind: input, shape index: {}]
  %s2 = inlined_call_operand.vmem [shape: f32[1,12], index: 2, kind: input, shape index: {}]
  %s3 = inlined_call_operand.vmem [shape: f32[272,12], index: 3, kind: output, shape index: {}]
  %s4 = sld [smem:[#allocation0]]
  $region22: #{forward.13} parent=0
    _
  %s6 = ssub.s32 1, %s4
  %s7 = scalar_select 0, %s6, %s4
  // Predicated region
  $region2: #{forward.13} parent=0 // pred_check
    _
  $region3: #{forward.13} parent=0 // pred_check_branch
    %9 = sbr.rel (0) target = $region5
  $region4: #{forward.13} parent=0 // pred_region
    _
  $region5: #{forward.13} parent=0 // pred_fallthru
    _
  // Predicated region
  $region6: #{forward.13} parent=0 // pred_check
    _
  $region7: #{forward.13} parent=0 // pred_check_branch
    %11 = sbr.rel (0) target = $region9
  $region8: #{forward.13} parent=0 // pred_region
    _
  $region9: #{forward.13} parent=0 // pred_fallthru
    _
  // Predicated region
  $region10: #{forward.13} parent=0 // pred_check
    _
  $region11: #{forward.13} parent=0 // pred_check_branch
    %13 = sbr.rel (0) target = $region13
  $region12: #{forward.13} parent=0 // pred_region
    _
  $region13: #{forward.13} parent=0 // pred_fallthru
    _
  %v14 = vld [vmem:[%s0] sm:$0xff]
  %v15 = vld [vmem:[%s0 + $0x8] sm:$0xff]
  %v16 = vld [vmem:[%s0 + $0x10] sm:$0xff]
  %v17 = vld [vmem:[%s0 + $0x18] sm:$0xff]
  %v18 = vld [vmem:[%s0 + $0x20] sm:$0xff]
  %v19 = vld [vmem:[%s0 + $0x28] sm:$0xff]
  %v20 = vld [vmem:[%s0 + $0x30] sm:$0xff]
  %v21 = vld [vmem:[%s0 + $0x38] sm:$0xff]
  %v22 = vld [vmem:[%s0 + $0x40] sm:$0xff]
  %v23 = vld [vmem:[%s0 + $0x48] sm:$0xff]
  %v24 = vld [vmem:[%s0 + $0x50] sm:$0xff]
  %v25 = vld [vmem:[%s0 + $0x58] sm:$0xff]
  %v26 = vld [vmem:[%s0 + $0x60] sm:$0xff]
  %v27 = vld [vmem:[%s0 + $0x68] sm:$0xff]
  %v28 = vld [vmem:[%s0 + $0x70] sm:$0xff]
  %v29 = vld [vmem:[%s0 + $0x78] sm:$0xff]
  %v30 = vld [vmem:[%s0 + $0x80] sm:$0xff]
  %v31 = vld [vmem:[%s0 + $0x88] sm:$0xff]
  %v32 = vld [vmem:[%s0 + $0x90] sm:$0xff]
  %v33 = vld [vmem:[%s0 + $0x98] sm:$0xff]
  %v34 = vld [vmem:[%s0 + $0xa0] sm:$0xff]
  %v35 = vld [vmem:[%s0 + $0xa8] sm:$0xff]
  %v36 = vld [vmem:[%s0 + $0xb0] sm:$0xff]
  %v37 = vld [vmem:[%s0 + $0xb8] sm:$0xff]
  %v38 = vld [vmem:[%s0 + $0xc0] sm:$0xff]
  %v39 = vld [vmem:[%s0 + $0xc8] sm:$0xff]
  %v40 = vld [vmem:[%s0 + $0xd0] sm:$0xff]
  %v41 = vld [vmem:[%s0 + $0xd8] sm:$0xff]
  %v42 = vld [vmem:[%s0 + $0xe0] sm:$0xff]
  %v43 = vld [vmem:[%s0 + $0xe8] sm:$0xff]
  %v44 = vld [vmem:[%s0 + $0xf0] sm:$0xff]
  %v45 = vld [vmem:[%s0 + $0xf8] sm:$0xff]
  %v46 = vld [vmem:[%s0 + $0x100] sm:$0xff]
  %v47 = vld [vmem:[%s0 + $0x108] sm:$0xff]
  %v48 = vld [vmem:[%s1] sm:$0xff]
  %v49 = vld [vmem:[%s2] sm:$0x1]
  %v51 = vlaneseq
  %v52 = vshrl.u32 %v51, 7
  %v53 = vsub.s32 0, %v52
  %v54 = vrot.slane %v49, %v53
  %vm56 = vcmask 64512
  %v58 = vsel %vm56, %v14, 0
  %v61 = vsel %vm56, %v15, 0
  %v64 = vsel %vm56, %v16, 0
  %v67 = vsel %vm56, %v17, 0
  %v70 = vsel %vm56, %v18, 0
  %v73 = vsel %vm56, %v19, 0
  %v76 = vsel %vm56, %v20, 0
  %v79 = vsel %vm56, %v21, 0
  %v82 = vsel %vm56, %v22, 0
  %v85 = vsel %vm56, %v23, 0
  %v88 = vsel %vm56, %v24, 0
  %v91 = vsel %vm56, %v25, 0
  %v94 = vsel %vm56, %v26, 0
  %v97 = vsel %vm56, %v27, 0
  %v100 = vsel %vm56, %v28, 0
  %v103 = vsel %vm56, %v29, 0
  %v106 = vsel %vm56, %v30, 0
  %v109 = vsel %vm56, %v31, 0
  %v112 = vsel %vm56, %v32, 0
  %v115 = vsel %vm56, %v33, 0
  %v118 = vsel %vm56, %v34, 0
  %v121 = vsel %vm56, %v35, 0
  %v124 = vsel %vm56, %v36, 0
  %v127 = vsel %vm56, %v37, 0
  %v130 = vsel %vm56, %v38, 0
  %v133 = vsel %vm56, %v39, 0
  %v136 = vsel %vm56, %v40, 0
  %v139 = vsel %vm56, %v41, 0
  %v142 = vsel %vm56, %v42, 0
  %v145 = vsel %vm56, %v43, 0
  %v148 = vsel %vm56, %v44, 0
  %v151 = vsel %vm56, %v45, 0
  %v154 = vsel %vm56, %v46, 0
  %v157 = vsel %vm56, %v47, 0
  %159 = vmatprep.subr.mxu0 0.0
  %160 = vmatpush1.msra.mxu0 %v48
  %161 = vmatprep.subr.mxu0 0.0
  %162 = vmatpush1.msra.mxu0 0.0
  %163 = vmatprep.subr.mxu0 0.0
  %164 = vmatpush1.msra.mxu0 0.0
  %165 = vmatprep.subr.mxu0 0.0
  %166 = vmatpush1.msra.mxu0 0.0
  %167 = vmatprep.subr.mxu0 0.0
  %168 = vmatpush1.msra.mxu0 0.0
  %169 = vmatprep.subr.mxu0 0.0
  %170 = vmatpush1.msra.mxu0 0.0
  %171 = vmatprep.subr.mxu0 0.0
  %172 = vmatpush1.msra.mxu0 0.0
  %173 = vmatprep.subr.mxu0 0.0
  %174 = vmatpush1.msra.mxu0 0.0
  %175 = vmatprep.subr.mxu0 0.0
  %176 = vmatpush1.msra.mxu0 0.0
  %177 = vmatprep.subr.mxu0 0.0
  %178 = vmatpush1.msra.mxu0 0.0
  %179 = vmatprep.subr.mxu0 0.0
  %180 = vmatpush1.msra.mxu0 0.0
  %181 = vmatprep.subr.mxu0 0.0
  %182 = vmatpush1.msra.mxu0 0.0
  %183 = vmatprep.subr.mxu0 0.0
  %184 = vmatpush1.msra.mxu0 0.0
  %185 = vmatprep.subr.mxu0 0.0
  %186 = vmatpush1.msra.mxu0 0.0
  %187 = vmatprep.subr.mxu0 0.0
  %188 = vmatpush1.msra.mxu0 0.0
  %189 = vmatprep.subr.mxu0 0.0
  %190 = vmatpush1.msra.mxu0 0.0
  %191 = vmatprep.subr.mxu0 0.0
  %192 = vmatpush1.msra.mxu0 0.0
  %193 = vmatprep.subr.mxu0 0.0
  %194 = vmatpush1.msra.mxu0 0.0
  %195 = vmatprep.subr.mxu0 0.0
  %196 = vmatpush1.msra.mxu0 0.0
  %197 = vmatprep.subr.mxu0 0.0
  %198 = vmatpush1.msra.mxu0 0.0
  %199 = vmatprep.subr.mxu0 0.0
  %200 = vmatpush1.msra.mxu0 0.0
  %201 = vmatprep.subr.mxu0 0.0
  %202 = vmatpush1.msra.mxu0 0.0
  %203 = vmatprep.subr.mxu0 0.0
  %204 = vmatpush1.msra.mxu0 0.0
  %205 = vmatprep.subr.mxu0 0.0
  %206 = vmatpush1.msra.mxu0 0.0
  %207 = vmatprep.subr.mxu0 0.0
  %208 = vmatpush1.msra.mxu0 0.0
  %209 = vmatprep.subr.mxu0 0.0
  %210 = vmatpush1.msra.mxu0 0.0
  %211 = vmatprep.subr.mxu0 0.0
  %212 = vmatpush1.msra.mxu0 0.0
  %213 = vmatprep.subr.mxu0 0.0
  %214 = vmatpush1.msra.mxu0 0.0
  %215 = vmatprep.subr.mxu0 0.0
  %216 = vmatpush1.msra.mxu0 0.0
  %217 = vmatprep.subr.mxu0 0.0
  %218 = vmatpush1.msra.mxu0 0.0
  %219 = vmatprep.subr.mxu0 0.0
  %220 = vmatpush1.msra.mxu0 0.0
  %221 = vmatprep.subr.mxu0 0.0
  %222 = vmatpush1.msra.mxu0 0.0
  %223 = vmatprep.mubr.f32.mxu0 0.0
  %224 = vmatmul.mubr.f32.gmra.mrb[0].mxu0 %v58
  %v225 = vpop.f32.mrb[0].mxu0
  %v226 = vadd.f32 %v54, %v225
  %v227 = vpop.f32.mrb[0].mxu0
  %228 = vmatprep.mubr.f32.mxu0 0.0
  %229 = vmatmul.mubr.f32.gmra.mrb[0].mxu0 %v61
  %v230 = vpop.f32.mrb[0].mxu0
  %v231 = vadd.f32 %v54, %v230
  %v232 = vpop.f32.mrb[0].mxu0
  %233 = vmatprep.mubr.f32.mxu0 0.0
  %234 = vmatmul.mubr.f32.gmra.mrb[0].mxu0 %v64
  %v235 = vpop.f32.mrb[0].mxu0
  %v236 = vadd.f32 %v54, %v235
  %v237 = vpop.f32.mrb[0].mxu0
  %238 = vmatprep.mubr.f32.mxu0 0.0
  %239 = vmatmul.mubr.f32.gmra.mrb[0].mxu0 %v67
  %v240 = vpop.f32.mrb[0].mxu0
  %v241 = vadd.f32 %v54, %v240
  %v242 = vpop.f32.mrb[0].mxu0
  %243 = vmatprep.mubr.f32.mxu0 0.0
  %244 = vmatmul.mubr.f32.gmra.mrb[0].mxu0 %v70
  %v245 = vpop.f32.mrb[0].mxu0
  %v246 = vadd.f32 %v54, %v245
  %v247 = vpop.f32.mrb[0].mxu0
  %248 = vmatprep.mubr.f32.mxu0 0.0
  %249 = vmatmul.mubr.f32.gmra.mrb[0].mxu0 %v73
  %v250 = vpop.f32.mrb[0].mxu0
  %v251 = vadd.f32 %v54, %v250
  %v252 = vpop.f32.mrb[0].mxu0
  %253 = vmatprep.mubr.f32.mxu0 0.0
  %254 = vmatmul.mubr.f32.gmra.mrb[0].mxu0 %v76
  %v255 = vpop.f32.mrb[0].mxu0
  %v256 = vadd.f32 %v54, %v255
  %v257 = vpop.f32.mrb[0].mxu0
  %258 = vmatprep.mubr.f32.mxu0 0.0
  %259 = vmatmul.mubr.f32.gmra.mrb[0].mxu0 %v79
  %v260 = vpop.f32.mrb[0].mxu0
  %v261 = vadd.f32 %v54, %v260
  %v262 = vpop.f32.mrb[0].mxu0
  %263 = vmatprep.mubr.f32.mxu0 0.0
  %264 = vmatmul.mubr.f32.gmra.mrb[0].mxu0 %v82
  %v265 = vpop.f32.mrb[0].mxu0
  %v266 = vadd.f32 %v54, %v265
  %v267 = vpop.f32.mrb[0].mxu0
  %268 = vmatprep.mubr.f32.mxu0 0.0
  %269 = vmatmul.mubr.f32.gmra.mrb[0].mxu0 %v85
  %v270 = vpop.f32.mrb[0].mxu0
  %v271 = vadd.f32 %v54, %v270
  %v272 = vpop.f32.mrb[0].mxu0
  %273 = vmatprep.mubr.f32.mxu0 0.0
  %274 = vmatmul.mubr.f32.gmra.mrb[0].mxu0 %v88
  %v275 = vpop.f32.mrb[0].mxu0
  %v276 = vadd.f32 %v54, %v275
  %v277 = vpop.f32.mrb[0].mxu0
  %278 = vmatprep.mubr.f32.mxu0 0.0
  %279 = vmatmul.mubr.f32.gmra.mrb[0].mxu0 %v91
  %v280 = vpop.f32.mrb[0].mxu0
  %v281 = vadd.f32 %v54, %v280
  %v282 = vpop.f32.mrb[0].mxu0
  %283 = vmatprep.mubr.f32.mxu0 0.0
  %284 = vmatmul.mubr.f32.gmra.mrb[0].mxu0 %v94
  %v285 = vpop.f32.mrb[0].mxu0
  %v286 = vadd.f32 %v54, %v285
  %v287 = vpop.f32.mrb[0].mxu0
  %288 = vmatprep.mubr.f32.mxu0 0.0
  %289 = vmatmul.mubr.f32.gmra.mrb[0].mxu0 %v97
  %v290 = vpop.f32.mrb[0].mxu0
  %v291 = vadd.f32 %v54, %v290
  %v292 = vpop.f32.mrb[0].mxu0
  %293 = vmatprep.mubr.f32.mxu0 0.0
  %294 = vmatmul.mubr.f32.gmra.mrb[0].mxu0 %v100
  %v295 = vpop.f32.mrb[0].mxu0
  %v296 = vadd.f32 %v54, %v295
  %v297 = vpop.f32.mrb[0].mxu0
  %298 = vmatprep.mubr.f32.mxu0 0.0
  %299 = vmatmul.mubr.f32.gmra.mrb[0].mxu0 %v103
  %v300 = vpop.f32.mrb[0].mxu0
  %v301 = vadd.f32 %v54, %v300
  %v302 = vpop.f32.mrb[0].mxu0
  %303 = vmatprep.mubr.f32.mxu0 0.0
  %304 = vmatmul.mubr.f32.gmra.mrb[0].mxu0 %v106
  %v305 = vpop.f32.mrb[0].mxu0
  %v306 = vadd.f32 %v54, %v305
  %v307 = vpop.f32.mrb[0].mxu0
  %308 = vmatprep.mubr.f32.mxu0 0.0
  %309 = vmatmul.mubr.f32.gmra.mrb[0].mxu0 %v109
  %v310 = vpop.f32.mrb[0].mxu0
  %v311 = vadd.f32 %v54, %v310
  %v312 = vpop.f32.mrb[0].mxu0
  %313 = vmatprep.mubr.f32.mxu0 0.0
  %314 = vmatmul.mubr.f32.gmra.mrb[0].mxu0 %v112
  %v315 = vpop.f32.mrb[0].mxu0
  %v316 = vadd.f32 %v54, %v315
  %v317 = vpop.f32.mrb[0].mxu0
  %318 = vmatprep.mubr.f32.mxu0 0.0
  %319 = vmatmul.mubr.f32.gmra.mrb[0].mxu0 %v115
  %v320 = vpop.f32.mrb[0].mxu0
  %v321 = vadd.f32 %v54, %v320
  %v322 = vpop.f32.mrb[0].mxu0
  %323 = vmatprep.mubr.f32.mxu0 0.0
  %324 = vmatmul.mubr.f32.gmra.mrb[0].mxu0 %v118
  %v325 = vpop.f32.mrb[0].mxu0
  %v326 = vadd.f32 %v54, %v325
  %v327 = vpop.f32.mrb[0].mxu0
  %328 = vmatprep.mubr.f32.mxu0 0.0
  %329 = vmatmul.mubr.f32.gmra.mrb[0].mxu0 %v121
  %v330 = vpop.f32.mrb[0].mxu0
  %v331 = vadd.f32 %v54, %v330
  %v332 = vpop.f32.mrb[0].mxu0
  %333 = vmatprep.mubr.f32.mxu0 0.0
  %334 = vmatmul.mubr.f32.gmra.mrb[0].mxu0 %v124
  %v335 = vpop.f32.mrb[0].mxu0
  %v336 = vadd.f32 %v54, %v335
  %v337 = vpop.f32.mrb[0].mxu0
  %338 = vmatprep.mubr.f32.mxu0 0.0
  %339 = vmatmul.mubr.f32.gmra.mrb[0].mxu0 %v127
  %v340 = vpop.f32.mrb[0].mxu0
  %v341 = vadd.f32 %v54, %v340
  %v342 = vpop.f32.mrb[0].mxu0
  %343 = vmatprep.mubr.f32.mxu0 0.0
  %344 = vmatmul.mubr.f32.gmra.mrb[0].mxu0 %v130
  %v345 = vpop.f32.mrb[0].mxu0
  %v346 = vadd.f32 %v54, %v345
  %v347 = vpop.f32.mrb[0].mxu0
  %348 = vmatprep.mubr.f32.mxu0 0.0
  %349 = vmatmul.mubr.f32.gmra.mrb[0].mxu0 %v133
  %v350 = vpop.f32.mrb[0].mxu0
  %v351 = vadd.f32 %v54, %v350
  %v352 = vpop.f32.mrb[0].mxu0
  %353 = vmatprep.mubr.f32.mxu0 0.0
  %354 = vmatmul.mubr.f32.gmra.mrb[0].mxu0 %v136
  %v355 = vpop.f32.mrb[0].mxu0
  %v356 = vadd.f32 %v54, %v355
  %v357 = vpop.f32.mrb[0].mxu0
  %358 = vmatprep.mubr.f32.mxu0 0.0
  %359 = vmatmul.mubr.f32.gmra.mrb[0].mxu0 %v139
  %v360 = vpop.f32.mrb[0].mxu0
  %v361 = vadd.f32 %v54, %v360
  %v362 = vpop.f32.mrb[0].mxu0
  %363 = vmatprep.mubr.f32.mxu0 0.0
  %364 = vmatmul.mubr.f32.gmra.mrb[0].mxu0 %v142
  %v365 = vpop.f32.mrb[0].mxu0
  %v366 = vadd.f32 %v54, %v365
  %v367 = vpop.f32.mrb[0].mxu0
  %368 = vmatprep.mubr.f32.mxu0 0.0
  %369 = vmatmul.mubr.f32.gmra.mrb[0].mxu0 %v145
  %v370 = vpop.f32.mrb[0].mxu0
  %v371 = vadd.f32 %v54, %v370
  %v372 = vpop.f32.mrb[0].mxu0
  %373 = vmatprep.mubr.f32.mxu0 0.0
  %374 = vmatmul.mubr.f32.gmra.mrb[0].mxu0 %v148
  %v375 = vpop.f32.mrb[0].mxu0
  %v376 = vadd.f32 %v54, %v375
  %v377 = vpop.f32.mrb[0].mxu0
  %378 = vmatprep.mubr.f32.mxu0 0.0
  %379 = vmatmul.mubr.f32.gmra.mrb[0].mxu0 %v151
  %v380 = vpop.f32.mrb[0].mxu0
  %v381 = vadd.f32 %v54, %v380
  %v382 = vpop.f32.mrb[0].mxu0
  %383 = vmatprep.mubr.f32.mxu0 0.0
  %384 = vmatmul.mubr.f32.gmra.mrb[0].mxu0 %v154
  %v385 = vpop.f32.mrb[0].mxu0
  %v386 = vadd.f32 %v54, %v385
  %v387 = vpop.f32.mrb[0].mxu0
  %388 = vmatprep.mubr.f32.mxu0 0.0
  %389 = vmatmul.mubr.f32.gmra.mrb[0].mxu0 %v157
  %v390 = vpop.f32.mrb[0].mxu0
  %v391 = vadd.f32 %v54, %v390
  %v392 = vpop.f32.mrb[0].mxu0
  %393 = vdwg.mxu0
  %vm394 = vcmask 97280
  %395 = vst.msk [vmem:[%s3] sm:$0xff] %vm394, %v226
  %396 = vst.msk [vmem:[%s3 + $0x8] sm:$0xff] %vm394, %v231
  %397 = vst.msk [vmem:[%s3 + $0x10] sm:$0xff] %vm394, %v236
  %398 = vst.msk [vmem:[%s3 + $0x18] sm:$0xff] %vm394, %v241
  %399 = vst.msk [vmem:[%s3 + $0x20] sm:$0xff] %vm394, %v246
  %400 = vst.msk [vmem:[%s3 + $0x28] sm:$0xff] %vm394, %v251
  %401 = vst.msk [vmem:[%s3 + $0x30] sm:$0xff] %vm394, %v256
  %402 = vst.msk [vmem:[%s3 + $0x38] sm:$0xff] %vm394, %v261
  %403 = vst.msk [vmem:[%s3 + $0x40] sm:$0xff] %vm394, %v266
  %404 = vst.msk [vmem:[%s3 + $0x48] sm:$0xff] %vm394, %v271
  %405 = vst.msk [vmem:[%s3 + $0x50] sm:$0xff] %vm394, %v276
  %406 = vst.msk [vmem:[%s3 + $0x58] sm:$0xff] %vm394, %v281
  %407 = vst.msk [vmem:[%s3 + $0x60] sm:$0xff] %vm394, %v286
  %408 = vst.msk [vmem:[%s3 + $0x68] sm:$0xff] %vm394, %v291
  %409 = vst.msk [vmem:[%s3 + $0x70] sm:$0xff] %vm394, %v296
  %410 = vst.msk [vmem:[%s3 + $0x78] sm:$0xff] %vm394, %v301
  %411 = vst.msk [vmem:[%s3 + $0x80] sm:$0xff] %vm394, %v306
  %412 = vst.msk [vmem:[%s3 + $0x88] sm:$0xff] %vm394, %v311
  %413 = vst.msk [vmem:[%s3 + $0x90] sm:$0xff] %vm394, %v316
  %414 = vst.msk [vmem:[%s3 + $0x98] sm:$0xff] %vm394, %v321
  %415 = vst.msk [vmem:[%s3 + $0xa0] sm:$0xff] %vm394, %v326
  %416 = vst.msk [vmem:[%s3 + $0xa8] sm:$0xff] %vm394, %v331
  %417 = vst.msk [vmem:[%s3 + $0xb0] sm:$0xff] %vm394, %v336
  %418 = vst.msk [vmem:[%s3 + $0xb8] sm:$0xff] %vm394, %v341
  %419 = vst.msk [vmem:[%s3 + $0xc0] sm:$0xff] %vm394, %v346
  %420 = vst.msk [vmem:[%s3 + $0xc8] sm:$0xff] %vm394, %v351
  %421 = vst.msk [vmem:[%s3 + $0xd0] sm:$0xff] %vm394, %v356
  %422 = vst.msk [vmem:[%s3 + $0xd8] sm:$0xff] %vm394, %v361
  %423 = vst.msk [vmem:[%s3 + $0xe0] sm:$0xff] %vm394, %v366
  %424 = vst.msk [vmem:[%s3 + $0xe8] sm:$0xff] %vm394, %v371
  %425 = vst.msk [vmem:[%s3 + $0xf0] sm:$0xff] %vm394, %v376
  %426 = vst.msk [vmem:[%s3 + $0xf8] sm:$0xff] %vm394, %v381
  %427 = vst.msk [vmem:[%s3 + $0x100] sm:$0xff] %vm394, %v386
  %428 = vst.msk [vmem:[%s3 + $0x108] sm:$0xff] %vm394, %v391
  // Predicated region
  $region14: #{forward.13} parent=0 // pred_check
    _
  $region15: #{forward.13} parent=0 // pred_check_branch
    %430 = sbr.rel (0) target = $region17
  $region16: #{forward.13} parent=0 // pred_region
    _
  $region17: #{forward.13} parent=0 // pred_fallthru
    _
  // Predicated region
  $region18: #{forward.13} parent=0 // pred_check
    _
  $region19: #{forward.13} parent=0 // pred_check_branch
    %432 = sbr.rel (0) target = $region21
  $region20: #{forward.13} parent=0 // pred_region
    _
  $region21: #{forward.13} parent=0 // pred_fallthru
    _

// kernel: forward.15
$region0: #{forward.15}
  #allocation0 [shape = 'u32[]', space=smem, size = 0x4, offset = 0x4, fixed_abs, tag = 'smem constant byte address 0x4 - core index']
  #allocation1 [shape = 'u32[144,128]{1,0:T(1,128)}', space=vmem, size = 0x12000, scoped, tag = 'internal scratch']
  %s0 = inlined_call_operand.vmem [shape: f32[192,96], index: 0, kind: input, shape index: {}]
  %s1 = inlined_call_operand.vmem [shape: f32[96,16], index: 1, kind: input, shape index: {}]
  %s2 = inlined_call_operand.vmem [shape: f32[1,16], index: 2, kind: input, shape index: {}]
  %s3 = inlined_call_operand.vmem [shape: f32[192,16], index: 3, kind: output, shape index: {}]
  %s4 = sld [smem:[#allocation0]]
  $region22: #{forward.15} parent=0
    _
  %s6 = ssub.s32 1, %s4
  %s7 = scalar_select 0, %s6, %s4
  // Predicated region
  $region2: #{forward.15} parent=0 // pred_check
    _
  $region3: #{forward.15} parent=0 // pred_check_branch
    %9 = sbr.rel (0) target = $region5
  $region4: #{forward.15} parent=0 // pred_region
    _
  $region5: #{forward.15} parent=0 // pred_fallthru
    _
  // Predicated region
  $region6: #{forward.15} parent=0 // pred_check
    _
  $region7: #{forward.15} parent=0 // pred_check_branch
    %11 = sbr.rel (0) target = $region9
  $region8: #{forward.15} parent=0 // pred_region
    _
  $region9: #{forward.15} parent=0 // pred_fallthru
    _
  // Predicated region
  $region10: #{forward.15} parent=0 // pred_check
    _
  $region11: #{forward.15} parent=0 // pred_check_branch
    %13 = sbr.rel (0) target = $region13
  $region12: #{forward.15} parent=0 // pred_region
    _
  $region13: #{forward.15} parent=0 // pred_fallthru
    _
  %v14 = vld [vmem:[%s0] sm:$0xff]
  %v15 = vld [vmem:[%s0 + $0x8] sm:$0xff]
  %v16 = vld [vmem:[%s0 + $0x10] sm:$0xff]
  %v17 = vld [vmem:[%s0 + $0x18] sm:$0xff]
  %v18 = vld [vmem:[%s0 + $0x20] sm:$0xff]
  %v19 = vld [vmem:[%s0 + $0x28] sm:$0xff]
  %v20 = vld [vmem:[%s0 + $0x30] sm:$0xff]
  %v21 = vld [vmem:[%s0 + $0x38] sm:$0xff]
  %v22 = vld [vmem:[%s0 + $0x40] sm:$0xff]
  %v23 = vld [vmem:[%s0 + $0x48] sm:$0xff]
  %v24 = vld [vmem:[%s0 + $0x50] sm:$0xff]
  %v25 = vld [vmem:[%s0 + $0x58] sm:$0xff]
  %v26 = vld [vmem:[%s0 + $0x60] sm:$0xff]
  %v27 = vld [vmem:[%s0 + $0x68] sm:$0xff]
  %v28 = vld [vmem:[%s0 + $0x70] sm:$0xff]
  %v29 = vld [vmem:[%s0 + $0x78] sm:$0xff]
  %v30 = vld [vmem:[%s0 + $0x80] sm:$0xff]
  %v31 = vld [vmem:[%s0 + $0x88] sm:$0xff]
  %v32 = vld [vmem:[%s0 + $0x90] sm:$0xff]
  %v33 = vld [vmem:[%s0 + $0x98] sm:$0xff]
  %v34 = vld [vmem:[%s0 + $0xa0] sm:$0xff]
  %v35 = vld [vmem:[%s0 + $0xa8] sm:$0xff]
  %v36 = vld [vmem:[%s0 + $0xb0] sm:$0xff]
  %v37 = vld [vmem:[%s0 + $0xb8] sm:$0xff]
  %v38 = vld [vmem:[%s1] sm:$0xff]
  %v39 = vld [vmem:[%s1 + $0x8] sm:$0xff]
  %v40 = vld [vmem:[%s1 + $0x10] sm:$0xff]
  %v41 = vld [vmem:[%s1 + $0x18] sm:$0xff]
  %v42 = vld [vmem:[%s1 + $0x20] sm:$0xff]
  %v43 = vld [vmem:[%s1 + $0x28] sm:$0xff]
  %v44 = vld [vmem:[%s1 + $0x30] sm:$0xff]
  %v45 = vld [vmem:[%s1 + $0x38] sm:$0xff]
  %v46 = vld [vmem:[%s1 + $0x40] sm:$0xff]
  %v47 = vld [vmem:[%s1 + $0x48] sm:$0xff]
  %v48 = vld [vmem:[%s1 + $0x50] sm:$0xff]
  %v49 = vld [vmem:[%s1 + $0x58] sm:$0xff]
  %v50 = vld [vmem:[%s2] sm:$0x1]
  %v52 = vlaneseq
  %v53 = vshrl.u32 %v52, 7
  %v54 = vsub.s32 0, %v53
  %v55 = vrot.slane %v50, %v54
  %vm57 = vcmask 785408
  %v59 = vsel %vm57, %v14, 0
  %v62 = vsel %vm57, %v15, 0
  %v65 = vsel %vm57, %v16, 0
  %v68 = vsel %vm57, %v17, 0
  %v71 = vsel %vm57, %v18, 0
  %v74 = vsel %vm57, %v19, 0
  %v77 = vsel %vm57, %v20, 0
  %v80 = vsel %vm57, %v21, 0
  %v83 = vsel %vm57, %v22, 0
  %v86 = vsel %vm57, %v23, 0
  %v89 = vsel %vm57, %v24, 0
  %v92 = vsel %vm57, %v25, 0
  %v95 = vsel %vm57, %v26, 0
  %v98 = vsel %vm57, %v27, 0
  %v101 = vsel %vm57, %v28, 0
  %v104 = vsel %vm57, %v29, 0
  %v107 = vsel %vm57, %v30, 0
  %v110 = vsel %vm57, %v31, 0
  %v113 = vsel %vm57, %v32, 0
  %v116 = vsel %vm57, %v33, 0
  %v119 = vsel %vm57, %v34, 0
  %v122 = vsel %vm57, %v35, 0
  %v125 = vsel %vm57, %v36, 0
  %v128 = vsel %vm57, %v37, 0
  %130 = vmatprep.subr.mxu0 0.0
  %131 = vmatpush1.msra.mxu0 %v38
  %132 = vmatprep.subr.mxu0 0.0
  %133 = vmatpush1.msra.mxu0 %v39
  %134 = vmatprep.subr.mxu0 0.0
  %135 = vmatpush1.msra.mxu0 %v40
  %136 = vmatprep.subr.mxu0 0.0
  %137 = vmatpush1.msra.mxu0 %v41
  %138 = vmatprep.subr.mxu0 0.0
  %139 = vmatpush1.msra.mxu0 %v42
  %140 = vmatprep.subr.mxu0 0.0
  %141 = vmatpush1.msra.mxu0 %v43
  %142 = vmatprep.subr.mxu0 0.0
  %143 = vmatpush1.msra.mxu0 %v44
  %144 = vmatprep.subr.mxu0 0.0
  %145 = vmatpush1.msra.mxu0 %v45
  %146 = vmatprep.subr.mxu0 0.0
  %147 = vmatpush1.msra.mxu0 %v46
  %148 = vmatprep.subr.mxu0 0.0
  %149 = vmatpush1.msra.mxu0 %v47
  %150 = vmatprep.subr.mxu0 0.0
  %151 = vmatpush1.msra.mxu0 %v48
  %152 = vmatprep.subr.mxu0 0.0
  %153 = vmatpush1.msra.mxu0 %v49
  %154 = vmatprep.subr.mxu0 0.0
  %155 = vmatpush1.msra.mxu0 0.0
  %156 = vmatprep.subr.mxu0 0.0
  %157 = vmatpush1.msra.mxu0 0.0
  %158 = vmatprep.subr.mxu0 0.0
  %159 = vmatpush1.msra.mxu0 0.0
  %160 = vmatprep.subr.mxu0 0.0
  %161 = vmatpush1.msra.mxu0 0.0
  %162 = vmatprep.subr.mxu0 0.0
  %163 = vmatpush1.msra.mxu0 0.0
  %164 = vmatprep.subr.mxu0 0.0
  %165 = vmatpush1.msra.mxu0 0.0
  %166 = vmatprep.subr.mxu0 0.0
  %167 = vmatpush1.msra.mxu0 0.0
  %168 = vmatprep.subr.mxu0 0.0
  %169 = vmatpush1.msra.mxu0 0.0
  %170 = vmatprep.subr.mxu0 0.0
  %171 = vmatpush1.msra.mxu0 0.0
  %172 = vmatprep.subr.mxu0 0.0
  %173 = vmatpush1.msra.mxu0 0.0
  %174 = vmatprep.subr.mxu0 0.0
  %175 = vmatpush1.msra.mxu0 0.0
  %176 = vmatprep.subr.mxu0 0.0
  %177 = vmatpush1.msra.mxu0 0.0
  %178 = vmatprep.subr.mxu0 0.0
  %179 = vmatpush1.msra.mxu0 0.0
  %180 = vmatprep.subr.mxu0 0.0
  %181 = vmatpush1.msra.mxu0 0.0
  %182 = vmatprep.subr.mxu0 0.0
  %183 = vmatpush1.msra.mxu0 0.0
  %184 = vmatprep.subr.mxu0 0.0
  %185 = vmatpush1.msra.mxu0 0.0
  %186 = vmatprep.subr.mxu0 0.0
  %187 = vmatpush1.msra.mxu0 0.0
  %188 = vmatprep.subr.mxu0 0.0
  %189 = vmatpush1.msra.mxu0 0.0
  %190 = vmatprep.subr.mxu0 0.0
  %191 = vmatpush1.msra.mxu0 0.0
  %192 = vmatprep.subr.mxu0 0.0
  %193 = vmatpush1.msra.mxu0 0.0
  %194 = vmatprep.mubr.f32.mxu0 0.0
  %195 = vmatmul.mubr.f32.gmra.mrb[0].mxu0 %v59
  %v196 = vpop.f32.mrb[0].mxu0
  %v197 = vadd.f32 %v55, %v196
  %v198 = vpop.f32.mrb[0].mxu0
  %199 = vmatprep.mubr.f32.mxu0 0.0
  %200 = vmatmul.mubr.f32.gmra.mrb[0].mxu0 %v62
  %v201 = vpop.f32.mrb[0].mxu0
  %v202 = vadd.f32 %v55, %v201
  %v203 = vpop.f32.mrb[0].mxu0
  %204 = vmatprep.mubr.f32.mxu0 0.0
  %205 = vmatmul.mubr.f32.gmra.mrb[0].mxu0 %v65
  %v206 = vpop.f32.mrb[0].mxu0
  %v207 = vadd.f32 %v55, %v206
  %v208 = vpop.f32.mrb[0].mxu0
  %209 = vmatprep.mubr.f32.mxu0 0.0
  %210 = vmatmul.mubr.f32.gmra.mrb[0].mxu0 %v68
  %v211 = vpop.f32.mrb[0].mxu0
  %v212 = vadd.f32 %v55, %v211
  %v213 = vpop.f32.mrb[0].mxu0
  %214 = vmatprep.mubr.f32.mxu0 0.0
  %215 = vmatmul.mubr.f32.gmra.mrb[0].mxu0 %v71
  %v216 = vpop.f32.mrb[0].mxu0
  %v217 = vadd.f32 %v55, %v216
  %v218 = vpop.f32.mrb[0].mxu0
  %219 = vmatprep.mubr.f32.mxu0 0.0
  %220 = vmatmul.mubr.f32.gmra.mrb[0].mxu0 %v74
  %v221 = vpop.f32.mrb[0].mxu0
  %v222 = vadd.f32 %v55, %v221
  %v223 = vpop.f32.mrb[0].mxu0
  %224 = vmatprep.mubr.f32.mxu0 0.0
  %225 = vmatmul.mubr.f32.gmra.mrb[0].mxu0 %v77
  %v226 = vpop.f32.mrb[0].mxu0
  %v227 = vadd.f32 %v55, %v226
  %v228 = vpop.f32.mrb[0].mxu0
  %229 = vmatprep.mubr.f32.mxu0 0.0
  %230 = vmatmul.mubr.f32.gmra.mrb[0].mxu0 %v80
  %v231 = vpop.f32.mrb[0].mxu0
  %v232 = vadd.f32 %v55, %v231
  %v233 = vpop.f32.mrb[0].mxu0
  %234 = vmatprep.mubr.f32.mxu0 0.0
  %235 = vmatmul.mubr.f32.gmra.mrb[0].mxu0 %v83
  %v236 = vpop.f32.mrb[0].mxu0
  %v237 = vadd.f32 %v55, %v236
  %v238 = vpop.f32.mrb[0].mxu0
  %239 = vmatprep.mubr.f32.mxu0 0.0
  %240 = vmatmul.mubr.f32.gmra.mrb[0].mxu0 %v86
  %v241 = vpop.f32.mrb[0].mxu0
  %v242 = vadd.f32 %v55, %v241
  %v243 = vpop.f32.mrb[0].mxu0
  %244 = vmatprep.mubr.f32.mxu0 0.0
  %245 = vmatmul.mubr.f32.gmra.mrb[0].mxu0 %v89
  %v246 = vpop.f32.mrb[0].mxu0
  %v247 = vadd.f32 %v55, %v246
  %v248 = vpop.f32.mrb[0].mxu0
  %249 = vmatprep.mubr.f32.mxu0 0.0
  %250 = vmatmul.mubr.f32.gmra.mrb[0].mxu0 %v92
  %v251 = vpop.f32.mrb[0].mxu0
  %v252 = vadd.f32 %v55, %v251
  %v253 = vpop.f32.mrb[0].mxu0
  %254 = vmatprep.mubr.f32.mxu0 0.0
  %255 = vmatmul.mubr.f32.gmra.mrb[0].mxu0 %v95
  %v256 = vpop.f32.mrb[0].mxu0
  %v257 = vadd.f32 %v55, %v256
  %v258 = vpop.f32.mrb[0].mxu0
  %259 = vmatprep.mubr.f32.mxu0 0.0
  %260 = vmatmul.mubr.f32.gmra.mrb[0].mxu0 %v98
  %v261 = vpop.f32.mrb[0].mxu0
  %v262 = vadd.f32 %v55, %v261
  %v263 = vpop.f32.mrb[0].mxu0
  %264 = vmatprep.mubr.f32.mxu0 0.0
  %265 = vmatmul.mubr.f32.gmra.mrb[0].mxu0 %v101
  %v266 = vpop.f32.mrb[0].mxu0
  %v267 = vadd.f32 %v55, %v266
  %v268 = vpop.f32.mrb[0].mxu0
  %269 = vmatprep.mubr.f32.mxu0 0.0
  %270 = vmatmul.mubr.f32.gmra.mrb[0].mxu0 %v104
  %v271 = vpop.f32.mrb[0].mxu0
  %v272 = vadd.f32 %v55, %v271
  %v273 = vpop.f32.mrb[0].mxu0
  %274 = vmatprep.mubr.f32.mxu0 0.0
  %275 = vmatmul.mubr.f32.gmra.mrb[0].mxu0 %v107
  %v276 = vpop.f32.mrb[0].mxu0
  %v277 = vadd.f32 %v55, %v276
  %v278 = vpop.f32.mrb[0].mxu0
  %279 = vmatprep.mubr.f32.mxu0 0.0
  %280 = vmatmul.mubr.f32.gmra.mrb[0].mxu0 %v110
  %v281 = vpop.f32.mrb[0].mxu0
  %v282 = vadd.f32 %v55, %v281
  %v283 = vpop.f32.mrb[0].mxu0
  %284 = vmatprep.mubr.f32.mxu0 0.0
  %285 = vmatmul.mubr.f32.gmra.mrb[0].mxu0 %v113
  %v286 = vpop.f32.mrb[0].mxu0
  %v287 = vadd.f32 %v55, %v286
  %v288 = vpop.f32.mrb[0].mxu0
  %289 = vmatprep.mubr.f32.mxu0 0.0
  %290 = vmatmul.mubr.f32.gmra.mrb[0].mxu0 %v116
  %v291 = vpop.f32.mrb[0].mxu0
  %v292 = vadd.f32 %v55, %v291
  %v293 = vpop.f32.mrb[0].mxu0
  %294 = vmatprep.mubr.f32.mxu0 0.0
  %295 = vmatmul.mubr.f32.gmra.mrb[0].mxu0 %v119
  %v296 = vpop.f32.mrb[0].mxu0
  %v297 = vadd.f32 %v55, %v296
  %v298 = vpop.f32.mrb[0].mxu0
  %299 = vmatprep.mubr.f32.mxu0 0.0
  %300 = vmatmul.mubr.f32.gmra.mrb[0].mxu0 %v122
  %v301 = vpop.f32.mrb[0].mxu0
  %v302 = vadd.f32 %v55, %v301
  %v303 = vpop.f32.mrb[0].mxu0
  %304 = vmatprep.mubr.f32.mxu0 0.0
  %305 = vmatmul.mubr.f32.gmra.mrb[0].mxu0 %v125
  %v306 = vpop.f32.mrb[0].mxu0
  %v307 = vadd.f32 %v55, %v306
  %v308 = vpop.f32.mrb[0].mxu0
  %309 = vmatprep.mubr.f32.mxu0 0.0
  %310 = vmatmul.mubr.f32.gmra.mrb[0].mxu0 %v128
  %v311 = vpop.f32.mrb[0].mxu0
  %v312 = vadd.f32 %v55, %v311
  %v313 = vpop.f32.mrb[0].mxu0
  %314 = vdwg.mxu0
  %vm315 = vcmask 130048
  %316 = vst.msk [vmem:[%s3] sm:$0xff] %vm315, %v197
  %317 = vst.msk [vmem:[%s3 + $0x8] sm:$0xff] %vm315, %v202
  %318 = vst.msk [vmem:[%s3 + $0x10] sm:$0xff] %vm315, %v207
  %319 = vst.msk [vmem:[%s3 + $0x18] sm:$0xff] %vm315, %v212
  %320 = vst.msk [vmem:[%s3 + $0x20] sm:$0xff] %vm315, %v217
  %321 = vst.msk [vmem:[%s3 + $0x28] sm:$0xff] %vm315, %v222
  %322 = vst.msk [vmem:[%s3 + $0x30] sm:$0xff] %vm315, %v227
  %323 = vst.msk [vmem:[%s3 + $0x38] sm:$0xff] %vm315, %v232
  %324 = vst.msk [vmem:[%s3 + $0x40] sm:$0xff] %vm315, %v237
  %325 = vst.msk [vmem:[%s3 + $0x48] sm:$0xff] %vm315, %v242
  %326 = vst.msk [vmem:[%s3 + $0x50] sm:$0xff] %vm315, %v247
  %327 = vst.msk [vmem:[%s3 + $0x58] sm:$0xff] %vm315, %v252
  %328 = vst.msk [vmem:[%s3 + $0x60] sm:$0xff] %vm315, %v257
  %329 = vst.msk [vmem:[%s3 + $0x68] sm:$0xff] %vm315, %v262
  %330 = vst.msk [vmem:[%s3 + $0x70] sm:$0xff] %vm315, %v267
  %331 = vst.msk [vmem:[%s3 + $0x78] sm:$0xff] %vm315, %v272
  %332 = vst.msk [vmem:[%s3 + $0x80] sm:$0xff] %vm315, %v277
  %333 = vst.msk [vmem:[%s3 + $0x88] sm:$0xff] %vm315, %v282
  %334 = vst.msk [vmem:[%s3 + $0x90] sm:$0xff] %vm315, %v287
  %335 = vst.msk [vmem:[%s3 + $0x98] sm:$0xff] %vm315, %v292
  %336 = vst.msk [vmem:[%s3 + $0xa0] sm:$0xff] %vm315, %v297
  %337 = vst.msk [vmem:[%s3 + $0xa8] sm:$0xff] %vm315, %v302
  %338 = vst.msk [vmem:[%s3 + $0xb0] sm:$0xff] %vm315, %v307
  %339 = vst.msk [vmem:[%s3 + $0xb8] sm:$0xff] %vm315, %v312
  // Predicated region
  $region14: #{forward.15} parent=0 // pred_check
    _
  $region15: #{forward.15} parent=0 // pred_check_branch
    %341 = sbr.rel (0) target = $region17
  $region16: #{forward.15} parent=0 // pred_region
    _
  $region17: #{forward.15} parent=0 // pred_fallthru
    _
  // Predicated region
  $region18: #{forward.15} parent=0 // pred_check
    _
  $region19: #{forward.15} parent=0 // pred_check_branch
    %343 = sbr.rel (0) target = $region21
  $region20: #{forward.15} parent=0 // pred_region
    _
  $region21: #{forward.15} parent=0 // pred_fallthru
    _

// kernel: forward.16
$region0: #{forward.16}
  #allocation0 [shape = 'u32[]', space=smem, size = 0x4, offset = 0x4, fixed_abs, tag = 'smem constant byte address 0x4 - core index']
  #allocation1 [shape = 'u32[144,128]{1,0:T(1,128)}', space=vmem, size = 0x12000, scoped, tag = 'internal scratch']
  %s0 = inlined_call_operand.vmem [shape: f32[256,12], index: 0, kind: input, shape index: {}]
  %s1 = inlined_call_operand.vmem [shape: f32[12,7], index: 1, kind: input, shape index: {}]
  %s2 = inlined_call_operand.vmem [shape: f32[12,7], index: 2, kind: input, shape index: {}]
  %s3 = inlined_call_operand.vmem [shape: f32[256,7], index: 3, kind: output, shape index: {}]
  %s4 = sld [smem:[#allocation0]]
  $region22: #{forward.16} parent=0
    _
  %s6 = ssub.s32 1, %s4
  %s7 = scalar_select 0, %s6, %s4
  // Predicated region
  $region2: #{forward.16} parent=0 // pred_check
    _
  $region3: #{forward.16} parent=0 // pred_check_branch
    %9 = sbr.rel (0) target = $region5
  $region4: #{forward.16} parent=0 // pred_region
    _
  $region5: #{forward.16} parent=0 // pred_fallthru
    _
  // Predicated region
  $region6: #{forward.16} parent=0 // pred_check
    _
  $region7: #{forward.16} parent=0 // pred_check_branch
    %11 = sbr.rel (0) target = $region9
  $region8: #{forward.16} parent=0 // pred_region
    _
  $region9: #{forward.16} parent=0 // pred_fallthru
    _
  // Predicated region
  $region10: #{forward.16} parent=0 // pred_check
    _
  $region11: #{forward.16} parent=0 // pred_check_branch
    %13 = sbr.rel (0) target = $region13
  $region12: #{forward.16} parent=0 // pred_region
    _
  $region13: #{forward.16} parent=0 // pred_fallthru
    _
  %v14 = vld [vmem:[%s0] sm:$0xff]
  %v15 = vld [vmem:[%s0 + $0x8] sm:$0xff]
  %v16 = vld [vmem:[%s0 + $0x10] sm:$0xff]
  %v17 = vld [vmem:[%s0 + $0x18] sm:$0xff]
  %v18 = vld [vmem:[%s0 + $0x20] sm:$0xff]
  %v19 = vld [vmem:[%s0 + $0x28] sm:$0xff]
  %v20 = vld [vmem:[%s0 + $0x30] sm:$0xff]
  %v21 = vld [vmem:[%s0 + $0x38] sm:$0xff]
  %v22 = vld [vmem:[%s0 + $0x40] sm:$0xff]
  %v23 = vld [vmem:[%s0 + $0x48] sm:$0xff]
  %v24 = vld [vmem:[%s0 + $0x50] sm:$0xff]
  %v25 = vld [vmem:[%s0 + $0x58] sm:$0xff]
  %v26 = vld [vmem:[%s0 + $0x60] sm:$0xff]
  %v27 = vld [vmem:[%s0 + $0x68] sm:$0xff]
  %v28 = vld [vmem:[%s0 + $0x70] sm:$0xff]
  %v29 = vld [vmem:[%s0 + $0x78] sm:$0xff]
  %v30 = vld [vmem:[%s0 + $0x80] sm:$0xff]
  %v31 = vld [vmem:[%s0 + $0x88] sm:$0xff]
  %v32 = vld [vmem:[%s0 + $0x90] sm:$0xff]
  %v33 = vld [vmem:[%s0 + $0x98] sm:$0xff]
  %v34 = vld [vmem:[%s0 + $0xa0] sm:$0xff]
  %v35 = vld [vmem:[%s0 + $0xa8] sm:$0xff]
  %v36 = vld [vmem:[%s0 + $0xb0] sm:$0xff]
  %v37 = vld [vmem:[%s0 + $0xb8] sm:$0xff]
  %v38 = vld [vmem:[%s0 + $0xc0] sm:$0xff]
  %v39 = vld [vmem:[%s0 + $0xc8] sm:$0xff]
  %v40 = vld [vmem:[%s0 + $0xd0] sm:$0xff]
  %v41 = vld [vmem:[%s0 + $0xd8] sm:$0xff]
  %v42 = vld [vmem:[%s0 + $0xe0] sm:$0xff]
  %v43 = vld [vmem:[%s0 + $0xe8] sm:$0xff]
  %v44 = vld [vmem:[%s0 + $0xf0] sm:$0xff]
  %v45 = vld [vmem:[%s0 + $0xf8] sm:$0xff]
  %v46 = vld [vmem:[%s1] sm:$0xff]
  %v47 = vld [vmem:[%s1 + $0x8] sm:$0xf]
  %vm48 = vcmask 97280
  %v50 = vsel %vm48, %v14, 0
  %v53 = vsel %vm48, %v15, 0
  %v56 = vsel %vm48, %v16, 0
  %v59 = vsel %vm48, %v17, 0
  %v62 = vsel %vm48, %v18, 0
  %v65 = vsel %vm48, %v19, 0
  %v68 = vsel %vm48, %v20, 0
  %v71 = vsel %vm48, %v21, 0
  %v74 = vsel %vm48, %v22, 0
  %v77 = vsel %vm48, %v23, 0
  %v80 = vsel %vm48, %v24, 0
  %v83 = vsel %vm48, %v25, 0
  %v86 = vsel %vm48, %v26, 0
  %v89 = vsel %vm48, %v27, 0
  %v92 = vsel %vm48, %v28, 0
  %v95 = vsel %vm48, %v29, 0
  %v98 = vsel %vm48, %v30, 0
  %v101 = vsel %vm48, %v31, 0
  %v104 = vsel %vm48, %v32, 0
  %v107 = vsel %vm48, %v33, 0
  %v110 = vsel %vm48, %v34, 0
  %v113 = vsel %vm48, %v35, 0
  %v116 = vsel %vm48, %v36, 0
  %v119 = vsel %vm48, %v37, 0
  %v122 = vsel %vm48, %v38, 0
  %v125 = vsel %vm48, %v39, 0
  %v128 = vsel %vm48, %v40, 0
  %v131 = vsel %vm48, %v41, 0
  %v134 = vsel %vm48, %v42, 0
  %v137 = vsel %vm48, %v43, 0
  %v140 = vsel %vm48, %v44, 0
  %v143 = vsel %vm48, %v45, 0
  %vm145 = vcmask 1043456
  %v147 = vsel %vm145, %v47, 0
  %149 = vmatprep.subr.mxu0 0.0
  %150 = vmatpush1.msra.mxu0 %v46
  %151 = vmatprep.subr.mxu0 0.0
  %152 = vmatpush1.msra.mxu0 %v147
  %153 = vmatprep.subr.mxu0 0.0
  %154 = vmatpush1.msra.mxu0 0.0
  %155 = vmatprep.subr.mxu0 0.0
  %156 = vmatpush1.msra.mxu0 0.0
  %157 = vmatprep.subr.mxu0 0.0
  %158 = vmatpush1.msra.mxu0 0.0
  %159 = vmatprep.subr.mxu0 0.0
  %160 = vmatpush1.msra.mxu0 0.0
  %161 = vmatprep.subr.mxu0 0.0
  %162 = vmatpush1.msra.mxu0 0.0
  %163 = vmatprep.subr.mxu0 0.0
  %164 = vmatpush1.msra.mxu0 0.0
  %165 = vmatprep.subr.mxu0 0.0
  %166 = vmatpush1.msra.mxu0 0.0
  %167 = vmatprep.subr.mxu0 0.0
  %168 = vmatpush1.msra.mxu0 0.0
  %169 = vmatprep.subr.mxu0 0.0
  %170 = vmatpush1.msra.mxu0 0.0
  %171 = vmatprep.subr.mxu0 0.0
  %172 = vmatpush1.msra.mxu0 0.0
  %173 = vmatprep.subr.mxu0 0.0
  %174 = vmatpush1.msra.mxu0 0.0
  %175 = vmatprep.subr.mxu0 0.0
  %176 = vmatpush1.msra.mxu0 0.0
  %177 = vmatprep.subr.mxu0 0.0
  %178 = vmatpush1.msra.mxu0 0.0
  %179 = vmatprep.subr.mxu0 0.0
  %180 = vmatpush1.msra.mxu0 0.0
  %181 = vmatprep.subr.mxu0 0.0
  %182 = vmatpush1.msra.mxu0 0.0
  %183 = vmatprep.subr.mxu0 0.0
  %184 = vmatpush1.msra.mxu0 0.0
  %185 = vmatprep.subr.mxu0 0.0
  %186 = vmatpush1.msra.mxu0 0.0
  %187 = vmatprep.subr.mxu0 0.0
  %188 = vmatpush1.msra.mxu0 0.0
  %189 = vmatprep.subr.mxu0 0.0
  %190 = vmatpush1.msra.mxu0 0.0
  %191 = vmatprep.subr.mxu0 0.0
  %192 = vmatpush1.msra.mxu0 0.0
  %193 = vmatprep.subr.mxu0 0.0
  %194 = vmatpush1.msra.mxu0 0.0
  %195 = vmatprep.subr.mxu0 0.0
  %196 = vmatpush1.msra.mxu0 0.0
  %197 = vmatprep.subr.mxu0 0.0
  %198 = vmatpush1.msra.mxu0 0.0
  %199 = vmatprep.subr.mxu0 0.0
  %200 = vmatpush1.msra.mxu0 0.0
  %201 = vmatprep.subr.mxu0 0.0
  %202 = vmatpush1.msra.mxu0 0.0
  %203 = vmatprep.subr.mxu0 0.0
  %204 = vmatpush1.msra.mxu0 0.0
  %205 = vmatprep.subr.mxu0 0.0
  %206 = vmatpush1.msra.mxu0 0.0
  %207 = vmatprep.subr.mxu0 0.0
  %208 = vmatpush1.msra.mxu0 0.0
  %209 = vmatprep.subr.mxu0 0.0
  %210 = vmatpush1.msra.mxu0 0.0
  %211 = vmatprep.subr.mxu0 0.0
  %212 = vmatpush1.msra.mxu0 0.0
  %213 = vmatprep.mubr.f32.mxu0 0.0
  %214 = vmatmul.mubr.f32.gmra.mrb[0].mxu0 %v50
  %v215 = vpop.f32.mrb[0].mxu0
  %v216 = vadd.f32 0.0, %v215
  %v217 = vpop.f32.mrb[0].mxu0
  %218 = vmatprep.mubr.f32.mxu0 0.0
  %219 = vmatmul.mubr.f32.gmra.mrb[0].mxu0 %v53
  %v220 = vpop.f32.mrb[0].mxu0
  %v221 = vadd.f32 0.0, %v220
  %v222 = vpop.f32.mrb[0].mxu0
  %223 = vmatprep.mubr.f32.mxu0 0.0
  %224 = vmatmul.mubr.f32.gmra.mrb[0].mxu0 %v56
  %v225 = vpop.f32.mrb[0].mxu0
  %v226 = vadd.f32 0.0, %v225
  %v227 = vpop.f32.mrb[0].mxu0
  %228 = vmatprep.mubr.f32.mxu0 0.0
  %229 = vmatmul.mubr.f32.gmra.mrb[0].mxu0 %v59
  %v230 = vpop.f32.mrb[0].mxu0
  %v231 = vadd.f32 0.0, %v230
  %v232 = vpop.f32.mrb[0].mxu0
  %233 = vmatprep.mubr.f32.mxu0 0.0
  %234 = vmatmul.mubr.f32.gmra.mrb[0].mxu0 %v62
  %v235 = vpop.f32.mrb[0].mxu0
  %v236 = vadd.f32 0.0, %v235
  %v237 = vpop.f32.mrb[0].mxu0
  %238 = vmatprep.mubr.f32.mxu0 0.0
  %239 = vmatmul.mubr.f32.gmra.mrb[0].mxu0 %v65
  %v240 = vpop.f32.mrb[0].mxu0
  %v241 = vadd.f32 0.0, %v240
  %v242 = vpop.f32.mrb[0].mxu0
  %243 = vmatprep.mubr.f32.mxu0 0.0
  %244 = vmatmul.mubr.f32.gmra.mrb[0].mxu0 %v68
  %v245 = vpop.f32.mrb[0].mxu0
  %v246 = vadd.f32 0.0, %v245
  %v247 = vpop.f32.mrb[0].mxu0
  %248 = vmatprep.mubr.f32.mxu0 0.0
  %249 = vmatmul.mubr.f32.gmra.mrb[0].mxu0 %v71
  %v250 = vpop.f32.mrb[0].mxu0
  %v251 = vadd.f32 0.0, %v250
  %v252 = vpop.f32.mrb[0].mxu0
  %253 = vmatprep.mubr.f32.mxu0 0.0
  %254 = vmatmul.mubr.f32.gmra.mrb[0].mxu0 %v74
  %v255 = vpop.f32.mrb[0].mxu0
  %v256 = vadd.f32 0.0, %v255
  %v257 = vpop.f32.mrb[0].mxu0
  %258 = vmatprep.mubr.f32.mxu0 0.0
  %259 = vmatmul.mubr.f32.gmra.mrb[0].mxu0 %v77
  %v260 = vpop.f32.mrb[0].mxu0
  %v261 = vadd.f32 0.0, %v260
  %v262 = vpop.f32.mrb[0].mxu0
  %263 = vmatprep.mubr.f32.mxu0 0.0
  %264 = vmatmul.mubr.f32.gmra.mrb[0].mxu0 %v80
  %v265 = vpop.f32.mrb[0].mxu0
  %v266 = vadd.f32 0.0, %v265
  %v267 = vpop.f32.mrb[0].mxu0
  %268 = vmatprep.mubr.f32.mxu0 0.0
  %269 = vmatmul.mubr.f32.gmra.mrb[0].mxu0 %v83
  %v270 = vpop.f32.mrb[0].mxu0
  %v271 = vadd.f32 0.0, %v270
  %v272 = vpop.f32.mrb[0].mxu0
  %273 = vmatprep.mubr.f32.mxu0 0.0
  %274 = vmatmul.mubr.f32.gmra.mrb[0].mxu0 %v86
  %v275 = vpop.f32.mrb[0].mxu0
  %v276 = vadd.f32 0.0, %v275
  %v277 = vpop.f32.mrb[0].mxu0
  %278 = vmatprep.mubr.f32.mxu0 0.0
  %279 = vmatmul.mubr.f32.gmra.mrb[0].mxu0 %v89
  %v280 = vpop.f32.mrb[0].mxu0
  %v281 = vadd.f32 0.0, %v280
  %v282 = vpop.f32.mrb[0].mxu0
  %283 = vmatprep.mubr.f32.mxu0 0.0
  %284 = vmatmul.mubr.f32.gmra.mrb[0].mxu0 %v92
  %v285 = vpop.f32.mrb[0].mxu0
  %v286 = vadd.f32 0.0, %v285
  %v287 = vpop.f32.mrb[0].mxu0
  %288 = vmatprep.mubr.f32.mxu0 0.0
  %289 = vmatmul.mubr.f32.gmra.mrb[0].mxu0 %v95
  %v290 = vpop.f32.mrb[0].mxu0
  %v291 = vadd.f32 0.0, %v290
  %v292 = vpop.f32.mrb[0].mxu0
  %293 = vmatprep.mubr.f32.mxu0 0.0
  %294 = vmatmul.mubr.f32.gmra.mrb[0].mxu0 %v98
  %v295 = vpop.f32.mrb[0].mxu0
  %v296 = vadd.f32 0.0, %v295
  %v297 = vpop.f32.mrb[0].mxu0
  %298 = vmatprep.mubr.f32.mxu0 0.0
  %299 = vmatmul.mubr.f32.gmra.mrb[0].mxu0 %v101
  %v300 = vpop.f32.mrb[0].mxu0
  %v301 = vadd.f32 0.0, %v300
  %v302 = vpop.f32.mrb[0].mxu0
  %303 = vmatprep.mubr.f32.mxu0 0.0
  %304 = vmatmul.mubr.f32.gmra.mrb[0].mxu0 %v104
  %v305 = vpop.f32.mrb[0].mxu0
  %v306 = vadd.f32 0.0, %v305
  %v307 = vpop.f32.mrb[0].mxu0
  %308 = vmatprep.mubr.f32.mxu0 0.0
  %309 = vmatmul.mubr.f32.gmra.mrb[0].mxu0 %v107
  %v310 = vpop.f32.mrb[0].mxu0
  %v311 = vadd.f32 0.0, %v310
  %v312 = vpop.f32.mrb[0].mxu0
  %313 = vmatprep.mubr.f32.mxu0 0.0
  %314 = vmatmul.mubr.f32.gmra.mrb[0].mxu0 %v110
  %v315 = vpop.f32.mrb[0].mxu0
  %v316 = vadd.f32 0.0, %v315
  %v317 = vpop.f32.mrb[0].mxu0
  %318 = vmatprep.mubr.f32.mxu0 0.0
  %319 = vmatmul.mubr.f32.gmra.mrb[0].mxu0 %v113
  %v320 = vpop.f32.mrb[0].mxu0
  %v321 = vadd.f32 0.0, %v320
  %v322 = vpop.f32.mrb[0].mxu0
  %323 = vmatprep.mubr.f32.mxu0 0.0
  %324 = vmatmul.mubr.f32.gmra.mrb[0].mxu0 %v116
  %v325 = vpop.f32.mrb[0].mxu0
  %v326 = vadd.f32 0.0, %v325
  %v327 = vpop.f32.mrb[0].mxu0
  %328 = vmatprep.mubr.f32.mxu0 0.0
  %329 = vmatmul.mubr.f32.gmra.mrb[0].mxu0 %v119
  %v330 = vpop.f32.mrb[0].mxu0
  %v331 = vadd.f32 0.0, %v330
  %v332 = vpop.f32.mrb[0].mxu0
  %333 = vmatprep.mubr.f32.mxu0 0.0
  %334 = vmatmul.mubr.f32.gmra.mrb[0].mxu0 %v122
  %v335 = vpop.f32.mrb[0].mxu0
  %v336 = vadd.f32 0.0, %v335
  %v337 = vpop.f32.mrb[0].mxu0
  %338 = vmatprep.mubr.f32.mxu0 0.0
  %339 = vmatmul.mubr.f32.gmra.mrb[0].mxu0 %v125
  %v340 = vpop.f32.mrb[0].mxu0
  %v341 = vadd.f32 0.0, %v340
  %v342 = vpop.f32.mrb[0].mxu0
  %343 = vmatprep.mubr.f32.mxu0 0.0
  %344 = vmatmul.mubr.f32.gmra.mrb[0].mxu0 %v128
  %v345 = vpop.f32.mrb[0].mxu0
  %v346 = vadd.f32 0.0, %v345
  %v347 = vpop.f32.mrb[0].mxu0
  %348 = vmatprep.mubr.f32.mxu0 0.0
  %349 = vmatmul.mubr.f32.gmra.mrb[0].mxu0 %v131
  %v350 = vpop.f32.mrb[0].mxu0
  %v351 = vadd.f32 0.0, %v350
  %v352 = vpop.f32.mrb[0].mxu0
  %353 = vmatprep.mubr.f32.mxu0 0.0
  %354 = vmatmul.mubr.f32.gmra.mrb[0].mxu0 %v134
  %v355 = vpop.f32.mrb[0].mxu0
  %v356 = vadd.f32 0.0, %v355
  %v357 = vpop.f32.mrb[0].mxu0
  %358 = vmatprep.mubr.f32.mxu0 0.0
  %359 = vmatmul.mubr.f32.gmra.mrb[0].mxu0 %v137
  %v360 = vpop.f32.mrb[0].mxu0
  %v361 = vadd.f32 0.0, %v360
  %v362 = vpop.f32.mrb[0].mxu0
  %363 = vmatprep.mubr.f32.mxu0 0.0
  %364 = vmatmul.mubr.f32.gmra.mrb[0].mxu0 %v140
  %v365 = vpop.f32.mrb[0].mxu0
  %v366 = vadd.f32 0.0, %v365
  %v367 = vpop.f32.mrb[0].mxu0
  %368 = vmatprep.mubr.f32.mxu0 0.0
  %369 = vmatmul.mubr.f32.gmra.mrb[0].mxu0 %v143
  %v370 = vpop.f32.mrb[0].mxu0
  %v371 = vadd.f32 0.0, %v370
  %v372 = vpop.f32.mrb[0].mxu0
  %373 = vdwg.mxu0
  %v374 = vld [vmem:[%s2] sm:$0xff]
  %v375 = vld [vmem:[%s2 + $0x8] sm:$0xf]
  %v377 = vsel %vm145, %v375, 0
  %379 = vmatprep.subr.mxu0 0.0
  %380 = vmatpush1.msra.mxu0 %v374
  %381 = vmatprep.subr.mxu0 0.0
  %382 = vmatpush1.msra.mxu0 %v377
  %383 = vmatprep.subr.mxu0 0.0
  %384 = vmatpush1.msra.mxu0 0.0
  %385 = vmatprep.subr.mxu0 0.0
  %386 = vmatpush1.msra.mxu0 0.0
  %387 = vmatprep.subr.mxu0 0.0
  %388 = vmatpush1.msra.mxu0 0.0
  %389 = vmatprep.subr.mxu0 0.0
  %390 = vmatpush1.msra.mxu0 0.0
  %391 = vmatprep.subr.mxu0 0.0
  %392 = vmatpush1.msra.mxu0 0.0
  %393 = vmatprep.subr.mxu0 0.0
  %394 = vmatpush1.msra.mxu0 0.0
  %395 = vmatprep.subr.mxu0 0.0
  %396 = vmatpush1.msra.mxu0 0.0
  %397 = vmatprep.subr.mxu0 0.0
  %398 = vmatpush1.msra.mxu0 0.0
  %399 = vmatprep.subr.mxu0 0.0
  %400 = vmatpush1.msra.mxu0 0.0
  %401 = vmatprep.subr.mxu0 0.0
  %402 = vmatpush1.msra.mxu0 0.0
  %403 = vmatprep.subr.mxu0 0.0
  %404 = vmatpush1.msra.mxu0 0.0
  %405 = vmatprep.subr.mxu0 0.0
  %406 = vmatpush1.msra.mxu0 0.0
  %407 = vmatprep.subr.mxu0 0.0
  %408 = vmatpush1.msra.mxu0 0.0
  %409 = vmatprep.subr.mxu0 0.0
  %410 = vmatpush1.msra.mxu0 0.0
  %411 = vmatprep.subr.mxu0 0.0
  %412 = vmatpush1.msra.mxu0 0.0
  %413 = vmatprep.subr.mxu0 0.0
  %414 = vmatpush1.msra.mxu0 0.0
  %415 = vmatprep.subr.mxu0 0.0
  %416 = vmatpush1.msra.mxu0 0.0
  %417 = vmatprep.subr.mxu0 0.0
  %418 = vmatpush1.msra.mxu0 0.0
  %419 = vmatprep.subr.mxu0 0.0
  %420 = vmatpush1.msra.mxu0 0.0
  %421 = vmatprep.subr.mxu0 0.0
  %422 = vmatpush1.msra.mxu0 0.0
  %423 = vmatprep.subr.mxu0 0.0
  %424 = vmatpush1.msra.mxu0 0.0
  %425 = vmatprep.subr.mxu0 0.0
  %426 = vmatpush1.msra.mxu0 0.0
  %427 = vmatprep.subr.mxu0 0.0
  %428 = vmatpush1.msra.mxu0 0.0
  %429 = vmatprep.subr.mxu0 0.0
  %430 = vmatpush1.msra.mxu0 0.0
  %431 = vmatprep.subr.mxu0 0.0
  %432 = vmatpush1.msra.mxu0 0.0
  %433 = vmatprep.subr.mxu0 0.0
  %434 = vmatpush1.msra.mxu0 0.0
  %435 = vmatprep.subr.mxu0 0.0
  %436 = vmatpush1.msra.mxu0 0.0
  %437 = vmatprep.subr.mxu0 0.0
  %438 = vmatpush1.msra.mxu0 0.0
  %439 = vmatprep.subr.mxu0 0.0
  %440 = vmatpush1.msra.mxu0 0.0
  %441 = vmatprep.subr.mxu0 0.0
  %442 = vmatpush1.msra.mxu0 0.0
  %443 = vmatprep.mubr.f32.mxu0 0.0
  %444 = vmatmul.mubr.f32.gmra.mrb[0].mxu0 %v50
  %v445 = vpop.f32.mrb[0].mxu0
  %v446 = vadd.f32 0.0, %v445
  %v447 = vpop.f32.mrb[0].mxu0
  %448 = vmatprep.mubr.f32.mxu0 0.0
  %449 = vmatmul.mubr.f32.gmra.mrb[0].mxu0 %v53
  %v450 = vpop.f32.mrb[0].mxu0
  %v451 = vadd.f32 0.0, %v450
  %v452 = vpop.f32.mrb[0].mxu0
  %453 = vmatprep.mubr.f32.mxu0 0.0
  %454 = vmatmul.mubr.f32.gmra.mrb[0].mxu0 %v56
  %v455 = vpop.f32.mrb[0].mxu0
  %v456 = vadd.f32 0.0, %v455
  %v457 = vpop.f32.mrb[0].mxu0
  %458 = vmatprep.mubr.f32.mxu0 0.0
  %459 = vmatmul.mubr.f32.gmra.mrb[0].mxu0 %v59
  %v460 = vpop.f32.mrb[0].mxu0
  %v461 = vadd.f32 0.0, %v460
  %v462 = vpop.f32.mrb[0].mxu0
  %463 = vmatprep.mubr.f32.mxu0 0.0
  %464 = vmatmul.mubr.f32.gmra.mrb[0].mxu0 %v62
  %v465 = vpop.f32.mrb[0].mxu0
  %v466 = vadd.f32 0.0, %v465
  %v467 = vpop.f32.mrb[0].mxu0
  %468 = vmatprep.mubr.f32.mxu0 0.0
  %469 = vmatmul.mubr.f32.gmra.mrb[0].mxu0 %v65
  %v470 = vpop.f32.mrb[0].mxu0
  %v471 = vadd.f32 0.0, %v470
  %v472 = vpop.f32.mrb[0].mxu0
  %473 = vmatprep.mubr.f32.mxu0 0.0
  %474 = vmatmul.mubr.f32.gmra.mrb[0].mxu0 %v68
  %v475 = vpop.f32.mrb[0].mxu0
  %v476 = vadd.f32 0.0, %v475
  %v477 = vpop.f32.mrb[0].mxu0
  %478 = vmatprep.mubr.f32.mxu0 0.0
  %479 = vmatmul.mubr.f32.gmra.mrb[0].mxu0 %v71
  %v480 = vpop.f32.mrb[0].mxu0
  %v481 = vadd.f32 0.0, %v480
  %v482 = vpop.f32.mrb[0].mxu0
  %483 = vmatprep.mubr.f32.mxu0 0.0
  %484 = vmatmul.mubr.f32.gmra.mrb[0].mxu0 %v74
  %v485 = vpop.f32.mrb[0].mxu0
  %v486 = vadd.f32 0.0, %v485
  %v487 = vpop.f32.mrb[0].mxu0
  %488 = vmatprep.mubr.f32.mxu0 0.0
  %489 = vmatmul.mubr.f32.gmra.mrb[0].mxu0 %v77
  %v490 = vpop.f32.mrb[0].mxu0
  %v491 = vadd.f32 0.0, %v490
  %v492 = vpop.f32.mrb[0].mxu0
  %493 = vmatprep.mubr.f32.mxu0 0.0
  %494 = vmatmul.mubr.f32.gmra.mrb[0].mxu0 %v80
  %v495 = vpop.f32.mrb[0].mxu0
  %v496 = vadd.f32 0.0, %v495
  %v497 = vpop.f32.mrb[0].mxu0
  %498 = vmatprep.mubr.f32.mxu0 0.0
  %499 = vmatmul.mubr.f32.gmra.mrb[0].mxu0 %v83
  %v500 = vpop.f32.mrb[0].mxu0
  %v501 = vadd.f32 0.0, %v500
  %v502 = vpop.f32.mrb[0].mxu0
  %503 = vmatprep.mubr.f32.mxu0 0.0
  %504 = vmatmul.mubr.f32.gmra.mrb[0].mxu0 %v86
  %v505 = vpop.f32.mrb[0].mxu0
  %v506 = vadd.f32 0.0, %v505
  %v507 = vpop.f32.mrb[0].mxu0
  %508 = vmatprep.mubr.f32.mxu0 0.0
  %509 = vmatmul.mubr.f32.gmra.mrb[0].mxu0 %v89
  %v510 = vpop.f32.mrb[0].mxu0
  %v511 = vadd.f32 0.0, %v510
  %v512 = vpop.f32.mrb[0].mxu0
  %513 = vmatprep.mubr.f32.mxu0 0.0
  %514 = vmatmul.mubr.f32.gmra.mrb[0].mxu0 %v92
  %v515 = vpop.f32.mrb[0].mxu0
  %v516 = vadd.f32 0.0, %v515
  %v517 = vpop.f32.mrb[0].mxu0
  %518 = vmatprep.mubr.f32.mxu0 0.0
  %519 = vmatmul.mubr.f32.gmra.mrb[0].mxu0 %v95
  %v520 = vpop.f32.mrb[0].mxu0
  %v521 = vadd.f32 0.0, %v520
  %v522 = vpop.f32.mrb[0].mxu0
  %523 = vmatprep.mubr.f32.mxu0 0.0
  %524 = vmatmul.mubr.f32.gmra.mrb[0].mxu0 %v98
  %v525 = vpop.f32.mrb[0].mxu0
  %v526 = vadd.f32 0.0, %v525
  %v527 = vpop.f32.mrb[0].mxu0
  %528 = vmatprep.mubr.f32.mxu0 0.0
  %529 = vmatmul.mubr.f32.gmra.mrb[0].mxu0 %v101
  %v530 = vpop.f32.mrb[0].mxu0
  %v531 = vadd.f32 0.0, %v530
  %v532 = vpop.f32.mrb[0].mxu0
  %533 = vmatprep.mubr.f32.mxu0 0.0
  %534 = vmatmul.mubr.f32.gmra.mrb[0].mxu0 %v104
  %v535 = vpop.f32.mrb[0].mxu0
  %v536 = vadd.f32 0.0, %v535
  %v537 = vpop.f32.mrb[0].mxu0
  %538 = vmatprep.mubr.f32.mxu0 0.0
  %539 = vmatmul.mubr.f32.gmra.mrb[0].mxu0 %v107
  %v540 = vpop.f32.mrb[0].mxu0
  %v541 = vadd.f32 0.0, %v540
  %v542 = vpop.f32.mrb[0].mxu0
  %543 = vmatprep.mubr.f32.mxu0 0.0
  %544 = vmatmul.mubr.f32.gmra.mrb[0].mxu0 %v110
  %v545 = vpop.f32.mrb[0].mxu0
  %v546 = vadd.f32 0.0, %v545
  %v547 = vpop.f32.mrb[0].mxu0
  %548 = vmatprep.mubr.f32.mxu0 0.0
  %549 = vmatmul.mubr.f32.gmra.mrb[0].mxu0 %v113
  %v550 = vpop.f32.mrb[0].mxu0
  %v551 = vadd.f32 0.0, %v550
  %v552 = vpop.f32.mrb[0].mxu0
  %553 = vmatprep.mubr.f32.mxu0 0.0
  %554 = vmatmul.mubr.f32.gmra.mrb[0].mxu0 %v116
  %v555 = vpop.f32.mrb[0].mxu0
  %v556 = vadd.f32 0.0, %v555
  %v557 = vpop.f32.mrb[0].mxu0
  %558 = vmatprep.mubr.f32.mxu0 0.0
  %559 = vmatmul.mubr.f32.gmra.mrb[0].mxu0 %v119
  %v560 = vpop.f32.mrb[0].mxu0
  %v561 = vadd.f32 0.0, %v560
  %v562 = vpop.f32.mrb[0].mxu0
  %563 = vmatprep.mubr.f32.mxu0 0.0
  %564 = vmatmul.mubr.f32.gmra.mrb[0].mxu0 %v122
  %v565 = vpop.f32.mrb[0].mxu0
  %v566 = vadd.f32 0.0, %v565
  %v567 = vpop.f32.mrb[0].mxu0
  %568 = vmatprep.mubr.f32.mxu0 0.0
  %569 = vmatmul.mubr.f32.gmra.mrb[0].mxu0 %v125
  %v570 = vpop.f32.mrb[0].mxu0
  %v571 = vadd.f32 0.0, %v570
  %v572 = vpop.f32.mrb[0].mxu0
  %573 = vmatprep.mubr.f32.mxu0 0.0
  %574 = vmatmul.mubr.f32.gmra.mrb[0].mxu0 %v128
  %v575 = vpop.f32.mrb[0].mxu0
  %v576 = vadd.f32 0.0, %v575
  %v577 = vpop.f32.mrb[0].mxu0
  %578 = vmatprep.mubr.f32.mxu0 0.0
  %579 = vmatmul.mubr.f32.gmra.mrb[0].mxu0 %v131
  %v580 = vpop.f32.mrb[0].mxu0
  %v581 = vadd.f32 0.0, %v580
  %v582 = vpop.f32.mrb[0].mxu0
  %583 = vmatprep.mubr.f32.mxu0 0.0
  %584 = vmatmul.mubr.f32.gmra.mrb[0].mxu0 %v134
  %v585 = vpop.f32.mrb[0].mxu0
  %v586 = vadd.f32 0.0, %v585
  %v587 = vpop.f32.mrb[0].mxu0
  %588 = vmatprep.mubr.f32.mxu0 0.0
  %589 = vmatmul.mubr.f32.gmra.mrb[0].mxu0 %v137
  %v590 = vpop.f32.mrb[0].mxu0
  %v591 = vadd.f32 0.0, %v590
  %v592 = vpop.f32.mrb[0].mxu0
  %593 = vmatprep.mubr.f32.mxu0 0.0
  %594 = vmatmul.mubr.f32.gmra.mrb[0].mxu0 %v140
  %v595 = vpop.f32.mrb[0].mxu0
  %v596 = vadd.f32 0.0, %v595
  %v597 = vpop.f32.mrb[0].mxu0
  %598 = vmatprep.mubr.f32.mxu0 0.0
  %599 = vmatmul.mubr.f32.gmra.mrb[0].mxu0 %v143
  %v600 = vpop.f32.mrb[0].mxu0
  %v601 = vadd.f32 0.0, %v600
  %v602 = vpop.f32.mrb[0].mxu0
  %603 = vdwg.mxu0
  %v604 = vmul.f32 %v216, %v216
  %v605 = vmul.f32 %v221, %v221
  %v606 = vmul.f32 %v226, %v226
  %v607 = vmul.f32 %v231, %v231
  %v608 = vmul.f32 %v236, %v236
  %v609 = vmul.f32 %v241, %v241
  %v610 = vmul.f32 %v246, %v246
  %v611 = vmul.f32 %v251, %v251
  %v612 = vmul.f32 %v256, %v256
  %v613 = vmul.f32 %v261, %v261
  %v614 = vmul.f32 %v266, %v266
  %v615 = vmul.f32 %v271, %v271
  %v616 = vmul.f32 %v276, %v276
  %v617 = vmul.f32 %v281, %v281
  %v618 = vmul.f32 %v286, %v286
  %v619 = vmul.f32 %v291, %v291
  %v620 = vmul.f32 %v296, %v296
  %v621 = vmul.f32 %v301, %v301
  %v622 = vmul.f32 %v306, %v306
  %v623 = vmul.f32 %v311, %v311
  %v624 = vmul.f32 %v316, %v316
  %v625 = vmul.f32 %v321, %v321
  %v626 = vmul.f32 %v326, %v326
  %v627 = vmul.f32 %v331, %v331
  %v628 = vmul.f32 %v336, %v336
  %v629 = vmul.f32 %v341, %v341
  %v630 = vmul.f32 %v346, %v346
  %v631 = vmul.f32 %v351, %v351
  %v632 = vmul.f32 %v356, %v356
  %v633 = vmul.f32 %v361, %v361
  %v634 = vmul.f32 %v366, %v366
  %v635 = vmul.f32 %v371, %v371
  %v636 = vmul.f32 %v446, %v446
  %v637 = vmul.f32 %v451, %v451
  %v638 = vmul.f32 %v456, %v456
  %v639 = vmul.f32 %v461, %v461
  %v640 = vmul.f32 %v466, %v466
  %v641 = vmul.f32 %v471, %v471
  %v642 = vmul.f32 %v476, %v476
  %v643 = vmul.f32 %v481, %v481
  %v644 = vmul.f32 %v486, %v486
  %v645 = vmul.f32 %v491, %v491
  %v646 = vmul.f32 %v496, %v496
  %v647 = vmul.f32 %v501, %v501
  %v648 = vmul.f32 %v506, %v506
  %v649 = vmul.f32 %v511, %v511
  %v650 = vmul.f32 %v516, %v516
  %v651 = vmul.f32 %v521, %v521
  %v652 = vmul.f32 %v526, %v526
  %v653 = vmul.f32 %v531, %v531
  %v654 = vmul.f32 %v536, %v536
  %v655 = vmul.f32 %v541, %v541
  %v656 = vmul.f32 %v546, %v546
  %v657 = vmul.f32 %v551, %v551
  %v658 = vmul.f32 %v556, %v556
  %v659 = vmul.f32 %v561, %v561
  %v660 = vmul.f32 %v566, %v566
  %v661 = vmul.f32 %v571, %v571
  %v662 = vmul.f32 %v576, %v576
  %v663 = vmul.f32 %v581, %v581
  %v664 = vmul.f32 %v586, %v586
  %v665 = vmul.f32 %v591, %v591
  %v666 = vmul.f32 %v596, %v596
  %v667 = vmul.f32 %v601, %v601
  %v668 = vadd.f32 %v604, %v636
  %v669 = vadd.f32 %v605, %v637
  %v670 = vadd.f32 %v606, %v638
  %v671 = vadd.f32 %v607, %v639
  %v672 = vadd.f32 %v608, %v640
  %v673 = vadd.f32 %v609, %v641
  %v674 = vadd.f32 %v610, %v642
  %v675 = vadd.f32 %v611, %v643
  %v676 = vadd.f32 %v612, %v644
  %v677 = vadd.f32 %v613, %v645
  %v678 = vadd.f32 %v614, %v646
  %v679 = vadd.f32 %v615, %v647
  %v680 = vadd.f32 %v616, %v648
  %v681 = vadd.f32 %v617, %v649
  %v682 = vadd.f32 %v618, %v650
  %v683 = vadd.f32 %v619, %v651
  %v684 = vadd.f32 %v620, %v652
  %v685 = vadd.f32 %v621, %v653
  %v686 = vadd.f32 %v622, %v654
  %v687 = vadd.f32 %v623, %v655
  %v688 = vadd.f32 %v624, %v656
  %v689 = vadd.f32 %v625, %v657
  %v690 = vadd.f32 %v626, %v658
  %v691 = vadd.f32 %v627, %v659
  %v692 = vadd.f32 %v628, %v660
  %v693 = vadd.f32 %v629, %v661
  %v694 = vadd.f32 %v630, %v662
  %v695 = vadd.f32 %v631, %v663
  %v696 = vadd.f32 %v632, %v664
  %v697 = vadd.f32 %v633, %v665
  %v698 = vadd.f32 %v634, %v666
  %v699 = vadd.f32 %v635, %v667
  %v700 = vrsqrt.pop %v668
  %v701 = vmul.f32 %v668, %v700
  %vm702 = vcmp.eq.f32.partialorder %v668, inf
  %v703 = vsel %vm702, %v668, %v701
  %vm704 = vcmp.eq.f32.partialorder %v668, 0.0
  %v705 = vand.u32 %v668, 2147483648
  %v706 = vsel %vm704, %v705, %v703
  %v707 = vrsqrt.pop %v669
  %v708 = vmul.f32 %v669, %v707
  %vm709 = vcmp.eq.f32.partialorder %v669, inf
  %v710 = vsel %vm709, %v669, %v708
  %vm711 = vcmp.eq.f32.partialorder %v669, 0.0
  %v712 = vand.u32 %v669, 2147483648
  %v713 = vsel %vm711, %v712, %v710
  %v714 = vrsqrt.pop %v670
  %v715 = vmul.f32 %v670, %v714
  %vm716 = vcmp.eq.f32.partialorder %v670, inf
  %v717 = vsel %vm716, %v670, %v715
  %vm718 = vcmp.eq.f32.partialorder %v670, 0.0
  %v719 = vand.u32 %v670, 2147483648
  %v720 = vsel %vm718, %v719, %v717
  %v721 = vrsqrt.pop %v671
  %v722 = vmul.f32 %v671, %v721
  %vm723 = vcmp.eq.f32.partialorder %v671, inf
  %v724 = vsel %vm723, %v671, %v722
  %vm725 = vcmp.eq.f32.partialorder %v671, 0.0
  %v726 = vand.u32 %v671, 2147483648
  %v727 = vsel %vm725, %v726, %v724
  %v728 = vrsqrt.pop %v672
  %v729 = vmul.f32 %v672, %v728
  %vm730 = vcmp.eq.f32.partialorder %v672, inf
  %v731 = vsel %vm730, %v672, %v729
  %vm732 = vcmp.eq.f32.partialorder %v672, 0.0
  %v733 = vand.u32 %v672, 2147483648
  %v734 = vsel %vm732, %v733, %v731
  %v735 = vrsqrt.pop %v673
  %v736 = vmul.f32 %v673, %v735
  %vm737 = vcmp.eq.f32.partialorder %v673, inf
  %v738 = vsel %vm737, %v673, %v736
  %vm739 = vcmp.eq.f32.partialorder %v673, 0.0
  %v740 = vand.u32 %v673, 2147483648
  %v741 = vsel %vm739, %v740, %v738
  %v742 = vrsqrt.pop %v674
  %v743 = vmul.f32 %v674, %v742
  %vm744 = vcmp.eq.f32.partialorder %v674, inf
  %v745 = vsel %vm744, %v674, %v743
  %vm746 = vcmp.eq.f32.partialorder %v674, 0.0
  %v747 = vand.u32 %v674, 2147483648
  %v748 = vsel %vm746, %v747, %v745
  %v749 = vrsqrt.pop %v675
  %v750 = vmul.f32 %v675, %v749
  %vm751 = vcmp.eq.f32.partialorder %v675, inf
  %v752 = vsel %vm751, %v675, %v750
  %vm753 = vcmp.eq.f32.partialorder %v675, 0.0
  %v754 = vand.u32 %v675, 2147483648
  %v755 = vsel %vm753, %v754, %v752
  %v756 = vrsqrt.pop %v676
  %v757 = vmul.f32 %v676, %v756
  %vm758 = vcmp.eq.f32.partialorder %v676, inf
  %v759 = vsel %vm758, %v676, %v757
  %vm760 = vcmp.eq.f32.partialorder %v676, 0.0
  %v761 = vand.u32 %v676, 2147483648
  %v762 = vsel %vm760, %v761, %v759
  %v763 = vrsqrt.pop %v677
  %v764 = vmul.f32 %v677, %v763
  %vm765 = vcmp.eq.f32.partialorder %v677, inf
  %v766 = vsel %vm765, %v677, %v764
  %vm767 = vcmp.eq.f32.partialorder %v677, 0.0
  %v768 = vand.u32 %v677, 2147483648
  %v769 = vsel %vm767, %v768, %v766
  %v770 = vrsqrt.pop %v678
  %v771 = vmul.f32 %v678, %v770
  %vm772 = vcmp.eq.f32.partialorder %v678, inf
  %v773 = vsel %vm772, %v678, %v771
  %vm774 = vcmp.eq.f32.partialorder %v678, 0.0
  %v775 = vand.u32 %v678, 2147483648
  %v776 = vsel %vm774, %v775, %v773
  %v777 = vrsqrt.pop %v679
  %v778 = vmul.f32 %v679, %v777
  %vm779 = vcmp.eq.f32.partialorder %v679, inf
  %v780 = vsel %vm779, %v679, %v778
  %vm781 = vcmp.eq.f32.partialorder %v679, 0.0
  %v782 = vand.u32 %v679, 2147483648
  %v783 = vsel %vm781, %v782, %v780
  %v784 = vrsqrt.pop %v680
  %v785 = vmul.f32 %v680, %v784
  %vm786 = vcmp.eq.f32.partialorder %v680, inf
  %v787 = vsel %vm786, %v680, %v785
  %vm788 = vcmp.eq.f32.partialorder %v680, 0.0
  %v789 = vand.u32 %v680, 2147483648
  %v790 = vsel %vm788, %v789, %v787
  %v791 = vrsqrt.pop %v681
  %v792 = vmul.f32 %v681, %v791
  %vm793 = vcmp.eq.f32.partialorder %v681, inf
  %v794 = vsel %vm793, %v681, %v792
  %vm795 = vcmp.eq.f32.partialorder %v681, 0.0
  %v796 = vand.u32 %v681, 2147483648
  %v797 = vsel %vm795, %v796, %v794
  %v798 = vrsqrt.pop %v682
  %v799 = vmul.f32 %v682, %v798
  %vm800 = vcmp.eq.f32.partialorder %v682, inf
  %v801 = vsel %vm800, %v682, %v799
  %vm802 = vcmp.eq.f32.partialorder %v682, 0.0
  %v803 = vand.u32 %v682, 2147483648
  %v804 = vsel %vm802, %v803, %v801
  %v805 = vrsqrt.pop %v683
  %v806 = vmul.f32 %v683, %v805
  %vm807 = vcmp.eq.f32.partialorder %v683, inf
  %v808 = vsel %vm807, %v683, %v806
  %vm809 = vcmp.eq.f32.partialorder %v683, 0.0
  %v810 = vand.u32 %v683, 2147483648
  %v811 = vsel %vm809, %v810, %v808
  %v812 = vrsqrt.pop %v684
  %v813 = vmul.f32 %v684, %v812
  %vm814 = vcmp.eq.f32.partialorder %v684, inf
  %v815 = vsel %vm814, %v684, %v813
  %vm816 = vcmp.eq.f32.partialorder %v684, 0.0
  %v817 = vand.u32 %v684, 2147483648
  %v818 = vsel %vm816, %v817, %v815
  %v819 = vrsqrt.pop %v685
  %v820 = vmul.f32 %v685, %v819
  %vm821 = vcmp.eq.f32.partialorder %v685, inf
  %v822 = vsel %vm821, %v685, %v820
  %vm823 = vcmp.eq.f32.partialorder %v685, 0.0
  %v824 = vand.u32 %v685, 2147483648
  %v825 = vsel %vm823, %v824, %v822
  %v826 = vrsqrt.pop %v686
  %v827 = vmul.f32 %v686, %v826
  %vm828 = vcmp.eq.f32.partialorder %v686, inf
  %v829 = vsel %vm828, %v686, %v827
  %vm830 = vcmp.eq.f32.partialorder %v686, 0.0
  %v831 = vand.u32 %v686, 2147483648
  %v832 = vsel %vm830, %v831, %v829
  %v833 = vrsqrt.pop %v687
  %v834 = vmul.f32 %v687, %v833
  %vm835 = vcmp.eq.f32.partialorder %v687, inf
  %v836 = vsel %vm835, %v687, %v834
  %vm837 = vcmp.eq.f32.partialorder %v687, 0.0
  %v838 = vand.u32 %v687, 2147483648
  %v839 = vsel %vm837, %v838, %v836
  %v840 = vrsqrt.pop %v688
  %v841 = vmul.f32 %v688, %v840
  %vm842 = vcmp.eq.f32.partialorder %v688, inf
  %v843 = vsel %vm842, %v688, %v841
  %vm844 = vcmp.eq.f32.partialorder %v688, 0.0
  %v845 = vand.u32 %v688, 2147483648
  %v846 = vsel %vm844, %v845, %v843
  %v847 = vrsqrt.pop %v689
  %v848 = vmul.f32 %v689, %v847
  %vm849 = vcmp.eq.f32.partialorder %v689, inf
  %v850 = vsel %vm849, %v689, %v848
  %vm851 = vcmp.eq.f32.partialorder %v689, 0.0
  %v852 = vand.u32 %v689, 2147483648
  %v853 = vsel %vm851, %v852, %v850
  %v854 = vrsqrt.pop %v690
  %v855 = vmul.f32 %v690, %v854
  %vm856 = vcmp.eq.f32.partialorder %v690, inf
  %v857 = vsel %vm856, %v690, %v855
  %vm858 = vcmp.eq.f32.partialorder %v690, 0.0
  %v859 = vand.u32 %v690, 2147483648
  %v860 = vsel %vm858, %v859, %v857
  %v861 = vrsqrt.pop %v691
  %v862 = vmul.f32 %v691, %v861
  %vm863 = vcmp.eq.f32.partialorder %v691, inf
  %v864 = vsel %vm863, %v691, %v862
  %vm865 = vcmp.eq.f32.partialorder %v691, 0.0
  %v866 = vand.u32 %v691, 2147483648
  %v867 = vsel %vm865, %v866, %v864
  %v868 = vrsqrt.pop %v692
  %v869 = vmul.f32 %v692, %v868
  %vm870 = vcmp.eq.f32.partialorder %v692, inf
  %v871 = vsel %vm870, %v692, %v869
  %vm872 = vcmp.eq.f32.partialorder %v692, 0.0
  %v873 = vand.u32 %v692, 2147483648
  %v874 = vsel %vm872, %v873, %v871
  %v875 = vrsqrt.pop %v693
  %v876 = vmul.f32 %v693, %v875
  %vm877 = vcmp.eq.f32.partialorder %v693, inf
  %v878 = vsel %vm877, %v693, %v876
  %vm879 = vcmp.eq.f32.partialorder %v693, 0.0
  %v880 = vand.u32 %v693, 2147483648
  %v881 = vsel %vm879, %v880, %v878
  %v882 = vrsqrt.pop %v694
  %v883 = vmul.f32 %v694, %v882
  %vm884 = vcmp.eq.f32.partialorder %v694, inf
  %v885 = vsel %vm884, %v694, %v883
  %vm886 = vcmp.eq.f32.partialorder %v694, 0.0
  %v887 = vand.u32 %v694, 2147483648
  %v888 = vsel %vm886, %v887, %v885
  %v889 = vrsqrt.pop %v695
  %v890 = vmul.f32 %v695, %v889
  %vm891 = vcmp.eq.f32.partialorder %v695, inf
  %v892 = vsel %vm891, %v695, %v890
  %vm893 = vcmp.eq.f32.partialorder %v695, 0.0
  %v894 = vand.u32 %v695, 2147483648
  %v895 = vsel %vm893, %v894, %v892
  %v896 = vrsqrt.pop %v696
  %v897 = vmul.f32 %v696, %v896
  %vm898 = vcmp.eq.f32.partialorder %v696, inf
  %v899 = vsel %vm898, %v696, %v897
  %vm900 = vcmp.eq.f32.partialorder %v696, 0.0
  %v901 = vand.u32 %v696, 2147483648
  %v902 = vsel %vm900, %v901, %v899
  %v903 = vrsqrt.pop %v697
  %v904 = vmul.f32 %v697, %v903
  %vm905 = vcmp.eq.f32.partialorder %v697, inf
  %v906 = vsel %vm905, %v697, %v904
  %vm907 = vcmp.eq.f32.partialorder %v697, 0.0
  %v908 = vand.u32 %v697, 2147483648
  %v909 = vsel %vm907, %v908, %v906
  %v910 = vrsqrt.pop %v698
  %v911 = vmul.f32 %v698, %v910
  %vm912 = vcmp.eq.f32.partialorder %v698, inf
  %v913 = vsel %vm912, %v698, %v911
  %vm914 = vcmp.eq.f32.partialorder %v698, 0.0
  %v915 = vand.u32 %v698, 2147483648
  %v916 = vsel %vm914, %v915, %v913
  %v917 = vrsqrt.pop %v699
  %v918 = vmul.f32 %v699, %v917
  %vm919 = vcmp.eq.f32.partialorder %v699, inf
  %v920 = vsel %vm919, %v699, %v918
  %vm921 = vcmp.eq.f32.partialorder %v699, 0.0
  %v922 = vand.u32 %v699, 2147483648
  %v923 = vsel %vm921, %v922, %v920
  %vm924 = vcmask 56320
  %925 = vst.msk [vmem:[%s3] sm:$0xff] %vm924, %v706
  %926 = vst.msk [vmem:[%s3 + $0x8] sm:$0xff] %vm924, %v713
  %927 = vst.msk [vmem:[%s3 + $0x10] sm:$0xff] %vm924, %v720
  %928 = vst.msk [vmem:[%s3 + $0x18] sm:$0xff] %vm924, %v727
  %929 = vst.msk [vmem:[%s3 + $0x20] sm:$0xff] %vm924, %v734
  %930 = vst.msk [vmem:[%s3 + $0x28] sm:$0xff] %vm924, %v741
  %931 = vst.msk [vmem:[%s3 + $0x30] sm:$0xff] %vm924, %v748
  %932 = vst.msk [vmem:[%s3 + $0x38] sm:$0xff] %vm924, %v755
  %933 = vst.msk [vmem:[%s3 + $0x40] sm:$0xff] %vm924, %v762
  %934 = vst.msk [vmem:[%s3 + $0x48] sm:$0xff] %vm924, %v769
  %935 = vst.msk [vmem:[%s3 + $0x50] sm:$0xff] %vm924, %v776
  %936 = vst.msk [vmem:[%s3 + $0x58] sm:$0xff] %vm924, %v783
  %937 = vst.msk [vmem:[%s3 + $0x60] sm:$0xff] %vm924, %v790
  %938 = vst.msk [vmem:[%s3 + $0x68] sm:$0xff] %vm924, %v797
  %939 = vst.msk [vmem:[%s3 + $0x70] sm:$0xff] %vm924, %v804
  %940 = vst.msk [vmem:[%s3 + $0x78] sm:$0xff] %vm924, %v811
  %941 = vst.msk [vmem:[%s3 + $0x80] sm:$0xff] %vm924, %v818
  %942 = vst.msk [vmem:[%s3 + $0x88] sm:$0xff] %vm924, %v825
  %943 = vst.msk [vmem:[%s3 + $0x90] sm:$0xff] %vm924, %v832
  %944 = vst.msk [vmem:[%s3 + $0x98] sm:$0xff] %vm924, %v839
  %945 = vst.msk [vmem:[%s3 + $0xa0] sm:$0xff] %vm924, %v846
  %946 = vst.msk [vmem:[%s3 + $0xa8] sm:$0xff] %vm924, %v853
  %947 = vst.msk [vmem:[%s3 + $0xb0] sm:$0xff] %vm924, %v860
  %948 = vst.msk [vmem:[%s3 + $0xb8] sm:$0xff] %vm924, %v867
  %949 = vst.msk [vmem:[%s3 + $0xc0] sm:$0xff] %vm924, %v874
  %950 = vst.msk [vmem:[%s3 + $0xc8] sm:$0xff] %vm924, %v881
  %951 = vst.msk [vmem:[%s3 + $0xd0] sm:$0xff] %vm924, %v888
  %952 = vst.msk [vmem:[%s3 + $0xd8] sm:$0xff] %vm924, %v895
  %953 = vst.msk [vmem:[%s3 + $0xe0] sm:$0xff] %vm924, %v902
  %954 = vst.msk [vmem:[%s3 + $0xe8] sm:$0xff] %vm924, %v909
  %955 = vst.msk [vmem:[%s3 + $0xf0] sm:$0xff] %vm924, %v916
  %956 = vst.msk [vmem:[%s3 + $0xf8] sm:$0xff] %vm924, %v923
  // Predicated region
  $region14: #{forward.16} parent=0 // pred_check
    _
  $region15: #{forward.16} parent=0 // pred_check_branch
    %958 = sbr.rel (0) target = $region17
  $region16: #{forward.16} parent=0 // pred_region
    _
  $region17: #{forward.16} parent=0 // pred_fallthru
    _
  // Predicated region
  $region18: #{forward.16} parent=0 // pred_check
    _
  $region19: #{forward.16} parent=0 // pred_check_branch
    %960 = sbr.rel (0) target = $region21
  $region20: #{forward.16} parent=0 // pred_region
    _
  $region21: #{forward.16} parent=0 // pred_fallthru
    _

// kernel: forward.19
$region0: #{forward.19}
  #allocation0 [shape = 'u32[]', space=smem, size = 0x4, offset = 0x4, fixed_abs, tag = 'smem constant byte address 0x4 - core index']
  #allocation1 [shape = 'u32[144,128]{1,0:T(1,128)}', space=vmem, size = 0x12000, scoped, tag = 'internal scratch']
  %s0 = inlined_call_operand.vmem [shape: f32[48,8], index: 0, kind: input, shape index: {}]
  %s1 = inlined_call_operand.vmem [shape: f32[8,768], index: 1, kind: input, shape index: {}]
  %s2 = inlined_call_operand.vmem [shape: f32[48,768], index: 2, kind: output, shape index: {}]
  %s3 = sld [smem:[#allocation0]]
  $region18: #{forward.19} parent=0
    _
  %s5 = ssub.s32 1, %s3
  %s6 = scalar_select 0, %s5, %s3
  // Predicated region
  $region2: #{forward.19} parent=0 // pred_check
    _
  $region3: #{forward.19} parent=0 // pred_check_branch
    %8 = sbr.rel (0) target = $region5
  $region4: #{forward.19} parent=0 // pred_region
    _
  $region5: #{forward.19} parent=0 // pred_fallthru
    _
  // Predicated region
  $region6: #{forward.19} parent=0 // pred_check
    _
  $region7: #{forward.19} parent=0 // pred_check_branch
    %10 = sbr.rel (0) target = $region9
  $region8: #{forward.19} parent=0 // pred_region
    _
  $region9: #{forward.19} parent=0 // pred_fallthru
    _
  %v11 = vld [vmem:[%s0] sm:$0xff]
  %v12 = vld [vmem:[%s0 + $0x8] sm:$0xff]
  %v13 = vld [vmem:[%s0 + $0x10] sm:$0xff]
  %v14 = vld [vmem:[%s0 + $0x18] sm:$0xff]
  %v15 = vld [vmem:[%s0 + $0x20] sm:$0xff]
  %v16 = vld [vmem:[%s0 + $0x28] sm:$0xff]
  %v17 = vld [vmem:[%s1] sm:$0xff]
  %v18 = vld [vmem:[%s1 + $0x8] sm:$0xff]
  %v19 = vld [vmem:[%s1 + $0x10] sm:$0xff]
  %v20 = vld [vmem:[%s1 + $0x18] sm:$0xff]
  %v21 = vld [vmem:[%s1 + $0x20] sm:$0xff]
  %v22 = vld [vmem:[%s1 + $0x28] sm:$0xff]
  %vm23 = vcmask 64512
  %v25 = vsel %vm23, %v11, 0
  %v28 = vsel %vm23, %v12, 0
  %v31 = vsel %vm23, %v13, 0
  %v34 = vsel %vm23, %v14, 0
  %v37 = vsel %vm23, %v15, 0
  %v40 = vsel %vm23, %v16, 0
  %42 = vmatprep.subr.mxu0 %v18
  %43 = vmatpush1.msra.mxu0 %v17
  %44 = vmatprep.subr.mxu0 0.0
  %45 = vmatpush1.msra.mxu0 0.0
  %46 = vmatprep.subr.mxu0 0.0
  %47 = vmatpush1.msra.mxu0 0.0
  %48 = vmatprep.subr.mxu0 0.0
  %49 = vmatpush1.msra.mxu0 0.0
  %50 = vmatprep.subr.mxu0 0.0
  %51 = vmatpush1.msra.mxu0 0.0
  %52 = vmatprep.subr.mxu0 0.0
  %53 = vmatpush1.msra.mxu0 0.0
  %54 = vmatprep.subr.mxu0 0.0
  %55 = vmatpush1.msra.mxu0 0.0
  %56 = vmatprep.subr.mxu0 0.0
  %57 = vmatpush1.msra.mxu0 0.0
  %58 = vmatprep.subr.mxu0 0.0
  %59 = vmatpush1.msra.mxu0 0.0
  %60 = vmatprep.subr.mxu0 0.0
  %61 = vmatpush1.msra.mxu0 0.0
  %62 = vmatprep.subr.mxu0 0.0
  %63 = vmatpush1.msra.mxu0 0.0
  %64 = vmatprep.subr.mxu0 0.0
  %65 = vmatpush1.msra.mxu0 0.0
  %66 = vmatprep.subr.mxu0 0.0
  %67 = vmatpush1.msra.mxu0 0.0
  %68 = vmatprep.subr.mxu0 0.0
  %69 = vmatpush1.msra.mxu0 0.0
  %70 = vmatprep.subr.mxu0 0.0
  %71 = vmatpush1.msra.mxu0 0.0
  %72 = vmatprep.subr.mxu0 0.0
  %73 = vmatpush1.msra.mxu0 0.0
  %74 = vmatprep.subr.mxu0 0.0
  %75 = vmatpush1.msra.mxu0 0.0
  %76 = vmatprep.subr.mxu0 0.0
  %77 = vmatpush1.msra.mxu0 0.0
  %78 = vmatprep.subr.mxu0 0.0
  %79 = vmatpush1.msra.mxu0 0.0
  %80 = vmatprep.subr.mxu0 0.0
  %81 = vmatpush1.msra.mxu0 0.0
  %82 = vmatprep.subr.mxu0 0.0
  %83 = vmatpush1.msra.mxu0 0.0
  %84 = vmatprep.subr.mxu0 0.0
  %85 = vmatpush1.msra.mxu0 0.0
  %86 = vmatprep.subr.mxu0 0.0
  %87 = vmatpush1.msra.mxu0 0.0
  %88 = vmatprep.subr.mxu0 0.0
  %89 = vmatpush1.msra.mxu0 0.0
  %90 = vmatprep.subr.mxu0 0.0
  %91 = vmatpush1.msra.mxu0 0.0
  %92 = vmatprep.subr.mxu0 0.0
  %93 = vmatpush1.msra.mxu0 0.0
  %94 = vmatprep.subr.mxu0 0.0
  %95 = vmatpush1.msra.mxu0 0.0
  %96 = vmatprep.subr.mxu0 0.0
  %97 = vmatpush1.msra.mxu0 0.0
  %98 = vmatprep.subr.mxu0 0.0
  %99 = vmatpush1.msra.mxu0 0.0
  %100 = vmatprep.subr.mxu0 0.0
  %101 = vmatpush1.msra.mxu0 0.0
  %102 = vmatprep.subr.mxu0 0.0
  %103 = vmatpush1.msra.mxu0 0.0
  %104 = vmatprep.subr.mxu0 0.0
  %105 = vmatpush1.msra.mxu0 0.0
  %106 = vmatprep.mubr.f32.mxu0 0.0
  %107 = vmatmul.mubr.f32.gmra.mrb[0].mxu0 %v25
  %v108 = vpop.f32.mrb[0].mxu0
  %v109 = vadd.f32 0.0, %v108
  %v110 = vpop.f32.mrb[0].mxu0
  %v111 = vadd.f32 0.0, %v110
  %112 = vmatprep.mubr.f32.mxu0 0.0
  %113 = vmatmul.mubr.f32.gmra.mrb[0].mxu0 %v28
  %v114 = vpop.f32.mrb[0].mxu0
  %v115 = vadd.f32 0.0, %v114
  %v116 = vpop.f32.mrb[0].mxu0
  %v117 = vadd.f32 0.0, %v116
  %118 = vmatprep.mubr.f32.mxu0 0.0
  %119 = vmatmul.mubr.f32.gmra.mrb[0].mxu0 %v31
  %v120 = vpop.f32.mrb[0].mxu0
  %v121 = vadd.f32 0.0, %v120
  %v122 = vpop.f32.mrb[0].mxu0
  %v123 = vadd.f32 0.0, %v122
  %124 = vmatprep.mubr.f32.mxu0 0.0
  %125 = vmatmul.mubr.f32.gmra.mrb[0].mxu0 %v34
  %v126 = vpop.f32.mrb[0].mxu0
  %v127 = vadd.f32 0.0, %v126
  %v128 = vpop.f32.mrb[0].mxu0
  %v129 = vadd.f32 0.0, %v128
  %130 = vmatprep.mubr.f32.mxu0 0.0
  %131 = vmatmul.mubr.f32.gmra.mrb[0].mxu0 %v37
  %v132 = vpop.f32.mrb[0].mxu0
  %v133 = vadd.f32 0.0, %v132
  %v134 = vpop.f32.mrb[0].mxu0
  %v135 = vadd.f32 0.0, %v134
  %136 = vmatprep.mubr.f32.mxu0 0.0
  %137 = vmatmul.mubr.f32.gmra.mrb[0].mxu0 %v40
  %v138 = vpop.f32.mrb[0].mxu0
  %v139 = vadd.f32 0.0, %v138
  %v140 = vpop.f32.mrb[0].mxu0
  %v141 = vadd.f32 0.0, %v140
  %142 = vdwg.mxu0
  %143 = vmatprep.subr.mxu0 %v20
  %144 = vmatpush1.msra.mxu0 %v19
  %145 = vmatprep.subr.mxu0 0.0
  %146 = vmatpush1.msra.mxu0 0.0
  %147 = vmatprep.subr.mxu0 0.0
  %148 = vmatpush1.msra.mxu0 0.0
  %149 = vmatprep.subr.mxu0 0.0
  %150 = vmatpush1.msra.mxu0 0.0
  %151 = vmatprep.subr.mxu0 0.0
  %152 = vmatpush1.msra.mxu0 0.0
  %153 = vmatprep.subr.mxu0 0.0
  %154 = vmatpush1.msra.mxu0 0.0
  %155 = vmatprep.subr.mxu0 0.0
  %156 = vmatpush1.msra.mxu0 0.0
  %157 = vmatprep.subr.mxu0 0.0
  %158 = vmatpush1.msra.mxu0 0.0
  %159 = vmatprep.subr.mxu0 0.0
  %160 = vmatpush1.msra.mxu0 0.0
  %161 = vmatprep.subr.mxu0 0.0
  %162 = vmatpush1.msra.mxu0 0.0
  %163 = vmatprep.subr.mxu0 0.0
  %164 = vmatpush1.msra.mxu0 0.0
  %165 = vmatprep.subr.mxu0 0.0
  %166 = vmatpush1.msra.mxu0 0.0
  %167 = vmatprep.subr.mxu0 0.0
  %168 = vmatpush1.msra.mxu0 0.0
  %169 = vmatprep.subr.mxu0 0.0
  %170 = vmatpush1.msra.mxu0 0.0
  %171 = vmatprep.subr.mxu0 0.0
  %172 = vmatpush1.msra.mxu0 0.0
  %173 = vmatprep.subr.mxu0 0.0
  %174 = vmatpush1.msra.mxu0 0.0
  %175 = vmatprep.subr.mxu0 0.0
  %176 = vmatpush1.msra.mxu0 0.0
  %177 = vmatprep.subr.mxu0 0.0
  %178 = vmatpush1.msra.mxu0 0.0
  %179 = vmatprep.subr.mxu0 0.0
  %180 = vmatpush1.msra.mxu0 0.0
  %181 = vmatprep.subr.mxu0 0.0
  %182 = vmatpush1.msra.mxu0 0.0
  %183 = vmatprep.subr.mxu0 0.0
  %184 = vmatpush1.msra.mxu0 0.0
  %185 = vmatprep.subr.mxu0 0.0
  %186 = vmatpush1.msra.mxu0 0.0
  %187 = vmatprep.subr.mxu0 0.0
  %188 = vmatpush1.msra.mxu0 0.0
  %189 = vmatprep.subr.mxu0 0.0
  %190 = vmatpush1.msra.mxu0 0.0
  %191 = vmatprep.subr.mxu0 0.0
  %192 = vmatpush1.msra.mxu0 0.0
  %193 = vmatprep.subr.mxu0 0.0
  %194 = vmatpush1.msra.mxu0 0.0
  %195 = vmatprep.subr.mxu0 0.0
  %196 = vmatpush1.msra.mxu0 0.0
  %197 = vmatprep.subr.mxu0 0.0
  %198 = vmatpush1.msra.mxu0 0.0
  %199 = vmatprep.subr.mxu0 0.0
  %200 = vmatpush1.msra.mxu0 0.0
  %201 = vmatprep.subr.mxu0 0.0
  %202 = vmatpush1.msra.mxu0 0.0
  %203 = vmatprep.subr.mxu0 0.0
  %204 = vmatpush1.msra.mxu0 0.0
  %205 = vmatprep.subr.mxu0 0.0
  %206 = vmatpush1.msra.mxu0 0.0
  %207 = vmatprep.mubr.f32.mxu0 0.0
  %208 = vmatmul.mubr.f32.gmra.mrb[0].mxu0 %v25
  %v209 = vpop.f32.mrb[0].mxu0
  %v210 = vadd.f32 0.0, %v209
  %v211 = vpop.f32.mrb[0].mxu0
  %v212 = vadd.f32 0.0, %v211
  %213 = vmatprep.mubr.f32.mxu0 0.0
  %214 = vmatmul.mubr.f32.gmra.mrb[0].mxu0 %v28
  %v215 = vpop.f32.mrb[0].mxu0
  %v216 = vadd.f32 0.0, %v215
  %v217 = vpop.f32.mrb[0].mxu0
  %v218 = vadd.f32 0.0, %v217
  %219 = vmatprep.mubr.f32.mxu0 0.0
  %220 = vmatmul.mubr.f32.gmra.mrb[0].mxu0 %v31
  %v221 = vpop.f32.mrb[0].mxu0
  %v222 = vadd.f32 0.0, %v221
  %v223 = vpop.f32.mrb[0].mxu0
  %v224 = vadd.f32 0.0, %v223
  %225 = vmatprep.mubr.f32.mxu0 0.0
  %226 = vmatmul.mubr.f32.gmra.mrb[0].mxu0 %v34
  %v227 = vpop.f32.mrb[0].mxu0
  %v228 = vadd.f32 0.0, %v227
  %v229 = vpop.f32.mrb[0].mxu0
  %v230 = vadd.f32 0.0, %v229
  %231 = vmatprep.mubr.f32.mxu0 0.0
  %232 = vmatmul.mubr.f32.gmra.mrb[0].mxu0 %v37
  %v233 = vpop.f32.mrb[0].mxu0
  %v234 = vadd.f32 0.0, %v233
  %v235 = vpop.f32.mrb[0].mxu0
  %v236 = vadd.f32 0.0, %v235
  %237 = vmatprep.mubr.f32.mxu0 0.0
  %238 = vmatmul.mubr.f32.gmra.mrb[0].mxu0 %v40
  %v239 = vpop.f32.mrb[0].mxu0
  %v240 = vadd.f32 0.0, %v239
  %v241 = vpop.f32.mrb[0].mxu0
  %v242 = vadd.f32 0.0, %v241
  %243 = vdwg.mxu0
  %244 = vmatprep.subr.mxu0 %v22
  %245 = vmatpush1.msra.mxu0 %v21
  %246 = vmatprep.subr.mxu0 0.0
  %247 = vmatpush1.msra.mxu0 0.0
  %248 = vmatprep.subr.mxu0 0.0
  %249 = vmatpush1.msra.mxu0 0.0
  %250 = vmatprep.subr.mxu0 0.0
  %251 = vmatpush1.msra.mxu0 0.0
  %252 = vmatprep.subr.mxu0 0.0
  %253 = vmatpush1.msra.mxu0 0.0
  %254 = vmatprep.subr.mxu0 0.0
  %255 = vmatpush1.msra.mxu0 0.0
  %256 = vmatprep.subr.mxu0 0.0
  %257 = vmatpush1.msra.mxu0 0.0
  %258 = vmatprep.subr.mxu0 0.0
  %259 = vmatpush1.msra.mxu0 0.0
  %260 = vmatprep.subr.mxu0 0.0
  %261 = vmatpush1.msra.mxu0 0.0
  %262 = vmatprep.subr.mxu0 0.0
  %263 = vmatpush1.msra.mxu0 0.0
  %264 = vmatprep.subr.mxu0 0.0
  %265 = vmatpush1.msra.mxu0 0.0
  %266 = vmatprep.subr.mxu0 0.0
  %267 = vmatpush1.msra.mxu0 0.0
  %268 = vmatprep.subr.mxu0 0.0
  %269 = vmatpush1.msra.mxu0 0.0
  %270 = vmatprep.subr.mxu0 0.0
  %271 = vmatpush1.msra.mxu0 0.0
  %272 = vmatprep.subr.mxu0 0.0
  %273 = vmatpush1.msra.mxu0 0.0
  %274 = vmatprep.subr.mxu0 0.0
  %275 = vmatpush1.msra.mxu0 0.0
  %276 = vmatprep.subr.mxu0 0.0
  %277 = vmatpush1.msra.mxu0 0.0
  %278 = vmatprep.subr.mxu0 0.0
  %279 = vmatpush1.msra.mxu0 0.0
  %280 = vmatprep.subr.mxu0 0.0
  %281 = vmatpush1.msra.mxu0 0.0
  %282 = vmatprep.subr.mxu0 0.0
  %283 = vmatpush1.msra.mxu0 0.0
  %284 = vmatprep.subr.mxu0 0.0
  %285 = vmatpush1.msra.mxu0 0.0
  %286 = vmatprep.subr.mxu0 0.0
  %287 = vmatpush1.msra.mxu0 0.0
  %288 = vmatprep.subr.mxu0 0.0
  %289 = vmatpush1.msra.mxu0 0.0
  %290 = vmatprep.subr.mxu0 0.0
  %291 = vmatpush1.msra.mxu0 0.0
  %292 = vmatprep.subr.mxu0 0.0
  %293 = vmatpush1.msra.mxu0 0.0
  %294 = vmatprep.subr.mxu0 0.0
  %295 = vmatpush1.msra.mxu0 0.0
  %296 = vmatprep.subr.mxu0 0.0
  %297 = vmatpush1.msra.mxu0 0.0
  %298 = vmatprep.subr.mxu0 0.0
  %299 = vmatpush1.msra.mxu0 0.0
  %300 = vmatprep.subr.mxu0 0.0
  %301 = vmatpush1.msra.mxu0 0.0
  %302 = vmatprep.subr.mxu0 0.0
  %303 = vmatpush1.msra.mxu0 0.0
  %304 = vmatprep.subr.mxu0 0.0
  %305 = vmatpush1.msra.mxu0 0.0
  %306 = vmatprep.subr.mxu0 0.0
  %307 = vmatpush1.msra.mxu0 0.0
  %308 = vmatprep.mubr.f32.mxu0 0.0
  %309 = vmatmul.mubr.f32.gmra.mrb[0].mxu0 %v25
  %v310 = vpop.f32.mrb[0].mxu0
  %v311 = vadd.f32 0.0, %v310
  %v312 = vpop.f32.mrb[0].mxu0
  %v313 = vadd.f32 0.0, %v312
  %314 = vmatprep.mubr.f32.mxu0 0.0
  %315 = vmatmul.mubr.f32.gmra.mrb[0].mxu0 %v28
  %v316 = vpop.f32.mrb[0].mxu0
  %v317 = vadd.f32 0.0, %v316
  %v318 = vpop.f32.mrb[0].mxu0
  %v319 = vadd.f32 0.0, %v318
  %320 = vmatprep.mubr.f32.mxu0 0.0
  %321 = vmatmul.mubr.f32.gmra.mrb[0].mxu0 %v31
  %v322 = vpop.f32.mrb[0].mxu0
  %v323 = vadd.f32 0.0, %v322
  %v324 = vpop.f32.mrb[0].mxu0
  %v325 = vadd.f32 0.0, %v324
  %326 = vmatprep.mubr.f32.mxu0 0.0
  %327 = vmatmul.mubr.f32.gmra.mrb[0].mxu0 %v34
  %v328 = vpop.f32.mrb[0].mxu0
  %v329 = vadd.f32 0.0, %v328
  %v330 = vpop.f32.mrb[0].mxu0
  %v331 = vadd.f32 0.0, %v330
  %332 = vmatprep.mubr.f32.mxu0 0.0
  %333 = vmatmul.mubr.f32.gmra.mrb[0].mxu0 %v37
  %v334 = vpop.f32.mrb[0].mxu0
  %v335 = vadd.f32 0.0, %v334
  %v336 = vpop.f32.mrb[0].mxu0
  %v337 = vadd.f32 0.0, %v336
  %338 = vmatprep.mubr.f32.mxu0 0.0
  %339 = vmatmul.mubr.f32.gmra.mrb[0].mxu0 %v40
  %v340 = vpop.f32.mrb[0].mxu0
  %v341 = vadd.f32 0.0, %v340
  %v342 = vpop.f32.mrb[0].mxu0
  %v343 = vadd.f32 0.0, %v342
  %344 = vdwg.mxu0
  %345 = vst [vmem:[%s2] sm:$0xff] %v109
  %346 = vst [vmem:[%s2 + $0x8] sm:$0xff] %v111
  %347 = vst [vmem:[%s2 + $0x10] sm:$0xff] %v210
  %348 = vst [vmem:[%s2 + $0x18] sm:$0xff] %v212
  %349 = vst [vmem:[%s2 + $0x20] sm:$0xff] %v311
  %350 = vst [vmem:[%s2 + $0x28] sm:$0xff] %v313
  %351 = vst [vmem:[%s2 + $0x30] sm:$0xff] %v115
  %352 = vst [vmem:[%s2 + $0x38] sm:$0xff] %v117
  %353 = vst [vmem:[%s2 + $0x40] sm:$0xff] %v216
  %354 = vst [vmem:[%s2 + $0x48] sm:$0xff] %v218
  %355 = vst [vmem:[%s2 + $0x50] sm:$0xff] %v317
  %356 = vst [vmem:[%s2 + $0x58] sm:$0xff] %v319
  %357 = vst [vmem:[%s2 + $0x60] sm:$0xff] %v121
  %358 = vst [vmem:[%s2 + $0x68] sm:$0xff] %v123
  %359 = vst [vmem:[%s2 + $0x70] sm:$0xff] %v222
  %360 = vst [vmem:[%s2 + $0x78] sm:$0xff] %v224
  %361 = vst [vmem:[%s2 + $0x80] sm:$0xff] %v323
  %362 = vst [vmem:[%s2 + $0x88] sm:$0xff] %v325
  %363 = vst [vmem:[%s2 + $0x90] sm:$0xff] %v127
  %364 = vst [vmem:[%s2 + $0x98] sm:$0xff] %v129
  %365 = vst [vmem:[%s2 + $0xa0] sm:$0xff] %v228
  %366 = vst [vmem:[%s2 + $0xa8] sm:$0xff] %v230
  %367 = vst [vmem:[%s2 + $0xb0] sm:$0xff] %v329
  %368 = vst [vmem:[%s2 + $0xb8] sm:$0xff] %v331
  %369 = vst [vmem:[%s2 + $0xc0] sm:$0xff] %v133
  %370 = vst [vmem:[%s2 + $0xc8] sm:$0xff] %v135
  %371 = vst [vmem:[%s2 + $0xd0] sm:$0xff] %v234
  %372 = vst [vmem:[%s2 + $0xd8] sm:$0xff] %v236
  %373 = vst [vmem:[%s2 + $0xe0] sm:$0xff] %v335
  %374 = vst [vmem:[%s2 + $0xe8] sm:$0xff] %v337
  %375 = vst [vmem:[%s2 + $0xf0] sm:$0xff] %v139
  %376 = vst [vmem:[%s2 + $0xf8] sm:$0xff] %v141
  %377 = vst [vmem:[%s2 + $0x100] sm:$0xff] %v240
  %378 = vst [vmem:[%s2 + $0x108] sm:$0xff] %v242
  %379 = vst [vmem:[%s2 + $0x110] sm:$0xff] %v341
  %380 = vst [vmem:[%s2 + $0x118] sm:$0xff] %v343
  // Predicated region
  $region10: #{forward.19} parent=0 // pred_check
    _
  $region11: #{forward.19} parent=0 // pred_check_branch
    %382 = sbr.rel (0) target = $region13
  $region12: #{forward.19} parent=0 // pred_region
    _
  $region13: #{forward.19} parent=0 // pred_fallthru
    _
  // Predicated region
  $region14: #{forward.19} parent=0 // pred_check
    _
  $region15: #{forward.19} parent=0 // pred_check_branch
    %384 = sbr.rel (0) target = $region17
  $region16: #{forward.19} parent=0 // pred_region
    _
  $region17: #{forward.19} parent=0 // pred_fallthru
    _

// kernel: forward.17
$region0: #{forward.17}
  #allocation0 [shape = 'u32[]', space=smem, size = 0x4, offset = 0x4, fixed_abs, tag = 'smem constant byte address 0x4 - core index']
  #allocation1 [shape = 'u32[144,128]{1,0:T(1,128)}', space=vmem, size = 0x12000, scoped, tag = 'internal scratch']
  %s0 = inlined_call_operand.vmem [shape: f32[192,16], index: 0, kind: input, shape index: {}]
  %s1 = inlined_call_operand.vmem [shape: f32[16,16], index: 1, kind: input, shape index: {}]
  %s2 = inlined_call_operand.vmem [shape: f32[1,16], index: 2, kind: input, shape index: {}]
  %s3 = inlined_call_operand.vmem [shape: f32[192,1], index: 3, kind: input, shape index: {}]
  %s4 = inlined_call_operand.vmem [shape: f32[1,16], index: 4, kind: input, shape index: {}]
  %s5 = inlined_call_operand.vmem [shape: f32[1,16], index: 5, kind: input, shape index: {}]
  %s6 = inlined_call_operand.vmem [shape: f32[192,16], index: 6, kind: output, shape index: {}]
  %s7 = sld [smem:[#allocation0]]
  $region34: #{forward.17} parent=0
    _
  %s9 = ssub.s32 1, %s7
  %s10 = scalar_select 0, %s9, %s7
  // Predicated region
  $region2: #{forward.17} parent=0 // pred_check
    _
  $region3: #{forward.17} parent=0 // pred_check_branch
    %12 = sbr.rel (0) target = $region5
  $region4: #{forward.17} parent=0 // pred_region
    _
  $region5: #{forward.17} parent=0 // pred_fallthru
    _
  // Predicated region
  $region6: #{forward.17} parent=0 // pred_check
    _
  $region7: #{forward.17} parent=0 // pred_check_branch
    %14 = sbr.rel (0) target = $region9
  $region8: #{forward.17} parent=0 // pred_region
    _
  $region9: #{forward.17} parent=0 // pred_fallthru
    _
  // Predicated region
  $region10: #{forward.17} parent=0 // pred_check
    _
  $region11: #{forward.17} parent=0 // pred_check_branch
    %16 = sbr.rel (0) target = $region13
  $region12: #{forward.17} parent=0 // pred_region
    _
  $region13: #{forward.17} parent=0 // pred_fallthru
    _
  // Predicated region
  $region14: #{forward.17} parent=0 // pred_check
    _
  $region15: #{forward.17} parent=0 // pred_check_branch
    %18 = sbr.rel (0) target = $region17
  $region16: #{forward.17} parent=0 // pred_region
    _
  $region17: #{forward.17} parent=0 // pred_fallthru
    _
  // Predicated region
  $region18: #{forward.17} parent=0 // pred_check
    _
  $region19: #{forward.17} parent=0 // pred_check_branch
    %20 = sbr.rel (0) target = $region21
  $region20: #{forward.17} parent=0 // pred_region
    _
  $region21: #{forward.17} parent=0 // pred_fallthru
    _
  // Predicated region
  $region22: #{forward.17} parent=0 // pred_check
    _
  $region23: #{forward.17} parent=0 // pred_check_branch
    %22 = sbr.rel (0) target = $region25
  $region24: #{forward.17} parent=0 // pred_region
    _
  $region25: #{forward.17} parent=0 // pred_fallthru
    _
  %v23 = vld [vmem:[%s0] sm:$0xff]
  %v24 = vld [vmem:[%s0 + $0x8] sm:$0xff]
  %v25 = vld [vmem:[%s0 + $0x10] sm:$0xff]
  %v26 = vld [vmem:[%s0 + $0x18] sm:$0xff]
  %v27 = vld [vmem:[%s0 + $0x20] sm:$0xff]
  %v28 = vld [vmem:[%s0 + $0x28] sm:$0xff]
  %v29 = vld [vmem:[%s0 + $0x30] sm:$0xff]
  %v30 = vld [vmem:[%s0 + $0x38] sm:$0xff]
  %v31 = vld [vmem:[%s0 + $0x40] sm:$0xff]
  %v32 = vld [vmem:[%s0 + $0x48] sm:$0xff]
  %v33 = vld [vmem:[%s0 + $0x50] sm:$0xff]
  %v34 = vld [vmem:[%s0 + $0x58] sm:$0xff]
  %v35 = vld [vmem:[%s0 + $0x60] sm:$0xff]
  %v36 = vld [vmem:[%s0 + $0x68] sm:$0xff]
  %v37 = vld [vmem:[%s0 + $0x70] sm:$0xff]
  %v38 = vld [vmem:[%s0 + $0x78] sm:$0xff]
  %v39 = vld [vmem:[%s0 + $0x80] sm:$0xff]
  %v40 = vld [vmem:[%s0 + $0x88] sm:$0xff]
  %v41 = vld [vmem:[%s0 + $0x90] sm:$0xff]
  %v42 = vld [vmem:[%s0 + $0x98] sm:$0xff]
  %v43 = vld [vmem:[%s0 + $0xa0] sm:$0xff]
  %v44 = vld [vmem:[%s0 + $0xa8] sm:$0xff]
  %v45 = vld [vmem:[%s0 + $0xb0] sm:$0xff]
  %v46 = vld [vmem:[%s0 + $0xb8] sm:$0xff]
  %v47 = vld [vmem:[%s1] sm:$0xff]
  %v48 = vld [vmem:[%s1 + $0x8] sm:$0xff]
  %v49 = vld [vmem:[%s2] sm:$0x1]
  %v51 = vlaneseq
  %v52 = vshrl.u32 %v51, 7
  %v53 = vsub.s32 0, %v52
  %v54 = vrot.slane %v49, %v53
  %vm56 = vcmask 130048
  %v58 = vsel %vm56, %v23, 0
  %v61 = vsel %vm56, %v24, 0
  %v64 = vsel %vm56, %v25, 0
  %v67 = vsel %vm56, %v26, 0
  %v70 = vsel %vm56, %v27, 0
  %v73 = vsel %vm56, %v28, 0
  %v76 = vsel %vm56, %v29, 0
  %v79 = vsel %vm56, %v30, 0
  %v82 = vsel %vm56, %v31, 0
  %v85 = vsel %vm56, %v32, 0
  %v88 = vsel %vm56, %v33, 0
  %v91 = vsel %vm56, %v34, 0
  %v94 = vsel %vm56, %v35, 0
  %v97 = vsel %vm56, %v36, 0
  %v100 = vsel %vm56, %v37, 0
  %v103 = vsel %vm56, %v38, 0
  %v106 = vsel %vm56, %v39, 0
  %v109 = vsel %vm56, %v40, 0
  %v112 = vsel %vm56, %v41, 0
  %v115 = vsel %vm56, %v42, 0
  %v118 = vsel %vm56, %v43, 0
  %v121 = vsel %vm56, %v44, 0
  %v124 = vsel %vm56, %v45, 0
  %v127 = vsel %vm56, %v46, 0
  %129 = vmatprep.subr.mxu0 0.0
  %130 = vmatpush1.msra.mxu0 %v47
  %131 = vmatprep.subr.mxu0 0.0
  %132 = vmatpush1.msra.mxu0 %v48
  %133 = vmatprep.subr.mxu0 0.0
  %134 = vmatpush1.msra.mxu0 0.0
  %135 = vmatprep.subr.mxu0 0.0
  %136 = vmatpush1.msra.mxu0 0.0
  %137 = vmatprep.subr.mxu0 0.0
  %138 = vmatpush1.msra.mxu0 0.0
  %139 = vmatprep.subr.mxu0 0.0
  %140 = vmatpush1.msra.mxu0 0.0
  %141 = vmatprep.subr.mxu0 0.0
  %142 = vmatpush1.msra.mxu0 0.0
  %143 = vmatprep.subr.mxu0 0.0
  %144 = vmatpush1.msra.mxu0 0.0
  %145 = vmatprep.subr.mxu0 0.0
  %146 = vmatpush1.msra.mxu0 0.0
  %147 = vmatprep.subr.mxu0 0.0
  %148 = vmatpush1.msra.mxu0 0.0
  %149 = vmatprep.subr.mxu0 0.0
  %150 = vmatpush1.msra.mxu0 0.0
  %151 = vmatprep.subr.mxu0 0.0
  %152 = vmatpush1.msra.mxu0 0.0
  %153 = vmatprep.subr.mxu0 0.0
  %154 = vmatpush1.msra.mxu0 0.0
  %155 = vmatprep.subr.mxu0 0.0
  %156 = vmatpush1.msra.mxu0 0.0
  %157 = vmatprep.subr.mxu0 0.0
  %158 = vmatpush1.msra.mxu0 0.0
  %159 = vmatprep.subr.mxu0 0.0
  %160 = vmatpush1.msra.mxu0 0.0
  %161 = vmatprep.subr.mxu0 0.0
  %162 = vmatpush1.msra.mxu0 0.0
  %163 = vmatprep.subr.mxu0 0.0
  %164 = vmatpush1.msra.mxu0 0.0
  %165 = vmatprep.subr.mxu0 0.0
  %166 = vmatpush1.msra.mxu0 0.0
  %167 = vmatprep.subr.mxu0 0.0
  %168 = vmatpush1.msra.mxu0 0.0
  %169 = vmatprep.subr.mxu0 0.0
  %170 = vmatpush1.msra.mxu0 0.0
  %171 = vmatprep.subr.mxu0 0.0
  %172 = vmatpush1.msra.mxu0 0.0
  %173 = vmatprep.subr.mxu0 0.0
  %174 = vmatpush1.msra.mxu0 0.0
  %175 = vmatprep.subr.mxu0 0.0
  %176 = vmatpush1.msra.mxu0 0.0
  %177 = vmatprep.subr.mxu0 0.0
  %178 = vmatpush1.msra.mxu0 0.0
  %179 = vmatprep.subr.mxu0 0.0
  %180 = vmatpush1.msra.mxu0 0.0
  %181 = vmatprep.subr.mxu0 0.0
  %182 = vmatpush1.msra.mxu0 0.0
  %183 = vmatprep.subr.mxu0 0.0
  %184 = vmatpush1.msra.mxu0 0.0
  %185 = vmatprep.subr.mxu0 0.0
  %186 = vmatpush1.msra.mxu0 0.0
  %187 = vmatprep.subr.mxu0 0.0
  %188 = vmatpush1.msra.mxu0 0.0
  %189 = vmatprep.subr.mxu0 0.0
  %190 = vmatpush1.msra.mxu0 0.0
  %191 = vmatprep.subr.mxu0 0.0
  %192 = vmatpush1.msra.mxu0 0.0
  %193 = vmatprep.mubr.f32.mxu0 0.0
  %194 = vmatmul.mubr.f32.gmra.mrb[0].mxu0 %v58
  %v195 = vpop.f32.mrb[0].mxu0
  %v196 = vadd.f32 %v54, %v195
  %v197 = vpop.f32.mrb[0].mxu0
  %198 = vmatprep.mubr.f32.mxu0 0.0
  %199 = vmatmul.mubr.f32.gmra.mrb[0].mxu0 %v61
  %v200 = vpop.f32.mrb[0].mxu0
  %v201 = vadd.f32 %v54, %v200
  %v202 = vpop.f32.mrb[0].mxu0
  %203 = vmatprep.mubr.f32.mxu0 0.0
  %204 = vmatmul.mubr.f32.gmra.mrb[0].mxu0 %v64
  %v205 = vpop.f32.mrb[0].mxu0
  %v206 = vadd.f32 %v54, %v205
  %v207 = vpop.f32.mrb[0].mxu0
  %208 = vmatprep.mubr.f32.mxu0 0.0
  %209 = vmatmul.mubr.f32.gmra.mrb[0].mxu0 %v67
  %v210 = vpop.f32.mrb[0].mxu0
  %v211 = vadd.f32 %v54, %v210
  %v212 = vpop.f32.mrb[0].mxu0
  %213 = vmatprep.mubr.f32.mxu0 0.0
  %214 = vmatmul.mubr.f32.gmra.mrb[0].mxu0 %v70
  %v215 = vpop.f32.mrb[0].mxu0
  %v216 = vadd.f32 %v54, %v215
  %v217 = vpop.f32.mrb[0].mxu0
  %218 = vmatprep.mubr.f32.mxu0 0.0
  %219 = vmatmul.mubr.f32.gmra.mrb[0].mxu0 %v73
  %v220 = vpop.f32.mrb[0].mxu0
  %v221 = vadd.f32 %v54, %v220
  %v222 = vpop.f32.mrb[0].mxu0
  %223 = vmatprep.mubr.f32.mxu0 0.0
  %224 = vmatmul.mubr.f32.gmra.mrb[0].mxu0 %v76
  %v225 = vpop.f32.mrb[0].mxu0
  %v226 = vadd.f32 %v54, %v225
  %v227 = vpop.f32.mrb[0].mxu0
  %228 = vmatprep.mubr.f32.mxu0 0.0
  %229 = vmatmul.mubr.f32.gmra.mrb[0].mxu0 %v79
  %v230 = vpop.f32.mrb[0].mxu0
  %v231 = vadd.f32 %v54, %v230
  %v232 = vpop.f32.mrb[0].mxu0
  %233 = vmatprep.mubr.f32.mxu0 0.0
  %234 = vmatmul.mubr.f32.gmra.mrb[0].mxu0 %v82
  %v235 = vpop.f32.mrb[0].mxu0
  %v236 = vadd.f32 %v54, %v235
  %v237 = vpop.f32.mrb[0].mxu0
  %238 = vmatprep.mubr.f32.mxu0 0.0
  %239 = vmatmul.mubr.f32.gmra.mrb[0].mxu0 %v85
  %v240 = vpop.f32.mrb[0].mxu0
  %v241 = vadd.f32 %v54, %v240
  %v242 = vpop.f32.mrb[0].mxu0
  %243 = vmatprep.mubr.f32.mxu0 0.0
  %244 = vmatmul.mubr.f32.gmra.mrb[0].mxu0 %v88
  %v245 = vpop.f32.mrb[0].mxu0
  %v246 = vadd.f32 %v54, %v245
  %v247 = vpop.f32.mrb[0].mxu0
  %248 = vmatprep.mubr.f32.mxu0 0.0
  %249 = vmatmul.mubr.f32.gmra.mrb[0].mxu0 %v91
  %v250 = vpop.f32.mrb[0].mxu0
  %v251 = vadd.f32 %v54, %v250
  %v252 = vpop.f32.mrb[0].mxu0
  %253 = vmatprep.mubr.f32.mxu0 0.0
  %254 = vmatmul.mubr.f32.gmra.mrb[0].mxu0 %v94
  %v255 = vpop.f32.mrb[0].mxu0
  %v256 = vadd.f32 %v54, %v255
  %v257 = vpop.f32.mrb[0].mxu0
  %258 = vmatprep.mubr.f32.mxu0 0.0
  %259 = vmatmul.mubr.f32.gmra.mrb[0].mxu0 %v97
  %v260 = vpop.f32.mrb[0].mxu0
  %v261 = vadd.f32 %v54, %v260
  %v262 = vpop.f32.mrb[0].mxu0
  %263 = vmatprep.mubr.f32.mxu0 0.0
  %264 = vmatmul.mubr.f32.gmra.mrb[0].mxu0 %v100
  %v265 = vpop.f32.mrb[0].mxu0
  %v266 = vadd.f32 %v54, %v265
  %v267 = vpop.f32.mrb[0].mxu0
  %268 = vmatprep.mubr.f32.mxu0 0.0
  %269 = vmatmul.mubr.f32.gmra.mrb[0].mxu0 %v103
  %v270 = vpop.f32.mrb[0].mxu0
  %v271 = vadd.f32 %v54, %v270
  %v272 = vpop.f32.mrb[0].mxu0
  %273 = vmatprep.mubr.f32.mxu0 0.0
  %274 = vmatmul.mubr.f32.gmra.mrb[0].mxu0 %v106
  %v275 = vpop.f32.mrb[0].mxu0
  %v276 = vadd.f32 %v54, %v275
  %v277 = vpop.f32.mrb[0].mxu0
  %278 = vmatprep.mubr.f32.mxu0 0.0
  %279 = vmatmul.mubr.f32.gmra.mrb[0].mxu0 %v109
  %v280 = vpop.f32.mrb[0].mxu0
  %v281 = vadd.f32 %v54, %v280
  %v282 = vpop.f32.mrb[0].mxu0
  %283 = vmatprep.mubr.f32.mxu0 0.0
  %284 = vmatmul.mubr.f32.gmra.mrb[0].mxu0 %v112
  %v285 = vpop.f32.mrb[0].mxu0
  %v286 = vadd.f32 %v54, %v285
  %v287 = vpop.f32.mrb[0].mxu0
  %288 = vmatprep.mubr.f32.mxu0 0.0
  %289 = vmatmul.mubr.f32.gmra.mrb[0].mxu0 %v115
  %v290 = vpop.f32.mrb[0].mxu0
  %v291 = vadd.f32 %v54, %v290
  %v292 = vpop.f32.mrb[0].mxu0
  %293 = vmatprep.mubr.f32.mxu0 0.0
  %294 = vmatmul.mubr.f32.gmra.mrb[0].mxu0 %v118
  %v295 = vpop.f32.mrb[0].mxu0
  %v296 = vadd.f32 %v54, %v295
  %v297 = vpop.f32.mrb[0].mxu0
  %298 = vmatprep.mubr.f32.mxu0 0.0
  %299 = vmatmul.mubr.f32.gmra.mrb[0].mxu0 %v121
  %v300 = vpop.f32.mrb[0].mxu0
  %v301 = vadd.f32 %v54, %v300
  %v302 = vpop.f32.mrb[0].mxu0
  %303 = vmatprep.mubr.f32.mxu0 0.0
  %304 = vmatmul.mubr.f32.gmra.mrb[0].mxu0 %v124
  %v305 = vpop.f32.mrb[0].mxu0
  %v306 = vadd.f32 %v54, %v305
  %v307 = vpop.f32.mrb[0].mxu0
  %308 = vmatprep.mubr.f32.mxu0 0.0
  %309 = vmatmul.mubr.f32.gmra.mrb[0].mxu0 %v127
  %v310 = vpop.f32.mrb[0].mxu0
  %v311 = vadd.f32 %v54, %v310
  %v312 = vpop.f32.mrb[0].mxu0
  %313 = vdwg.mxu0
  %v314 = vmax.f32 %v196, 0.0
  %v315 = vmax.f32 %v201, 0.0
  %v316 = vmax.f32 %v206, 0.0
  %v317 = vmax.f32 %v211, 0.0
  %v318 = vmax.f32 %v216, 0.0
  %v319 = vmax.f32 %v221, 0.0
  %v320 = vmax.f32 %v226, 0.0
  %v321 = vmax.f32 %v231, 0.0
  %v322 = vmax.f32 %v236, 0.0
  %v323 = vmax.f32 %v241, 0.0
  %v324 = vmax.f32 %v246, 0.0
  %v325 = vmax.f32 %v251, 0.0
  %v326 = vmax.f32 %v256, 0.0
  %v327 = vmax.f32 %v261, 0.0
  %v328 = vmax.f32 %v266, 0.0
  %v329 = vmax.f32 %v271, 0.0
  %v330 = vmax.f32 %v276, 0.0
  %v331 = vmax.f32 %v281, 0.0
  %v332 = vmax.f32 %v286, 0.0
  %v333 = vmax.f32 %v291, 0.0
  %v334 = vmax.f32 %v296, 0.0
  %v335 = vmax.f32 %v301, 0.0
  %v336 = vmax.f32 %v306, 0.0
  %v337 = vmax.f32 %v311, 0.0
  %v338 = vld [vmem:[%s3] sm:$0xff]
  %v339 = vld [vmem:[%s3 + $0x8] sm:$0xff]
  %v340 = vld [vmem:[%s3 + $0x10] sm:$0xff]
  %v341 = vld [vmem:[%s3 + $0x18] sm:$0xff]
  %v342 = vld [vmem:[%s3 + $0x20] sm:$0xff]
  %v343 = vld [vmem:[%s3 + $0x28] sm:$0xff]
  %v344 = vld [vmem:[%s3 + $0x30] sm:$0xff]
  %v345 = vld [vmem:[%s3 + $0x38] sm:$0xff]
  %v346 = vld [vmem:[%s3 + $0x40] sm:$0xff]
  %v347 = vld [vmem:[%s3 + $0x48] sm:$0xff]
  %v348 = vld [vmem:[%s3 + $0x50] sm:$0xff]
  %v349 = vld [vmem:[%s3 + $0x58] sm:$0xff]
  %v350 = vld [vmem:[%s3 + $0x60] sm:$0xff]
  %v351 = vld [vmem:[%s3 + $0x68] sm:$0xff]
  %v352 = vld [vmem:[%s3 + $0x70] sm:$0xff]
  %v353 = vld [vmem:[%s3 + $0x78] sm:$0xff]
  %v354 = vld [vmem:[%s3 + $0x80] sm:$0xff]
  %v355 = vld [vmem:[%s3 + $0x88] sm:$0xff]
  %v356 = vld [vmem:[%s3 + $0x90] sm:$0xff]
  %v357 = vld [vmem:[%s3 + $0x98] sm:$0xff]
  %v358 = vld [vmem:[%s3 + $0xa0] sm:$0xff]
  %v359 = vld [vmem:[%s3 + $0xa8] sm:$0xff]
  %v360 = vld [vmem:[%s3 + $0xb0] sm:$0xff]
  %v361 = vld [vmem:[%s3 + $0xb8] sm:$0xff]
  %363 = vset.pattern.permute.xlu0 0
  %364 = vperm.xlu0 %363, %v338
  %v365 = vpop.permute.xlu0 %364
  %368 = vset.pattern.permute.xlu0 0
  %369 = vperm.xlu0 %368, %v339
  %v370 = vpop.permute.xlu0 %369
  %373 = vset.pattern.permute.xlu0 0
  %374 = vperm.xlu0 %373, %v340
  %v375 = vpop.permute.xlu0 %374
  %378 = vset.pattern.permute.xlu0 0
  %379 = vperm.xlu0 %378, %v341
  %v380 = vpop.permute.xlu0 %379
  %383 = vset.pattern.permute.xlu0 0
  %384 = vperm.xlu0 %383, %v342
  %v385 = vpop.permute.xlu0 %384
  %388 = vset.pattern.permute.xlu0 0
  %389 = vperm.xlu0 %388, %v343
  %v390 = vpop.permute.xlu0 %389
  %393 = vset.pattern.permute.xlu0 0
  %394 = vperm.xlu0 %393, %v344
  %v395 = vpop.permute.xlu0 %394
  %398 = vset.pattern.permute.xlu0 0
  %399 = vperm.xlu0 %398, %v345
  %v400 = vpop.permute.xlu0 %399
  %403 = vset.pattern.permute.xlu0 0
  %404 = vperm.xlu0 %403, %v346
  %v405 = vpop.permute.xlu0 %404
  %408 = vset.pattern.permute.xlu0 0
  %409 = vperm.xlu0 %408, %v347
  %v410 = vpop.permute.xlu0 %409
  %413 = vset.pattern.permute.xlu0 0
  %414 = vperm.xlu0 %413, %v348
  %v415 = vpop.permute.xlu0 %414
  %418 = vset.pattern.permute.xlu0 0
  %419 = vperm.xlu0 %418, %v349
  %v420 = vpop.permute.xlu0 %419
  %423 = vset.pattern.permute.xlu0 0
  %424 = vperm.xlu0 %423, %v350
  %v425 = vpop.permute.xlu0 %424
  %428 = vset.pattern.permute.xlu0 0
  %429 = vperm.xlu0 %428, %v351
  %v430 = vpop.permute.xlu0 %429
  %433 = vset.pattern.permute.xlu0 0
  %434 = vperm.xlu0 %433, %v352
  %v435 = vpop.permute.xlu0 %434
  %438 = vset.pattern.permute.xlu0 0
  %439 = vperm.xlu0 %438, %v353
  %v440 = vpop.permute.xlu0 %439
  %443 = vset.pattern.permute.xlu0 0
  %444 = vperm.xlu0 %443, %v354
  %v445 = vpop.permute.xlu0 %444
  %448 = vset.pattern.permute.xlu0 0
  %449 = vperm.xlu0 %448, %v355
  %v450 = vpop.permute.xlu0 %449
  %453 = vset.pattern.permute.xlu0 0
  %454 = vperm.xlu0 %453, %v356
  %v455 = vpop.permute.xlu0 %454
  %458 = vset.pattern.permute.xlu0 0
  %459 = vperm.xlu0 %458, %v357
  %v460 = vpop.permute.xlu0 %459
  %463 = vset.pattern.permute.xlu0 0
  %464 = vperm.xlu0 %463, %v358
  %v465 = vpop.permute.xlu0 %464
  %468 = vset.pattern.permute.xlu0 0
  %469 = vperm.xlu0 %468, %v359
  %v470 = vpop.permute.xlu0 %469
  %473 = vset.pattern.permute.xlu0 0
  %474 = vperm.xlu0 %473, %v360
  %v475 = vpop.permute.xlu0 %474
  %478 = vset.pattern.permute.xlu0 0
  %479 = vperm.xlu0 %478, %v361
  %v480 = vpop.permute.xlu0 %479
  %v482 = vmul.f32 %v314, %v365
  %v483 = vmul.f32 %v315, %v370
  %v484 = vmul.f32 %v316, %v375
  %v485 = vmul.f32 %v317, %v380
  %v486 = vmul.f32 %v318, %v385
  %v487 = vmul.f32 %v319, %v390
  %v488 = vmul.f32 %v320, %v395
  %v489 = vmul.f32 %v321, %v400
  %v490 = vmul.f32 %v322, %v405
  %v491 = vmul.f32 %v323, %v410
  %v492 = vmul.f32 %v324, %v415
  %v493 = vmul.f32 %v325, %v420
  %v494 = vmul.f32 %v326, %v425
  %v495 = vmul.f32 %v327, %v430
  %v496 = vmul.f32 %v328, %v435
  %v497 = vmul.f32 %v329, %v440
  %v498 = vmul.f32 %v330, %v445
  %v499 = vmul.f32 %v331, %v450
  %v500 = vmul.f32 %v332, %v455
  %v501 = vmul.f32 %v333, %v460
  %v502 = vmul.f32 %v334, %v465
  %v503 = vmul.f32 %v335, %v470
  %v504 = vmul.f32 %v336, %v475
  %v505 = vmul.f32 %v337, %v480
  %v506 = vadd.f32 %v482, %v23
  %v507 = vadd.f32 %v483, %v24
  %v508 = vadd.f32 %v484, %v25
  %v509 = vadd.f32 %v485, %v26
  %v510 = vadd.f32 %v486, %v27
  %v511 = vadd.f32 %v487, %v28
  %v512 = vadd.f32 %v488, %v29
  %v513 = vadd.f32 %v489, %v30
  %v514 = vadd.f32 %v490, %v31
  %v515 = vadd.f32 %v491, %v32
  %v516 = vadd.f32 %v492, %v33
  %v517 = vadd.f32 %v493, %v34
  %v518 = vadd.f32 %v494, %v35
  %v519 = vadd.f32 %v495, %v36
  %v520 = vadd.f32 %v496, %v37
  %v521 = vadd.f32 %v497, %v38
  %v522 = vadd.f32 %v498, %v39
  %v523 = vadd.f32 %v499, %v40
  %v524 = vadd.f32 %v500, %v41
  %v525 = vadd.f32 %v501, %v42
  %v526 = vadd.f32 %v502, %v43
  %v527 = vadd.f32 %v503, %v44
  %v528 = vadd.f32 %v504, %v45
  %v529 = vadd.f32 %v505, %v46
  %v530 = vsel %vm56, %v506, 0.0
  %531 = vadd.xlane.f32.xlu0 %v530
  %v532 = vpop.xlane.xlu0 %531
  %v533 = vsel %vm56, %v507, 0.0
  %534 = vadd.xlane.f32.xlu0 %v533
  %v535 = vpop.xlane.xlu0 %534
  %v536 = vsel %vm56, %v508, 0.0
  %537 = vadd.xlane.f32.xlu0 %v536
  %v538 = vpop.xlane.xlu0 %537
  %v539 = vsel %vm56, %v509, 0.0
  %540 = vadd.xlane.f32.xlu0 %v539
  %v541 = vpop.xlane.xlu0 %540
  %v542 = vsel %vm56, %v510, 0.0
  %543 = vadd.xlane.f32.xlu0 %v542
  %v544 = vpop.xlane.xlu0 %543
  %v545 = vsel %vm56, %v511, 0.0
  %546 = vadd.xlane.f32.xlu0 %v545
  %v547 = vpop.xlane.xlu0 %546
  %v548 = vsel %vm56, %v512, 0.0
  %549 = vadd.xlane.f32.xlu0 %v548
  %v550 = vpop.xlane.xlu0 %549
  %v551 = vsel %vm56, %v513, 0.0
  %552 = vadd.xlane.f32.xlu0 %v551
  %v553 = vpop.xlane.xlu0 %552
  %v554 = vsel %vm56, %v514, 0.0
  %555 = vadd.xlane.f32.xlu0 %v554
  %v556 = vpop.xlane.xlu0 %555
  %v557 = vsel %vm56, %v515, 0.0
  %558 = vadd.xlane.f32.xlu0 %v557
  %v559 = vpop.xlane.xlu0 %558
  %v560 = vsel %vm56, %v516, 0.0
  %561 = vadd.xlane.f32.xlu0 %v560
  %v562 = vpop.xlane.xlu0 %561
  %v563 = vsel %vm56, %v517, 0.0
  %564 = vadd.xlane.f32.xlu0 %v563
  %v565 = vpop.xlane.xlu0 %564
  %v566 = vsel %vm56, %v518, 0.0
  %567 = vadd.xlane.f32.xlu0 %v566
  %v568 = vpop.xlane.xlu0 %567
  %v569 = vsel %vm56, %v519, 0.0
  %570 = vadd.xlane.f32.xlu0 %v569
  %v571 = vpop.xlane.xlu0 %570
  %v572 = vsel %vm56, %v520, 0.0
  %573 = vadd.xlane.f32.xlu0 %v572
  %v574 = vpop.xlane.xlu0 %573
  %v575 = vsel %vm56, %v521, 0.0
  %576 = vadd.xlane.f32.xlu0 %v575
  %v577 = vpop.xlane.xlu0 %576
  %v578 = vsel %vm56, %v522, 0.0
  %579 = vadd.xlane.f32.xlu0 %v578
  %v580 = vpop.xlane.xlu0 %579
  %v581 = vsel %vm56, %v523, 0.0
  %582 = vadd.xlane.f32.xlu0 %v581
  %v583 = vpop.xlane.xlu0 %582
  %v584 = vsel %vm56, %v524, 0.0
  %585 = vadd.xlane.f32.xlu0 %v584
  %v586 = vpop.xlane.xlu0 %585
  %v587 = vsel %vm56, %v525, 0.0
  %588 = vadd.xlane.f32.xlu0 %v587
  %v589 = vpop.xlane.xlu0 %588
  %v590 = vsel %vm56, %v526, 0.0
  %591 = vadd.xlane.f32.xlu0 %v590
  %v592 = vpop.xlane.xlu0 %591
  %v593 = vsel %vm56, %v527, 0.0
  %594 = vadd.xlane.f32.xlu0 %v593
  %v595 = vpop.xlane.xlu0 %594
  %v596 = vsel %vm56, %v528, 0.0
  %597 = vadd.xlane.f32.xlu0 %v596
  %v598 = vpop.xlane.xlu0 %597
  %v599 = vsel %vm56, %v529, 0.0
  %600 = vadd.xlane.f32.xlu0 %v599
  %v601 = vpop.xlane.xlu0 %600
  %v602 = vrcp.pop 16.0
  %v603 = vmul.f32 %v532, %v602
  %v604 = vmul.f32 %v535, %v602
  %v605 = vmul.f32 %v538, %v602
  %v606 = vmul.f32 %v541, %v602
  %v607 = vmul.f32 %v544, %v602
  %v608 = vmul.f32 %v547, %v602
  %v609 = vmul.f32 %v550, %v602
  %v610 = vmul.f32 %v553, %v602
  %v611 = vmul.f32 %v556, %v602
  %v612 = vmul.f32 %v559, %v602
  %v613 = vmul.f32 %v562, %v602
  %v614 = vmul.f32 %v565, %v602
  %v615 = vmul.f32 %v568, %v602
  %v616 = vmul.f32 %v571, %v602
  %v617 = vmul.f32 %v574, %v602
  %v618 = vmul.f32 %v577, %v602
  %v619 = vmul.f32 %v580, %v602
  %v620 = vmul.f32 %v583, %v602
  %v621 = vmul.f32 %v586, %v602
  %v622 = vmul.f32 %v589, %v602
  %v623 = vmul.f32 %v592, %v602
  %v624 = vmul.f32 %v595, %v602
  %v625 = vmul.f32 %v598, %v602
  %v626 = vmul.f32 %v601, %v602
  %v627 = vsub.f32 %v506, %v603
  %v628 = vsub.f32 %v507, %v604
  %v629 = vsub.f32 %v508, %v605
  %v630 = vsub.f32 %v509, %v606
  %v631 = vsub.f32 %v510, %v607
  %v632 = vsub.f32 %v511, %v608
  %v633 = vsub.f32 %v512, %v609
  %v634 = vsub.f32 %v513, %v610
  %v635 = vsub.f32 %v514, %v611
  %v636 = vsub.f32 %v515, %v612
  %v637 = vsub.f32 %v516, %v613
  %v638 = vsub.f32 %v517, %v614
  %v639 = vsub.f32 %v518, %v615
  %v640 = vsub.f32 %v519, %v616
  %v641 = vsub.f32 %v520, %v617
  %v642 = vsub.f32 %v521, %v618
  %v643 = vsub.f32 %v522, %v619
  %v644 = vsub.f32 %v523, %v620
  %v645 = vsub.f32 %v524, %v621
  %v646 = vsub.f32 %v525, %v622
  %v647 = vsub.f32 %v526, %v623
  %v648 = vsub.f32 %v527, %v624
  %v649 = vsub.f32 %v528, %v625
  %v650 = vsub.f32 %v529, %v626
  %v651 = vmul.f32 %v627, %v627
  %v652 = vmul.f32 %v628, %v628
  %v653 = vmul.f32 %v629, %v629
  %v654 = vmul.f32 %v630, %v630
  %v655 = vmul.f32 %v631, %v631
  %v656 = vmul.f32 %v632, %v632
  %v657 = vmul.f32 %v633, %v633
  %v658 = vmul.f32 %v634, %v634
  %v659 = vmul.f32 %v635, %v635
  %v660 = vmul.f32 %v636, %v636
  %v661 = vmul.f32 %v637, %v637
  %v662 = vmul.f32 %v638, %v638
  %v663 = vmul.f32 %v639, %v639
  %v664 = vmul.f32 %v640, %v640
  %v665 = vmul.f32 %v641, %v641
  %v666 = vmul.f32 %v642, %v642
  %v667 = vmul.f32 %v643, %v643
  %v668 = vmul.f32 %v644, %v644
  %v669 = vmul.f32 %v645, %v645
  %v670 = vmul.f32 %v646, %v646
  %v671 = vmul.f32 %v647, %v647
  %v672 = vmul.f32 %v648, %v648
  %v673 = vmul.f32 %v649, %v649
  %v674 = vmul.f32 %v650, %v650
  %v675 = vsel %vm56, %v651, 0.0
  %676 = vadd.xlane.f32.xlu0 %v675
  %v677 = vpop.xlane.xlu0 %676
  %v678 = vsel %vm56, %v652, 0.0
  %679 = vadd.xlane.f32.xlu0 %v678
  %v680 = vpop.xlane.xlu0 %679
  %v681 = vsel %vm56, %v653, 0.0
  %682 = vadd.xlane.f32.xlu0 %v681
  %v683 = vpop.xlane.xlu0 %682
  %v684 = vsel %vm56, %v654, 0.0
  %685 = vadd.xlane.f32.xlu0 %v684
  %v686 = vpop.xlane.xlu0 %685
  %v687 = vsel %vm56, %v655, 0.0
  %688 = vadd.xlane.f32.xlu0 %v687
  %v689 = vpop.xlane.xlu0 %688
  %v690 = vsel %vm56, %v656, 0.0
  %691 = vadd.xlane.f32.xlu0 %v690
  %v692 = vpop.xlane.xlu0 %691
  %v693 = vsel %vm56, %v657, 0.0
  %694 = vadd.xlane.f32.xlu0 %v693
  %v695 = vpop.xlane.xlu0 %694
  %v696 = vsel %vm56, %v658, 0.0
  %697 = vadd.xlane.f32.xlu0 %v696
  %v698 = vpop.xlane.xlu0 %697
  %v699 = vsel %vm56, %v659, 0.0
  %700 = vadd.xlane.f32.xlu0 %v699
  %v701 = vpop.xlane.xlu0 %700
  %v702 = vsel %vm56, %v660, 0.0
  %703 = vadd.xlane.f32.xlu0 %v702
  %v704 = vpop.xlane.xlu0 %703
  %v705 = vsel %vm56, %v661, 0.0
  %706 = vadd.xlane.f32.xlu0 %v705
  %v707 = vpop.xlane.xlu0 %706
  %v708 = vsel %vm56, %v662, 0.0
  %709 = vadd.xlane.f32.xlu0 %v708
  %v710 = vpop.xlane.xlu0 %709
  %v711 = vsel %vm56, %v663, 0.0
  %712 = vadd.xlane.f32.xlu0 %v711
  %v713 = vpop.xlane.xlu0 %712
  %v714 = vsel %vm56, %v664, 0.0
  %715 = vadd.xlane.f32.xlu0 %v714
  %v716 = vpop.xlane.xlu0 %715
  %v717 = vsel %vm56, %v665, 0.0
  %718 = vadd.xlane.f32.xlu0 %v717
  %v719 = vpop.xlane.xlu0 %718
  %v720 = vsel %vm56, %v666, 0.0
  %721 = vadd.xlane.f32.xlu0 %v720
  %v722 = vpop.xlane.xlu0 %721
  %v723 = vsel %vm56, %v667, 0.0
  %724 = vadd.xlane.f32.xlu0 %v723
  %v725 = vpop.xlane.xlu0 %724
  %v726 = vsel %vm56, %v668, 0.0
  %727 = vadd.xlane.f32.xlu0 %v726
  %v728 = vpop.xlane.xlu0 %727
  %v729 = vsel %vm56, %v669, 0.0
  %730 = vadd.xlane.f32.xlu0 %v729
  %v731 = vpop.xlane.xlu0 %730
  %v732 = vsel %vm56, %v670, 0.0
  %733 = vadd.xlane.f32.xlu0 %v732
  %v734 = vpop.xlane.xlu0 %733
  %v735 = vsel %vm56, %v671, 0.0
  %736 = vadd.xlane.f32.xlu0 %v735
  %v737 = vpop.xlane.xlu0 %736
  %v738 = vsel %vm56, %v672, 0.0
  %739 = vadd.xlane.f32.xlu0 %v738
  %v740 = vpop.xlane.xlu0 %739
  %v741 = vsel %vm56, %v673, 0.0
  %742 = vadd.xlane.f32.xlu0 %v741
  %v743 = vpop.xlane.xlu0 %742
  %v744 = vsel %vm56, %v674, 0.0
  %745 = vadd.xlane.f32.xlu0 %v744
  %v746 = vpop.xlane.xlu0 %745
  %v747 = vmul.f32 %v677, %v602
  %v748 = vmul.f32 %v680, %v602
  %v749 = vmul.f32 %v683, %v602
  %v750 = vmul.f32 %v686, %v602
  %v751 = vmul.f32 %v689, %v602
  %v752 = vmul.f32 %v692, %v602
  %v753 = vmul.f32 %v695, %v602
  %v754 = vmul.f32 %v698, %v602
  %v755 = vmul.f32 %v701, %v602
  %v756 = vmul.f32 %v704, %v602
  %v757 = vmul.f32 %v707, %v602
  %v758 = vmul.f32 %v710, %v602
  %v759 = vmul.f32 %v713, %v602
  %v760 = vmul.f32 %v716, %v602
  %v761 = vmul.f32 %v719, %v602
  %v762 = vmul.f32 %v722, %v602
  %v763 = vmul.f32 %v725, %v602
  %v764 = vmul.f32 %v728, %v602
  %v765 = vmul.f32 %v731, %v602
  %v766 = vmul.f32 %v734, %v602
  %v767 = vmul.f32 %v737, %v602
  %v768 = vmul.f32 %v740, %v602
  %v769 = vmul.f32 %v743, %v602
  %v770 = vmul.f32 %v746, %v602
  %v771 = vadd.f32 %v747, 1e-05
  %v772 = vadd.f32 %v748, 1e-05
  %v773 = vadd.f32 %v749, 1e-05
  %v774 = vadd.f32 %v750, 1e-05
  %v775 = vadd.f32 %v751, 1e-05
  %v776 = vadd.f32 %v752, 1e-05
  %v777 = vadd.f32 %v753, 1e-05
  %v778 = vadd.f32 %v754, 1e-05
  %v779 = vadd.f32 %v755, 1e-05
  %v780 = vadd.f32 %v756, 1e-05
  %v781 = vadd.f32 %v757, 1e-05
  %v782 = vadd.f32 %v758, 1e-05
  %v783 = vadd.f32 %v759, 1e-05
  %v784 = vadd.f32 %v760, 1e-05
  %v785 = vadd.f32 %v761, 1e-05
  %v786 = vadd.f32 %v762, 1e-05
  %v787 = vadd.f32 %v763, 1e-05
  %v788 = vadd.f32 %v764, 1e-05
  %v789 = vadd.f32 %v765, 1e-05
  %v790 = vadd.f32 %v766, 1e-05
  %v791 = vadd.f32 %v767, 1e-05
  %v792 = vadd.f32 %v768, 1e-05
  %v793 = vadd.f32 %v769, 1e-05
  %v794 = vadd.f32 %v770, 1e-05
  %v795 = vrsqrt.pop %v771
  %v796 = vrsqrt.pop %v772
  %v797 = vrsqrt.pop %v773
  %v798 = vrsqrt.pop %v774
  %v799 = vrsqrt.pop %v775
  %v800 = vrsqrt.pop %v776
  %v801 = vrsqrt.pop %v777
  %v802 = vrsqrt.pop %v778
  %v803 = vrsqrt.pop %v779
  %v804 = vrsqrt.pop %v780
  %v805 = vrsqrt.pop %v781
  %v806 = vrsqrt.pop %v782
  %v807 = vrsqrt.pop %v783
  %v808 = vrsqrt.pop %v784
  %v809 = vrsqrt.pop %v785
  %v810 = vrsqrt.pop %v786
  %v811 = vrsqrt.pop %v787
  %v812 = vrsqrt.pop %v788
  %v813 = vrsqrt.pop %v789
  %v814 = vrsqrt.pop %v790
  %v815 = vrsqrt.pop %v791
  %v816 = vrsqrt.pop %v792
  %v817 = vrsqrt.pop %v793
  %v818 = vrsqrt.pop %v794
  %v819 = vmul.f32 %v627, %v795
  %v820 = vmul.f32 %v628, %v796
  %v821 = vmul.f32 %v629, %v797
  %v822 = vmul.f32 %v630, %v798
  %v823 = vmul.f32 %v631, %v799
  %v824 = vmul.f32 %v632, %v800
  %v825 = vmul.f32 %v633, %v801
  %v826 = vmul.f32 %v634, %v802
  %v827 = vmul.f32 %v635, %v803
  %v828 = vmul.f32 %v636, %v804
  %v829 = vmul.f32 %v637, %v805
  %v830 = vmul.f32 %v638, %v806
  %v831 = vmul.f32 %v639, %v807
  %v832 = vmul.f32 %v640, %v808
  %v833 = vmul.f32 %v641, %v809
  %v834 = vmul.f32 %v642, %v810
  %v835 = vmul.f32 %v643, %v811
  %v836 = vmul.f32 %v644, %v812
  %v837 = vmul.f32 %v645, %v813
  %v838 = vmul.f32 %v646, %v814
  %v839 = vmul.f32 %v647, %v815
  %v840 = vmul.f32 %v648, %v816
  %v841 = vmul.f32 %v649, %v817
  %v842 = vmul.f32 %v650, %v818
  %v843 = vld [vmem:[%s4] sm:$0x1]
  %v845 = vlaneseq
  %v846 = vshrl.u32 %v845, 7
  %v847 = vsub.s32 0, %v846
  %v848 = vrot.slane %v843, %v847
  %v850 = vmul.f32 %v819, %v848
  %v851 = vmul.f32 %v820, %v848
  %v852 = vmul.f32 %v821, %v848
  %v853 = vmul.f32 %v822, %v848
  %v854 = vmul.f32 %v823, %v848
  %v855 = vmul.f32 %v824, %v848
  %v856 = vmul.f32 %v825, %v848
  %v857 = vmul.f32 %v826, %v848
  %v858 = vmul.f32 %v827, %v848
  %v859 = vmul.f32 %v828, %v848
  %v860 = vmul.f32 %v829, %v848
  %v861 = vmul.f32 %v830, %v848
  %v862 = vmul.f32 %v831, %v848
  %v863 = vmul.f32 %v832, %v848
  %v864 = vmul.f32 %v833, %v848
  %v865 = vmul.f32 %v834, %v848
  %v866 = vmul.f32 %v835, %v848
  %v867 = vmul.f32 %v836, %v848
  %v868 = vmul.f32 %v837, %v848
  %v869 = vmul.f32 %v838, %v848
  %v870 = vmul.f32 %v839, %v848
  %v871 = vmul.f32 %v840, %v848
  %v872 = vmul.f32 %v841, %v848
  %v873 = vmul.f32 %v842, %v848
  %v874 = vld [vmem:[%s5] sm:$0x1]
  %v876 = vlaneseq
  %v877 = vshrl.u32 %v876, 7
  %v878 = vsub.s32 0, %v877
  %v879 = vrot.slane %v874, %v878
  %v881 = vadd.f32 %v850, %v879
  %v882 = vadd.f32 %v851, %v879
  %v883 = vadd.f32 %v852, %v879
  %v884 = vadd.f32 %v853, %v879
  %v885 = vadd.f32 %v854, %v879
  %v886 = vadd.f32 %v855, %v879
  %v887 = vadd.f32 %v856, %v879
  %v888 = vadd.f32 %v857, %v879
  %v889 = vadd.f32 %v858, %v879
  %v890 = vadd.f32 %v859, %v879
  %v891 = vadd.f32 %v860, %v879
  %v892 = vadd.f32 %v861, %v879
  %v893 = vadd.f32 %v862, %v879
  %v894 = vadd.f32 %v863, %v879
  %v895 = vadd.f32 %v864, %v879
  %v896 = vadd.f32 %v865, %v879
  %v897 = vadd.f32 %v866, %v879
  %v898 = vadd.f32 %v867, %v879
  %v899 = vadd.f32 %v868, %v879
  %v900 = vadd.f32 %v869, %v879
  %v901 = vadd.f32 %v870, %v879
  %v902 = vadd.f32 %v871, %v879
  %v903 = vadd.f32 %v872, %v879
  %v904 = vadd.f32 %v873, %v879
  %905 = vst.msk [vmem:[%s6] sm:$0xff] %vm56, %v881
  %906 = vst.msk [vmem:[%s6 + $0x8] sm:$0xff] %vm56, %v882
  %907 = vst.msk [vmem:[%s6 + $0x10] sm:$0xff] %vm56, %v883
  %908 = vst.msk [vmem:[%s6 + $0x18] sm:$0xff] %vm56, %v884
  %909 = vst.msk [vmem:[%s6 + $0x20] sm:$0xff] %vm56, %v885
  %910 = vst.msk [vmem:[%s6 + $0x28] sm:$0xff] %vm56, %v886
  %911 = vst.msk [vmem:[%s6 + $0x30] sm:$0xff] %vm56, %v887
  %912 = vst.msk [vmem:[%s6 + $0x38] sm:$0xff] %vm56, %v888
  %913 = vst.msk [vmem:[%s6 + $0x40] sm:$0xff] %vm56, %v889
  %914 = vst.msk [vmem:[%s6 + $0x48] sm:$0xff] %vm56, %v890
  %915 = vst.msk [vmem:[%s6 + $0x50] sm:$0xff] %vm56, %v891
  %916 = vst.msk [vmem:[%s6 + $0x58] sm:$0xff] %vm56, %v892
  %917 = vst.msk [vmem:[%s6 + $0x60] sm:$0xff] %vm56, %v893
  %918 = vst.msk [vmem:[%s6 + $0x68] sm:$0xff] %vm56, %v894
  %919 = vst.msk [vmem:[%s6 + $0x70] sm:$0xff] %vm56, %v895
  %920 = vst.msk [vmem:[%s6 + $0x78] sm:$0xff] %vm56, %v896
  %921 = vst.msk [vmem:[%s6 + $0x80] sm:$0xff] %vm56, %v897
  %922 = vst.msk [vmem:[%s6 + $0x88] sm:$0xff] %vm56, %v898
  %923 = vst.msk [vmem:[%s6 + $0x90] sm:$0xff] %vm56, %v899
  %924 = vst.msk [vmem:[%s6 + $0x98] sm:$0xff] %vm56, %v900
  %925 = vst.msk [vmem:[%s6 + $0xa0] sm:$0xff] %vm56, %v901
  %926 = vst.msk [vmem:[%s6 + $0xa8] sm:$0xff] %vm56, %v902
  %927 = vst.msk [vmem:[%s6 + $0xb0] sm:$0xff] %vm56, %v903
  %928 = vst.msk [vmem:[%s6 + $0xb8] sm:$0xff] %vm56, %v904
  // Predicated region
  $region26: #{forward.17} parent=0 // pred_check
    _
  $region27: #{forward.17} parent=0 // pred_check_branch
    %930 = sbr.rel (0) target = $region29
  $region28: #{forward.17} parent=0 // pred_region
    _
  $region29: #{forward.17} parent=0 // pred_fallthru
    _
  // Predicated region
  $region30: #{forward.17} parent=0 // pred_check
    _
  $region31: #{forward.17} parent=0 // pred_check_branch
    %932 = sbr.rel (0) target = $region33
  $region32: #{forward.17} parent=0 // pred_region
    _
  $region33: #{forward.17} parent=0 // pred_fallthru
    _

// kernel: forward.18
$region0: #{forward.18}
  #allocation0 [shape = 'u32[]', space=smem, size = 0x4, offset = 0x4, fixed_abs, tag = 'smem constant byte address 0x4 - core index']
  #allocation1 [shape = 'u32[144,128]{1,0:T(1,128)}', space=vmem, size = 0x12000, scoped, tag = 'internal scratch']
  %s0 = inlined_call_operand.vmem [shape: f32[192,16], index: 0, kind: input, shape index: {}]
  %s1 = inlined_call_operand.vmem [shape: f32[16,16], index: 1, kind: input, shape index: {}]
  %s2 = inlined_call_operand.vmem [shape: f32[8,16], index: 2, kind: input, shape index: {}]
  %s3 = inlined_call_operand.vmem [shape: f32[192,16], index: 3, kind: output, shape index: {0}]
  %s4 = inlined_call_operand.vmem [shape: f32[192,16], index: 4, kind: output, shape index: {1}]
  %s5 = inlined_call_operand.vmem [shape: f32[192,8], index: 5, kind: output, shape index: {2}]
  %6 = xla_tuple %s3, %s4, %s5
  %s7 = sld [smem:[#allocation0]]
  $region38: #{forward.18} parent=0
    _
  %s9 = ssub.s32 1, %s7
  %s10 = scalar_select 0, %s9, %s7
  // Predicated region
  $region2: #{forward.18} parent=0 // pred_check
    _
  $region3: #{forward.18} parent=0 // pred_check_branch
    %12 = sbr.rel (0) target = $region5
  $region4: #{forward.18} parent=0 // pred_region
    _
  $region5: #{forward.18} parent=0 // pred_fallthru
    _
  // Predicated region
  $region6: #{forward.18} parent=0 // pred_check
    _
  $region7: #{forward.18} parent=0 // pred_check_branch
    %14 = sbr.rel (0) target = $region9
  $region8: #{forward.18} parent=0 // pred_region
    _
  $region9: #{forward.18} parent=0 // pred_fallthru
    _
  // Predicated region
  $region10: #{forward.18} parent=0 // pred_check
    _
  $region11: #{forward.18} parent=0 // pred_check_branch
    %16 = sbr.rel (0) target = $region13
  $region12: #{forward.18} parent=0 // pred_region
    _
  $region13: #{forward.18} parent=0 // pred_fallthru
    _
  %v17 = vld [vmem:[%s0] sm:$0xff]
  %v18 = vld [vmem:[%s0 + $0x8] sm:$0xff]
  %v19 = vld [vmem:[%s0 + $0x10] sm:$0xff]
  %v20 = vld [vmem:[%s0 + $0x18] sm:$0xff]
  %v21 = vld [vmem:[%s0 + $0x20] sm:$0xff]
  %v22 = vld [vmem:[%s0 + $0x28] sm:$0xff]
  %v23 = vld [vmem:[%s0 + $0x30] sm:$0xff]
  %v24 = vld [vmem:[%s0 + $0x38] sm:$0xff]
  %v25 = vld [vmem:[%s0 + $0x40] sm:$0xff]
  %v26 = vld [vmem:[%s0 + $0x48] sm:$0xff]
  %v27 = vld [vmem:[%s0 + $0x50] sm:$0xff]
  %v28 = vld [vmem:[%s0 + $0x58] sm:$0xff]
  %v29 = vld [vmem:[%s0 + $0x60] sm:$0xff]
  %v30 = vld [vmem:[%s0 + $0x68] sm:$0xff]
  %v31 = vld [vmem:[%s0 + $0x70] sm:$0xff]
  %v32 = vld [vmem:[%s0 + $0x78] sm:$0xff]
  %v33 = vld [vmem:[%s0 + $0x80] sm:$0xff]
  %v34 = vld [vmem:[%s0 + $0x88] sm:$0xff]
  %v35 = vld [vmem:[%s0 + $0x90] sm:$0xff]
  %v36 = vld [vmem:[%s0 + $0x98] sm:$0xff]
  %v37 = vld [vmem:[%s0 + $0xa0] sm:$0xff]
  %v38 = vld [vmem:[%s0 + $0xa8] sm:$0xff]
  %v39 = vld [vmem:[%s0 + $0xb0] sm:$0xff]
  %v40 = vld [vmem:[%s0 + $0xb8] sm:$0xff]
  %v41 = vld [vmem:[%s1] sm:$0xff]
  %v42 = vld [vmem:[%s1 + $0x8] sm:$0xff]
  %vm43 = vcmask 130048
  %v45 = vsel %vm43, %v17, 0
  %v48 = vsel %vm43, %v18, 0
  %v51 = vsel %vm43, %v19, 0
  %v54 = vsel %vm43, %v20, 0
  %v57 = vsel %vm43, %v21, 0
  %v60 = vsel %vm43, %v22, 0
  %v63 = vsel %vm43, %v23, 0
  %v66 = vsel %vm43, %v24, 0
  %v69 = vsel %vm43, %v25, 0
  %v72 = vsel %vm43, %v26, 0
  %v75 = vsel %vm43, %v27, 0
  %v78 = vsel %vm43, %v28, 0
  %v81 = vsel %vm43, %v29, 0
  %v84 = vsel %vm43, %v30, 0
  %v87 = vsel %vm43, %v31, 0
  %v90 = vsel %vm43, %v32, 0
  %v93 = vsel %vm43, %v33, 0
  %v96 = vsel %vm43, %v34, 0
  %v99 = vsel %vm43, %v35, 0
  %v102 = vsel %vm43, %v36, 0
  %v105 = vsel %vm43, %v37, 0
  %v108 = vsel %vm43, %v38, 0
  %v111 = vsel %vm43, %v39, 0
  %v114 = vsel %vm43, %v40, 0
  %116 = vmatprep.subr.mxu0 0.0
  %117 = vmatpush1.msra.mxu0 %v41
  %118 = vmatprep.subr.mxu0 0.0
  %119 = vmatpush1.msra.mxu0 %v42
  %120 = vmatprep.subr.mxu0 0.0
  %121 = vmatpush1.msra.mxu0 0.0
  %122 = vmatprep.subr.mxu0 0.0
  %123 = vmatpush1.msra.mxu0 0.0
  %124 = vmatprep.subr.mxu0 0.0
  %125 = vmatpush1.msra.mxu0 0.0
  %126 = vmatprep.subr.mxu0 0.0
  %127 = vmatpush1.msra.mxu0 0.0
  %128 = vmatprep.subr.mxu0 0.0
  %129 = vmatpush1.msra.mxu0 0.0
  %130 = vmatprep.subr.mxu0 0.0
  %131 = vmatpush1.msra.mxu0 0.0
  %132 = vmatprep.subr.mxu0 0.0
  %133 = vmatpush1.msra.mxu0 0.0
  %134 = vmatprep.subr.mxu0 0.0
  %135 = vmatpush1.msra.mxu0 0.0
  %136 = vmatprep.subr.mxu0 0.0
  %137 = vmatpush1.msra.mxu0 0.0
  %138 = vmatprep.subr.mxu0 0.0
  %139 = vmatpush1.msra.mxu0 0.0
  %140 = vmatprep.subr.mxu0 0.0
  %141 = vmatpush1.msra.mxu0 0.0
  %142 = vmatprep.subr.mxu0 0.0
  %143 = vmatpush1.msra.mxu0 0.0
  %144 = vmatprep.subr.mxu0 0.0
  %145 = vmatpush1.msra.mxu0 0.0
  %146 = vmatprep.subr.mxu0 0.0
  %147 = vmatpush1.msra.mxu0 0.0
  %148 = vmatprep.subr.mxu0 0.0
  %149 = vmatpush1.msra.mxu0 0.0
  %150 = vmatprep.subr.mxu0 0.0
  %151 = vmatpush1.msra.mxu0 0.0
  %152 = vmatprep.subr.mxu0 0.0
  %153 = vmatpush1.msra.mxu0 0.0
  %154 = vmatprep.subr.mxu0 0.0
  %155 = vmatpush1.msra.mxu0 0.0
  %156 = vmatprep.subr.mxu0 0.0
  %157 = vmatpush1.msra.mxu0 0.0
  %158 = vmatprep.subr.mxu0 0.0
  %159 = vmatpush1.msra.mxu0 0.0
  %160 = vmatprep.subr.mxu0 0.0
  %161 = vmatpush1.msra.mxu0 0.0
  %162 = vmatprep.subr.mxu0 0.0
  %163 = vmatpush1.msra.mxu0 0.0
  %164 = vmatprep.subr.mxu0 0.0
  %165 = vmatpush1.msra.mxu0 0.0
  %166 = vmatprep.subr.mxu0 0.0
  %167 = vmatpush1.msra.mxu0 0.0
  %168 = vmatprep.subr.mxu0 0.0
  %169 = vmatpush1.msra.mxu0 0.0
  %170 = vmatprep.subr.mxu0 0.0
  %171 = vmatpush1.msra.mxu0 0.0
  %172 = vmatprep.subr.mxu0 0.0
  %173 = vmatpush1.msra.mxu0 0.0
  %174 = vmatprep.subr.mxu0 0.0
  %175 = vmatpush1.msra.mxu0 0.0
  %176 = vmatprep.subr.mxu0 0.0
  %177 = vmatpush1.msra.mxu0 0.0
  %178 = vmatprep.subr.mxu0 0.0
  %179 = vmatpush1.msra.mxu0 0.0
  %180 = vmatprep.mubr.f32.mxu0 0.0
  %181 = vmatmul.mubr.f32.gmra.mrb[0].mxu0 %v45
  %v182 = vpop.f32.mrb[0].mxu0
  %v183 = vadd.f32 0.0, %v182
  %v184 = vpop.f32.mrb[0].mxu0
  %185 = vmatprep.mubr.f32.mxu0 0.0
  %186 = vmatmul.mubr.f32.gmra.mrb[0].mxu0 %v48
  %v187 = vpop.f32.mrb[0].mxu0
  %v188 = vadd.f32 0.0, %v187
  %v189 = vpop.f32.mrb[0].mxu0
  %190 = vmatprep.mubr.f32.mxu0 0.0
  %191 = vmatmul.mubr.f32.gmra.mrb[0].mxu0 %v51
  %v192 = vpop.f32.mrb[0].mxu0
  %v193 = vadd.f32 0.0, %v192
  %v194 = vpop.f32.mrb[0].mxu0
  %195 = vmatprep.mubr.f32.mxu0 0.0
  %196 = vmatmul.mubr.f32.gmra.mrb[0].mxu0 %v54
  %v197 = vpop.f32.mrb[0].mxu0
  %v198 = vadd.f32 0.0, %v197
  %v199 = vpop.f32.mrb[0].mxu0
  %200 = vmatprep.mubr.f32.mxu0 0.0
  %201 = vmatmul.mubr.f32.gmra.mrb[0].mxu0 %v57
  %v202 = vpop.f32.mrb[0].mxu0
  %v203 = vadd.f32 0.0, %v202
  %v204 = vpop.f32.mrb[0].mxu0
  %205 = vmatprep.mubr.f32.mxu0 0.0
  %206 = vmatmul.mubr.f32.gmra.mrb[0].mxu0 %v60
  %v207 = vpop.f32.mrb[0].mxu0
  %v208 = vadd.f32 0.0, %v207
  %v209 = vpop.f32.mrb[0].mxu0
  %210 = vmatprep.mubr.f32.mxu0 0.0
  %211 = vmatmul.mubr.f32.gmra.mrb[0].mxu0 %v63
  %v212 = vpop.f32.mrb[0].mxu0
  %v213 = vadd.f32 0.0, %v212
  %v214 = vpop.f32.mrb[0].mxu0
  %215 = vmatprep.mubr.f32.mxu0 0.0
  %216 = vmatmul.mubr.f32.gmra.mrb[0].mxu0 %v66
  %v217 = vpop.f32.mrb[0].mxu0
  %v218 = vadd.f32 0.0, %v217
  %v219 = vpop.f32.mrb[0].mxu0
  %220 = vmatprep.mubr.f32.mxu0 0.0
  %221 = vmatmul.mubr.f32.gmra.mrb[0].mxu0 %v69
  %v222 = vpop.f32.mrb[0].mxu0
  %v223 = vadd.f32 0.0, %v222
  %v224 = vpop.f32.mrb[0].mxu0
  %225 = vmatprep.mubr.f32.mxu0 0.0
  %226 = vmatmul.mubr.f32.gmra.mrb[0].mxu0 %v72
  %v227 = vpop.f32.mrb[0].mxu0
  %v228 = vadd.f32 0.0, %v227
  %v229 = vpop.f32.mrb[0].mxu0
  %230 = vmatprep.mubr.f32.mxu0 0.0
  %231 = vmatmul.mubr.f32.gmra.mrb[0].mxu0 %v75
  %v232 = vpop.f32.mrb[0].mxu0
  %v233 = vadd.f32 0.0, %v232
  %v234 = vpop.f32.mrb[0].mxu0
  %235 = vmatprep.mubr.f32.mxu0 0.0
  %236 = vmatmul.mubr.f32.gmra.mrb[0].mxu0 %v78
  %v237 = vpop.f32.mrb[0].mxu0
  %v238 = vadd.f32 0.0, %v237
  %v239 = vpop.f32.mrb[0].mxu0
  %240 = vmatprep.mubr.f32.mxu0 0.0
  %241 = vmatmul.mubr.f32.gmra.mrb[0].mxu0 %v81
  %v242 = vpop.f32.mrb[0].mxu0
  %v243 = vadd.f32 0.0, %v242
  %v244 = vpop.f32.mrb[0].mxu0
  %245 = vmatprep.mubr.f32.mxu0 0.0
  %246 = vmatmul.mubr.f32.gmra.mrb[0].mxu0 %v84
  %v247 = vpop.f32.mrb[0].mxu0
  %v248 = vadd.f32 0.0, %v247
  %v249 = vpop.f32.mrb[0].mxu0
  %250 = vmatprep.mubr.f32.mxu0 0.0
  %251 = vmatmul.mubr.f32.gmra.mrb[0].mxu0 %v87
  %v252 = vpop.f32.mrb[0].mxu0
  %v253 = vadd.f32 0.0, %v252
  %v254 = vpop.f32.mrb[0].mxu0
  %255 = vmatprep.mubr.f32.mxu0 0.0
  %256 = vmatmul.mubr.f32.gmra.mrb[0].mxu0 %v90
  %v257 = vpop.f32.mrb[0].mxu0
  %v258 = vadd.f32 0.0, %v257
  %v259 = vpop.f32.mrb[0].mxu0
  %260 = vmatprep.mubr.f32.mxu0 0.0
  %261 = vmatmul.mubr.f32.gmra.mrb[0].mxu0 %v93
  %v262 = vpop.f32.mrb[0].mxu0
  %v263 = vadd.f32 0.0, %v262
  %v264 = vpop.f32.mrb[0].mxu0
  %265 = vmatprep.mubr.f32.mxu0 0.0
  %266 = vmatmul.mubr.f32.gmra.mrb[0].mxu0 %v96
  %v267 = vpop.f32.mrb[0].mxu0
  %v268 = vadd.f32 0.0, %v267
  %v269 = vpop.f32.mrb[0].mxu0
  %270 = vmatprep.mubr.f32.mxu0 0.0
  %271 = vmatmul.mubr.f32.gmra.mrb[0].mxu0 %v99
  %v272 = vpop.f32.mrb[0].mxu0
  %v273 = vadd.f32 0.0, %v272
  %v274 = vpop.f32.mrb[0].mxu0
  %275 = vmatprep.mubr.f32.mxu0 0.0
  %276 = vmatmul.mubr.f32.gmra.mrb[0].mxu0 %v102
  %v277 = vpop.f32.mrb[0].mxu0
  %v278 = vadd.f32 0.0, %v277
  %v279 = vpop.f32.mrb[0].mxu0
  %280 = vmatprep.mubr.f32.mxu0 0.0
  %281 = vmatmul.mubr.f32.gmra.mrb[0].mxu0 %v105
  %v282 = vpop.f32.mrb[0].mxu0
  %v283 = vadd.f32 0.0, %v282
  %v284 = vpop.f32.mrb[0].mxu0
  %285 = vmatprep.mubr.f32.mxu0 0.0
  %286 = vmatmul.mubr.f32.gmra.mrb[0].mxu0 %v108
  %v287 = vpop.f32.mrb[0].mxu0
  %v288 = vadd.f32 0.0, %v287
  %v289 = vpop.f32.mrb[0].mxu0
  %290 = vmatprep.mubr.f32.mxu0 0.0
  %291 = vmatmul.mubr.f32.gmra.mrb[0].mxu0 %v111
  %v292 = vpop.f32.mrb[0].mxu0
  %v293 = vadd.f32 0.0, %v292
  %v294 = vpop.f32.mrb[0].mxu0
  %295 = vmatprep.mubr.f32.mxu0 0.0
  %296 = vmatmul.mubr.f32.gmra.mrb[0].mxu0 %v114
  %v297 = vpop.f32.mrb[0].mxu0
  %v298 = vadd.f32 0.0, %v297
  %v299 = vpop.f32.mrb[0].mxu0
  %300 = vdwg.mxu0
  %v301 = vld [vmem:[%s2] sm:$0xff]
  %v303 = vsel %vm43, %v183, 0
  %v306 = vsel %vm43, %v188, 0
  %v309 = vsel %vm43, %v193, 0
  %v312 = vsel %vm43, %v198, 0
  %v315 = vsel %vm43, %v203, 0
  %v318 = vsel %vm43, %v208, 0
  %v321 = vsel %vm43, %v213, 0
  %v324 = vsel %vm43, %v218, 0
  %v327 = vsel %vm43, %v223, 0
  %v330 = vsel %vm43, %v228, 0
  %v333 = vsel %vm43, %v233, 0
  %v336 = vsel %vm43, %v238, 0
  %v339 = vsel %vm43, %v243, 0
  %v342 = vsel %vm43, %v248, 0
  %v345 = vsel %vm43, %v253, 0
  %v348 = vsel %vm43, %v258, 0
  %v351 = vsel %vm43, %v263, 0
  %v354 = vsel %vm43, %v268, 0
  %v357 = vsel %vm43, %v273, 0
  %v360 = vsel %vm43, %v278, 0
  %v363 = vsel %vm43, %v283, 0
  %v366 = vsel %vm43, %v288, 0
  %v369 = vsel %vm43, %v293, 0
  %v372 = vsel %vm43, %v298, 0
  %v375 = vsel %vm43, %v301, 0
  %377 = vmatprep.subr.mxu0 0.0
  %378 = vmatpush1.xpose.msra.mxu0 %v375
  %379 = vmatprep.subr.mxu0 0.0
  %380 = vmatpush1.xpose.msra.mxu0 0.0
  %381 = vmatprep.subr.mxu0 0.0
  %382 = vmatpush1.xpose.msra.mxu0 0.0
  %383 = vmatprep.subr.mxu0 0.0
  %384 = vmatpush1.xpose.msra.mxu0 0.0
  %385 = vmatprep.subr.mxu0 0.0
  %386 = vmatpush1.xpose.msra.mxu0 0.0
  %387 = vmatprep.subr.mxu0 0.0
  %388 = vmatpush1.xpose.msra.mxu0 0.0
  %389 = vmatprep.subr.mxu0 0.0
  %390 = vmatpush1.xpose.msra.mxu0 0.0
  %391 = vmatprep.subr.mxu0 0.0
  %392 = vmatpush1.xpose.msra.mxu0 0.0
  %393 = vmatprep.subr.mxu0 0.0
  %394 = vmatpush1.xpose.msra.mxu0 0.0
  %395 = vmatprep.subr.mxu0 0.0
  %396 = vmatpush1.xpose.msra.mxu0 0.0
  %397 = vmatprep.subr.mxu0 0.0
  %398 = vmatpush1.xpose.msra.mxu0 0.0
  %399 = vmatprep.subr.mxu0 0.0
  %400 = vmatpush1.xpose.msra.mxu0 0.0
  %401 = vmatprep.subr.mxu0 0.0
  %402 = vmatpush1.xpose.msra.mxu0 0.0
  %403 = vmatprep.subr.mxu0 0.0
  %404 = vmatpush1.xpose.msra.mxu0 0.0
  %405 = vmatprep.subr.mxu0 0.0
  %406 = vmatpush1.xpose.msra.mxu0 0.0
  %407 = vmatprep.subr.mxu0 0.0
  %408 = vmatpush1.xpose.msra.mxu0 0.0
  %409 = vmatprep.subr.mxu0 0.0
  %410 = vmatpush1.xpose.msra.mxu0 0.0
  %411 = vmatprep.subr.mxu0 0.0
  %412 = vmatpush1.xpose.msra.mxu0 0.0
  %413 = vmatprep.subr.mxu0 0.0
  %414 = vmatpush1.xpose.msra.mxu0 0.0
  %415 = vmatprep.subr.mxu0 0.0
  %416 = vmatpush1.xpose.msra.mxu0 0.0
  %417 = vmatprep.subr.mxu0 0.0
  %418 = vmatpush1.xpose.msra.mxu0 0.0
  %419 = vmatprep.subr.mxu0 0.0
  %420 = vmatpush1.xpose.msra.mxu0 0.0
  %421 = vmatprep.subr.mxu0 0.0
  %422 = vmatpush1.xpose.msra.mxu0 0.0
  %423 = vmatprep.subr.mxu0 0.0
  %424 = vmatpush1.xpose.msra.mxu0 0.0
  %425 = vmatprep.subr.mxu0 0.0
  %426 = vmatpush1.xpose.msra.mxu0 0.0
  %427 = vmatprep.subr.mxu0 0.0
  %428 = vmatpush1.xpose.msra.mxu0 0.0
  %429 = vmatprep.subr.mxu0 0.0
  %430 = vmatpush1.xpose.msra.mxu0 0.0
  %431 = vmatprep.subr.mxu0 0.0
  %432 = vmatpush1.xpose.msra.mxu0 0.0
  %433 = vmatprep.subr.mxu0 0.0
  %434 = vmatpush1.xpose.msra.mxu0 0.0
  %435 = vmatprep.subr.mxu0 0.0
  %436 = vmatpush1.xpose.msra.mxu0 0.0
  %437 = vmatprep.subr.mxu0 0.0
  %438 = vmatpush1.xpose.msra.mxu0 0.0
  %439 = vmatprep.subr.mxu0 0.0
  %440 = vmatpush1.xpose.msra.mxu0 0.0
  %441 = vmatprep.mubr.f32.mxu0 0.0
  %442 = vmatmul.mubr.f32.gmra.mrb[0].mxu0 %v303
  %v443 = vpop.f32.mrb[0].mxu0
  %v444 = vadd.f32 0.0, %v443
  %v445 = vpop.f32.mrb[0].mxu0
  %446 = vmatprep.mubr.f32.mxu0 0.0
  %447 = vmatmul.mubr.f32.gmra.mrb[0].mxu0 %v306
  %v448 = vpop.f32.mrb[0].mxu0
  %v449 = vadd.f32 0.0, %v448
  %v450 = vpop.f32.mrb[0].mxu0
  %451 = vmatprep.mubr.f32.mxu0 0.0
  %452 = vmatmul.mubr.f32.gmra.mrb[0].mxu0 %v309
  %v453 = vpop.f32.mrb[0].mxu0
  %v454 = vadd.f32 0.0, %v453
  %v455 = vpop.f32.mrb[0].mxu0
  %456 = vmatprep.mubr.f32.mxu0 0.0
  %457 = vmatmul.mubr.f32.gmra.mrb[0].mxu0 %v312
  %v458 = vpop.f32.mrb[0].mxu0
  %v459 = vadd.f32 0.0, %v458
  %v460 = vpop.f32.mrb[0].mxu0
  %461 = vmatprep.mubr.f32.mxu0 0.0
  %462 = vmatmul.mubr.f32.gmra.mrb[0].mxu0 %v315
  %v463 = vpop.f32.mrb[0].mxu0
  %v464 = vadd.f32 0.0, %v463
  %v465 = vpop.f32.mrb[0].mxu0
  %466 = vmatprep.mubr.f32.mxu0 0.0
  %467 = vmatmul.mubr.f32.gmra.mrb[0].mxu0 %v318
  %v468 = vpop.f32.mrb[0].mxu0
  %v469 = vadd.f32 0.0, %v468
  %v470 = vpop.f32.mrb[0].mxu0
  %471 = vmatprep.mubr.f32.mxu0 0.0
  %472 = vmatmul.mubr.f32.gmra.mrb[0].mxu0 %v321
  %v473 = vpop.f32.mrb[0].mxu0
  %v474 = vadd.f32 0.0, %v473
  %v475 = vpop.f32.mrb[0].mxu0
  %476 = vmatprep.mubr.f32.mxu0 0.0
  %477 = vmatmul.mubr.f32.gmra.mrb[0].mxu0 %v324
  %v478 = vpop.f32.mrb[0].mxu0
  %v479 = vadd.f32 0.0, %v478
  %v480 = vpop.f32.mrb[0].mxu0
  %481 = vmatprep.mubr.f32.mxu0 0.0
  %482 = vmatmul.mubr.f32.gmra.mrb[0].mxu0 %v327
  %v483 = vpop.f32.mrb[0].mxu0
  %v484 = vadd.f32 0.0, %v483
  %v485 = vpop.f32.mrb[0].mxu0
  %486 = vmatprep.mubr.f32.mxu0 0.0
  %487 = vmatmul.mubr.f32.gmra.mrb[0].mxu0 %v330
  %v488 = vpop.f32.mrb[0].mxu0
  %v489 = vadd.f32 0.0, %v488
  %v490 = vpop.f32.mrb[0].mxu0
  %491 = vmatprep.mubr.f32.mxu0 0.0
  %492 = vmatmul.mubr.f32.gmra.mrb[0].mxu0 %v333
  %v493 = vpop.f32.mrb[0].mxu0
  %v494 = vadd.f32 0.0, %v493
  %v495 = vpop.f32.mrb[0].mxu0
  %496 = vmatprep.mubr.f32.mxu0 0.0
  %497 = vmatmul.mubr.f32.gmra.mrb[0].mxu0 %v336
  %v498 = vpop.f32.mrb[0].mxu0
  %v499 = vadd.f32 0.0, %v498
  %v500 = vpop.f32.mrb[0].mxu0
  %501 = vmatprep.mubr.f32.mxu0 0.0
  %502 = vmatmul.mubr.f32.gmra.mrb[0].mxu0 %v339
  %v503 = vpop.f32.mrb[0].mxu0
  %v504 = vadd.f32 0.0, %v503
  %v505 = vpop.f32.mrb[0].mxu0
  %506 = vmatprep.mubr.f32.mxu0 0.0
  %507 = vmatmul.mubr.f32.gmra.mrb[0].mxu0 %v342
  %v508 = vpop.f32.mrb[0].mxu0
  %v509 = vadd.f32 0.0, %v508
  %v510 = vpop.f32.mrb[0].mxu0
  %511 = vmatprep.mubr.f32.mxu0 0.0
  %512 = vmatmul.mubr.f32.gmra.mrb[0].mxu0 %v345
  %v513 = vpop.f32.mrb[0].mxu0
  %v514 = vadd.f32 0.0, %v513
  %v515 = vpop.f32.mrb[0].mxu0
  %516 = vmatprep.mubr.f32.mxu0 0.0
  %517 = vmatmul.mubr.f32.gmra.mrb[0].mxu0 %v348
  %v518 = vpop.f32.mrb[0].mxu0
  %v519 = vadd.f32 0.0, %v518
  %v520 = vpop.f32.mrb[0].mxu0
  %521 = vmatprep.mubr.f32.mxu0 0.0
  %522 = vmatmul.mubr.f32.gmra.mrb[0].mxu0 %v351
  %v523 = vpop.f32.mrb[0].mxu0
  %v524 = vadd.f32 0.0, %v523
  %v525 = vpop.f32.mrb[0].mxu0
  %526 = vmatprep.mubr.f32.mxu0 0.0
  %527 = vmatmul.mubr.f32.gmra.mrb[0].mxu0 %v354
  %v528 = vpop.f32.mrb[0].mxu0
  %v529 = vadd.f32 0.0, %v528
  %v530 = vpop.f32.mrb[0].mxu0
  %531 = vmatprep.mubr.f32.mxu0 0.0
  %532 = vmatmul.mubr.f32.gmra.mrb[0].mxu0 %v357
  %v533 = vpop.f32.mrb[0].mxu0
  %v534 = vadd.f32 0.0, %v533
  %v535 = vpop.f32.mrb[0].mxu0
  %536 = vmatprep.mubr.f32.mxu0 0.0
  %537 = vmatmul.mubr.f32.gmra.mrb[0].mxu0 %v360
  %v538 = vpop.f32.mrb[0].mxu0
  %v539 = vadd.f32 0.0, %v538
  %v540 = vpop.f32.mrb[0].mxu0
  %541 = vmatprep.mubr.f32.mxu0 0.0
  %542 = vmatmul.mubr.f32.gmra.mrb[0].mxu0 %v363
  %v543 = vpop.f32.mrb[0].mxu0
  %v544 = vadd.f32 0.0, %v543
  %v545 = vpop.f32.mrb[0].mxu0
  %546 = vmatprep.mubr.f32.mxu0 0.0
  %547 = vmatmul.mubr.f32.gmra.mrb[0].mxu0 %v366
  %v548 = vpop.f32.mrb[0].mxu0
  %v549 = vadd.f32 0.0, %v548
  %v550 = vpop.f32.mrb[0].mxu0
  %551 = vmatprep.mubr.f32.mxu0 0.0
  %552 = vmatmul.mubr.f32.gmra.mrb[0].mxu0 %v369
  %v553 = vpop.f32.mrb[0].mxu0
  %v554 = vadd.f32 0.0, %v553
  %v555 = vpop.f32.mrb[0].mxu0
  %556 = vmatprep.mubr.f32.mxu0 0.0
  %557 = vmatmul.mubr.f32.gmra.mrb[0].mxu0 %v372
  %v558 = vpop.f32.mrb[0].mxu0
  %v559 = vadd.f32 0.0, %v558
  %v560 = vpop.f32.mrb[0].mxu0
  %561 = vdwg.mxu0
  %vm562 = vcmask 64512
  %v563 = vsel %vm562, %v444, -inf
  %564 = vmax.xlane.f32.xlu0 %v563
  %v565 = vpop.xlane.xlu0 %564
  %v566 = vsel %vm562, %v449, -inf
  %567 = vmax.xlane.f32.xlu0 %v566
  %v568 = vpop.xlane.xlu0 %567
  %v569 = vsel %vm562, %v454, -inf
  %570 = vmax.xlane.f32.xlu0 %v569
  %v571 = vpop.xlane.xlu0 %570
  %v572 = vsel %vm562, %v459, -inf
  %573 = vmax.xlane.f32.xlu0 %v572
  %v574 = vpop.xlane.xlu0 %573
  %v575 = vsel %vm562, %v464, -inf
  %576 = vmax.xlane.f32.xlu0 %v575
  %v577 = vpop.xlane.xlu0 %576
  %v578 = vsel %vm562, %v469, -inf
  %579 = vmax.xlane.f32.xlu0 %v578
  %v580 = vpop.xlane.xlu0 %579
  %v581 = vsel %vm562, %v474, -inf
  %582 = vmax.xlane.f32.xlu0 %v581
  %v583 = vpop.xlane.xlu0 %582
  %v584 = vsel %vm562, %v479, -inf
  %585 = vmax.xlane.f32.xlu0 %v584
  %v586 = vpop.xlane.xlu0 %585
  %v587 = vsel %vm562, %v484, -inf
  %588 = vmax.xlane.f32.xlu0 %v587
  %v589 = vpop.xlane.xlu0 %588
  %v590 = vsel %vm562, %v489, -inf
  %591 = vmax.xlane.f32.xlu0 %v590
  %v592 = vpop.xlane.xlu0 %591
  %v593 = vsel %vm562, %v494, -inf
  %594 = vmax.xlane.f32.xlu0 %v593
  %v595 = vpop.xlane.xlu0 %594
  %v596 = vsel %vm562, %v499, -inf
  %597 = vmax.xlane.f32.xlu0 %v596
  %v598 = vpop.xlane.xlu0 %597
  %v599 = vsel %vm562, %v504, -inf
  %600 = vmax.xlane.f32.xlu0 %v599
  %v601 = vpop.xlane.xlu0 %600
  %v602 = vsel %vm562, %v509, -inf
  %603 = vmax.xlane.f32.xlu0 %v602
  %v604 = vpop.xlane.xlu0 %603
  %v605 = vsel %vm562, %v514, -inf
  %606 = vmax.xlane.f32.xlu0 %v605
  %v607 = vpop.xlane.xlu0 %606
  %v608 = vsel %vm562, %v519, -inf
  %609 = vmax.xlane.f32.xlu0 %v608
  %v610 = vpop.xlane.xlu0 %609
  %v611 = vsel %vm562, %v524, -inf
  %612 = vmax.xlane.f32.xlu0 %v611
  %v613 = vpop.xlane.xlu0 %612
  %v614 = vsel %vm562, %v529, -inf
  %615 = vmax.xlane.f32.xlu0 %v614
  %v616 = vpop.xlane.xlu0 %615
  %v617 = vsel %vm562, %v534, -inf
  %618 = vmax.xlane.f32.xlu0 %v617
  %v619 = vpop.xlane.xlu0 %618
  %v620 = vsel %vm562, %v539, -inf
  %621 = vmax.xlane.f32.xlu0 %v620
  %v622 = vpop.xlane.xlu0 %621
  %v623 = vsel %vm562, %v544, -inf
  %624 = vmax.xlane.f32.xlu0 %v623
  %v625 = vpop.xlane.xlu0 %624
  %v626 = vsel %vm562, %v549, -inf
  %627 = vmax.xlane.f32.xlu0 %v626
  %v628 = vpop.xlane.xlu0 %627
  %v629 = vsel %vm562, %v554, -inf
  %630 = vmax.xlane.f32.xlu0 %v629
  %v631 = vpop.xlane.xlu0 %630
  %v632 = vsel %vm562, %v559, -inf
  %633 = vmax.xlane.f32.xlu0 %v632
  %v634 = vpop.xlane.xlu0 %633
  %v635 = vsub.f32 %v444, %v565
  %v636 = vsub.f32 %v449, %v568
  %v637 = vsub.f32 %v454, %v571
  %v638 = vsub.f32 %v459, %v574
  %v639 = vsub.f32 %v464, %v577
  %v640 = vsub.f32 %v469, %v580
  %v641 = vsub.f32 %v474, %v583
  %v642 = vsub.f32 %v479, %v586
  %v643 = vsub.f32 %v484, %v589
  %v644 = vsub.f32 %v489, %v592
  %v645 = vsub.f32 %v494, %v595
  %v646 = vsub.f32 %v499, %v598
  %v647 = vsub.f32 %v504, %v601
  %v648 = vsub.f32 %v509, %v604
  %v649 = vsub.f32 %v514, %v607
  %v650 = vsub.f32 %v519, %v610
  %v651 = vsub.f32 %v524, %v613
  %v652 = vsub.f32 %v529, %v616
  %v653 = vsub.f32 %v534, %v619
  %v654 = vsub.f32 %v539, %v622
  %v655 = vsub.f32 %v544, %v625
  %v656 = vsub.f32 %v549, %v628
  %v657 = vsub.f32 %v554, %v631
  %v658 = vsub.f32 %v559, %v634
  %v659 = vmul.f32 %v635, 1.442695
  %v660 = vpow.pop %v659
  %v661 = vmul.f32 %v636, 1.442695
  %v662 = vpow.pop %v661
  %v663 = vmul.f32 %v637, 1.442695
  %v664 = vpow.pop %v663
  %v665 = vmul.f32 %v638, 1.442695
  %v666 = vpow.pop %v665
  %v667 = vmul.f32 %v639, 1.442695
  %v668 = vpow.pop %v667
  %v669 = vmul.f32 %v640, 1.442695
  %v670 = vpow.pop %v669
  %v671 = vmul.f32 %v641, 1.442695
  %v672 = vpow.pop %v671
  %v673 = vmul.f32 %v642, 1.442695
  %v674 = vpow.pop %v673
  %v675 = vmul.f32 %v643, 1.442695
  %v676 = vpow.pop %v675
  %v677 = vmul.f32 %v644, 1.442695
  %v678 = vpow.pop %v677
  %v679 = vmul.f32 %v645, 1.442695
  %v680 = vpow.pop %v679
  %v681 = vmul.f32 %v646, 1.442695
  %v682 = vpow.pop %v681
  %v683 = vmul.f32 %v647, 1.442695
  %v684 = vpow.pop %v683
  %v685 = vmul.f32 %v648, 1.442695
  %v686 = vpow.pop %v685
  %v687 = vmul.f32 %v649, 1.442695
  %v688 = vpow.pop %v687
  %v689 = vmul.f32 %v650, 1.442695
  %v690 = vpow.pop %v689
  %v691 = vmul.f32 %v651, 1.442695
  %v692 = vpow.pop %v691
  %v693 = vmul.f32 %v652, 1.442695
  %v694 = vpow.pop %v693
  %v695 = vmul.f32 %v653, 1.442695
  %v696 = vpow.pop %v695
  %v697 = vmul.f32 %v654, 1.442695
  %v698 = vpow.pop %v697
  %v699 = vmul.f32 %v655, 1.442695
  %v700 = vpow.pop %v699
  %v701 = vmul.f32 %v656, 1.442695
  %v702 = vpow.pop %v701
  %v703 = vmul.f32 %v657, 1.442695
  %v704 = vpow.pop %v703
  %v705 = vmul.f32 %v658, 1.442695
  %v706 = vpow.pop %v705
  %v707 = vsel %vm562, %v660, 0.0
  %708 = vadd.xlane.f32.xlu0 %v707
  %v709 = vpop.xlane.xlu0 %708
  %v710 = vsel %vm562, %v662, 0.0
  %711 = vadd.xlane.f32.xlu0 %v710
  %v712 = vpop.xlane.xlu0 %711
  %v713 = vsel %vm562, %v664, 0.0
  %714 = vadd.xlane.f32.xlu0 %v713
  %v715 = vpop.xlane.xlu0 %714
  %v716 = vsel %vm562, %v666, 0.0
  %717 = vadd.xlane.f32.xlu0 %v716
  %v718 = vpop.xlane.xlu0 %717
  %v719 = vsel %vm562, %v668, 0.0
  %720 = vadd.xlane.f32.xlu0 %v719
  %v721 = vpop.xlane.xlu0 %720
  %v722 = vsel %vm562, %v670, 0.0
  %723 = vadd.xlane.f32.xlu0 %v722
  %v724 = vpop.xlane.xlu0 %723
  %v725 = vsel %vm562, %v672, 0.0
  %726 = vadd.xlane.f32.xlu0 %v725
  %v727 = vpop.xlane.xlu0 %726
  %v728 = vsel %vm562, %v674, 0.0
  %729 = vadd.xlane.f32.xlu0 %v728
  %v730 = vpop.xlane.xlu0 %729
  %v731 = vsel %vm562, %v676, 0.0
  %732 = vadd.xlane.f32.xlu0 %v731
  %v733 = vpop.xlane.xlu0 %732
  %v734 = vsel %vm562, %v678, 0.0
  %735 = vadd.xlane.f32.xlu0 %v734
  %v736 = vpop.xlane.xlu0 %735
  %v737 = vsel %vm562, %v680, 0.0
  %738 = vadd.xlane.f32.xlu0 %v737
  %v739 = vpop.xlane.xlu0 %738
  %v740 = vsel %vm562, %v682, 0.0
  %741 = vadd.xlane.f32.xlu0 %v740
  %v742 = vpop.xlane.xlu0 %741
  %v743 = vsel %vm562, %v684, 0.0
  %744 = vadd.xlane.f32.xlu0 %v743
  %v745 = vpop.xlane.xlu0 %744
  %v746 = vsel %vm562, %v686, 0.0
  %747 = vadd.xlane.f32.xlu0 %v746
  %v748 = vpop.xlane.xlu0 %747
  %v749 = vsel %vm562, %v688, 0.0
  %750 = vadd.xlane.f32.xlu0 %v749
  %v751 = vpop.xlane.xlu0 %750
  %v752 = vsel %vm562, %v690, 0.0
  %753 = vadd.xlane.f32.xlu0 %v752
  %v754 = vpop.xlane.xlu0 %753
  %v755 = vsel %vm562, %v692, 0.0
  %756 = vadd.xlane.f32.xlu0 %v755
  %v757 = vpop.xlane.xlu0 %756
  %v758 = vsel %vm562, %v694, 0.0
  %759 = vadd.xlane.f32.xlu0 %v758
  %v760 = vpop.xlane.xlu0 %759
  %v761 = vsel %vm562, %v696, 0.0
  %762 = vadd.xlane.f32.xlu0 %v761
  %v763 = vpop.xlane.xlu0 %762
  %v764 = vsel %vm562, %v698, 0.0
  %765 = vadd.xlane.f32.xlu0 %v764
  %v766 = vpop.xlane.xlu0 %765
  %v767 = vsel %vm562, %v700, 0.0
  %768 = vadd.xlane.f32.xlu0 %v767
  %v769 = vpop.xlane.xlu0 %768
  %v770 = vsel %vm562, %v702, 0.0
  %771 = vadd.xlane.f32.xlu0 %v770
  %v772 = vpop.xlane.xlu0 %771
  %v773 = vsel %vm562, %v704, 0.0
  %774 = vadd.xlane.f32.xlu0 %v773
  %v775 = vpop.xlane.xlu0 %774
  %v776 = vsel %vm562, %v706, 0.0
  %777 = vadd.xlane.f32.xlu0 %v776
  %v778 = vpop.xlane.xlu0 %777
  %v779 = vrcp.pop %v709
  %v780 = vmul.f32 %v660, %v779
  %v781 = vrcp.pop %v712
  %v782 = vmul.f32 %v662, %v781
  %v783 = vrcp.pop %v715
  %v784 = vmul.f32 %v664, %v783
  %v785 = vrcp.pop %v718
  %v786 = vmul.f32 %v666, %v785
  %v787 = vrcp.pop %v721
  %v788 = vmul.f32 %v668, %v787
  %v789 = vrcp.pop %v724
  %v790 = vmul.f32 %v670, %v789
  %v791 = vrcp.pop %v727
  %v792 = vmul.f32 %v672, %v791
  %v793 = vrcp.pop %v730
  %v794 = vmul.f32 %v674, %v793
  %v795 = vrcp.pop %v733
  %v796 = vmul.f32 %v676, %v795
  %v797 = vrcp.pop %v736
  %v798 = vmul.f32 %v678, %v797
  %v799 = vrcp.pop %v739
  %v800 = vmul.f32 %v680, %v799
  %v801 = vrcp.pop %v742
  %v802 = vmul.f32 %v682, %v801
  %v803 = vrcp.pop %v745
  %v804 = vmul.f32 %v684, %v803
  %v805 = vrcp.pop %v748
  %v806 = vmul.f32 %v686, %v805
  %v807 = vrcp.pop %v751
  %v808 = vmul.f32 %v688, %v807
  %v809 = vrcp.pop %v754
  %v810 = vmul.f32 %v690, %v809
  %v811 = vrcp.pop %v757
  %v812 = vmul.f32 %v692, %v811
  %v813 = vrcp.pop %v760
  %v814 = vmul.f32 %v694, %v813
  %v815 = vrcp.pop %v763
  %v816 = vmul.f32 %v696, %v815
  %v817 = vrcp.pop %v766
  %v818 = vmul.f32 %v698, %v817
  %v819 = vrcp.pop %v769
  %v820 = vmul.f32 %v700, %v819
  %v821 = vrcp.pop %v772
  %v822 = vmul.f32 %v702, %v821
  %v823 = vrcp.pop %v775
  %v824 = vmul.f32 %v704, %v823
  %v825 = vrcp.pop %v778
  %v826 = vmul.f32 %v706, %v825
  %v828 = vsel %vm562, %v780, 0
  %v831 = vsel %vm562, %v782, 0
  %v834 = vsel %vm562, %v784, 0
  %v837 = vsel %vm562, %v786, 0
  %v840 = vsel %vm562, %v788, 0
  %v843 = vsel %vm562, %v790, 0
  %v846 = vsel %vm562, %v792, 0
  %v849 = vsel %vm562, %v794, 0
  %v852 = vsel %vm562, %v796, 0
  %v855 = vsel %vm562, %v798, 0
  %v858 = vsel %vm562, %v800, 0
  %v861 = vsel %vm562, %v802, 0
  %v864 = vsel %vm562, %v804, 0
  %v867 = vsel %vm562, %v806, 0
  %v870 = vsel %vm562, %v808, 0
  %v873 = vsel %vm562, %v810, 0
  %v876 = vsel %vm562, %v812, 0
  %v879 = vsel %vm562, %v814, 0
  %v882 = vsel %vm562, %v816, 0
  %v885 = vsel %vm562, %v818, 0
  %v888 = vsel %vm562, %v820, 0
  %v891 = vsel %vm562, %v822, 0
  %v894 = vsel %vm562, %v824, 0
  %v897 = vsel %vm562, %v826, 0
  %899 = vmatprep.subr.mxu0 0.0
  %900 = vmatpush1.msra.mxu0 %v301
  %901 = vmatprep.subr.mxu0 0.0
  %902 = vmatpush1.msra.mxu0 0.0
  %903 = vmatprep.subr.mxu0 0.0
  %904 = vmatpush1.msra.mxu0 0.0
  %905 = vmatprep.subr.mxu0 0.0
  %906 = vmatpush1.msra.mxu0 0.0
  %907 = vmatprep.subr.mxu0 0.0
  %908 = vmatpush1.msra.mxu0 0.0
  %909 = vmatprep.subr.mxu0 0.0
  %910 = vmatpush1.msra.mxu0 0.0
  %911 = vmatprep.subr.mxu0 0.0
  %912 = vmatpush1.msra.mxu0 0.0
  %913 = vmatprep.subr.mxu0 0.0
  %914 = vmatpush1.msra.mxu0 0.0
  %915 = vmatprep.subr.mxu0 0.0
  %916 = vmatpush1.msra.mxu0 0.0
  %917 = vmatprep.subr.mxu0 0.0
  %918 = vmatpush1.msra.mxu0 0.0
  %919 = vmatprep.subr.mxu0 0.0
  %920 = vmatpush1.msra.mxu0 0.0
  %921 = vmatprep.subr.mxu0 0.0
  %922 = vmatpush1.msra.mxu0 0.0
  %923 = vmatprep.subr.mxu0 0.0
  %924 = vmatpush1.msra.mxu0 0.0
  %925 = vmatprep.subr.mxu0 0.0
  %926 = vmatpush1.msra.mxu0 0.0
  %927 = vmatprep.subr.mxu0 0.0
  %928 = vmatpush1.msra.mxu0 0.0
  %929 = vmatprep.subr.mxu0 0.0
  %930 = vmatpush1.msra.mxu0 0.0
  %931 = vmatprep.subr.mxu0 0.0
  %932 = vmatpush1.msra.mxu0 0.0
  %933 = vmatprep.subr.mxu0 0.0
  %934 = vmatpush1.msra.mxu0 0.0
  %935 = vmatprep.subr.mxu0 0.0
  %936 = vmatpush1.msra.mxu0 0.0
  %937 = vmatprep.subr.mxu0 0.0
  %938 = vmatpush1.msra.mxu0 0.0
  %939 = vmatprep.subr.mxu0 0.0
  %940 = vmatpush1.msra.mxu0 0.0
  %941 = vmatprep.subr.mxu0 0.0
  %942 = vmatpush1.msra.mxu0 0.0
  %943 = vmatprep.subr.mxu0 0.0
  %944 = vmatpush1.msra.mxu0 0.0
  %945 = vmatprep.subr.mxu0 0.0
  %946 = vmatpush1.msra.mxu0 0.0
  %947 = vmatprep.subr.mxu0 0.0
  %948 = vmatpush1.msra.mxu0 0.0
  %949 = vmatprep.subr.mxu0 0.0
  %950 = vmatpush1.msra.mxu0 0.0
  %951 = vmatprep.subr.mxu0 0.0
  %952 = vmatpush1.msra.mxu0 0.0
  %953 = vmatprep.subr.mxu0 0.0
  %954 = vmatpush1.msra.mxu0 0.0
  %955 = vmatprep.subr.mxu0 0.0
  %956 = vmatpush1.msra.mxu0 0.0
  %957 = vmatprep.subr.mxu0 0.0
  %958 = vmatpush1.msra.mxu0 0.0
  %959 = vmatprep.subr.mxu0 0.0
  %960 = vmatpush1.msra.mxu0 0.0
  %961 = vmatprep.subr.mxu0 0.0
  %962 = vmatpush1.msra.mxu0 0.0
  %963 = vmatprep.mubr.f32.mxu0 0.0
  %964 = vmatmul.mubr.f32.gmra.mrb[0].mxu0 %v828
  %v965 = vpop.f32.mrb[0].mxu0
  %v966 = vadd.f32 0.0, %v965
  %v967 = vpop.f32.mrb[0].mxu0
  %968 = vmatprep.mubr.f32.mxu0 0.0
  %969 = vmatmul.mubr.f32.gmra.mrb[0].mxu0 %v831
  %v970 = vpop.f32.mrb[0].mxu0
  %v971 = vadd.f32 0.0, %v970
  %v972 = vpop.f32.mrb[0].mxu0
  %973 = vmatprep.mubr.f32.mxu0 0.0
  %974 = vmatmul.mubr.f32.gmra.mrb[0].mxu0 %v834
  %v975 = vpop.f32.mrb[0].mxu0
  %v976 = vadd.f32 0.0, %v975
  %v977 = vpop.f32.mrb[0].mxu0
  %978 = vmatprep.mubr.f32.mxu0 0.0
  %979 = vmatmul.mubr.f32.gmra.mrb[0].mxu0 %v837
  %v980 = vpop.f32.mrb[0].mxu0
  %v981 = vadd.f32 0.0, %v980
  %v982 = vpop.f32.mrb[0].mxu0
  %983 = vmatprep.mubr.f32.mxu0 0.0
  %984 = vmatmul.mubr.f32.gmra.mrb[0].mxu0 %v840
  %v985 = vpop.f32.mrb[0].mxu0
  %v986 = vadd.f32 0.0, %v985
  %v987 = vpop.f32.mrb[0].mxu0
  %988 = vmatprep.mubr.f32.mxu0 0.0
  %989 = vmatmul.mubr.f32.gmra.mrb[0].mxu0 %v843
  %v990 = vpop.f32.mrb[0].mxu0
  %v991 = vadd.f32 0.0, %v990
  %v992 = vpop.f32.mrb[0].mxu0
  %993 = vmatprep.mubr.f32.mxu0 0.0
  %994 = vmatmul.mubr.f32.gmra.mrb[0].mxu0 %v846
  %v995 = vpop.f32.mrb[0].mxu0
  %v996 = vadd.f32 0.0, %v995
  %v997 = vpop.f32.mrb[0].mxu0
  %998 = vmatprep.mubr.f32.mxu0 0.0
  %999 = vmatmul.mubr.f32.gmra.mrb[0].mxu0 %v849
  %v1000 = vpop.f32.mrb[0].mxu0
  %v1001 = vadd.f32 0.0, %v1000
  %v1002 = vpop.f32.mrb[0].mxu0
  %1003 = vmatprep.mubr.f32.mxu0 0.0
  %1004 = vmatmul.mubr.f32.gmra.mrb[0].mxu0 %v852
  %v1005 = vpop.f32.mrb[0].mxu0
  %v1006 = vadd.f32 0.0, %v1005
  %v1007 = vpop.f32.mrb[0].mxu0
  %1008 = vmatprep.mubr.f32.mxu0 0.0
  %1009 = vmatmul.mubr.f32.gmra.mrb[0].mxu0 %v855
  %v1010 = vpop.f32.mrb[0].mxu0
  %v1011 = vadd.f32 0.0, %v1010
  %v1012 = vpop.f32.mrb[0].mxu0
  %1013 = vmatprep.mubr.f32.mxu0 0.0
  %1014 = vmatmul.mubr.f32.gmra.mrb[0].mxu0 %v858
  %v1015 = vpop.f32.mrb[0].mxu0
  %v1016 = vadd.f32 0.0, %v1015
  %v1017 = vpop.f32.mrb[0].mxu0
  %1018 = vmatprep.mubr.f32.mxu0 0.0
  %1019 = vmatmul.mubr.f32.gmra.mrb[0].mxu0 %v861
  %v1020 = vpop.f32.mrb[0].mxu0
  %v1021 = vadd.f32 0.0, %v1020
  %v1022 = vpop.f32.mrb[0].mxu0
  %1023 = vmatprep.mubr.f32.mxu0 0.0
  %1024 = vmatmul.mubr.f32.gmra.mrb[0].mxu0 %v864
  %v1025 = vpop.f32.mrb[0].mxu0
  %v1026 = vadd.f32 0.0, %v1025
  %v1027 = vpop.f32.mrb[0].mxu0
  %1028 = vmatprep.mubr.f32.mxu0 0.0
  %1029 = vmatmul.mubr.f32.gmra.mrb[0].mxu0 %v867
  %v1030 = vpop.f32.mrb[0].mxu0
  %v1031 = vadd.f32 0.0, %v1030
  %v1032 = vpop.f32.mrb[0].mxu0
  %1033 = vmatprep.mubr.f32.mxu0 0.0
  %1034 = vmatmul.mubr.f32.gmra.mrb[0].mxu0 %v870
  %v1035 = vpop.f32.mrb[0].mxu0
  %v1036 = vadd.f32 0.0, %v1035
  %v1037 = vpop.f32.mrb[0].mxu0
  %1038 = vmatprep.mubr.f32.mxu0 0.0
  %1039 = vmatmul.mubr.f32.gmra.mrb[0].mxu0 %v873
  %v1040 = vpop.f32.mrb[0].mxu0
  %v1041 = vadd.f32 0.0, %v1040
  %v1042 = vpop.f32.mrb[0].mxu0
  %1043 = vmatprep.mubr.f32.mxu0 0.0
  %1044 = vmatmul.mubr.f32.gmra.mrb[0].mxu0 %v876
  %v1045 = vpop.f32.mrb[0].mxu0
  %v1046 = vadd.f32 0.0, %v1045
  %v1047 = vpop.f32.mrb[0].mxu0
  %1048 = vmatprep.mubr.f32.mxu0 0.0
  %1049 = vmatmul.mubr.f32.gmra.mrb[0].mxu0 %v879
  %v1050 = vpop.f32.mrb[0].mxu0
  %v1051 = vadd.f32 0.0, %v1050
  %v1052 = vpop.f32.mrb[0].mxu0
  %1053 = vmatprep.mubr.f32.mxu0 0.0
  %1054 = vmatmul.mubr.f32.gmra.mrb[0].mxu0 %v882
  %v1055 = vpop.f32.mrb[0].mxu0
  %v1056 = vadd.f32 0.0, %v1055
  %v1057 = vpop.f32.mrb[0].mxu0
  %1058 = vmatprep.mubr.f32.mxu0 0.0
  %1059 = vmatmul.mubr.f32.gmra.mrb[0].mxu0 %v885
  %v1060 = vpop.f32.mrb[0].mxu0
  %v1061 = vadd.f32 0.0, %v1060
  %v1062 = vpop.f32.mrb[0].mxu0
  %1063 = vmatprep.mubr.f32.mxu0 0.0
  %1064 = vmatmul.mubr.f32.gmra.mrb[0].mxu0 %v888
  %v1065 = vpop.f32.mrb[0].mxu0
  %v1066 = vadd.f32 0.0, %v1065
  %v1067 = vpop.f32.mrb[0].mxu0
  %1068 = vmatprep.mubr.f32.mxu0 0.0
  %1069 = vmatmul.mubr.f32.gmra.mrb[0].mxu0 %v891
  %v1070 = vpop.f32.mrb[0].mxu0
  %v1071 = vadd.f32 0.0, %v1070
  %v1072 = vpop.f32.mrb[0].mxu0
  %1073 = vmatprep.mubr.f32.mxu0 0.0
  %1074 = vmatmul.mubr.f32.gmra.mrb[0].mxu0 %v894
  %v1075 = vpop.f32.mrb[0].mxu0
  %v1076 = vadd.f32 0.0, %v1075
  %v1077 = vpop.f32.mrb[0].mxu0
  %1078 = vmatprep.mubr.f32.mxu0 0.0
  %1079 = vmatmul.mubr.f32.gmra.mrb[0].mxu0 %v897
  %v1080 = vpop.f32.mrb[0].mxu0
  %v1081 = vadd.f32 0.0, %v1080
  %v1082 = vpop.f32.mrb[0].mxu0
  %1083 = vdwg.mxu0
  %1084 = vst.msk [vmem:[%s3] sm:$0xff] %vm43, %v966
  %1085 = vst.msk [vmem:[%s3 + $0x8] sm:$0xff] %vm43, %v971
  %1086 = vst.msk [vmem:[%s3 + $0x10] sm:$0xff] %vm43, %v976
  %1087 = vst.msk [vmem:[%s3 + $0x18] sm:$0xff] %vm43, %v981
  %1088 = vst.msk [vmem:[%s3 + $0x20] sm:$0xff] %vm43, %v986
  %1089 = vst.msk [vmem:[%s3 + $0x28] sm:$0xff] %vm43, %v991
  %1090 = vst.msk [vmem:[%s3 + $0x30] sm:$0xff] %vm43, %v996
  %1091 = vst.msk [vmem:[%s3 + $0x38] sm:$0xff] %vm43, %v1001
  %1092 = vst.msk [vmem:[%s3 + $0x40] sm:$0xff] %vm43, %v1006
  %1093 = vst.msk [vmem:[%s3 + $0x48] sm:$0xff] %vm43, %v1011
  %1094 = vst.msk [vmem:[%s3 + $0x50] sm:$0xff] %vm43, %v1016
  %1095 = vst.msk [vmem:[%s3 + $0x58] sm:$0xff] %vm43, %v1021
  %1096 = vst.msk [vmem:[%s3 + $0x60] sm:$0xff] %vm43, %v1026
  %1097 = vst.msk [vmem:[%s3 + $0x68] sm:$0xff] %vm43, %v1031
  %1098 = vst.msk [vmem:[%s3 + $0x70] sm:$0xff] %vm43, %v1036
  %1099 = vst.msk [vmem:[%s3 + $0x78] sm:$0xff] %vm43, %v1041
  %1100 = vst.msk [vmem:[%s3 + $0x80] sm:$0xff] %vm43, %v1046
  %1101 = vst.msk [vmem:[%s3 + $0x88] sm:$0xff] %vm43, %v1051
  %1102 = vst.msk [vmem:[%s3 + $0x90] sm:$0xff] %vm43, %v1056
  %1103 = vst.msk [vmem:[%s3 + $0x98] sm:$0xff] %vm43, %v1061
  %1104 = vst.msk [vmem:[%s3 + $0xa0] sm:$0xff] %vm43, %v1066
  %1105 = vst.msk [vmem:[%s3 + $0xa8] sm:$0xff] %vm43, %v1071
  %1106 = vst.msk [vmem:[%s3 + $0xb0] sm:$0xff] %vm43, %v1076
  %1107 = vst.msk [vmem:[%s3 + $0xb8] sm:$0xff] %vm43, %v1081
  %1108 = vst.msk [vmem:[%s4] sm:$0xff] %vm43, %v183
  %1109 = vst.msk [vmem:[%s4 + $0x8] sm:$0xff] %vm43, %v188
  %1110 = vst.msk [vmem:[%s4 + $0x10] sm:$0xff] %vm43, %v193
  %1111 = vst.msk [vmem:[%s4 + $0x18] sm:$0xff] %vm43, %v198
  %1112 = vst.msk [vmem:[%s4 + $0x20] sm:$0xff] %vm43, %v203
  %1113 = vst.msk [vmem:[%s4 + $0x28] sm:$0xff] %vm43, %v208
  %1114 = vst.msk [vmem:[%s4 + $0x30] sm:$0xff] %vm43, %v213
  %1115 = vst.msk [vmem:[%s4 + $0x38] sm:$0xff] %vm43, %v218
  %1116 = vst.msk [vmem:[%s4 + $0x40] sm:$0xff] %vm43, %v223
  %1117 = vst.msk [vmem:[%s4 + $0x48] sm:$0xff] %vm43, %v228
  %1118 = vst.msk [vmem:[%s4 + $0x50] sm:$0xff] %vm43, %v233
  %1119 = vst.msk [vmem:[%s4 + $0x58] sm:$0xff] %vm43, %v238
  %1120 = vst.msk [vmem:[%s4 + $0x60] sm:$0xff] %vm43, %v243
  %1121 = vst.msk [vmem:[%s4 + $0x68] sm:$0xff] %vm43, %v248
  %1122 = vst.msk [vmem:[%s4 + $0x70] sm:$0xff] %vm43, %v253
  %1123 = vst.msk [vmem:[%s4 + $0x78] sm:$0xff] %vm43, %v258
  %1124 = vst.msk [vmem:[%s4 + $0x80] sm:$0xff] %vm43, %v263
  %1125 = vst.msk [vmem:[%s4 + $0x88] sm:$0xff] %vm43, %v268
  %1126 = vst.msk [vmem:[%s4 + $0x90] sm:$0xff] %vm43, %v273
  %1127 = vst.msk [vmem:[%s4 + $0x98] sm:$0xff] %vm43, %v278
  %1128 = vst.msk [vmem:[%s4 + $0xa0] sm:$0xff] %vm43, %v283
  %1129 = vst.msk [vmem:[%s4 + $0xa8] sm:$0xff] %vm43, %v288
  %1130 = vst.msk [vmem:[%s4 + $0xb0] sm:$0xff] %vm43, %v293
  %1131 = vst.msk [vmem:[%s4 + $0xb8] sm:$0xff] %vm43, %v298
  %1132 = vst.msk [vmem:[%s5] sm:$0xff] %vm562, %v780
  %1133 = vst.msk [vmem:[%s5 + $0x8] sm:$0xff] %vm562, %v782
  %1134 = vst.msk [vmem:[%s5 + $0x10] sm:$0xff] %vm562, %v784
  %1135 = vst.msk [vmem:[%s5 + $0x18] sm:$0xff] %vm562, %v786
  %1136 = vst.msk [vmem:[%s5 + $0x20] sm:$0xff] %vm562, %v788
  %1137 = vst.msk [vmem:[%s5 + $0x28] sm:$0xff] %vm562, %v790
  %1138 = vst.msk [vmem:[%s5 + $0x30] sm:$0xff] %vm562, %v792
  %1139 = vst.msk [vmem:[%s5 + $0x38] sm:$0xff] %vm562, %v794
  %1140 = vst.msk [vmem:[%s5 + $0x40] sm:$0xff] %vm562, %v796
  %1141 = vst.msk [vmem:[%s5 + $0x48] sm:$0xff] %vm562, %v798
  %1142 = vst.msk [vmem:[%s5 + $0x50] sm:$0xff] %vm562, %v800
  %1143 = vst.msk [vmem:[%s5 + $0x58] sm:$0xff] %vm562, %v802
  %1144 = vst.msk [vmem:[%s5 + $0x60] sm:$0xff] %vm562, %v804
  %1145 = vst.msk [vmem:[%s5 + $0x68] sm:$0xff] %vm562, %v806
  %1146 = vst.msk [vmem:[%s5 + $0x70] sm:$0xff] %vm562, %v808
  %1147 = vst.msk [vmem:[%s5 + $0x78] sm:$0xff] %vm562, %v810
  %1148 = vst.msk [vmem:[%s5 + $0x80] sm:$0xff] %vm562, %v812
  %1149 = vst.msk [vmem:[%s5 + $0x88] sm:$0xff] %vm562, %v814
  %1150 = vst.msk [vmem:[%s5 + $0x90] sm:$0xff] %vm562, %v816
  %1151 = vst.msk [vmem:[%s5 + $0x98] sm:$0xff] %vm562, %v818
  %1152 = vst.msk [vmem:[%s5 + $0xa0] sm:$0xff] %vm562, %v820
  %1153 = vst.msk [vmem:[%s5 + $0xa8] sm:$0xff] %vm562, %v822
  %1154 = vst.msk [vmem:[%s5 + $0xb0] sm:$0xff] %vm562, %v824
  %1155 = vst.msk [vmem:[%s5 + $0xb8] sm:$0xff] %vm562, %v826
  // Predicated region
  $region14: #{forward.18} parent=0 // pred_check
    _
  $region15: #{forward.18} parent=0 // pred_check_branch
    %1157 = sbr.rel (0) target = $region17
  $region16: #{forward.18} parent=0 // pred_region
    _
  $region17: #{forward.18} parent=0 // pred_fallthru
    _
  // Predicated region
  $region18: #{forward.18} parent=0 // pred_check
    _
  $region19: #{forward.18} parent=0 // pred_check_branch
    %1159 = sbr.rel (0) target = $region21
  $region20: #{forward.18} parent=0 // pred_region
    _
  $region21: #{forward.18} parent=0 // pred_fallthru
    _
  // Predicated region
  $region22: #{forward.18} parent=0 // pred_check
    _
  $region23: #{forward.18} parent=0 // pred_check_branch
    %1161 = sbr.rel (0) target = $region25
  $region24: #{forward.18} parent=0 // pred_region
    _
  $region25: #{forward.18} parent=0 // pred_fallthru
    _
  // Predicated region
  $region26: #{forward.18} parent=0 // pred_check
    _
  $region27: #{forward.18} parent=0 // pred_check_branch
    %1163 = sbr.rel (0) target = $region29
  $region28: #{forward.18} parent=0 // pred_region
    _
  $region29: #{forward.18} parent=0 // pred_fallthru
    _
  // Predicated region
  $region30: #{forward.18} parent=0 // pred_check
    _
  $region31: #{forward.18} parent=0 // pred_check_branch
    %1165 = sbr.rel (0) target = $region33
  $region32: #{forward.18} parent=0 // pred_region
    _
  $region33: #{forward.18} parent=0 // pred_fallthru
    _
  // Predicated region
  $region34: #{forward.18} parent=0 // pred_check
    _
  $region35: #{forward.18} parent=0 // pred_check_branch
    %1167 = sbr.rel (0) target = $region37
  $region36: #{forward.18} parent=0 // pred_region
    _
  $region37: #{forward.18} parent=0 // pred_fallthru
    _

// kernel: forward.20
$region0: #{forward.20}
  #allocation0 [shape = 'u32[]', space=smem, size = 0x4, offset = 0x4, fixed_abs, tag = 'smem constant byte address 0x4 - core index']
  #allocation1 [shape = 'u32[144,128]{1,0:T(1,128)}', space=vmem, size = 0x12000, scoped, tag = 'internal scratch']
  %s0 = inlined_call_operand.vmem [shape: f32[192,192], index: 0, kind: input, shape index: {}]
  %s1 = inlined_call_operand.vmem [shape: f32[192,32], index: 1, kind: input, shape index: {}]
  %s2 = inlined_call_operand.vmem [shape: f32[1,32], index: 2, kind: input, shape index: {}]
  %s3 = inlined_call_operand.vmem [shape: f32[192,32], index: 3, kind: output, shape index: {}]
  %s4 = sld [smem:[#allocation0]]
  $region22: #{forward.20} parent=0
    _
  %s6 = ssub.s32 1, %s4
  %s7 = scalar_select 0, %s6, %s4
  // Predicated region
  $region2: #{forward.20} parent=0 // pred_check
    _
  $region3: #{forward.20} parent=0 // pred_check_branch
    %9 = sbr.rel (0) target = $region5
  $region4: #{forward.20} parent=0 // pred_region
    _
  $region5: #{forward.20} parent=0 // pred_fallthru
    _
  // Predicated region
  $region6: #{forward.20} parent=0 // pred_check
    _
  $region7: #{forward.20} parent=0 // pred_check_branch
    %11 = sbr.rel (0) target = $region9
  $region8: #{forward.20} parent=0 // pred_region
    _
  $region9: #{forward.20} parent=0 // pred_fallthru
    _
  // Predicated region
  $region10: #{forward.20} parent=0 // pred_check
    _
  $region11: #{forward.20} parent=0 // pred_check_branch
    %13 = sbr.rel (0) target = $region13
  $region12: #{forward.20} parent=0 // pred_region
    _
  $region13: #{forward.20} parent=0 // pred_fallthru
    _
  %v14 = vld [vmem:[%s0] sm:$0xff]
  %v15 = vld [vmem:[%s0 + $0x8] sm:$0xff]
  %v16 = vld [vmem:[%s0 + $0x10] sm:$0xff]
  %v17 = vld [vmem:[%s0 + $0x18] sm:$0xff]
  %v18 = vld [vmem:[%s0 + $0x20] sm:$0xff]
  %v19 = vld [vmem:[%s0 + $0x28] sm:$0xff]
  %v20 = vld [vmem:[%s0 + $0x30] sm:$0xff]
  %v21 = vld [vmem:[%s0 + $0x38] sm:$0xff]
  %v22 = vld [vmem:[%s0 + $0x40] sm:$0xff]
  %v23 = vld [vmem:[%s0 + $0x48] sm:$0xff]
  %v24 = vld [vmem:[%s0 + $0x50] sm:$0xff]
  %v25 = vld [vmem:[%s0 + $0x58] sm:$0xff]
  %v26 = vld [vmem:[%s0 + $0x60] sm:$0xff]
  %v27 = vld [vmem:[%s0 + $0x68] sm:$0xff]
  %v28 = vld [vmem:[%s0 + $0x70] sm:$0xff]
  %v29 = vld [vmem:[%s0 + $0x78] sm:$0xff]
  %v30 = vld [vmem:[%s0 + $0x80] sm:$0xff]
  %v31 = vld [vmem:[%s0 + $0x88] sm:$0xff]
  %v32 = vld [vmem:[%s0 + $0x90] sm:$0xff]
  %v33 = vld [vmem:[%s0 + $0x98] sm:$0xff]
  %v34 = vld [vmem:[%s0 + $0xa0] sm:$0xff]
  %v35 = vld [vmem:[%s0 + $0xa8] sm:$0xff]
  %v36 = vld [vmem:[%s0 + $0xb0] sm:$0xff]
  %v37 = vld [vmem:[%s0 + $0xb8] sm:$0xff]
  %v38 = vld [vmem:[%s0 + $0xc0] sm:$0xff]
  %v39 = vld [vmem:[%s0 + $0xc8] sm:$0xff]
  %v40 = vld [vmem:[%s0 + $0xd0] sm:$0xff]
  %v41 = vld [vmem:[%s0 + $0xd8] sm:$0xff]
  %v42 = vld [vmem:[%s0 + $0xe0] sm:$0xff]
  %v43 = vld [vmem:[%s0 + $0xe8] sm:$0xff]
  %v44 = vld [vmem:[%s0 + $0xf0] sm:$0xff]
  %v45 = vld [vmem:[%s0 + $0xf8] sm:$0xff]
  %v46 = vld [vmem:[%s0 + $0x100] sm:$0xff]
  %v47 = vld [vmem:[%s0 + $0x108] sm:$0xff]
  %v48 = vld [vmem:[%s0 + $0x110] sm:$0xff]
  %v49 = vld [vmem:[%s0 + $0x118] sm:$0xff]
  %v50 = vld [vmem:[%s0 + $0x120] sm:$0xff]
  %v51 = vld [vmem:[%s0 + $0x128] sm:$0xff]
  %v52 = vld [vmem:[%s0 + $0x130] sm:$0xff]
  %v53 = vld [vmem:[%s0 + $0x138] sm:$0xff]
  %v54 = vld [vmem:[%s0 + $0x140] sm:$0xff]
  %v55 = vld [vmem:[%s0 + $0x148] sm:$0xff]
  %v56 = vld [vmem:[%s0 + $0x150] sm:$0xff]
  %v57 = vld [vmem:[%s0 + $0x158] sm:$0xff]
  %v58 = vld [vmem:[%s0 + $0x160] sm:$0xff]
  %v59 = vld [vmem:[%s0 + $0x168] sm:$0xff]
  %v60 = vld [vmem:[%s0 + $0x170] sm:$0xff]
  %v61 = vld [vmem:[%s0 + $0x178] sm:$0xff]
  %v62 = vld [vmem:[%s1] sm:$0xff]
  %v63 = vld [vmem:[%s1 + $0x8] sm:$0xff]
  %v64 = vld [vmem:[%s1 + $0x10] sm:$0xff]
  %v65 = vld [vmem:[%s1 + $0x18] sm:$0xff]
  %v66 = vld [vmem:[%s1 + $0x20] sm:$0xff]
  %v67 = vld [vmem:[%s1 + $0x28] sm:$0xff]
  %v68 = vld [vmem:[%s1 + $0x30] sm:$0xff]
  %v69 = vld [vmem:[%s1 + $0x38] sm:$0xff]
  %v70 = vld [vmem:[%s1 + $0x40] sm:$0xff]
  %v71 = vld [vmem:[%s1 + $0x48] sm:$0xff]
  %v72 = vld [vmem:[%s1 + $0x50] sm:$0xff]
  %v73 = vld [vmem:[%s1 + $0x58] sm:$0xff]
  %v74 = vld [vmem:[%s1 + $0x60] sm:$0xff]
  %v75 = vld [vmem:[%s1 + $0x68] sm:$0xff]
  %v76 = vld [vmem:[%s1 + $0x70] sm:$0xff]
  %v77 = vld [vmem:[%s1 + $0x78] sm:$0xff]
  %v78 = vld [vmem:[%s1 + $0x80] sm:$0xff]
  %v79 = vld [vmem:[%s1 + $0x88] sm:$0xff]
  %v80 = vld [vmem:[%s1 + $0x90] sm:$0xff]
  %v81 = vld [vmem:[%s1 + $0x98] sm:$0xff]
  %v82 = vld [vmem:[%s1 + $0xa0] sm:$0xff]
  %v83 = vld [vmem:[%s1 + $0xa8] sm:$0xff]
  %v84 = vld [vmem:[%s1 + $0xb0] sm:$0xff]
  %v85 = vld [vmem:[%s1 + $0xb8] sm:$0xff]
  %v86 = vld [vmem:[%s2] sm:$0x1]
  %v88 = vlaneseq
  %v89 = vshrl.u32 %v88, 7
  %v90 = vsub.s32 0, %v89
  %v91 = vrot.slane %v86, %v90
  %vm93 = vcmask 523264
  %v95 = vsel %vm93, %v15, 0
  %v98 = vsel %vm93, %v17, 0
  %v101 = vsel %vm93, %v19, 0
  %v104 = vsel %vm93, %v21, 0
  %v107 = vsel %vm93, %v23, 0
  %v110 = vsel %vm93, %v25, 0
  %v113 = vsel %vm93, %v27, 0
  %v116 = vsel %vm93, %v29, 0
  %v119 = vsel %vm93, %v31, 0
  %v122 = vsel %vm93, %v33, 0
  %v125 = vsel %vm93, %v35, 0
  %v128 = vsel %vm93, %v37, 0
  %v131 = vsel %vm93, %v39, 0
  %v134 = vsel %vm93, %v41, 0
  %v137 = vsel %vm93, %v43, 0
  %v140 = vsel %vm93, %v45, 0
  %v143 = vsel %vm93, %v47, 0
  %v146 = vsel %vm93, %v49, 0
  %v149 = vsel %vm93, %v51, 0
  %v152 = vsel %vm93, %v53, 0
  %v155 = vsel %vm93, %v55, 0
  %v158 = vsel %vm93, %v57, 0
  %v161 = vsel %vm93, %v59, 0
  %v164 = vsel %vm93, %v61, 0
  %166 = vmatprep.subr.mxu0 0.0
  %167 = vmatpush1.msra.mxu0 %v62
  %168 = vmatprep.subr.mxu0 0.0
  %169 = vmatpush1.msra.mxu0 %v63
  %170 = vmatprep.subr.mxu0 0.0
  %171 = vmatpush1.msra.mxu0 %v64
  %172 = vmatprep.subr.mxu0 0.0
  %173 = vmatpush1.msra.mxu0 %v65
  %174 = vmatprep.subr.mxu0 0.0
  %175 = vmatpush1.msra.mxu0 %v66
  %176 = vmatprep.subr.mxu0 0.0
  %177 = vmatpush1.msra.mxu0 %v67
  %178 = vmatprep.subr.mxu0 0.0
  %179 = vmatpush1.msra.mxu0 %v68
  %180 = vmatprep.subr.mxu0 0.0
  %181 = vmatpush1.msra.mxu0 %v69
  %182 = vmatprep.subr.mxu0 0.0
  %183 = vmatpush1.msra.mxu0 %v70
  %184 = vmatprep.subr.mxu0 0.0
  %185 = vmatpush1.msra.mxu0 %v71
  %186 = vmatprep.subr.mxu0 0.0
  %187 = vmatpush1.msra.mxu0 %v72
  %188 = vmatprep.subr.mxu0 0.0
  %189 = vmatpush1.msra.mxu0 %v73
  %190 = vmatprep.subr.mxu0 0.0
  %191 = vmatpush1.msra.mxu0 %v74
  %192 = vmatprep.subr.mxu0 0.0
  %193 = vmatpush1.msra.mxu0 %v75
  %194 = vmatprep.subr.mxu0 0.0
  %195 = vmatpush1.msra.mxu0 %v76
  %196 = vmatprep.subr.mxu0 0.0
  %197 = vmatpush1.msra.mxu0 %v77
  %198 = vmatprep.subr.mxu0 0.0
  %199 = vmatpush1.msra.mxu0 %v78
  %200 = vmatprep.subr.mxu0 0.0
  %201 = vmatpush1.msra.mxu0 %v79
  %202 = vmatprep.subr.mxu0 0.0
  %203 = vmatpush1.msra.mxu0 %v80
  %204 = vmatprep.subr.mxu0 0.0
  %205 = vmatpush1.msra.mxu0 %v81
  %206 = vmatprep.subr.mxu0 0.0
  %207 = vmatpush1.msra.mxu0 %v82
  %208 = vmatprep.subr.mxu0 0.0
  %209 = vmatpush1.msra.mxu0 %v83
  %210 = vmatprep.subr.mxu0 0.0
  %211 = vmatpush1.msra.mxu0 %v84
  %212 = vmatprep.subr.mxu0 0.0
  %213 = vmatpush1.msra.mxu0 %v85
  %214 = vmatprep.subr.mxu0 0.0
  %215 = vmatpush1.msra.mxu0 0.0
  %216 = vmatprep.subr.mxu0 0.0
  %217 = vmatpush1.msra.mxu0 0.0
  %218 = vmatprep.subr.mxu0 0.0
  %219 = vmatpush1.msra.mxu0 0.0
  %220 = vmatprep.subr.mxu0 0.0
  %221 = vmatpush1.msra.mxu0 0.0
  %222 = vmatprep.subr.mxu0 0.0
  %223 = vmatpush1.msra.mxu0 0.0
  %224 = vmatprep.subr.mxu0 0.0
  %225 = vmatpush1.msra.mxu0 0.0
  %226 = vmatprep.subr.mxu0 0.0
  %227 = vmatpush1.msra.mxu0 0.0
  %228 = vmatprep.subr.mxu0 0.0
  %229 = vmatpush1.msra.mxu0 0.0
  %230 = vmatprep.mubr.f32.mxu0 %v95
  %231 = vmatmul.mubr.f32.gmra.mrb[0].mxu0 %v14
  %v232 = vpop.f32.mrb[0].mxu0
  %v233 = vadd.f32 %v91, %v232
  %v234 = vpop.f32.mrb[0].mxu0
  %235 = vmatprep.mubr.f32.mxu0 %v98
  %236 = vmatmul.mubr.f32.gmra.mrb[0].mxu0 %v16
  %v237 = vpop.f32.mrb[0].mxu0
  %v238 = vadd.f32 %v91, %v237
  %v239 = vpop.f32.mrb[0].mxu0
  %240 = vmatprep.mubr.f32.mxu0 %v101
  %241 = vmatmul.mubr.f32.gmra.mrb[0].mxu0 %v18
  %v242 = vpop.f32.mrb[0].mxu0
  %v243 = vadd.f32 %v91, %v242
  %v244 = vpop.f32.mrb[0].mxu0
  %245 = vmatprep.mubr.f32.mxu0 %v104
  %246 = vmatmul.mubr.f32.gmra.mrb[0].mxu0 %v20
  %v247 = vpop.f32.mrb[0].mxu0
  %v248 = vadd.f32 %v91, %v247
  %v249 = vpop.f32.mrb[0].mxu0
  %250 = vmatprep.mubr.f32.mxu0 %v107
  %251 = vmatmul.mubr.f32.gmra.mrb[0].mxu0 %v22
  %v252 = vpop.f32.mrb[0].mxu0
  %v253 = vadd.f32 %v91, %v252
  %v254 = vpop.f32.mrb[0].mxu0
  %255 = vmatprep.mubr.f32.mxu0 %v110
  %256 = vmatmul.mubr.f32.gmra.mrb[0].mxu0 %v24
  %v257 = vpop.f32.mrb[0].mxu0
  %v258 = vadd.f32 %v91, %v257
  %v259 = vpop.f32.mrb[0].mxu0
  %260 = vmatprep.mubr.f32.mxu0 %v113
  %261 = vmatmul.mubr.f32.gmra.mrb[0].mxu0 %v26
  %v262 = vpop.f32.mrb[0].mxu0
  %v263 = vadd.f32 %v91, %v262
  %v264 = vpop.f32.mrb[0].mxu0
  %265 = vmatprep.mubr.f32.mxu0 %v116
  %266 = vmatmul.mubr.f32.gmra.mrb[0].mxu0 %v28
  %v267 = vpop.f32.mrb[0].mxu0
  %v268 = vadd.f32 %v91, %v267
  %v269 = vpop.f32.mrb[0].mxu0
  %270 = vmatprep.mubr.f32.mxu0 %v119
  %271 = vmatmul.mubr.f32.gmra.mrb[0].mxu0 %v30
  %v272 = vpop.f32.mrb[0].mxu0
  %v273 = vadd.f32 %v91, %v272
  %v274 = vpop.f32.mrb[0].mxu0
  %275 = vmatprep.mubr.f32.mxu0 %v122
  %276 = vmatmul.mubr.f32.gmra.mrb[0].mxu0 %v32
  %v277 = vpop.f32.mrb[0].mxu0
  %v278 = vadd.f32 %v91, %v277
  %v279 = vpop.f32.mrb[0].mxu0
  %280 = vmatprep.mubr.f32.mxu0 %v125
  %281 = vmatmul.mubr.f32.gmra.mrb[0].mxu0 %v34
  %v282 = vpop.f32.mrb[0].mxu0
  %v283 = vadd.f32 %v91, %v282
  %v284 = vpop.f32.mrb[0].mxu0
  %285 = vmatprep.mubr.f32.mxu0 %v128
  %286 = vmatmul.mubr.f32.gmra.mrb[0].mxu0 %v36
  %v287 = vpop.f32.mrb[0].mxu0
  %v288 = vadd.f32 %v91, %v287
  %v289 = vpop.f32.mrb[0].mxu0
  %290 = vmatprep.mubr.f32.mxu0 %v131
  %291 = vmatmul.mubr.f32.gmra.mrb[0].mxu0 %v38
  %v292 = vpop.f32.mrb[0].mxu0
  %v293 = vadd.f32 %v91, %v292
  %v294 = vpop.f32.mrb[0].mxu0
  %295 = vmatprep.mubr.f32.mxu0 %v134
  %296 = vmatmul.mubr.f32.gmra.mrb[0].mxu0 %v40
  %v297 = vpop.f32.mrb[0].mxu0
  %v298 = vadd.f32 %v91, %v297
  %v299 = vpop.f32.mrb[0].mxu0
  %300 = vmatprep.mubr.f32.mxu0 %v137
  %301 = vmatmul.mubr.f32.gmra.mrb[0].mxu0 %v42
  %v302 = vpop.f32.mrb[0].mxu0
  %v303 = vadd.f32 %v91, %v302
  %v304 = vpop.f32.mrb[0].mxu0
  %305 = vmatprep.mubr.f32.mxu0 %v140
  %306 = vmatmul.mubr.f32.gmra.mrb[0].mxu0 %v44
  %v307 = vpop.f32.mrb[0].mxu0
  %v308 = vadd.f32 %v91, %v307
  %v309 = vpop.f32.mrb[0].mxu0
  %310 = vmatprep.mubr.f32.mxu0 %v143
  %311 = vmatmul.mubr.f32.gmra.mrb[0].mxu0 %v46
  %v312 = vpop.f32.mrb[0].mxu0
  %v313 = vadd.f32 %v91, %v312
  %v314 = vpop.f32.mrb[0].mxu0
  %315 = vmatprep.mubr.f32.mxu0 %v146
  %316 = vmatmul.mubr.f32.gmra.mrb[0].mxu0 %v48
  %v317 = vpop.f32.mrb[0].mxu0
  %v318 = vadd.f32 %v91, %v317
  %v319 = vpop.f32.mrb[0].mxu0
  %320 = vmatprep.mubr.f32.mxu0 %v149
  %321 = vmatmul.mubr.f32.gmra.mrb[0].mxu0 %v50
  %v322 = vpop.f32.mrb[0].mxu0
  %v323 = vadd.f32 %v91, %v322
  %v324 = vpop.f32.mrb[0].mxu0
  %325 = vmatprep.mubr.f32.mxu0 %v152
  %326 = vmatmul.mubr.f32.gmra.mrb[0].mxu0 %v52
  %v327 = vpop.f32.mrb[0].mxu0
  %v328 = vadd.f32 %v91, %v327
  %v329 = vpop.f32.mrb[0].mxu0
  %330 = vmatprep.mubr.f32.mxu0 %v155
  %331 = vmatmul.mubr.f32.gmra.mrb[0].mxu0 %v54
  %v332 = vpop.f32.mrb[0].mxu0
  %v333 = vadd.f32 %v91, %v332
  %v334 = vpop.f32.mrb[0].mxu0
  %335 = vmatprep.mubr.f32.mxu0 %v158
  %336 = vmatmul.mubr.f32.gmra.mrb[0].mxu0 %v56
  %v337 = vpop.f32.mrb[0].mxu0
  %v338 = vadd.f32 %v91, %v337
  %v339 = vpop.f32.mrb[0].mxu0
  %340 = vmatprep.mubr.f32.mxu0 %v161
  %341 = vmatmul.mubr.f32.gmra.mrb[0].mxu0 %v58
  %v342 = vpop.f32.mrb[0].mxu0
  %v343 = vadd.f32 %v91, %v342
  %v344 = vpop.f32.mrb[0].mxu0
  %345 = vmatprep.mubr.f32.mxu0 %v164
  %346 = vmatmul.mubr.f32.gmra.mrb[0].mxu0 %v60
  %v347 = vpop.f32.mrb[0].mxu0
  %v348 = vadd.f32 %v91, %v347
  %v349 = vpop.f32.mrb[0].mxu0
  %350 = vdwg.mxu0
  %vm351 = vcmask 261120
  %352 = vst.msk [vmem:[%s3] sm:$0xff] %vm351, %v233
  %353 = vst.msk [vmem:[%s3 + $0x8] sm:$0xff] %vm351, %v238
  %354 = vst.msk [vmem:[%s3 + $0x10] sm:$0xff] %vm351, %v243
  %355 = vst.msk [vmem:[%s3 + $0x18] sm:$0xff] %vm351, %v248
  %356 = vst.msk [vmem:[%s3 + $0x20] sm:$0xff] %vm351, %v253
  %357 = vst.msk [vmem:[%s3 + $0x28] sm:$0xff] %vm351, %v258
  %358 = vst.msk [vmem:[%s3 + $0x30] sm:$0xff] %vm351, %v263
  %359 = vst.msk [vmem:[%s3 + $0x38] sm:$0xff] %vm351, %v268
  %360 = vst.msk [vmem:[%s3 + $0x40] sm:$0xff] %vm351, %v273
  %361 = vst.msk [vmem:[%s3 + $0x48] sm:$0xff] %vm351, %v278
  %362 = vst.msk [vmem:[%s3 + $0x50] sm:$0xff] %vm351, %v283
  %363 = vst.msk [vmem:[%s3 + $0x58] sm:$0xff] %vm351, %v288
  %364 = vst.msk [vmem:[%s3 + $0x60] sm:$0xff] %vm351, %v293
  %365 = vst.msk [vmem:[%s3 + $0x68] sm:$0xff] %vm351, %v298
  %366 = vst.msk [vmem:[%s3 + $0x70] sm:$0xff] %vm351, %v303
  %367 = vst.msk [vmem:[%s3 + $0x78] sm:$0xff] %vm351, %v308
  %368 = vst.msk [vmem:[%s3 + $0x80] sm:$0xff] %vm351, %v313
  %369 = vst.msk [vmem:[%s3 + $0x88] sm:$0xff] %vm351, %v318
  %370 = vst.msk [vmem:[%s3 + $0x90] sm:$0xff] %vm351, %v323
  %371 = vst.msk [vmem:[%s3 + $0x98] sm:$0xff] %vm351, %v328
  %372 = vst.msk [vmem:[%s3 + $0xa0] sm:$0xff] %vm351, %v333
  %373 = vst.msk [vmem:[%s3 + $0xa8] sm:$0xff] %vm351, %v338
  %374 = vst.msk [vmem:[%s3 + $0xb0] sm:$0xff] %vm351, %v343
  %375 = vst.msk [vmem:[%s3 + $0xb8] sm:$0xff] %vm351, %v348
  // Predicated region
  $region14: #{forward.20} parent=0 // pred_check
    _
  $region15: #{forward.20} parent=0 // pred_check_branch
    %377 = sbr.rel (0) target = $region17
  $region16: #{forward.20} parent=0 // pred_region
    _
  $region17: #{forward.20} parent=0 // pred_fallthru
    _
  // Predicated region
  $region18: #{forward.20} parent=0 // pred_check
    _
  $region19: #{forward.20} parent=0 // pred_check_branch
    %379 = sbr.rel (0) target = $region21
  $region20: #{forward.20} parent=0 // pred_region
    _
  $region21: #{forward.20} parent=0 // pred_fallthru
    _

// kernel: forward.21
$region0: #{forward.21}
  #allocation0 [shape = 'u32[]', space=smem, size = 0x4, offset = 0x4, fixed_abs, tag = 'smem constant byte address 0x4 - core index']
  #allocation1 [shape = 'u32[144,128]{1,0:T(1,128)}', space=vmem, size = 0x12000, scoped, tag = 'internal scratch']
  %s0 = inlined_call_operand.vmem [shape: f32[512,12], index: 0, kind: input, shape index: {}]
  %s1 = inlined_call_operand.vmem [shape: f32[12,7], index: 1, kind: input, shape index: {}]
  %s2 = inlined_call_operand.vmem [shape: f32[12,7], index: 2, kind: input, shape index: {}]
  %s3 = inlined_call_operand.vmem [shape: f32[512,7], index: 3, kind: output, shape index: {}]
  %s4 = sld [smem:[#allocation0]]
  $region22: #{forward.21} parent=0
    _
  %s6 = ssub.s32 1, %s4
  %s7 = scalar_select 0, %s6, %s4
  // Predicated region
  $region2: #{forward.21} parent=0 // pred_check
    _
  $region3: #{forward.21} parent=0 // pred_check_branch
    %9 = sbr.rel (0) target = $region5
  $region4: #{forward.21} parent=0 // pred_region
    _
  $region5: #{forward.21} parent=0 // pred_fallthru
    _
  // Predicated region
  $region6: #{forward.21} parent=0 // pred_check
    _
  $region7: #{forward.21} parent=0 // pred_check_branch
    %11 = sbr.rel (0) target = $region9
  $region8: #{forward.21} parent=0 // pred_region
    _
  $region9: #{forward.21} parent=0 // pred_fallthru
    _
  // Predicated region
  $region10: #{forward.21} parent=0 // pred_check
    _
  $region11: #{forward.21} parent=0 // pred_check_branch
    %13 = sbr.rel (0) target = $region13
  $region12: #{forward.21} parent=0 // pred_region
    _
  $region13: #{forward.21} parent=0 // pred_fallthru
    _
  %v14 = vld [vmem:[%s0] sm:$0xff]
  %v15 = vld [vmem:[%s0 + $0x8] sm:$0xff]
  %v16 = vld [vmem:[%s0 + $0x10] sm:$0xff]
  %v17 = vld [vmem:[%s0 + $0x18] sm:$0xff]
  %v18 = vld [vmem:[%s0 + $0x20] sm:$0xff]
  %v19 = vld [vmem:[%s0 + $0x28] sm:$0xff]
  %v20 = vld [vmem:[%s0 + $0x30] sm:$0xff]
  %v21 = vld [vmem:[%s0 + $0x38] sm:$0xff]
  %v22 = vld [vmem:[%s0 + $0x40] sm:$0xff]
  %v23 = vld [vmem:[%s0 + $0x48] sm:$0xff]
  %v24 = vld [vmem:[%s0 + $0x50] sm:$0xff]
  %v25 = vld [vmem:[%s0 + $0x58] sm:$0xff]
  %v26 = vld [vmem:[%s0 + $0x60] sm:$0xff]
  %v27 = vld [vmem:[%s0 + $0x68] sm:$0xff]
  %v28 = vld [vmem:[%s0 + $0x70] sm:$0xff]
  %v29 = vld [vmem:[%s0 + $0x78] sm:$0xff]
  %v30 = vld [vmem:[%s0 + $0x80] sm:$0xff]
  %v31 = vld [vmem:[%s0 + $0x88] sm:$0xff]
  %v32 = vld [vmem:[%s0 + $0x90] sm:$0xff]
  %v33 = vld [vmem:[%s0 + $0x98] sm:$0xff]
  %v34 = vld [vmem:[%s0 + $0xa0] sm:$0xff]
  %v35 = vld [vmem:[%s0 + $0xa8] sm:$0xff]
  %v36 = vld [vmem:[%s0 + $0xb0] sm:$0xff]
  %v37 = vld [vmem:[%s0 + $0xb8] sm:$0xff]
  %v38 = vld [vmem:[%s0 + $0xc0] sm:$0xff]
  %v39 = vld [vmem:[%s0 + $0xc8] sm:$0xff]
  %v40 = vld [vmem:[%s0 + $0xd0] sm:$0xff]
  %v41 = vld [vmem:[%s0 + $0xd8] sm:$0xff]
  %v42 = vld [vmem:[%s0 + $0xe0] sm:$0xff]
  %v43 = vld [vmem:[%s0 + $0xe8] sm:$0xff]
  %v44 = vld [vmem:[%s0 + $0xf0] sm:$0xff]
  %v45 = vld [vmem:[%s0 + $0xf8] sm:$0xff]
  %v46 = vld [vmem:[%s0 + $0x100] sm:$0xff]
  %v47 = vld [vmem:[%s0 + $0x108] sm:$0xff]
  %v48 = vld [vmem:[%s0 + $0x110] sm:$0xff]
  %v49 = vld [vmem:[%s0 + $0x118] sm:$0xff]
  %v50 = vld [vmem:[%s0 + $0x120] sm:$0xff]
  %v51 = vld [vmem:[%s0 + $0x128] sm:$0xff]
  %v52 = vld [vmem:[%s0 + $0x130] sm:$0xff]
  %v53 = vld [vmem:[%s0 + $0x138] sm:$0xff]
  %v54 = vld [vmem:[%s0 + $0x140] sm:$0xff]
  %v55 = vld [vmem:[%s0 + $0x148] sm:$0xff]
  %v56 = vld [vmem:[%s0 + $0x150] sm:$0xff]
  %v57 = vld [vmem:[%s0 + $0x158] sm:$0xff]
  %v58 = vld [vmem:[%s0 + $0x160] sm:$0xff]
  %v59 = vld [vmem:[%s0 + $0x168] sm:$0xff]
  %v60 = vld [vmem:[%s0 + $0x170] sm:$0xff]
  %v61 = vld [vmem:[%s0 + $0x178] sm:$0xff]
  %v62 = vld [vmem:[%s0 + $0x180] sm:$0xff]
  %v63 = vld [vmem:[%s0 + $0x188] sm:$0xff]
  %v64 = vld [vmem:[%s0 + $0x190] sm:$0xff]
  %v65 = vld [vmem:[%s0 + $0x198] sm:$0xff]
  %v66 = vld [vmem:[%s0 + $0x1a0] sm:$0xff]
  %v67 = vld [vmem:[%s0 + $0x1a8] sm:$0xff]
  %v68 = vld [vmem:[%s0 + $0x1b0] sm:$0xff]
  %v69 = vld [vmem:[%s0 + $0x1b8] sm:$0xff]
  %v70 = vld [vmem:[%s0 + $0x1c0] sm:$0xff]
  %v71 = vld [vmem:[%s0 + $0x1c8] sm:$0xff]
  %v72 = vld [vmem:[%s0 + $0x1d0] sm:$0xff]
  %v73 = vld [vmem:[%s0 + $0x1d8] sm:$0xff]
  %v74 = vld [vmem:[%s0 + $0x1e0] sm:$0xff]
  %v75 = vld [vmem:[%s0 + $0x1e8] sm:$0xff]
  %v76 = vld [vmem:[%s0 + $0x1f0] sm:$0xff]
  %v77 = vld [vmem:[%s0 + $0x1f8] sm:$0xff]
  %v78 = vld [vmem:[%s1] sm:$0xff]
  %v79 = vld [vmem:[%s1 + $0x8] sm:$0xf]
  %vm80 = vcmask 97280
  %v82 = vsel %vm80, %v14, 0
  %v85 = vsel %vm80, %v15, 0
  %v88 = vsel %vm80, %v16, 0
  %v91 = vsel %vm80, %v17, 0
  %v94 = vsel %vm80, %v18, 0
  %v97 = vsel %vm80, %v19, 0
  %v100 = vsel %vm80, %v20, 0
  %v103 = vsel %vm80, %v21, 0
  %v106 = vsel %vm80, %v22, 0
  %v109 = vsel %vm80, %v23, 0
  %v112 = vsel %vm80, %v24, 0
  %v115 = vsel %vm80, %v25, 0
  %v118 = vsel %vm80, %v26, 0
  %v121 = vsel %vm80, %v27, 0
  %v124 = vsel %vm80, %v28, 0
  %v127 = vsel %vm80, %v29, 0
  %v130 = vsel %vm80, %v30, 0
  %v133 = vsel %vm80, %v31, 0
  %v136 = vsel %vm80, %v32, 0
  %v139 = vsel %vm80, %v33, 0
  %v142 = vsel %vm80, %v34, 0
  %v145 = vsel %vm80, %v35, 0
  %v148 = vsel %vm80, %v36, 0
  %v151 = vsel %vm80, %v37, 0
  %v154 = vsel %vm80, %v38, 0
  %v157 = vsel %vm80, %v39, 0
  %v160 = vsel %vm80, %v40, 0
  %v163 = vsel %vm80, %v41, 0
  %v166 = vsel %vm80, %v42, 0
  %v169 = vsel %vm80, %v43, 0
  %v172 = vsel %vm80, %v44, 0
  %v175 = vsel %vm80, %v45, 0
  %v178 = vsel %vm80, %v46, 0
  %v181 = vsel %vm80, %v47, 0
  %v184 = vsel %vm80, %v48, 0
  %v187 = vsel %vm80, %v49, 0
  %v190 = vsel %vm80, %v50, 0
  %v193 = vsel %vm80, %v51, 0
  %v196 = vsel %vm80, %v52, 0
  %v199 = vsel %vm80, %v53, 0
  %v202 = vsel %vm80, %v54, 0
  %v205 = vsel %vm80, %v55, 0
  %v208 = vsel %vm80, %v56, 0
  %v211 = vsel %vm80, %v57, 0
  %v214 = vsel %vm80, %v58, 0
  %v217 = vsel %vm80, %v59, 0
  %v220 = vsel %vm80, %v60, 0
  %v223 = vsel %vm80, %v61, 0
  %v226 = vsel %vm80, %v62, 0
  %v229 = vsel %vm80, %v63, 0
  %v232 = vsel %vm80, %v64, 0
  %v235 = vsel %vm80, %v65, 0
  %v238 = vsel %vm80, %v66, 0
  %v241 = vsel %vm80, %v67, 0
  %v244 = vsel %vm80, %v68, 0
  %v247 = vsel %vm80, %v69, 0
  %v250 = vsel %vm80, %v70, 0
  %v253 = vsel %vm80, %v71, 0
  %v256 = vsel %vm80, %v72, 0
  %v259 = vsel %vm80, %v73, 0
  %v262 = vsel %vm80, %v74, 0
  %v265 = vsel %vm80, %v75, 0
  %v268 = vsel %vm80, %v76, 0
  %v271 = vsel %vm80, %v77, 0
  %vm273 = vcmask 1043456
  %v275 = vsel %vm273, %v79, 0
  %277 = vmatprep.subr.mxu0 0.0
  %278 = vmatpush1.msra.mxu0 %v78
  %279 = vmatprep.subr.mxu0 0.0
  %280 = vmatpush1.msra.mxu0 %v275
  %281 = vmatprep.subr.mxu0 0.0
  %282 = vmatpush1.msra.mxu0 0.0
  %283 = vmatprep.subr.mxu0 0.0
  %284 = vmatpush1.msra.mxu0 0.0
  %285 = vmatprep.subr.mxu0 0.0
  %286 = vmatpush1.msra.mxu0 0.0
  %287 = vmatprep.subr.mxu0 0.0
  %288 = vmatpush1.msra.mxu0 0.0
  %289 = vmatprep.subr.mxu0 0.0
  %290 = vmatpush1.msra.mxu0 0.0
  %291 = vmatprep.subr.mxu0 0.0
  %292 = vmatpush1.msra.mxu0 0.0
  %293 = vmatprep.subr.mxu0 0.0
  %294 = vmatpush1.msra.mxu0 0.0
  %295 = vmatprep.subr.mxu0 0.0
  %296 = vmatpush1.msra.mxu0 0.0
  %297 = vmatprep.subr.mxu0 0.0
  %298 = vmatpush1.msra.mxu0 0.0
  %299 = vmatprep.subr.mxu0 0.0
  %300 = vmatpush1.msra.mxu0 0.0
  %301 = vmatprep.subr.mxu0 0.0
  %302 = vmatpush1.msra.mxu0 0.0
  %303 = vmatprep.subr.mxu0 0.0
  %304 = vmatpush1.msra.mxu0 0.0
  %305 = vmatprep.subr.mxu0 0.0
  %306 = vmatpush1.msra.mxu0 0.0
  %307 = vmatprep.subr.mxu0 0.0
  %308 = vmatpush1.msra.mxu0 0.0
  %309 = vmatprep.subr.mxu0 0.0
  %310 = vmatpush1.msra.mxu0 0.0
  %311 = vmatprep.subr.mxu0 0.0
  %312 = vmatpush1.msra.mxu0 0.0
  %313 = vmatprep.subr.mxu0 0.0
  %314 = vmatpush1.msra.mxu0 0.0
  %315 = vmatprep.subr.mxu0 0.0
  %316 = vmatpush1.msra.mxu0 0.0
  %317 = vmatprep.subr.mxu0 0.0
  %318 = vmatpush1.msra.mxu0 0.0
  %319 = vmatprep.subr.mxu0 0.0
  %320 = vmatpush1.msra.mxu0 0.0
  %321 = vmatprep.subr.mxu0 0.0
  %322 = vmatpush1.msra.mxu0 0.0
  %323 = vmatprep.subr.mxu0 0.0
  %324 = vmatpush1.msra.mxu0 0.0
  %325 = vmatprep.subr.mxu0 0.0
  %326 = vmatpush1.msra.mxu0 0.0
  %327 = vmatprep.subr.mxu0 0.0
  %328 = vmatpush1.msra.mxu0 0.0
  %329 = vmatprep.subr.mxu0 0.0
  %330 = vmatpush1.msra.mxu0 0.0
  %331 = vmatprep.subr.mxu0 0.0
  %332 = vmatpush1.msra.mxu0 0.0
  %333 = vmatprep.subr.mxu0 0.0
  %334 = vmatpush1.msra.mxu0 0.0
  %335 = vmatprep.subr.mxu0 0.0
  %336 = vmatpush1.msra.mxu0 0.0
  %337 = vmatprep.subr.mxu0 0.0
  %338 = vmatpush1.msra.mxu0 0.0
  %339 = vmatprep.subr.mxu0 0.0
  %340 = vmatpush1.msra.mxu0 0.0
  %341 = vmatprep.mubr.f32.mxu0 0.0
  %342 = vmatmul.mubr.f32.gmra.mrb[0].mxu0 %v82
  %v343 = vpop.f32.mrb[0].mxu0
  %v344 = vadd.f32 0.0, %v343
  %v345 = vpop.f32.mrb[0].mxu0
  %346 = vmatprep.mubr.f32.mxu0 0.0
  %347 = vmatmul.mubr.f32.gmra.mrb[0].mxu0 %v85
  %v348 = vpop.f32.mrb[0].mxu0
  %v349 = vadd.f32 0.0, %v348
  %v350 = vpop.f32.mrb[0].mxu0
  %351 = vmatprep.mubr.f32.mxu0 0.0
  %352 = vmatmul.mubr.f32.gmra.mrb[0].mxu0 %v88
  %v353 = vpop.f32.mrb[0].mxu0
  %v354 = vadd.f32 0.0, %v353
  %v355 = vpop.f32.mrb[0].mxu0
  %356 = vmatprep.mubr.f32.mxu0 0.0
  %357 = vmatmul.mubr.f32.gmra.mrb[0].mxu0 %v91
  %v358 = vpop.f32.mrb[0].mxu0
  %v359 = vadd.f32 0.0, %v358
  %v360 = vpop.f32.mrb[0].mxu0
  %361 = vmatprep.mubr.f32.mxu0 0.0
  %362 = vmatmul.mubr.f32.gmra.mrb[0].mxu0 %v94
  %v363 = vpop.f32.mrb[0].mxu0
  %v364 = vadd.f32 0.0, %v363
  %v365 = vpop.f32.mrb[0].mxu0
  %366 = vmatprep.mubr.f32.mxu0 0.0
  %367 = vmatmul.mubr.f32.gmra.mrb[0].mxu0 %v97
  %v368 = vpop.f32.mrb[0].mxu0
  %v369 = vadd.f32 0.0, %v368
  %v370 = vpop.f32.mrb[0].mxu0
  %371 = vmatprep.mubr.f32.mxu0 0.0
  %372 = vmatmul.mubr.f32.gmra.mrb[0].mxu0 %v100
  %v373 = vpop.f32.mrb[0].mxu0
  %v374 = vadd.f32 0.0, %v373
  %v375 = vpop.f32.mrb[0].mxu0
  %376 = vmatprep.mubr.f32.mxu0 0.0
  %377 = vmatmul.mubr.f32.gmra.mrb[0].mxu0 %v103
  %v378 = vpop.f32.mrb[0].mxu0
  %v379 = vadd.f32 0.0, %v378
  %v380 = vpop.f32.mrb[0].mxu0
  %381 = vmatprep.mubr.f32.mxu0 0.0
  %382 = vmatmul.mubr.f32.gmra.mrb[0].mxu0 %v106
  %v383 = vpop.f32.mrb[0].mxu0
  %v384 = vadd.f32 0.0, %v383
  %v385 = vpop.f32.mrb[0].mxu0
  %386 = vmatprep.mubr.f32.mxu0 0.0
  %387 = vmatmul.mubr.f32.gmra.mrb[0].mxu0 %v109
  %v388 = vpop.f32.mrb[0].mxu0
  %v389 = vadd.f32 0.0, %v388
  %v390 = vpop.f32.mrb[0].mxu0
  %391 = vmatprep.mubr.f32.mxu0 0.0
  %392 = vmatmul.mubr.f32.gmra.mrb[0].mxu0 %v112
  %v393 = vpop.f32.mrb[0].mxu0
  %v394 = vadd.f32 0.0, %v393
  %v395 = vpop.f32.mrb[0].mxu0
  %396 = vmatprep.mubr.f32.mxu0 0.0
  %397 = vmatmul.mubr.f32.gmra.mrb[0].mxu0 %v115
  %v398 = vpop.f32.mrb[0].mxu0
  %v399 = vadd.f32 0.0, %v398
  %v400 = vpop.f32.mrb[0].mxu0
  %401 = vmatprep.mubr.f32.mxu0 0.0
  %402 = vmatmul.mubr.f32.gmra.mrb[0].mxu0 %v118
  %v403 = vpop.f32.mrb[0].mxu0
  %v404 = vadd.f32 0.0, %v403
  %v405 = vpop.f32.mrb[0].mxu0
  %406 = vmatprep.mubr.f32.mxu0 0.0
  %407 = vmatmul.mubr.f32.gmra.mrb[0].mxu0 %v121
  %v408 = vpop.f32.mrb[0].mxu0
  %v409 = vadd.f32 0.0, %v408
  %v410 = vpop.f32.mrb[0].mxu0
  %411 = vmatprep.mubr.f32.mxu0 0.0
  %412 = vmatmul.mubr.f32.gmra.mrb[0].mxu0 %v124
  %v413 = vpop.f32.mrb[0].mxu0
  %v414 = vadd.f32 0.0, %v413
  %v415 = vpop.f32.mrb[0].mxu0
  %416 = vmatprep.mubr.f32.mxu0 0.0
  %417 = vmatmul.mubr.f32.gmra.mrb[0].mxu0 %v127
  %v418 = vpop.f32.mrb[0].mxu0
  %v419 = vadd.f32 0.0, %v418
  %v420 = vpop.f32.mrb[0].mxu0
  %421 = vmatprep.mubr.f32.mxu0 0.0
  %422 = vmatmul.mubr.f32.gmra.mrb[0].mxu0 %v130
  %v423 = vpop.f32.mrb[0].mxu0
  %v424 = vadd.f32 0.0, %v423
  %v425 = vpop.f32.mrb[0].mxu0
  %426 = vmatprep.mubr.f32.mxu0 0.0
  %427 = vmatmul.mubr.f32.gmra.mrb[0].mxu0 %v133
  %v428 = vpop.f32.mrb[0].mxu0
  %v429 = vadd.f32 0.0, %v428
  %v430 = vpop.f32.mrb[0].mxu0
  %431 = vmatprep.mubr.f32.mxu0 0.0
  %432 = vmatmul.mubr.f32.gmra.mrb[0].mxu0 %v136
  %v433 = vpop.f32.mrb[0].mxu0
  %v434 = vadd.f32 0.0, %v433
  %v435 = vpop.f32.mrb[0].mxu0
  %436 = vmatprep.mubr.f32.mxu0 0.0
  %437 = vmatmul.mubr.f32.gmra.mrb[0].mxu0 %v139
  %v438 = vpop.f32.mrb[0].mxu0
  %v439 = vadd.f32 0.0, %v438
  %v440 = vpop.f32.mrb[0].mxu0
  %441 = vmatprep.mubr.f32.mxu0 0.0
  %442 = vmatmul.mubr.f32.gmra.mrb[0].mxu0 %v142
  %v443 = vpop.f32.mrb[0].mxu0
  %v444 = vadd.f32 0.0, %v443
  %v445 = vpop.f32.mrb[0].mxu0
  %446 = vmatprep.mubr.f32.mxu0 0.0
  %447 = vmatmul.mubr.f32.gmra.mrb[0].mxu0 %v145
  %v448 = vpop.f32.mrb[0].mxu0
  %v449 = vadd.f32 0.0, %v448
  %v450 = vpop.f32.mrb[0].mxu0
  %451 = vmatprep.mubr.f32.mxu0 0.0
  %452 = vmatmul.mubr.f32.gmra.mrb[0].mxu0 %v148
  %v453 = vpop.f32.mrb[0].mxu0
  %v454 = vadd.f32 0.0, %v453
  %v455 = vpop.f32.mrb[0].mxu0
  %456 = vmatprep.mubr.f32.mxu0 0.0
  %457 = vmatmul.mubr.f32.gmra.mrb[0].mxu0 %v151
  %v458 = vpop.f32.mrb[0].mxu0
  %v459 = vadd.f32 0.0, %v458
  %v460 = vpop.f32.mrb[0].mxu0
  %461 = vmatprep.mubr.f32.mxu0 0.0
  %462 = vmatmul.mubr.f32.gmra.mrb[0].mxu0 %v154
  %v463 = vpop.f32.mrb[0].mxu0
  %v464 = vadd.f32 0.0, %v463
  %v465 = vpop.f32.mrb[0].mxu0
  %466 = vmatprep.mubr.f32.mxu0 0.0
  %467 = vmatmul.mubr.f32.gmra.mrb[0].mxu0 %v157
  %v468 = vpop.f32.mrb[0].mxu0
  %v469 = vadd.f32 0.0, %v468
  %v470 = vpop.f32.mrb[0].mxu0
  %471 = vmatprep.mubr.f32.mxu0 0.0
  %472 = vmatmul.mubr.f32.gmra.mrb[0].mxu0 %v160
  %v473 = vpop.f32.mrb[0].mxu0
  %v474 = vadd.f32 0.0, %v473
  %v475 = vpop.f32.mrb[0].mxu0
  %476 = vmatprep.mubr.f32.mxu0 0.0
  %477 = vmatmul.mubr.f32.gmra.mrb[0].mxu0 %v163
  %v478 = vpop.f32.mrb[0].mxu0
  %v479 = vadd.f32 0.0, %v478
  %v480 = vpop.f32.mrb[0].mxu0
  %481 = vmatprep.mubr.f32.mxu0 0.0
  %482 = vmatmul.mubr.f32.gmra.mrb[0].mxu0 %v166
  %v483 = vpop.f32.mrb[0].mxu0
  %v484 = vadd.f32 0.0, %v483
  %v485 = vpop.f32.mrb[0].mxu0
  %486 = vmatprep.mubr.f32.mxu0 0.0
  %487 = vmatmul.mubr.f32.gmra.mrb[0].mxu0 %v169
  %v488 = vpop.f32.mrb[0].mxu0
  %v489 = vadd.f32 0.0, %v488
  %v490 = vpop.f32.mrb[0].mxu0
  %491 = vmatprep.mubr.f32.mxu0 0.0
  %492 = vmatmul.mubr.f32.gmra.mrb[0].mxu0 %v172
  %v493 = vpop.f32.mrb[0].mxu0
  %v494 = vadd.f32 0.0, %v493
  %v495 = vpop.f32.mrb[0].mxu0
  %496 = vmatprep.mubr.f32.mxu0 0.0
  %497 = vmatmul.mubr.f32.gmra.mrb[0].mxu0 %v175
  %v498 = vpop.f32.mrb[0].mxu0
  %v499 = vadd.f32 0.0, %v498
  %v500 = vpop.f32.mrb[0].mxu0
  %501 = vmatprep.mubr.f32.mxu0 0.0
  %502 = vmatmul.mubr.f32.gmra.mrb[0].mxu0 %v178
  %v503 = vpop.f32.mrb[0].mxu0
  %v504 = vadd.f32 0.0, %v503
  %v505 = vpop.f32.mrb[0].mxu0
  %506 = vmatprep.mubr.f32.mxu0 0.0
  %507 = vmatmul.mubr.f32.gmra.mrb[0].mxu0 %v181
  %v508 = vpop.f32.mrb[0].mxu0
  %v509 = vadd.f32 0.0, %v508
  %v510 = vpop.f32.mrb[0].mxu0
  %511 = vmatprep.mubr.f32.mxu0 0.0
  %512 = vmatmul.mubr.f32.gmra.mrb[0].mxu0 %v184
  %v513 = vpop.f32.mrb[0].mxu0
  %v514 = vadd.f32 0.0, %v513
  %v515 = vpop.f32.mrb[0].mxu0
  %516 = vmatprep.mubr.f32.mxu0 0.0
  %517 = vmatmul.mubr.f32.gmra.mrb[0].mxu0 %v187
  %v518 = vpop.f32.mrb[0].mxu0
  %v519 = vadd.f32 0.0, %v518
  %v520 = vpop.f32.mrb[0].mxu0
  %521 = vmatprep.mubr.f32.mxu0 0.0
  %522 = vmatmul.mubr.f32.gmra.mrb[0].mxu0 %v190
  %v523 = vpop.f32.mrb[0].mxu0
  %v524 = vadd.f32 0.0, %v523
  %v525 = vpop.f32.mrb[0].mxu0
  %526 = vmatprep.mubr.f32.mxu0 0.0
  %527 = vmatmul.mubr.f32.gmra.mrb[0].mxu0 %v193
  %v528 = vpop.f32.mrb[0].mxu0
  %v529 = vadd.f32 0.0, %v528
  %v530 = vpop.f32.mrb[0].mxu0
  %531 = vmatprep.mubr.f32.mxu0 0.0
  %532 = vmatmul.mubr.f32.gmra.mrb[0].mxu0 %v196
  %v533 = vpop.f32.mrb[0].mxu0
  %v534 = vadd.f32 0.0, %v533
  %v535 = vpop.f32.mrb[0].mxu0
  %536 = vmatprep.mubr.f32.mxu0 0.0
  %537 = vmatmul.mubr.f32.gmra.mrb[0].mxu0 %v199
  %v538 = vpop.f32.mrb[0].mxu0
  %v539 = vadd.f32 0.0, %v538
  %v540 = vpop.f32.mrb[0].mxu0
  %541 = vmatprep.mubr.f32.mxu0 0.0
  %542 = vmatmul.mubr.f32.gmra.mrb[0].mxu0 %v202
  %v543 = vpop.f32.mrb[0].mxu0
  %v544 = vadd.f32 0.0, %v543
  %v545 = vpop.f32.mrb[0].mxu0
  %546 = vmatprep.mubr.f32.mxu0 0.0
  %547 = vmatmul.mubr.f32.gmra.mrb[0].mxu0 %v205
  %v548 = vpop.f32.mrb[0].mxu0
  %v549 = vadd.f32 0.0, %v548
  %v550 = vpop.f32.mrb[0].mxu0
  %551 = vmatprep.mubr.f32.mxu0 0.0
  %552 = vmatmul.mubr.f32.gmra.mrb[0].mxu0 %v208
  %v553 = vpop.f32.mrb[0].mxu0
  %v554 = vadd.f32 0.0, %v553
  %v555 = vpop.f32.mrb[0].mxu0
  %556 = vmatprep.mubr.f32.mxu0 0.0
  %557 = vmatmul.mubr.f32.gmra.mrb[0].mxu0 %v211
  %v558 = vpop.f32.mrb[0].mxu0
  %v559 = vadd.f32 0.0, %v558
  %v560 = vpop.f32.mrb[0].mxu0
  %561 = vmatprep.mubr.f32.mxu0 0.0
  %562 = vmatmul.mubr.f32.gmra.mrb[0].mxu0 %v214
  %v563 = vpop.f32.mrb[0].mxu0
  %v564 = vadd.f32 0.0, %v563
  %v565 = vpop.f32.mrb[0].mxu0
  %566 = vmatprep.mubr.f32.mxu0 0.0
  %567 = vmatmul.mubr.f32.gmra.mrb[0].mxu0 %v217
  %v568 = vpop.f32.mrb[0].mxu0
  %v569 = vadd.f32 0.0, %v568
  %v570 = vpop.f32.mrb[0].mxu0
  %571 = vmatprep.mubr.f32.mxu0 0.0
  %572 = vmatmul.mubr.f32.gmra.mrb[0].mxu0 %v220
  %v573 = vpop.f32.mrb[0].mxu0
  %v574 = vadd.f32 0.0, %v573
  %v575 = vpop.f32.mrb[0].mxu0
  %576 = vmatprep.mubr.f32.mxu0 0.0
  %577 = vmatmul.mubr.f32.gmra.mrb[0].mxu0 %v223
  %v578 = vpop.f32.mrb[0].mxu0
  %v579 = vadd.f32 0.0, %v578
  %v580 = vpop.f32.mrb[0].mxu0
  %581 = vmatprep.mubr.f32.mxu0 0.0
  %582 = vmatmul.mubr.f32.gmra.mrb[0].mxu0 %v226
  %v583 = vpop.f32.mrb[0].mxu0
  %v584 = vadd.f32 0.0, %v583
  %v585 = vpop.f32.mrb[0].mxu0
  %586 = vmatprep.mubr.f32.mxu0 0.0
  %587 = vmatmul.mubr.f32.gmra.mrb[0].mxu0 %v229
  %v588 = vpop.f32.mrb[0].mxu0
  %v589 = vadd.f32 0.0, %v588
  %v590 = vpop.f32.mrb[0].mxu0
  %591 = vmatprep.mubr.f32.mxu0 0.0
  %592 = vmatmul.mubr.f32.gmra.mrb[0].mxu0 %v232
  %v593 = vpop.f32.mrb[0].mxu0
  %v594 = vadd.f32 0.0, %v593
  %v595 = vpop.f32.mrb[0].mxu0
  %596 = vmatprep.mubr.f32.mxu0 0.0
  %597 = vmatmul.mubr.f32.gmra.mrb[0].mxu0 %v235
  %v598 = vpop.f32.mrb[0].mxu0
  %v599 = vadd.f32 0.0, %v598
  %v600 = vpop.f32.mrb[0].mxu0
  %601 = vmatprep.mubr.f32.mxu0 0.0
  %602 = vmatmul.mubr.f32.gmra.mrb[0].mxu0 %v238
  %v603 = vpop.f32.mrb[0].mxu0
  %v604 = vadd.f32 0.0, %v603
  %v605 = vpop.f32.mrb[0].mxu0
  %606 = vmatprep.mubr.f32.mxu0 0.0
  %607 = vmatmul.mubr.f32.gmra.mrb[0].mxu0 %v241
  %v608 = vpop.f32.mrb[0].mxu0
  %v609 = vadd.f32 0.0, %v608
  %v610 = vpop.f32.mrb[0].mxu0
  %611 = vmatprep.mubr.f32.mxu0 0.0
  %612 = vmatmul.mubr.f32.gmra.mrb[0].mxu0 %v244
  %v613 = vpop.f32.mrb[0].mxu0
  %v614 = vadd.f32 0.0, %v613
  %v615 = vpop.f32.mrb[0].mxu0
  %616 = vmatprep.mubr.f32.mxu0 0.0
  %617 = vmatmul.mubr.f32.gmra.mrb[0].mxu0 %v247
  %v618 = vpop.f32.mrb[0].mxu0
  %v619 = vadd.f32 0.0, %v618
  %v620 = vpop.f32.mrb[0].mxu0
  %621 = vmatprep.mubr.f32.mxu0 0.0
  %622 = vmatmul.mubr.f32.gmra.mrb[0].mxu0 %v250
  %v623 = vpop.f32.mrb[0].mxu0
  %v624 = vadd.f32 0.0, %v623
  %v625 = vpop.f32.mrb[0].mxu0
  %626 = vmatprep.mubr.f32.mxu0 0.0
  %627 = vmatmul.mubr.f32.gmra.mrb[0].mxu0 %v253
  %v628 = vpop.f32.mrb[0].mxu0
  %v629 = vadd.f32 0.0, %v628
  %v630 = vpop.f32.mrb[0].mxu0
  %631 = vmatprep.mubr.f32.mxu0 0.0
  %632 = vmatmul.mubr.f32.gmra.mrb[0].mxu0 %v256
  %v633 = vpop.f32.mrb[0].mxu0
  %v634 = vadd.f32 0.0, %v633
  %v635 = vpop.f32.mrb[0].mxu0
  %636 = vmatprep.mubr.f32.mxu0 0.0
  %637 = vmatmul.mubr.f32.gmra.mrb[0].mxu0 %v259
  %v638 = vpop.f32.mrb[0].mxu0
  %v639 = vadd.f32 0.0, %v638
  %v640 = vpop.f32.mrb[0].mxu0
  %641 = vmatprep.mubr.f32.mxu0 0.0
  %642 = vmatmul.mubr.f32.gmra.mrb[0].mxu0 %v262
  %v643 = vpop.f32.mrb[0].mxu0
  %v644 = vadd.f32 0.0, %v643
  %v645 = vpop.f32.mrb[0].mxu0
  %646 = vmatprep.mubr.f32.mxu0 0.0
  %647 = vmatmul.mubr.f32.gmra.mrb[0].mxu0 %v265
  %v648 = vpop.f32.mrb[0].mxu0
  %v649 = vadd.f32 0.0, %v648
  %v650 = vpop.f32.mrb[0].mxu0
  %651 = vmatprep.mubr.f32.mxu0 0.0
  %652 = vmatmul.mubr.f32.gmra.mrb[0].mxu0 %v268
  %v653 = vpop.f32.mrb[0].mxu0
  %v654 = vadd.f32 0.0, %v653
  %v655 = vpop.f32.mrb[0].mxu0
  %656 = vmatprep.mubr.f32.mxu0 0.0
  %657 = vmatmul.mubr.f32.gmra.mrb[0].mxu0 %v271
  %v658 = vpop.f32.mrb[0].mxu0
  %v659 = vadd.f32 0.0, %v658
  %v660 = vpop.f32.mrb[0].mxu0
  %661 = vdwg.mxu0
  %v662 = vld [vmem:[%s2] sm:$0xff]
  %v663 = vld [vmem:[%s2 + $0x8] sm:$0xf]
  %v665 = vsel %vm273, %v663, 0
  %667 = vmatprep.subr.mxu0 0.0
  %668 = vmatpush1.msra.mxu0 %v662
  %669 = vmatprep.subr.mxu0 0.0
  %670 = vmatpush1.msra.mxu0 %v665
  %671 = vmatprep.subr.mxu0 0.0
  %672 = vmatpush1.msra.mxu0 0.0
  %673 = vmatprep.subr.mxu0 0.0
  %674 = vmatpush1.msra.mxu0 0.0
  %675 = vmatprep.subr.mxu0 0.0
  %676 = vmatpush1.msra.mxu0 0.0
  %677 = vmatprep.subr.mxu0 0.0
  %678 = vmatpush1.msra.mxu0 0.0
  %679 = vmatprep.subr.mxu0 0.0
  %680 = vmatpush1.msra.mxu0 0.0
  %681 = vmatprep.subr.mxu0 0.0
  %682 = vmatpush1.msra.mxu0 0.0
  %683 = vmatprep.subr.mxu0 0.0
  %684 = vmatpush1.msra.mxu0 0.0
  %685 = vmatprep.subr.mxu0 0.0
  %686 = vmatpush1.msra.mxu0 0.0
  %687 = vmatprep.subr.mxu0 0.0
  %688 = vmatpush1.msra.mxu0 0.0
  %689 = vmatprep.subr.mxu0 0.0
  %690 = vmatpush1.msra.mxu0 0.0
  %691 = vmatprep.subr.mxu0 0.0
  %692 = vmatpush1.msra.mxu0 0.0
  %693 = vmatprep.subr.mxu0 0.0
  %694 = vmatpush1.msra.mxu0 0.0
  %695 = vmatprep.subr.mxu0 0.0
  %696 = vmatpush1.msra.mxu0 0.0
  %697 = vmatprep.subr.mxu0 0.0
  %698 = vmatpush1.msra.mxu0 0.0
  %699 = vmatprep.subr.mxu0 0.0
  %700 = vmatpush1.msra.mxu0 0.0
  %701 = vmatprep.subr.mxu0 0.0
  %702 = vmatpush1.msra.mxu0 0.0
  %703 = vmatprep.subr.mxu0 0.0
  %704 = vmatpush1.msra.mxu0 0.0
  %705 = vmatprep.subr.mxu0 0.0
  %706 = vmatpush1.msra.mxu0 0.0
  %707 = vmatprep.subr.mxu0 0.0
  %708 = vmatpush1.msra.mxu0 0.0
  %709 = vmatprep.subr.mxu0 0.0
  %710 = vmatpush1.msra.mxu0 0.0
  %711 = vmatprep.subr.mxu0 0.0
  %712 = vmatpush1.msra.mxu0 0.0
  %713 = vmatprep.subr.mxu0 0.0
  %714 = vmatpush1.msra.mxu0 0.0
  %715 = vmatprep.subr.mxu0 0.0
  %716 = vmatpush1.msra.mxu0 0.0
  %717 = vmatprep.subr.mxu0 0.0
  %718 = vmatpush1.msra.mxu0 0.0
  %719 = vmatprep.subr.mxu0 0.0
  %720 = vmatpush1.msra.mxu0 0.0
  %721 = vmatprep.subr.mxu0 0.0
  %722 = vmatpush1.msra.mxu0 0.0
  %723 = vmatprep.subr.mxu0 0.0
  %724 = vmatpush1.msra.mxu0 0.0
  %725 = vmatprep.subr.mxu0 0.0
  %726 = vmatpush1.msra.mxu0 0.0
  %727 = vmatprep.subr.mxu0 0.0
  %728 = vmatpush1.msra.mxu0 0.0
  %729 = vmatprep.subr.mxu0 0.0
  %730 = vmatpush1.msra.mxu0 0.0
  %731 = vmatprep.mubr.f32.mxu0 0.0
  %732 = vmatmul.mubr.f32.gmra.mrb[0].mxu0 %v82
  %v733 = vpop.f32.mrb[0].mxu0
  %v734 = vadd.f32 0.0, %v733
  %v735 = vpop.f32.mrb[0].mxu0
  %736 = vmatprep.mubr.f32.mxu0 0.0
  %737 = vmatmul.mubr.f32.gmra.mrb[0].mxu0 %v85
  %v738 = vpop.f32.mrb[0].mxu0
  %v739 = vadd.f32 0.0, %v738
  %v740 = vpop.f32.mrb[0].mxu0
  %741 = vmatprep.mubr.f32.mxu0 0.0
  %742 = vmatmul.mubr.f32.gmra.mrb[0].mxu0 %v88
  %v743 = vpop.f32.mrb[0].mxu0
  %v744 = vadd.f32 0.0, %v743
  %v745 = vpop.f32.mrb[0].mxu0
  %746 = vmatprep.mubr.f32.mxu0 0.0
  %747 = vmatmul.mubr.f32.gmra.mrb[0].mxu0 %v91
  %v748 = vpop.f32.mrb[0].mxu0
  %v749 = vadd.f32 0.0, %v748
  %v750 = vpop.f32.mrb[0].mxu0
  %751 = vmatprep.mubr.f32.mxu0 0.0
  %752 = vmatmul.mubr.f32.gmra.mrb[0].mxu0 %v94
  %v753 = vpop.f32.mrb[0].mxu0
  %v754 = vadd.f32 0.0, %v753
  %v755 = vpop.f32.mrb[0].mxu0
  %756 = vmatprep.mubr.f32.mxu0 0.0
  %757 = vmatmul.mubr.f32.gmra.mrb[0].mxu0 %v97
  %v758 = vpop.f32.mrb[0].mxu0
  %v759 = vadd.f32 0.0, %v758
  %v760 = vpop.f32.mrb[0].mxu0
  %761 = vmatprep.mubr.f32.mxu0 0.0
  %762 = vmatmul.mubr.f32.gmra.mrb[0].mxu0 %v100
  %v763 = vpop.f32.mrb[0].mxu0
  %v764 = vadd.f32 0.0, %v763
  %v765 = vpop.f32.mrb[0].mxu0
  %766 = vmatprep.mubr.f32.mxu0 0.0
  %767 = vmatmul.mubr.f32.gmra.mrb[0].mxu0 %v103
  %v768 = vpop.f32.mrb[0].mxu0
  %v769 = vadd.f32 0.0, %v768
  %v770 = vpop.f32.mrb[0].mxu0
  %771 = vmatprep.mubr.f32.mxu0 0.0
  %772 = vmatmul.mubr.f32.gmra.mrb[0].mxu0 %v106
  %v773 = vpop.f32.mrb[0].mxu0
  %v774 = vadd.f32 0.0, %v773
  %v775 = vpop.f32.mrb[0].mxu0
  %776 = vmatprep.mubr.f32.mxu0 0.0
  %777 = vmatmul.mubr.f32.gmra.mrb[0].mxu0 %v109
  %v778 = vpop.f32.mrb[0].mxu0
  %v779 = vadd.f32 0.0, %v778
  %v780 = vpop.f32.mrb[0].mxu0
  %781 = vmatprep.mubr.f32.mxu0 0.0
  %782 = vmatmul.mubr.f32.gmra.mrb[0].mxu0 %v112
  %v783 = vpop.f32.mrb[0].mxu0
  %v784 = vadd.f32 0.0, %v783
  %v785 = vpop.f32.mrb[0].mxu0
  %786 = vmatprep.mubr.f32.mxu0 0.0
  %787 = vmatmul.mubr.f32.gmra.mrb[0].mxu0 %v115
  %v788 = vpop.f32.mrb[0].mxu0
  %v789 = vadd.f32 0.0, %v788
  %v790 = vpop.f32.mrb[0].mxu0
  %791 = vmatprep.mubr.f32.mxu0 0.0
  %792 = vmatmul.mubr.f32.gmra.mrb[0].mxu0 %v118
  %v793 = vpop.f32.mrb[0].mxu0
  %v794 = vadd.f32 0.0, %v793
  %v795 = vpop.f32.mrb[0].mxu0
  %796 = vmatprep.mubr.f32.mxu0 0.0
  %797 = vmatmul.mubr.f32.gmra.mrb[0].mxu0 %v121
  %v798 = vpop.f32.mrb[0].mxu0
  %v799 = vadd.f32 0.0, %v798
  %v800 = vpop.f32.mrb[0].mxu0
  %801 = vmatprep.mubr.f32.mxu0 0.0
  %802 = vmatmul.mubr.f32.gmra.mrb[0].mxu0 %v124
  %v803 = vpop.f32.mrb[0].mxu0
  %v804 = vadd.f32 0.0, %v803
  %v805 = vpop.f32.mrb[0].mxu0
  %806 = vmatprep.mubr.f32.mxu0 0.0
  %807 = vmatmul.mubr.f32.gmra.mrb[0].mxu0 %v127
  %v808 = vpop.f32.mrb[0].mxu0
  %v809 = vadd.f32 0.0, %v808
  %v810 = vpop.f32.mrb[0].mxu0
  %811 = vmatprep.mubr.f32.mxu0 0.0
  %812 = vmatmul.mubr.f32.gmra.mrb[0].mxu0 %v130
  %v813 = vpop.f32.mrb[0].mxu0
  %v814 = vadd.f32 0.0, %v813
  %v815 = vpop.f32.mrb[0].mxu0
  %816 = vmatprep.mubr.f32.mxu0 0.0
  %817 = vmatmul.mubr.f32.gmra.mrb[0].mxu0 %v133
  %v818 = vpop.f32.mrb[0].mxu0
  %v819 = vadd.f32 0.0, %v818
  %v820 = vpop.f32.mrb[0].mxu0
  %821 = vmatprep.mubr.f32.mxu0 0.0
  %822 = vmatmul.mubr.f32.gmra.mrb[0].mxu0 %v136
  %v823 = vpop.f32.mrb[0].mxu0
  %v824 = vadd.f32 0.0, %v823
  %v825 = vpop.f32.mrb[0].mxu0
  %826 = vmatprep.mubr.f32.mxu0 0.0
  %827 = vmatmul.mubr.f32.gmra.mrb[0].mxu0 %v139
  %v828 = vpop.f32.mrb[0].mxu0
  %v829 = vadd.f32 0.0, %v828
  %v830 = vpop.f32.mrb[0].mxu0
  %831 = vmatprep.mubr.f32.mxu0 0.0
  %832 = vmatmul.mubr.f32.gmra.mrb[0].mxu0 %v142
  %v833 = vpop.f32.mrb[0].mxu0
  %v834 = vadd.f32 0.0, %v833
  %v835 = vpop.f32.mrb[0].mxu0
  %836 = vmatprep.mubr.f32.mxu0 0.0
  %837 = vmatmul.mubr.f32.gmra.mrb[0].mxu0 %v145
  %v838 = vpop.f32.mrb[0].mxu0
  %v839 = vadd.f32 0.0, %v838
  %v840 = vpop.f32.mrb[0].mxu0
  %841 = vmatprep.mubr.f32.mxu0 0.0
  %842 = vmatmul.mubr.f32.gmra.mrb[0].mxu0 %v148
  %v843 = vpop.f32.mrb[0].mxu0
  %v844 = vadd.f32 0.0, %v843
  %v845 = vpop.f32.mrb[0].mxu0
  %846 = vmatprep.mubr.f32.mxu0 0.0
  %847 = vmatmul.mubr.f32.gmra.mrb[0].mxu0 %v151
  %v848 = vpop.f32.mrb[0].mxu0
  %v849 = vadd.f32 0.0, %v848
  %v850 = vpop.f32.mrb[0].mxu0
  %851 = vmatprep.mubr.f32.mxu0 0.0
  %852 = vmatmul.mubr.f32.gmra.mrb[0].mxu0 %v154
  %v853 = vpop.f32.mrb[0].mxu0
  %v854 = vadd.f32 0.0, %v853
  %v855 = vpop.f32.mrb[0].mxu0
  %856 = vmatprep.mubr.f32.mxu0 0.0
  %857 = vmatmul.mubr.f32.gmra.mrb[0].mxu0 %v157
  %v858 = vpop.f32.mrb[0].mxu0
  %v859 = vadd.f32 0.0, %v858
  %v860 = vpop.f32.mrb[0].mxu0
  %861 = vmatprep.mubr.f32.mxu0 0.0
  %862 = vmatmul.mubr.f32.gmra.mrb[0].mxu0 %v160
  %v863 = vpop.f32.mrb[0].mxu0
  %v864 = vadd.f32 0.0, %v863
  %v865 = vpop.f32.mrb[0].mxu0
  %866 = vmatprep.mubr.f32.mxu0 0.0
  %867 = vmatmul.mubr.f32.gmra.mrb[0].mxu0 %v163
  %v868 = vpop.f32.mrb[0].mxu0
  %v869 = vadd.f32 0.0, %v868
  %v870 = vpop.f32.mrb[0].mxu0
  %871 = vmatprep.mubr.f32.mxu0 0.0
  %872 = vmatmul.mubr.f32.gmra.mrb[0].mxu0 %v166
  %v873 = vpop.f32.mrb[0].mxu0
  %v874 = vadd.f32 0.0, %v873
  %v875 = vpop.f32.mrb[0].mxu0
  %876 = vmatprep.mubr.f32.mxu0 0.0
  %877 = vmatmul.mubr.f32.gmra.mrb[0].mxu0 %v169
  %v878 = vpop.f32.mrb[0].mxu0
  %v879 = vadd.f32 0.0, %v878
  %v880 = vpop.f32.mrb[0].mxu0
  %881 = vmatprep.mubr.f32.mxu0 0.0
  %882 = vmatmul.mubr.f32.gmra.mrb[0].mxu0 %v172
  %v883 = vpop.f32.mrb[0].mxu0
  %v884 = vadd.f32 0.0, %v883
  %v885 = vpop.f32.mrb[0].mxu0
  %886 = vmatprep.mubr.f32.mxu0 0.0
  %887 = vmatmul.mubr.f32.gmra.mrb[0].mxu0 %v175
  %v888 = vpop.f32.mrb[0].mxu0
  %v889 = vadd.f32 0.0, %v888
  %v890 = vpop.f32.mrb[0].mxu0
  %891 = vmatprep.mubr.f32.mxu0 0.0
  %892 = vmatmul.mubr.f32.gmra.mrb[0].mxu0 %v178
  %v893 = vpop.f32.mrb[0].mxu0
  %v894 = vadd.f32 0.0, %v893
  %v895 = vpop.f32.mrb[0].mxu0
  %896 = vmatprep.mubr.f32.mxu0 0.0
  %897 = vmatmul.mubr.f32.gmra.mrb[0].mxu0 %v181
  %v898 = vpop.f32.mrb[0].mxu0
  %v899 = vadd.f32 0.0, %v898
  %v900 = vpop.f32.mrb[0].mxu0
  %901 = vmatprep.mubr.f32.mxu0 0.0
  %902 = vmatmul.mubr.f32.gmra.mrb[0].mxu0 %v184
  %v903 = vpop.f32.mrb[0].mxu0
  %v904 = vadd.f32 0.0, %v903
  %v905 = vpop.f32.mrb[0].mxu0
  %906 = vmatprep.mubr.f32.mxu0 0.0
  %907 = vmatmul.mubr.f32.gmra.mrb[0].mxu0 %v187
  %v908 = vpop.f32.mrb[0].mxu0
  %v909 = vadd.f32 0.0, %v908
  %v910 = vpop.f32.mrb[0].mxu0
  %911 = vmatprep.mubr.f32.mxu0 0.0
  %912 = vmatmul.mubr.f32.gmra.mrb[0].mxu0 %v190
  %v913 = vpop.f32.mrb[0].mxu0
  %v914 = vadd.f32 0.0, %v913
  %v915 = vpop.f32.mrb[0].mxu0
  %916 = vmatprep.mubr.f32.mxu0 0.0
  %917 = vmatmul.mubr.f32.gmra.mrb[0].mxu0 %v193
  %v918 = vpop.f32.mrb[0].mxu0
  %v919 = vadd.f32 0.0, %v918
  %v920 = vpop.f32.mrb[0].mxu0
  %921 = vmatprep.mubr.f32.mxu0 0.0
  %922 = vmatmul.mubr.f32.gmra.mrb[0].mxu0 %v196
  %v923 = vpop.f32.mrb[0].mxu0
  %v924 = vadd.f32 0.0, %v923
  %v925 = vpop.f32.mrb[0].mxu0
  %926 = vmatprep.mubr.f32.mxu0 0.0
  %927 = vmatmul.mubr.f32.gmra.mrb[0].mxu0 %v199
  %v928 = vpop.f32.mrb[0].mxu0
  %v929 = vadd.f32 0.0, %v928
  %v930 = vpop.f32.mrb[0].mxu0
  %931 = vmatprep.mubr.f32.mxu0 0.0
  %932 = vmatmul.mubr.f32.gmra.mrb[0].mxu0 %v202
  %v933 = vpop.f32.mrb[0].mxu0
  %v934 = vadd.f32 0.0, %v933
  %v935 = vpop.f32.mrb[0].mxu0
  %936 = vmatprep.mubr.f32.mxu0 0.0
  %937 = vmatmul.mubr.f32.gmra.mrb[0].mxu0 %v205
  %v938 = vpop.f32.mrb[0].mxu0
  %v939 = vadd.f32 0.0, %v938
  %v940 = vpop.f32.mrb[0].mxu0
  %941 = vmatprep.mubr.f32.mxu0 0.0
  %942 = vmatmul.mubr.f32.gmra.mrb[0].mxu0 %v208
  %v943 = vpop.f32.mrb[0].mxu0
  %v944 = vadd.f32 0.0, %v943
  %v945 = vpop.f32.mrb[0].mxu0
  %946 = vmatprep.mubr.f32.mxu0 0.0
  %947 = vmatmul.mubr.f32.gmra.mrb[0].mxu0 %v211
  %v948 = vpop.f32.mrb[0].mxu0
  %v949 = vadd.f32 0.0, %v948
  %v950 = vpop.f32.mrb[0].mxu0
  %951 = vmatprep.mubr.f32.mxu0 0.0
  %952 = vmatmul.mubr.f32.gmra.mrb[0].mxu0 %v214
  %v953 = vpop.f32.mrb[0].mxu0
  %v954 = vadd.f32 0.0, %v953
  %v955 = vpop.f32.mrb[0].mxu0
  %956 = vmatprep.mubr.f32.mxu0 0.0
  %957 = vmatmul.mubr.f32.gmra.mrb[0].mxu0 %v217
  %v958 = vpop.f32.mrb[0].mxu0
  %v959 = vadd.f32 0.0, %v958
  %v960 = vpop.f32.mrb[0].mxu0
  %961 = vmatprep.mubr.f32.mxu0 0.0
  %962 = vmatmul.mubr.f32.gmra.mrb[0].mxu0 %v220
  %v963 = vpop.f32.mrb[0].mxu0
  %v964 = vadd.f32 0.0, %v963
  %v965 = vpop.f32.mrb[0].mxu0
  %966 = vmatprep.mubr.f32.mxu0 0.0
  %967 = vmatmul.mubr.f32.gmra.mrb[0].mxu0 %v223
  %v968 = vpop.f32.mrb[0].mxu0
  %v969 = vadd.f32 0.0, %v968
  %v970 = vpop.f32.mrb[0].mxu0
  %971 = vmatprep.mubr.f32.mxu0 0.0
  %972 = vmatmul.mubr.f32.gmra.mrb[0].mxu0 %v226
  %v973 = vpop.f32.mrb[0].mxu0
  %v974 = vadd.f32 0.0, %v973
  %v975 = vpop.f32.mrb[0].mxu0
  %976 = vmatprep.mubr.f32.mxu0 0.0
  %977 = vmatmul.mubr.f32.gmra.mrb[0].mxu0 %v229
  %v978 = vpop.f32.mrb[0].mxu0
  %v979 = vadd.f32 0.0, %v978
  %v980 = vpop.f32.mrb[0].mxu0
  %981 = vmatprep.mubr.f32.mxu0 0.0
  %982 = vmatmul.mubr.f32.gmra.mrb[0].mxu0 %v232
  %v983 = vpop.f32.mrb[0].mxu0
  %v984 = vadd.f32 0.0, %v983
  %v985 = vpop.f32.mrb[0].mxu0
  %986 = vmatprep.mubr.f32.mxu0 0.0
  %987 = vmatmul.mubr.f32.gmra.mrb[0].mxu0 %v235
  %v988 = vpop.f32.mrb[0].mxu0
  %v989 = vadd.f32 0.0, %v988
  %v990 = vpop.f32.mrb[0].mxu0
  %991 = vmatprep.mubr.f32.mxu0 0.0
  %992 = vmatmul.mubr.f32.gmra.mrb[0].mxu0 %v238
  %v993 = vpop.f32.mrb[0].mxu0
  %v994 = vadd.f32 0.0, %v993
  %v995 = vpop.f32.mrb[0].mxu0
  %996 = vmatprep.mubr.f32.mxu0 0.0
  %997 = vmatmul.mubr.f32.gmra.mrb[0].mxu0 %v241
  %v998 = vpop.f32.mrb[0].mxu0
  %v999 = vadd.f32 0.0, %v998
  %v1000 = vpop.f32.mrb[0].mxu0
  %1001 = vmatprep.mubr.f32.mxu0 0.0
  %1002 = vmatmul.mubr.f32.gmra.mrb[0].mxu0 %v244
  %v1003 = vpop.f32.mrb[0].mxu0
  %v1004 = vadd.f32 0.0, %v1003
  %v1005 = vpop.f32.mrb[0].mxu0
  %1006 = vmatprep.mubr.f32.mxu0 0.0
  %1007 = vmatmul.mubr.f32.gmra.mrb[0].mxu0 %v247
  %v1008 = vpop.f32.mrb[0].mxu0
  %v1009 = vadd.f32 0.0, %v1008
  %v1010 = vpop.f32.mrb[0].mxu0
  %1011 = vmatprep.mubr.f32.mxu0 0.0
  %1012 = vmatmul.mubr.f32.gmra.mrb[0].mxu0 %v250
  %v1013 = vpop.f32.mrb[0].mxu0
  %v1014 = vadd.f32 0.0, %v1013
  %v1015 = vpop.f32.mrb[0].mxu0
  %1016 = vmatprep.mubr.f32.mxu0 0.0
  %1017 = vmatmul.mubr.f32.gmra.mrb[0].mxu0 %v253
  %v1018 = vpop.f32.mrb[0].mxu0
  %v1019 = vadd.f32 0.0, %v1018
  %v1020 = vpop.f32.mrb[0].mxu0
  %1021 = vmatprep.mubr.f32.mxu0 0.0
  %1022 = vmatmul.mubr.f32.gmra.mrb[0].mxu0 %v256
  %v1023 = vpop.f32.mrb[0].mxu0
  %v1024 = vadd.f32 0.0, %v1023
  %v1025 = vpop.f32.mrb[0].mxu0
  %1026 = vmatprep.mubr.f32.mxu0 0.0
  %1027 = vmatmul.mubr.f32.gmra.mrb[0].mxu0 %v259
  %v1028 = vpop.f32.mrb[0].mxu0
  %v1029 = vadd.f32 0.0, %v1028
  %v1030 = vpop.f32.mrb[0].mxu0
  %1031 = vmatprep.mubr.f32.mxu0 0.0
  %1032 = vmatmul.mubr.f32.gmra.mrb[0].mxu0 %v262
  %v1033 = vpop.f32.mrb[0].mxu0
  %v1034 = vadd.f32 0.0, %v1033
  %v1035 = vpop.f32.mrb[0].mxu0
  %1036 = vmatprep.mubr.f32.mxu0 0.0
  %1037 = vmatmul.mubr.f32.gmra.mrb[0].mxu0 %v265
  %v1038 = vpop.f32.mrb[0].mxu0
  %v1039 = vadd.f32 0.0, %v1038
  %v1040 = vpop.f32.mrb[0].mxu0
  %1041 = vmatprep.mubr.f32.mxu0 0.0
  %1042 = vmatmul.mubr.f32.gmra.mrb[0].mxu0 %v268
  %v1043 = vpop.f32.mrb[0].mxu0
  %v1044 = vadd.f32 0.0, %v1043
  %v1045 = vpop.f32.mrb[0].mxu0
  %1046 = vmatprep.mubr.f32.mxu0 0.0
  %1047 = vmatmul.mubr.f32.gmra.mrb[0].mxu0 %v271
  %v1048 = vpop.f32.mrb[0].mxu0
  %v1049 = vadd.f32 0.0, %v1048
  %v1050 = vpop.f32.mrb[0].mxu0
  %1051 = vdwg.mxu0
  %v1052 = vmul.f32 %v344, %v344
  %v1053 = vmul.f32 %v349, %v349
  %v1054 = vmul.f32 %v354, %v354
  %v1055 = vmul.f32 %v359, %v359
  %v1056 = vmul.f32 %v364, %v364
  %v1057 = vmul.f32 %v369, %v369
  %v1058 = vmul.f32 %v374, %v374
  %v1059 = vmul.f32 %v379, %v379
  %v1060 = vmul.f32 %v384, %v384
  %v1061 = vmul.f32 %v389, %v389
  %v1062 = vmul.f32 %v394, %v394
  %v1063 = vmul.f32 %v399, %v399
  %v1064 = vmul.f32 %v404, %v404
  %v1065 = vmul.f32 %v409, %v409
  %v1066 = vmul.f32 %v414, %v414
  %v1067 = vmul.f32 %v419, %v419
  %v1068 = vmul.f32 %v424, %v424
  %v1069 = vmul.f32 %v429, %v429
  %v1070 = vmul.f32 %v434, %v434
  %v1071 = vmul.f32 %v439, %v439
  %v1072 = vmul.f32 %v444, %v444
  %v1073 = vmul.f32 %v449, %v449
  %v1074 = vmul.f32 %v454, %v454
  %v1075 = vmul.f32 %v459, %v459
  %v1076 = vmul.f32 %v464, %v464
  %v1077 = vmul.f32 %v469, %v469
  %v1078 = vmul.f32 %v474, %v474
  %v1079 = vmul.f32 %v479, %v479
  %v1080 = vmul.f32 %v484, %v484
  %v1081 = vmul.f32 %v489, %v489
  %v1082 = vmul.f32 %v494, %v494
  %v1083 = vmul.f32 %v499, %v499
  %v1084 = vmul.f32 %v504, %v504
  %v1085 = vmul.f32 %v509, %v509
  %v1086 = vmul.f32 %v514, %v514
  %v1087 = vmul.f32 %v519, %v519
  %v1088 = vmul.f32 %v524, %v524
  %v1089 = vmul.f32 %v529, %v529
  %v1090 = vmul.f32 %v534, %v534
  %v1091 = vmul.f32 %v539, %v539
  %v1092 = vmul.f32 %v544, %v544
  %v1093 = vmul.f32 %v549, %v549
  %v1094 = vmul.f32 %v554, %v554
  %v1095 = vmul.f32 %v559, %v559
  %v1096 = vmul.f32 %v564, %v564
  %v1097 = vmul.f32 %v569, %v569
  %v1098 = vmul.f32 %v574, %v574
  %v1099 = vmul.f32 %v579, %v579
  %v1100 = vmul.f32 %v584, %v584
  %v1101 = vmul.f32 %v589, %v589
  %v1102 = vmul.f32 %v594, %v594
  %v1103 = vmul.f32 %v599, %v599
  %v1104 = vmul.f32 %v604, %v604
  %v1105 = vmul.f32 %v609, %v609
  %v1106 = vmul.f32 %v614, %v614
  %v1107 = vmul.f32 %v619, %v619
  %v1108 = vmul.f32 %v624, %v624
  %v1109 = vmul.f32 %v629, %v629
  %v1110 = vmul.f32 %v634, %v634
  %v1111 = vmul.f32 %v639, %v639
  %v1112 = vmul.f32 %v644, %v644
  %v1113 = vmul.f32 %v649, %v649
  %v1114 = vmul.f32 %v654, %v654
  %v1115 = vmul.f32 %v659, %v659
  %v1116 = vmul.f32 %v734, %v734
  %v1117 = vmul.f32 %v739, %v739
  %v1118 = vmul.f32 %v744, %v744
  %v1119 = vmul.f32 %v749, %v749
  %v1120 = vmul.f32 %v754, %v754
  %v1121 = vmul.f32 %v759, %v759
  %v1122 = vmul.f32 %v764, %v764
  %v1123 = vmul.f32 %v769, %v769
  %v1124 = vmul.f32 %v774, %v774
  %v1125 = vmul.f32 %v779, %v779
  %v1126 = vmul.f32 %v784, %v784
  %v1127 = vmul.f32 %v789, %v789
  %v1128 = vmul.f32 %v794, %v794
  %v1129 = vmul.f32 %v799, %v799
  %v1130 = vmul.f32 %v804, %v804
  %v1131 = vmul.f32 %v809, %v809
  %v1132 = vmul.f32 %v814, %v814
  %v1133 = vmul.f32 %v819, %v819
  %v1134 = vmul.f32 %v824, %v824
  %v1135 = vmul.f32 %v829, %v829
  %v1136 = vmul.f32 %v834, %v834
  %v1137 = vmul.f32 %v839, %v839
  %v1138 = vmul.f32 %v844, %v844
  %v1139 = vmul.f32 %v849, %v849
  %v1140 = vmul.f32 %v854, %v854
  %v1141 = vmul.f32 %v859, %v859
  %v1142 = vmul.f32 %v864, %v864
  %v1143 = vmul.f32 %v869, %v869
  %v1144 = vmul.f32 %v874, %v874
  %v1145 = vmul.f32 %v879, %v879
  %v1146 = vmul.f32 %v884, %v884
  %v1147 = vmul.f32 %v889, %v889
  %v1148 = vmul.f32 %v894, %v894
  %v1149 = vmul.f32 %v899, %v899
  %v1150 = vmul.f32 %v904, %v904
  %v1151 = vmul.f32 %v909, %v909
  %v1152 = vmul.f32 %v914, %v914
  %v1153 = vmul.f32 %v919, %v919
  %v1154 = vmul.f32 %v924, %v924
  %v1155 = vmul.f32 %v929, %v929
  %v1156 = vmul.f32 %v934, %v934
  %v1157 = vmul.f32 %v939, %v939
  %v1158 = vmul.f32 %v944, %v944
  %v1159 = vmul.f32 %v949, %v949
  %v1160 = vmul.f32 %v954, %v954
  %v1161 = vmul.f32 %v959, %v959
  %v1162 = vmul.f32 %v964, %v964
  %v1163 = vmul.f32 %v969, %v969
  %v1164 = vmul.f32 %v974, %v974
  %v1165 = vmul.f32 %v979, %v979
  %v1166 = vmul.f32 %v984, %v984
  %v1167 = vmul.f32 %v989, %v989
  %v1168 = vmul.f32 %v994, %v994
  %v1169 = vmul.f32 %v999, %v999
  %v1170 = vmul.f32 %v1004, %v1004
  %v1171 = vmul.f32 %v1009, %v1009
  %v1172 = vmul.f32 %v1014, %v1014
  %v1173 = vmul.f32 %v1019, %v1019
  %v1174 = vmul.f32 %v1024, %v1024
  %v1175 = vmul.f32 %v1029, %v1029
  %v1176 = vmul.f32 %v1034, %v1034
  %v1177 = vmul.f32 %v1039, %v1039
  %v1178 = vmul.f32 %v1044, %v1044
  %v1179 = vmul.f32 %v1049, %v1049
  %v1180 = vadd.f32 %v1052, %v1116
  %v1181 = vadd.f32 %v1053, %v1117
  %v1182 = vadd.f32 %v1054, %v1118
  %v1183 = vadd.f32 %v1055, %v1119
  %v1184 = vadd.f32 %v1056, %v1120
  %v1185 = vadd.f32 %v1057, %v1121
  %v1186 = vadd.f32 %v1058, %v1122
  %v1187 = vadd.f32 %v1059, %v1123
  %v1188 = vadd.f32 %v1060, %v1124
  %v1189 = vadd.f32 %v1061, %v1125
  %v1190 = vadd.f32 %v1062, %v1126
  %v1191 = vadd.f32 %v1063, %v1127
  %v1192 = vadd.f32 %v1064, %v1128
  %v1193 = vadd.f32 %v1065, %v1129
  %v1194 = vadd.f32 %v1066, %v1130
  %v1195 = vadd.f32 %v1067, %v1131
  %v1196 = vadd.f32 %v1068, %v1132
  %v1197 = vadd.f32 %v1069, %v1133
  %v1198 = vadd.f32 %v1070, %v1134
  %v1199 = vadd.f32 %v1071, %v1135
  %v1200 = vadd.f32 %v1072, %v1136
  %v1201 = vadd.f32 %v1073, %v1137
  %v1202 = vadd.f32 %v1074, %v1138
  %v1203 = vadd.f32 %v1075, %v1139
  %v1204 = vadd.f32 %v1076, %v1140
  %v1205 = vadd.f32 %v1077, %v1141
  %v1206 = vadd.f32 %v1078, %v1142
  %v1207 = vadd.f32 %v1079, %v1143
  %v1208 = vadd.f32 %v1080, %v1144
  %v1209 = vadd.f32 %v1081, %v1145
  %v1210 = vadd.f32 %v1082, %v1146
  %v1211 = vadd.f32 %v1083, %v1147
  %v1212 = vadd.f32 %v1084, %v1148
  %v1213 = vadd.f32 %v1085, %v1149
  %v1214 = vadd.f32 %v1086, %v1150
  %v1215 = vadd.f32 %v1087, %v1151
  %v1216 = vadd.f32 %v1088, %v1152
  %v1217 = vadd.f32 %v1089, %v1153
  %v1218 = vadd.f32 %v1090, %v1154
  %v1219 = vadd.f32 %v1091, %v1155
  %v1220 = vadd.f32 %v1092, %v1156
  %v1221 = vadd.f32 %v1093, %v1157
  %v1222 = vadd.f32 %v1094, %v1158
  %v1223 = vadd.f32 %v1095, %v1159
  %v1224 = vadd.f32 %v1096, %v1160
  %v1225 = vadd.f32 %v1097, %v1161
  %v1226 = vadd.f32 %v1098, %v1162
  %v1227 = vadd.f32 %v1099, %v1163
  %v1228 = vadd.f32 %v1100, %v1164
  %v1229 = vadd.f32 %v1101, %v1165
  %v1230 = vadd.f32 %v1102, %v1166
  %v1231 = vadd.f32 %v1103, %v1167
  %v1232 = vadd.f32 %v1104, %v1168
  %v1233 = vadd.f32 %v1105, %v1169
  %v1234 = vadd.f32 %v1106, %v1170
  %v1235 = vadd.f32 %v1107, %v1171
  %v1236 = vadd.f32 %v1108, %v1172
  %v1237 = vadd.f32 %v1109, %v1173
  %v1238 = vadd.f32 %v1110, %v1174
  %v1239 = vadd.f32 %v1111, %v1175
  %v1240 = vadd.f32 %v1112, %v1176
  %v1241 = vadd.f32 %v1113, %v1177
  %v1242 = vadd.f32 %v1114, %v1178
  %v1243 = vadd.f32 %v1115, %v1179
  %v1244 = vrsqrt.pop %v1180
  %v1245 = vmul.f32 %v1180, %v1244
  %vm1246 = vcmp.eq.f32.partialorder %v1180, inf
  %v1247 = vsel %vm1246, %v1180, %v1245
  %vm1248 = vcmp.eq.f32.partialorder %v1180, 0.0
  %v1249 = vand.u32 %v1180, 2147483648
  %v1250 = vsel %vm1248, %v1249, %v1247
  %v1251 = vrsqrt.pop %v1181
  %v1252 = vmul.f32 %v1181, %v1251
  %vm1253 = vcmp.eq.f32.partialorder %v1181, inf
  %v1254 = vsel %vm1253, %v1181, %v1252
  %vm1255 = vcmp.eq.f32.partialorder %v1181, 0.0
  %v1256 = vand.u32 %v1181, 2147483648
  %v1257 = vsel %vm1255, %v1256, %v1254
  %v1258 = vrsqrt.pop %v1182
  %v1259 = vmul.f32 %v1182, %v1258
  %vm1260 = vcmp.eq.f32.partialorder %v1182, inf
  %v1261 = vsel %vm1260, %v1182, %v1259
  %vm1262 = vcmp.eq.f32.partialorder %v1182, 0.0
  %v1263 = vand.u32 %v1182, 2147483648
  %v1264 = vsel %vm1262, %v1263, %v1261
  %v1265 = vrsqrt.pop %v1183
  %v1266 = vmul.f32 %v1183, %v1265
  %vm1267 = vcmp.eq.f32.partialorder %v1183, inf
  %v1268 = vsel %vm1267, %v1183, %v1266
  %vm1269 = vcmp.eq.f32.partialorder %v1183, 0.0
  %v1270 = vand.u32 %v1183, 2147483648
  %v1271 = vsel %vm1269, %v1270, %v1268
  %v1272 = vrsqrt.pop %v1184
  %v1273 = vmul.f32 %v1184, %v1272
  %vm1274 = vcmp.eq.f32.partialorder %v1184, inf
  %v1275 = vsel %vm1274, %v1184, %v1273
  %vm1276 = vcmp.eq.f32.partialorder %v1184, 0.0
  %v1277 = vand.u32 %v1184, 2147483648
  %v1278 = vsel %vm1276, %v1277, %v1275
  %v1279 = vrsqrt.pop %v1185
  %v1280 = vmul.f32 %v1185, %v1279
  %vm1281 = vcmp.eq.f32.partialorder %v1185, inf
  %v1282 = vsel %vm1281, %v1185, %v1280
  %vm1283 = vcmp.eq.f32.partialorder %v1185, 0.0
  %v1284 = vand.u32 %v1185, 2147483648
  %v1285 = vsel %vm1283, %v1284, %v1282
  %v1286 = vrsqrt.pop %v1186
  %v1287 = vmul.f32 %v1186, %v1286
  %vm1288 = vcmp.eq.f32.partialorder %v1186, inf
  %v1289 = vsel %vm1288, %v1186, %v1287
  %vm1290 = vcmp.eq.f32.partialorder %v1186, 0.0
  %v1291 = vand.u32 %v1186, 2147483648
  %v1292 = vsel %vm1290, %v1291, %v1289
  %v1293 = vrsqrt.pop %v1187
  %v1294 = vmul.f32 %v1187, %v1293
  %vm1295 = vcmp.eq.f32.partialorder %v1187, inf
  %v1296 = vsel %vm1295, %v1187, %v1294
  %vm1297 = vcmp.eq.f32.partialorder %v1187, 0.0
  %v1298 = vand.u32 %v1187, 2147483648
  %v1299 = vsel %vm1297, %v1298, %v1296
  %v1300 = vrsqrt.pop %v1188
  %v1301 = vmul.f32 %v1188, %v1300
  %vm1302 = vcmp.eq.f32.partialorder %v1188, inf
  %v1303 = vsel %vm1302, %v1188, %v1301
  %vm1304 = vcmp.eq.f32.partialorder %v1188, 0.0
  %v1305 = vand.u32 %v1188, 2147483648
  %v1306 = vsel %vm1304, %v1305, %v1303
  %v1307 = vrsqrt.pop %v1189
  %v1308 = vmul.f32 %v1189, %v1307
  %vm1309 = vcmp.eq.f32.partialorder %v1189, inf
  %v1310 = vsel %vm1309, %v1189, %v1308
  %vm1311 = vcmp.eq.f32.partialorder %v1189, 0.0
  %v1312 = vand.u32 %v1189, 2147483648
  %v1313 = vsel %vm1311, %v1312, %v1310
  %v1314 = vrsqrt.pop %v1190
  %v1315 = vmul.f32 %v1190, %v1314
  %vm1316 = vcmp.eq.f32.partialorder %v1190, inf
  %v1317 = vsel %vm1316, %v1190, %v1315
  %vm1318 = vcmp.eq.f32.partialorder %v1190, 0.0
  %v1319 = vand.u32 %v1190, 2147483648
  %v1320 = vsel %vm1318, %v1319, %v1317
  %v1321 = vrsqrt.pop %v1191
  %v1322 = vmul.f32 %v1191, %v1321
  %vm1323 = vcmp.eq.f32.partialorder %v1191, inf
  %v1324 = vsel %vm1323, %v1191, %v1322
  %vm1325 = vcmp.eq.f32.partialorder %v1191, 0.0
  %v1326 = vand.u32 %v1191, 2147483648
  %v1327 = vsel %vm1325, %v1326, %v1324
  %v1328 = vrsqrt.pop %v1192
  %v1329 = vmul.f32 %v1192, %v1328
  %vm1330 = vcmp.eq.f32.partialorder %v1192, inf
  %v1331 = vsel %vm1330, %v1192, %v1329
  %vm1332 = vcmp.eq.f32.partialorder %v1192, 0.0
  %v1333 = vand.u32 %v1192, 2147483648
  %v1334 = vsel %vm1332, %v1333, %v1331
  %v1335 = vrsqrt.pop %v1193
  %v1336 = vmul.f32 %v1193, %v1335
  %vm1337 = vcmp.eq.f32.partialorder %v1193, inf
  %v1338 = vsel %vm1337, %v1193, %v1336
  %vm1339 = vcmp.eq.f32.partialorder %v1193, 0.0
  %v1340 = vand.u32 %v1193, 2147483648
  %v1341 = vsel %vm1339, %v1340, %v1338
  %v1342 = vrsqrt.pop %v1194
  %v1343 = vmul.f32 %v1194, %v1342
  %vm1344 = vcmp.eq.f32.partialorder %v1194, inf
  %v1345 = vsel %vm1344, %v1194, %v1343
  %vm1346 = vcmp.eq.f32.partialorder %v1194, 0.0
  %v1347 = vand.u32 %v1194, 2147483648
  %v1348 = vsel %vm1346, %v1347, %v1345
  %v1349 = vrsqrt.pop %v1195
  %v1350 = vmul.f32 %v1195, %v1349
  %vm1351 = vcmp.eq.f32.partialorder %v1195, inf
  %v1352 = vsel %vm1351, %v1195, %v1350
  %vm1353 = vcmp.eq.f32.partialorder %v1195, 0.0
  %v1354 = vand.u32 %v1195, 2147483648
  %v1355 = vsel %vm1353, %v1354, %v1352
  %v1356 = vrsqrt.pop %v1196
  %v1357 = vmul.f32 %v1196, %v1356
  %vm1358 = vcmp.eq.f32.partialorder %v1196, inf
  %v1359 = vsel %vm1358, %v1196, %v1357
  %vm1360 = vcmp.eq.f32.partialorder %v1196, 0.0
  %v1361 = vand.u32 %v1196, 2147483648
  %v1362 = vsel %vm1360, %v1361, %v1359
  %v1363 = vrsqrt.pop %v1197
  %v1364 = vmul.f32 %v1197, %v1363
  %vm1365 = vcmp.eq.f32.partialorder %v1197, inf
  %v1366 = vsel %vm1365, %v1197, %v1364
  %vm1367 = vcmp.eq.f32.partialorder %v1197, 0.0
  %v1368 = vand.u32 %v1197, 2147483648
  %v1369 = vsel %vm1367, %v1368, %v1366
  %v1370 = vrsqrt.pop %v1198
  %v1371 = vmul.f32 %v1198, %v1370
  %vm1372 = vcmp.eq.f32.partialorder %v1198, inf
  %v1373 = vsel %vm1372, %v1198, %v1371
  %vm1374 = vcmp.eq.f32.partialorder %v1198, 0.0
  %v1375 = vand.u32 %v1198, 2147483648
  %v1376 = vsel %vm1374, %v1375, %v1373
  %v1377 = vrsqrt.pop %v1199
  %v1378 = vmul.f32 %v1199, %v1377
  %vm1379 = vcmp.eq.f32.partialorder %v1199, inf
  %v1380 = vsel %vm1379, %v1199, %v1378
  %vm1381 = vcmp.eq.f32.partialorder %v1199, 0.0
  %v1382 = vand.u32 %v1199, 2147483648
  %v1383 = vsel %vm1381, %v1382, %v1380
  %v1384 = vrsqrt.pop %v1200
  %v1385 = vmul.f32 %v1200, %v1384
  %vm1386 = vcmp.eq.f32.partialorder %v1200, inf
  %v1387 = vsel %vm1386, %v1200, %v1385
  %vm1388 = vcmp.eq.f32.partialorder %v1200, 0.0
  %v1389 = vand.u32 %v1200, 2147483648
  %v1390 = vsel %vm1388, %v1389, %v1387
  %v1391 = vrsqrt.pop %v1201
  %v1392 = vmul.f32 %v1201, %v1391
  %vm1393 = vcmp.eq.f32.partialorder %v1201, inf
  %v1394 = vsel %vm1393, %v1201, %v1392
  %vm1395 = vcmp.eq.f32.partialorder %v1201, 0.0
  %v1396 = vand.u32 %v1201, 2147483648
  %v1397 = vsel %vm1395, %v1396, %v1394
  %v1398 = vrsqrt.pop %v1202
  %v1399 = vmul.f32 %v1202, %v1398
  %vm1400 = vcmp.eq.f32.partialorder %v1202, inf
  %v1401 = vsel %vm1400, %v1202, %v1399
  %vm1402 = vcmp.eq.f32.partialorder %v1202, 0.0
  %v1403 = vand.u32 %v1202, 2147483648
  %v1404 = vsel %vm1402, %v1403, %v1401
  %v1405 = vrsqrt.pop %v1203
  %v1406 = vmul.f32 %v1203, %v1405
  %vm1407 = vcmp.eq.f32.partialorder %v1203, inf
  %v1408 = vsel %vm1407, %v1203, %v1406
  %vm1409 = vcmp.eq.f32.partialorder %v1203, 0.0
  %v1410 = vand.u32 %v1203, 2147483648
  %v1411 = vsel %vm1409, %v1410, %v1408
  %v1412 = vrsqrt.pop %v1204
  %v1413 = vmul.f32 %v1204, %v1412
  %vm1414 = vcmp.eq.f32.partialorder %v1204, inf
  %v1415 = vsel %vm1414, %v1204, %v1413
  %vm1416 = vcmp.eq.f32.partialorder %v1204, 0.0
  %v1417 = vand.u32 %v1204, 2147483648
  %v1418 = vsel %vm1416, %v1417, %v1415
  %v1419 = vrsqrt.pop %v1205
  %v1420 = vmul.f32 %v1205, %v1419
  %vm1421 = vcmp.eq.f32.partialorder %v1205, inf
  %v1422 = vsel %vm1421, %v1205, %v1420
  %vm1423 = vcmp.eq.f32.partialorder %v1205, 0.0
  %v1424 = vand.u32 %v1205, 2147483648
  %v1425 = vsel %vm1423, %v1424, %v1422
  %v1426 = vrsqrt.pop %v1206
  %v1427 = vmul.f32 %v1206, %v1426
  %vm1428 = vcmp.eq.f32.partialorder %v1206, inf
  %v1429 = vsel %vm1428, %v1206, %v1427
  %vm1430 = vcmp.eq.f32.partialorder %v1206, 0.0
  %v1431 = vand.u32 %v1206, 2147483648
  %v1432 = vsel %vm1430, %v1431, %v1429
  %v1433 = vrsqrt.pop %v1207
  %v1434 = vmul.f32 %v1207, %v1433
  %vm1435 = vcmp.eq.f32.partialorder %v1207, inf
  %v1436 = vsel %vm1435, %v1207, %v1434
  %vm1437 = vcmp.eq.f32.partialorder %v1207, 0.0
  %v1438 = vand.u32 %v1207, 2147483648
  %v1439 = vsel %vm1437, %v1438, %v1436
  %v1440 = vrsqrt.pop %v1208
  %v1441 = vmul.f32 %v1208, %v1440
  %vm1442 = vcmp.eq.f32.partialorder %v1208, inf
  %v1443 = vsel %vm1442, %v1208, %v1441
  %vm1444 = vcmp.eq.f32.partialorder %v1208, 0.0
  %v1445 = vand.u32 %v1208, 2147483648
  %v1446 = vsel %vm1444, %v1445, %v1443
  %v1447 = vrsqrt.pop %v1209
  %v1448 = vmul.f32 %v1209, %v1447
  %vm1449 = vcmp.eq.f32.partialorder %v1209, inf
  %v1450 = vsel %vm1449, %v1209, %v1448
  %vm1451 = vcmp.eq.f32.partialorder %v1209, 0.0
  %v1452 = vand.u32 %v1209, 2147483648
  %v1453 = vsel %vm1451, %v1452, %v1450
  %v1454 = vrsqrt.pop %v1210
  %v1455 = vmul.f32 %v1210, %v1454
  %vm1456 = vcmp.eq.f32.partialorder %v1210, inf
  %v1457 = vsel %vm1456, %v1210, %v1455
  %vm1458 = vcmp.eq.f32.partialorder %v1210, 0.0
  %v1459 = vand.u32 %v1210, 2147483648
  %v1460 = vsel %vm1458, %v1459, %v1457
  %v1461 = vrsqrt.pop %v1211
  %v1462 = vmul.f32 %v1211, %v1461
  %vm1463 = vcmp.eq.f32.partialorder %v1211, inf
  %v1464 = vsel %vm1463, %v1211, %v1462
  %vm1465 = vcmp.eq.f32.partialorder %v1211, 0.0
  %v1466 = vand.u32 %v1211, 2147483648
  %v1467 = vsel %vm1465, %v1466, %v1464
  %v1468 = vrsqrt.pop %v1212
  %v1469 = vmul.f32 %v1212, %v1468
  %vm1470 = vcmp.eq.f32.partialorder %v1212, inf
  %v1471 = vsel %vm1470, %v1212, %v1469
  %vm1472 = vcmp.eq.f32.partialorder %v1212, 0.0
  %v1473 = vand.u32 %v1212, 2147483648
  %v1474 = vsel %vm1472, %v1473, %v1471
  %v1475 = vrsqrt.pop %v1213
  %v1476 = vmul.f32 %v1213, %v1475
  %vm1477 = vcmp.eq.f32.partialorder %v1213, inf
  %v1478 = vsel %vm1477, %v1213, %v1476
  %vm1479 = vcmp.eq.f32.partialorder %v1213, 0.0
  %v1480 = vand.u32 %v1213, 2147483648
  %v1481 = vsel %vm1479, %v1480, %v1478
  %v1482 = vrsqrt.pop %v1214
  %v1483 = vmul.f32 %v1214, %v1482
  %vm1484 = vcmp.eq.f32.partialorder %v1214, inf
  %v1485 = vsel %vm1484, %v1214, %v1483
  %vm1486 = vcmp.eq.f32.partialorder %v1214, 0.0
  %v1487 = vand.u32 %v1214, 2147483648
  %v1488 = vsel %vm1486, %v1487, %v1485
  %v1489 = vrsqrt.pop %v1215
  %v1490 = vmul.f32 %v1215, %v1489
  %vm1491 = vcmp.eq.f32.partialorder %v1215, inf
  %v1492 = vsel %vm1491, %v1215, %v1490
  %vm1493 = vcmp.eq.f32.partialorder %v1215, 0.0
  %v1494 = vand.u32 %v1215, 2147483648
  %v1495 = vsel %vm1493, %v1494, %v1492
  %v1496 = vrsqrt.pop %v1216
  %v1497 = vmul.f32 %v1216, %v1496
  %vm1498 = vcmp.eq.f32.partialorder %v1216, inf
  %v1499 = vsel %vm1498, %v1216, %v1497
  %vm1500 = vcmp.eq.f32.partialorder %v1216, 0.0
  %v1501 = vand.u32 %v1216, 2147483648
  %v1502 = vsel %vm1500, %v1501, %v1499
  %v1503 = vrsqrt.pop %v1217
  %v1504 = vmul.f32 %v1217, %v1503
  %vm1505 = vcmp.eq.f32.partialorder %v1217, inf
  %v1506 = vsel %vm1505, %v1217, %v1504
  %vm1507 = vcmp.eq.f32.partialorder %v1217, 0.0
  %v1508 = vand.u32 %v1217, 2147483648
  %v1509 = vsel %vm1507, %v1508, %v1506
  %v1510 = vrsqrt.pop %v1218
  %v1511 = vmul.f32 %v1218, %v1510
  %vm1512 = vcmp.eq.f32.partialorder %v1218, inf
  %v1513 = vsel %vm1512, %v1218, %v1511
  %vm1514 = vcmp.eq.f32.partialorder %v1218, 0.0
  %v1515 = vand.u32 %v1218, 2147483648
  %v1516 = vsel %vm1514, %v1515, %v1513
  %v1517 = vrsqrt.pop %v1219
  %v1518 = vmul.f32 %v1219, %v1517
  %vm1519 = vcmp.eq.f32.partialorder %v1219, inf
  %v1520 = vsel %vm1519, %v1219, %v1518
  %vm1521 = vcmp.eq.f32.partialorder %v1219, 0.0
  %v1522 = vand.u32 %v1219, 2147483648
  %v1523 = vsel %vm1521, %v1522, %v1520
  %v1524 = vrsqrt.pop %v1220
  %v1525 = vmul.f32 %v1220, %v1524
  %vm1526 = vcmp.eq.f32.partialorder %v1220, inf
  %v1527 = vsel %vm1526, %v1220, %v1525
  %vm1528 = vcmp.eq.f32.partialorder %v1220, 0.0
  %v1529 = vand.u32 %v1220, 2147483648
  %v1530 = vsel %vm1528, %v1529, %v1527
  %v1531 = vrsqrt.pop %v1221
  %v1532 = vmul.f32 %v1221, %v1531
  %vm1533 = vcmp.eq.f32.partialorder %v1221, inf
  %v1534 = vsel %vm1533, %v1221, %v1532
  %vm1535 = vcmp.eq.f32.partialorder %v1221, 0.0
  %v1536 = vand.u32 %v1221, 2147483648
  %v1537 = vsel %vm1535, %v1536, %v1534
  %v1538 = vrsqrt.pop %v1222
  %v1539 = vmul.f32 %v1222, %v1538
  %vm1540 = vcmp.eq.f32.partialorder %v1222, inf
  %v1541 = vsel %vm1540, %v1222, %v1539
  %vm1542 = vcmp.eq.f32.partialorder %v1222, 0.0
  %v1543 = vand.u32 %v1222, 2147483648
  %v1544 = vsel %vm1542, %v1543, %v1541
  %v1545 = vrsqrt.pop %v1223
  %v1546 = vmul.f32 %v1223, %v1545
  %vm1547 = vcmp.eq.f32.partialorder %v1223, inf
  %v1548 = vsel %vm1547, %v1223, %v1546
  %vm1549 = vcmp.eq.f32.partialorder %v1223, 0.0
  %v1550 = vand.u32 %v1223, 2147483648
  %v1551 = vsel %vm1549, %v1550, %v1548
  %v1552 = vrsqrt.pop %v1224
  %v1553 = vmul.f32 %v1224, %v1552
  %vm1554 = vcmp.eq.f32.partialorder %v1224, inf
  %v1555 = vsel %vm1554, %v1224, %v1553
  %vm1556 = vcmp.eq.f32.partialorder %v1224, 0.0
  %v1557 = vand.u32 %v1224, 2147483648
  %v1558 = vsel %vm1556, %v1557, %v1555
  %v1559 = vrsqrt.pop %v1225
  %v1560 = vmul.f32 %v1225, %v1559
  %vm1561 = vcmp.eq.f32.partialorder %v1225, inf
  %v1562 = vsel %vm1561, %v1225, %v1560
  %vm1563 = vcmp.eq.f32.partialorder %v1225, 0.0
  %v1564 = vand.u32 %v1225, 2147483648
  %v1565 = vsel %vm1563, %v1564, %v1562
  %v1566 = vrsqrt.pop %v1226
  %v1567 = vmul.f32 %v1226, %v1566
  %vm1568 = vcmp.eq.f32.partialorder %v1226, inf
  %v1569 = vsel %vm1568, %v1226, %v1567
  %vm1570 = vcmp.eq.f32.partialorder %v1226, 0.0
  %v1571 = vand.u32 %v1226, 2147483648
  %v1572 = vsel %vm1570, %v1571, %v1569
  %v1573 = vrsqrt.pop %v1227
  %v1574 = vmul.f32 %v1227, %v1573
  %vm1575 = vcmp.eq.f32.partialorder %v1227, inf
  %v1576 = vsel %vm1575, %v1227, %v1574
  %vm1577 = vcmp.eq.f32.partialorder %v1227, 0.0
  %v1578 = vand.u32 %v1227, 2147483648
  %v1579 = vsel %vm1577, %v1578, %v1576
  %v1580 = vrsqrt.pop %v1228
  %v1581 = vmul.f32 %v1228, %v1580
  %vm1582 = vcmp.eq.f32.partialorder %v1228, inf
  %v1583 = vsel %vm1582, %v1228, %v1581
  %vm1584 = vcmp.eq.f32.partialorder %v1228, 0.0
  %v1585 = vand.u32 %v1228, 2147483648
  %v1586 = vsel %vm1584, %v1585, %v1583
  %v1587 = vrsqrt.pop %v1229
  %v1588 = vmul.f32 %v1229, %v1587
  %vm1589 = vcmp.eq.f32.partialorder %v1229, inf
  %v1590 = vsel %vm1589, %v1229, %v1588
  %vm1591 = vcmp.eq.f32.partialorder %v1229, 0.0
  %v1592 = vand.u32 %v1229, 2147483648
  %v1593 = vsel %vm1591, %v1592, %v1590
  %v1594 = vrsqrt.pop %v1230
  %v1595 = vmul.f32 %v1230, %v1594
  %vm1596 = vcmp.eq.f32.partialorder %v1230, inf
  %v1597 = vsel %vm1596, %v1230, %v1595
  %vm1598 = vcmp.eq.f32.partialorder %v1230, 0.0
  %v1599 = vand.u32 %v1230, 2147483648
  %v1600 = vsel %vm1598, %v1599, %v1597
  %v1601 = vrsqrt.pop %v1231
  %v1602 = vmul.f32 %v1231, %v1601
  %vm1603 = vcmp.eq.f32.partialorder %v1231, inf
  %v1604 = vsel %vm1603, %v1231, %v1602
  %vm1605 = vcmp.eq.f32.partialorder %v1231, 0.0
  %v1606 = vand.u32 %v1231, 2147483648
  %v1607 = vsel %vm1605, %v1606, %v1604
  %v1608 = vrsqrt.pop %v1232
  %v1609 = vmul.f32 %v1232, %v1608
  %vm1610 = vcmp.eq.f32.partialorder %v1232, inf
  %v1611 = vsel %vm1610, %v1232, %v1609
  %vm1612 = vcmp.eq.f32.partialorder %v1232, 0.0
  %v1613 = vand.u32 %v1232, 2147483648
  %v1614 = vsel %vm1612, %v1613, %v1611
  %v1615 = vrsqrt.pop %v1233
  %v1616 = vmul.f32 %v1233, %v1615
  %vm1617 = vcmp.eq.f32.partialorder %v1233, inf
  %v1618 = vsel %vm1617, %v1233, %v1616
  %vm1619 = vcmp.eq.f32.partialorder %v1233, 0.0
  %v1620 = vand.u32 %v1233, 2147483648
  %v1621 = vsel %vm1619, %v1620, %v1618
  %v1622 = vrsqrt.pop %v1234
  %v1623 = vmul.f32 %v1234, %v1622
  %vm1624 = vcmp.eq.f32.partialorder %v1234, inf
  %v1625 = vsel %vm1624, %v1234, %v1623
  %vm1626 = vcmp.eq.f32.partialorder %v1234, 0.0
  %v1627 = vand.u32 %v1234, 2147483648
  %v1628 = vsel %vm1626, %v1627, %v1625
  %v1629 = vrsqrt.pop %v1235
  %v1630 = vmul.f32 %v1235, %v1629
  %vm1631 = vcmp.eq.f32.partialorder %v1235, inf
  %v1632 = vsel %vm1631, %v1235, %v1630
  %vm1633 = vcmp.eq.f32.partialorder %v1235, 0.0
  %v1634 = vand.u32 %v1235, 2147483648
  %v1635 = vsel %vm1633, %v1634, %v1632
  %v1636 = vrsqrt.pop %v1236
  %v1637 = vmul.f32 %v1236, %v1636
  %vm1638 = vcmp.eq.f32.partialorder %v1236, inf
  %v1639 = vsel %vm1638, %v1236, %v1637
  %vm1640 = vcmp.eq.f32.partialorder %v1236, 0.0
  %v1641 = vand.u32 %v1236, 2147483648
  %v1642 = vsel %vm1640, %v1641, %v1639
  %v1643 = vrsqrt.pop %v1237
  %v1644 = vmul.f32 %v1237, %v1643
  %vm1645 = vcmp.eq.f32.partialorder %v1237, inf
  %v1646 = vsel %vm1645, %v1237, %v1644
  %vm1647 = vcmp.eq.f32.partialorder %v1237, 0.0
  %v1648 = vand.u32 %v1237, 2147483648
  %v1649 = vsel %vm1647, %v1648, %v1646
  %v1650 = vrsqrt.pop %v1238
  %v1651 = vmul.f32 %v1238, %v1650
  %vm1652 = vcmp.eq.f32.partialorder %v1238, inf
  %v1653 = vsel %vm1652, %v1238, %v1651
  %vm1654 = vcmp.eq.f32.partialorder %v1238, 0.0
  %v1655 = vand.u32 %v1238, 2147483648
  %v1656 = vsel %vm1654, %v1655, %v1653
  %v1657 = vrsqrt.pop %v1239
  %v1658 = vmul.f32 %v1239, %v1657
  %vm1659 = vcmp.eq.f32.partialorder %v1239, inf
  %v1660 = vsel %vm1659, %v1239, %v1658
  %vm1661 = vcmp.eq.f32.partialorder %v1239, 0.0
  %v1662 = vand.u32 %v1239, 2147483648
  %v1663 = vsel %vm1661, %v1662, %v1660
  %v1664 = vrsqrt.pop %v1240
  %v1665 = vmul.f32 %v1240, %v1664
  %vm1666 = vcmp.eq.f32.partialorder %v1240, inf
  %v1667 = vsel %vm1666, %v1240, %v1665
  %vm1668 = vcmp.eq.f32.partialorder %v1240, 0.0
  %v1669 = vand.u32 %v1240, 2147483648
  %v1670 = vsel %vm1668, %v1669, %v1667
  %v1671 = vrsqrt.pop %v1241
  %v1672 = vmul.f32 %v1241, %v1671
  %vm1673 = vcmp.eq.f32.partialorder %v1241, inf
  %v1674 = vsel %vm1673, %v1241, %v1672
  %vm1675 = vcmp.eq.f32.partialorder %v1241, 0.0
  %v1676 = vand.u32 %v1241, 2147483648
  %v1677 = vsel %vm1675, %v1676, %v1674
  %v1678 = vrsqrt.pop %v1242
  %v1679 = vmul.f32 %v1242, %v1678
  %vm1680 = vcmp.eq.f32.partialorder %v1242, inf
  %v1681 = vsel %vm1680, %v1242, %v1679
  %vm1682 = vcmp.eq.f32.partialorder %v1242, 0.0
  %v1683 = vand.u32 %v1242, 2147483648
  %v1684 = vsel %vm1682, %v1683, %v1681
  %v1685 = vrsqrt.pop %v1243
  %v1686 = vmul.f32 %v1243, %v1685
  %vm1687 = vcmp.eq.f32.partialorder %v1243, inf
  %v1688 = vsel %vm1687, %v1243, %v1686
  %vm1689 = vcmp.eq.f32.partialorder %v1243, 0.0
  %v1690 = vand.u32 %v1243, 2147483648
  %v1691 = vsel %vm1689, %v1690, %v1688
  %vm1692 = vcmask 56320
  %1693 = vst.msk [vmem:[%s3] sm:$0xff] %vm1692, %v1250
  %1694 = vst.msk [vmem:[%s3 + $0x8] sm:$0xff] %vm1692, %v1257
  %1695 = vst.msk [vmem:[%s3 + $0x10] sm:$0xff] %vm1692, %v1264
  %1696 = vst.msk [vmem:[%s3 + $0x18] sm:$0xff] %vm1692, %v1271
  %1697 = vst.msk [vmem:[%s3 + $0x20] sm:$0xff] %vm1692, %v1278
  %1698 = vst.msk [vmem:[%s3 + $0x28] sm:$0xff] %vm1692, %v1285
  %1699 = vst.msk [vmem:[%s3 + $0x30] sm:$0xff] %vm1692, %v1292
  %1700 = vst.msk [vmem:[%s3 + $0x38] sm:$0xff] %vm1692, %v1299
  %1701 = vst.msk [vmem:[%s3 + $0x40] sm:$0xff] %vm1692, %v1306
  %1702 = vst.msk [vmem:[%s3 + $0x48] sm:$0xff] %vm1692, %v1313
  %1703 = vst.msk [vmem:[%s3 + $0x50] sm:$0xff] %vm1692, %v1320
  %1704 = vst.msk [vmem:[%s3 + $0x58] sm:$0xff] %vm1692, %v1327
  %1705 = vst.msk [vmem:[%s3 + $0x60] sm:$0xff] %vm1692, %v1334
  %1706 = vst.msk [vmem:[%s3 + $0x68] sm:$0xff] %vm1692, %v1341
  %1707 = vst.msk [vmem:[%s3 + $0x70] sm:$0xff] %vm1692, %v1348
  %1708 = vst.msk [vmem:[%s3 + $0x78] sm:$0xff] %vm1692, %v1355
  %1709 = vst.msk [vmem:[%s3 + $0x80] sm:$0xff] %vm1692, %v1362
  %1710 = vst.msk [vmem:[%s3 + $0x88] sm:$0xff] %vm1692, %v1369
  %1711 = vst.msk [vmem:[%s3 + $0x90] sm:$0xff] %vm1692, %v1376
  %1712 = vst.msk [vmem:[%s3 + $0x98] sm:$0xff] %vm1692, %v1383
  %1713 = vst.msk [vmem:[%s3 + $0xa0] sm:$0xff] %vm1692, %v1390
  %1714 = vst.msk [vmem:[%s3 + $0xa8] sm:$0xff] %vm1692, %v1397
  %1715 = vst.msk [vmem:[%s3 + $0xb0] sm:$0xff] %vm1692, %v1404
  %1716 = vst.msk [vmem:[%s3 + $0xb8] sm:$0xff] %vm1692, %v1411
  %1717 = vst.msk [vmem:[%s3 + $0xc0] sm:$0xff] %vm1692, %v1418
  %1718 = vst.msk [vmem:[%s3 + $0xc8] sm:$0xff] %vm1692, %v1425
  %1719 = vst.msk [vmem:[%s3 + $0xd0] sm:$0xff] %vm1692, %v1432
  %1720 = vst.msk [vmem:[%s3 + $0xd8] sm:$0xff] %vm1692, %v1439
  %1721 = vst.msk [vmem:[%s3 + $0xe0] sm:$0xff] %vm1692, %v1446
  %1722 = vst.msk [vmem:[%s3 + $0xe8] sm:$0xff] %vm1692, %v1453
  %1723 = vst.msk [vmem:[%s3 + $0xf0] sm:$0xff] %vm1692, %v1460
  %1724 = vst.msk [vmem:[%s3 + $0xf8] sm:$0xff] %vm1692, %v1467
  %1725 = vst.msk [vmem:[%s3 + $0x100] sm:$0xff] %vm1692, %v1474
  %1726 = vst.msk [vmem:[%s3 + $0x108] sm:$0xff] %vm1692, %v1481
  %1727 = vst.msk [vmem:[%s3 + $0x110] sm:$0xff] %vm1692, %v1488
  %1728 = vst.msk [vmem:[%s3 + $0x118] sm:$0xff] %vm1692, %v1495
  %1729 = vst.msk [vmem:[%s3 + $0x120] sm:$0xff] %vm1692, %v1502
  %1730 = vst.msk [vmem:[%s3 + $0x128] sm:$0xff] %vm1692, %v1509
  %1731 = vst.msk [vmem:[%s3 + $0x130] sm:$0xff] %vm1692, %v1516
  %1732 = vst.msk [vmem:[%s3 + $0x138] sm:$0xff] %vm1692, %v1523
  %1733 = vst.msk [vmem:[%s3 + $0x140] sm:$0xff] %vm1692, %v1530
  %1734 = vst.msk [vmem:[%s3 + $0x148] sm:$0xff] %vm1692, %v1537
  %1735 = vst.msk [vmem:[%s3 + $0x150] sm:$0xff] %vm1692, %v1544
  %1736 = vst.msk [vmem:[%s3 + $0x158] sm:$0xff] %vm1692, %v1551
  %1737 = vst.msk [vmem:[%s3 + $0x160] sm:$0xff] %vm1692, %v1558
  %1738 = vst.msk [vmem:[%s3 + $0x168] sm:$0xff] %vm1692, %v1565
  %1739 = vst.msk [vmem:[%s3 + $0x170] sm:$0xff] %vm1692, %v1572
  %1740 = vst.msk [vmem:[%s3 + $0x178] sm:$0xff] %vm1692, %v1579
  %1741 = vst.msk [vmem:[%s3 + $0x180] sm:$0xff] %vm1692, %v1586
  %1742 = vst.msk [vmem:[%s3 + $0x188] sm:$0xff] %vm1692, %v1593
  %1743 = vst.msk [vmem:[%s3 + $0x190] sm:$0xff] %vm1692, %v1600
  %1744 = vst.msk [vmem:[%s3 + $0x198] sm:$0xff] %vm1692, %v1607
  %1745 = vst.msk [vmem:[%s3 + $0x1a0] sm:$0xff] %vm1692, %v1614
  %1746 = vst.msk [vmem:[%s3 + $0x1a8] sm:$0xff] %vm1692, %v1621
  %1747 = vst.msk [vmem:[%s3 + $0x1b0] sm:$0xff] %vm1692, %v1628
  %1748 = vst.msk [vmem:[%s3 + $0x1b8] sm:$0xff] %vm1692, %v1635
  %1749 = vst.msk [vmem:[%s3 + $0x1c0] sm:$0xff] %vm1692, %v1642
  %1750 = vst.msk [vmem:[%s3 + $0x1c8] sm:$0xff] %vm1692, %v1649
  %1751 = vst.msk [vmem:[%s3 + $0x1d0] sm:$0xff] %vm1692, %v1656
  %1752 = vst.msk [vmem:[%s3 + $0x1d8] sm:$0xff] %vm1692, %v1663
  %1753 = vst.msk [vmem:[%s3 + $0x1e0] sm:$0xff] %vm1692, %v1670
  %1754 = vst.msk [vmem:[%s3 + $0x1e8] sm:$0xff] %vm1692, %v1677
  %1755 = vst.msk [vmem:[%s3 + $0x1f0] sm:$0xff] %vm1692, %v1684
  %1756 = vst.msk [vmem:[%s3 + $0x1f8] sm:$0xff] %vm1692, %v1691
  // Predicated region
  $region14: #{forward.21} parent=0 // pred_check
    _
  $region15: #{forward.21} parent=0 // pred_check_branch
    %1758 = sbr.rel (0) target = $region17
  $region16: #{forward.21} parent=0 // pred_region
    _
  $region17: #{forward.21} parent=0 // pred_fallthru
    _
  // Predicated region
  $region18: #{forward.21} parent=0 // pred_check
    _
  $region19: #{forward.21} parent=0 // pred_check_branch
    %1760 = sbr.rel (0) target = $region21
  $region20: #{forward.21} parent=0 // pred_region
    _
  $region21: #{forward.21} parent=0 // pred_fallthru
    _

// kernel: forward.22
$region0: #{forward.22}
  #allocation0 [shape = 'u32[]', space=smem, size = 0x4, offset = 0x4, fixed_abs, tag = 'smem constant byte address 0x4 - core index']
  #allocation1 [shape = 'u32[144,128]{1,0:T(1,128)}', space=vmem, size = 0x12000, scoped, tag = 'internal scratch']
  %s0 = inlined_call_operand.vmem [shape: f32[192,32], index: 0, kind: input, shape index: {}]
  %s1 = inlined_call_operand.vmem [shape: f32[32,32], index: 1, kind: input, shape index: {}]
  %s2 = inlined_call_operand.vmem [shape: f32[1,32], index: 2, kind: input, shape index: {}]
  %s3 = inlined_call_operand.vmem [shape: f32[192,1], index: 3, kind: input, shape index: {}]
  %s4 = inlined_call_operand.vmem [shape: f32[1,32], index: 4, kind: input, shape index: {}]
  %s5 = inlined_call_operand.vmem [shape: f32[1,32], index: 5, kind: input, shape index: {}]
  %s6 = inlined_call_operand.vmem [shape: f32[192,32], index: 6, kind: output, shape index: {}]
  %s7 = sld [smem:[#allocation0]]
  $region34: #{forward.22} parent=0
    _
  %s9 = ssub.s32 1, %s7
  %s10 = scalar_select 0, %s9, %s7
  // Predicated region
  $region2: #{forward.22} parent=0 // pred_check
    _
  $region3: #{forward.22} parent=0 // pred_check_branch
    %12 = sbr.rel (0) target = $region5
  $region4: #{forward.22} parent=0 // pred_region
    _
  $region5: #{forward.22} parent=0 // pred_fallthru
    _
  // Predicated region
  $region6: #{forward.22} parent=0 // pred_check
    _
  $region7: #{forward.22} parent=0 // pred_check_branch
    %14 = sbr.rel (0) target = $region9
  $region8: #{forward.22} parent=0 // pred_region
    _
  $region9: #{forward.22} parent=0 // pred_fallthru
    _
  // Predicated region
  $region10: #{forward.22} parent=0 // pred_check
    _
  $region11: #{forward.22} parent=0 // pred_check_branch
    %16 = sbr.rel (0) target = $region13
  $region12: #{forward.22} parent=0 // pred_region
    _
  $region13: #{forward.22} parent=0 // pred_fallthru
    _
  // Predicated region
  $region14: #{forward.22} parent=0 // pred_check
    _
  $region15: #{forward.22} parent=0 // pred_check_branch
    %18 = sbr.rel (0) target = $region17
  $region16: #{forward.22} parent=0 // pred_region
    _
  $region17: #{forward.22} parent=0 // pred_fallthru
    _
  // Predicated region
  $region18: #{forward.22} parent=0 // pred_check
    _
  $region19: #{forward.22} parent=0 // pred_check_branch
    %20 = sbr.rel (0) target = $region21
  $region20: #{forward.22} parent=0 // pred_region
    _
  $region21: #{forward.22} parent=0 // pred_fallthru
    _
  // Predicated region
  $region22: #{forward.22} parent=0 // pred_check
    _
  $region23: #{forward.22} parent=0 // pred_check_branch
    %22 = sbr.rel (0) target = $region25
  $region24: #{forward.22} parent=0 // pred_region
    _
  $region25: #{forward.22} parent=0 // pred_fallthru
    _
  %v23 = vld [vmem:[%s0] sm:$0xff]
  %v24 = vld [vmem:[%s0 + $0x8] sm:$0xff]
  %v25 = vld [vmem:[%s0 + $0x10] sm:$0xff]
  %v26 = vld [vmem:[%s0 + $0x18] sm:$0xff]
  %v27 = vld [vmem:[%s0 + $0x20] sm:$0xff]
  %v28 = vld [vmem:[%s0 + $0x28] sm:$0xff]
  %v29 = vld [vmem:[%s0 + $0x30] sm:$0xff]
  %v30 = vld [vmem:[%s0 + $0x38] sm:$0xff]
  %v31 = vld [vmem:[%s0 + $0x40] sm:$0xff]
  %v32 = vld [vmem:[%s0 + $0x48] sm:$0xff]
  %v33 = vld [vmem:[%s0 + $0x50] sm:$0xff]
  %v34 = vld [vmem:[%s0 + $0x58] sm:$0xff]
  %v35 = vld [vmem:[%s0 + $0x60] sm:$0xff]
  %v36 = vld [vmem:[%s0 + $0x68] sm:$0xff]
  %v37 = vld [vmem:[%s0 + $0x70] sm:$0xff]
  %v38 = vld [vmem:[%s0 + $0x78] sm:$0xff]
  %v39 = vld [vmem:[%s0 + $0x80] sm:$0xff]
  %v40 = vld [vmem:[%s0 + $0x88] sm:$0xff]
  %v41 = vld [vmem:[%s0 + $0x90] sm:$0xff]
  %v42 = vld [vmem:[%s0 + $0x98] sm:$0xff]
  %v43 = vld [vmem:[%s0 + $0xa0] sm:$0xff]
  %v44 = vld [vmem:[%s0 + $0xa8] sm:$0xff]
  %v45 = vld [vmem:[%s0 + $0xb0] sm:$0xff]
  %v46 = vld [vmem:[%s0 + $0xb8] sm:$0xff]
  %v47 = vld [vmem:[%s1] sm:$0xff]
  %v48 = vld [vmem:[%s1 + $0x8] sm:$0xff]
  %v49 = vld [vmem:[%s1 + $0x10] sm:$0xff]
  %v50 = vld [vmem:[%s1 + $0x18] sm:$0xff]
  %v51 = vld [vmem:[%s2] sm:$0x1]
  %v53 = vlaneseq
  %v54 = vshrl.u32 %v53, 7
  %v55 = vsub.s32 0, %v54
  %v56 = vrot.slane %v51, %v55
  %vm58 = vcmask 261120
  %v60 = vsel %vm58, %v23, 0
  %v63 = vsel %vm58, %v24, 0
  %v66 = vsel %vm58, %v25, 0
  %v69 = vsel %vm58, %v26, 0
  %v72 = vsel %vm58, %v27, 0
  %v75 = vsel %vm58, %v28, 0
  %v78 = vsel %vm58, %v29, 0
  %v81 = vsel %vm58, %v30, 0
  %v84 = vsel %vm58, %v31, 0
  %v87 = vsel %vm58, %v32, 0
  %v90 = vsel %vm58, %v33, 0
  %v93 = vsel %vm58, %v34, 0
  %v96 = vsel %vm58, %v35, 0
  %v99 = vsel %vm58, %v36, 0
  %v102 = vsel %vm58, %v37, 0
  %v105 = vsel %vm58, %v38, 0
  %v108 = vsel %vm58, %v39, 0
  %v111 = vsel %vm58, %v40, 0
  %v114 = vsel %vm58, %v41, 0
  %v117 = vsel %vm58, %v42, 0
  %v120 = vsel %vm58, %v43, 0
  %v123 = vsel %vm58, %v44, 0
  %v126 = vsel %vm58, %v45, 0
  %v129 = vsel %vm58, %v46, 0
  %131 = vmatprep.subr.mxu0 0.0
  %132 = vmatpush1.msra.mxu0 %v47
  %133 = vmatprep.subr.mxu0 0.0
  %134 = vmatpush1.msra.mxu0 %v48
  %135 = vmatprep.subr.mxu0 0.0
  %136 = vmatpush1.msra.mxu0 %v49
  %137 = vmatprep.subr.mxu0 0.0
  %138 = vmatpush1.msra.mxu0 %v50
  %139 = vmatprep.subr.mxu0 0.0
  %140 = vmatpush1.msra.mxu0 0.0
  %141 = vmatprep.subr.mxu0 0.0
  %142 = vmatpush1.msra.mxu0 0.0
  %143 = vmatprep.subr.mxu0 0.0
  %144 = vmatpush1.msra.mxu0 0.0
  %145 = vmatprep.subr.mxu0 0.0
  %146 = vmatpush1.msra.mxu0 0.0
  %147 = vmatprep.subr.mxu0 0.0
  %148 = vmatpush1.msra.mxu0 0.0
  %149 = vmatprep.subr.mxu0 0.0
  %150 = vmatpush1.msra.mxu0 0.0
  %151 = vmatprep.subr.mxu0 0.0
  %152 = vmatpush1.msra.mxu0 0.0
  %153 = vmatprep.subr.mxu0 0.0
  %154 = vmatpush1.msra.mxu0 0.0
  %155 = vmatprep.subr.mxu0 0.0
  %156 = vmatpush1.msra.mxu0 0.0
  %157 = vmatprep.subr.mxu0 0.0
  %158 = vmatpush1.msra.mxu0 0.0
  %159 = vmatprep.subr.mxu0 0.0
  %160 = vmatpush1.msra.mxu0 0.0
  %161 = vmatprep.subr.mxu0 0.0
  %162 = vmatpush1.msra.mxu0 0.0
  %163 = vmatprep.subr.mxu0 0.0
  %164 = vmatpush1.msra.mxu0 0.0
  %165 = vmatprep.subr.mxu0 0.0
  %166 = vmatpush1.msra.mxu0 0.0
  %167 = vmatprep.subr.mxu0 0.0
  %168 = vmatpush1.msra.mxu0 0.0
  %169 = vmatprep.subr.mxu0 0.0
  %170 = vmatpush1.msra.mxu0 0.0
  %171 = vmatprep.subr.mxu0 0.0
  %172 = vmatpush1.msra.mxu0 0.0
  %173 = vmatprep.subr.mxu0 0.0
  %174 = vmatpush1.msra.mxu0 0.0
  %175 = vmatprep.subr.mxu0 0.0
  %176 = vmatpush1.msra.mxu0 0.0
  %177 = vmatprep.subr.mxu0 0.0
  %178 = vmatpush1.msra.mxu0 0.0
  %179 = vmatprep.subr.mxu0 0.0
  %180 = vmatpush1.msra.mxu0 0.0
  %181 = vmatprep.subr.mxu0 0.0
  %182 = vmatpush1.msra.mxu0 0.0
  %183 = vmatprep.subr.mxu0 0.0
  %184 = vmatpush1.msra.mxu0 0.0
  %185 = vmatprep.subr.mxu0 0.0
  %186 = vmatpush1.msra.mxu0 0.0
  %187 = vmatprep.subr.mxu0 0.0
  %188 = vmatpush1.msra.mxu0 0.0
  %189 = vmatprep.subr.mxu0 0.0
  %190 = vmatpush1.msra.mxu0 0.0
  %191 = vmatprep.subr.mxu0 0.0
  %192 = vmatpush1.msra.mxu0 0.0
  %193 = vmatprep.subr.mxu0 0.0
  %194 = vmatpush1.msra.mxu0 0.0
  %195 = vmatprep.mubr.f32.mxu0 0.0
  %196 = vmatmul.mubr.f32.gmra.mrb[0].mxu0 %v60
  %v197 = vpop.f32.mrb[0].mxu0
  %v198 = vadd.f32 %v56, %v197
  %v199 = vpop.f32.mrb[0].mxu0
  %200 = vmatprep.mubr.f32.mxu0 0.0
  %201 = vmatmul.mubr.f32.gmra.mrb[0].mxu0 %v63
  %v202 = vpop.f32.mrb[0].mxu0
  %v203 = vadd.f32 %v56, %v202
  %v204 = vpop.f32.mrb[0].mxu0
  %205 = vmatprep.mubr.f32.mxu0 0.0
  %206 = vmatmul.mubr.f32.gmra.mrb[0].mxu0 %v66
  %v207 = vpop.f32.mrb[0].mxu0
  %v208 = vadd.f32 %v56, %v207
  %v209 = vpop.f32.mrb[0].mxu0
  %210 = vmatprep.mubr.f32.mxu0 0.0
  %211 = vmatmul.mubr.f32.gmra.mrb[0].mxu0 %v69
  %v212 = vpop.f32.mrb[0].mxu0
  %v213 = vadd.f32 %v56, %v212
  %v214 = vpop.f32.mrb[0].mxu0
  %215 = vmatprep.mubr.f32.mxu0 0.0
  %216 = vmatmul.mubr.f32.gmra.mrb[0].mxu0 %v72
  %v217 = vpop.f32.mrb[0].mxu0
  %v218 = vadd.f32 %v56, %v217
  %v219 = vpop.f32.mrb[0].mxu0
  %220 = vmatprep.mubr.f32.mxu0 0.0
  %221 = vmatmul.mubr.f32.gmra.mrb[0].mxu0 %v75
  %v222 = vpop.f32.mrb[0].mxu0
  %v223 = vadd.f32 %v56, %v222
  %v224 = vpop.f32.mrb[0].mxu0
  %225 = vmatprep.mubr.f32.mxu0 0.0
  %226 = vmatmul.mubr.f32.gmra.mrb[0].mxu0 %v78
  %v227 = vpop.f32.mrb[0].mxu0
  %v228 = vadd.f32 %v56, %v227
  %v229 = vpop.f32.mrb[0].mxu0
  %230 = vmatprep.mubr.f32.mxu0 0.0
  %231 = vmatmul.mubr.f32.gmra.mrb[0].mxu0 %v81
  %v232 = vpop.f32.mrb[0].mxu0
  %v233 = vadd.f32 %v56, %v232
  %v234 = vpop.f32.mrb[0].mxu0
  %235 = vmatprep.mubr.f32.mxu0 0.0
  %236 = vmatmul.mubr.f32.gmra.mrb[0].mxu0 %v84
  %v237 = vpop.f32.mrb[0].mxu0
  %v238 = vadd.f32 %v56, %v237
  %v239 = vpop.f32.mrb[0].mxu0
  %240 = vmatprep.mubr.f32.mxu0 0.0
  %241 = vmatmul.mubr.f32.gmra.mrb[0].mxu0 %v87
  %v242 = vpop.f32.mrb[0].mxu0
  %v243 = vadd.f32 %v56, %v242
  %v244 = vpop.f32.mrb[0].mxu0
  %245 = vmatprep.mubr.f32.mxu0 0.0
  %246 = vmatmul.mubr.f32.gmra.mrb[0].mxu0 %v90
  %v247 = vpop.f32.mrb[0].mxu0
  %v248 = vadd.f32 %v56, %v247
  %v249 = vpop.f32.mrb[0].mxu0
  %250 = vmatprep.mubr.f32.mxu0 0.0
  %251 = vmatmul.mubr.f32.gmra.mrb[0].mxu0 %v93
  %v252 = vpop.f32.mrb[0].mxu0
  %v253 = vadd.f32 %v56, %v252
  %v254 = vpop.f32.mrb[0].mxu0
  %255 = vmatprep.mubr.f32.mxu0 0.0
  %256 = vmatmul.mubr.f32.gmra.mrb[0].mxu0 %v96
  %v257 = vpop.f32.mrb[0].mxu0
  %v258 = vadd.f32 %v56, %v257
  %v259 = vpop.f32.mrb[0].mxu0
  %260 = vmatprep.mubr.f32.mxu0 0.0
  %261 = vmatmul.mubr.f32.gmra.mrb[0].mxu0 %v99
  %v262 = vpop.f32.mrb[0].mxu0
  %v263 = vadd.f32 %v56, %v262
  %v264 = vpop.f32.mrb[0].mxu0
  %265 = vmatprep.mubr.f32.mxu0 0.0
  %266 = vmatmul.mubr.f32.gmra.mrb[0].mxu0 %v102
  %v267 = vpop.f32.mrb[0].mxu0
  %v268 = vadd.f32 %v56, %v267
  %v269 = vpop.f32.mrb[0].mxu0
  %270 = vmatprep.mubr.f32.mxu0 0.0
  %271 = vmatmul.mubr.f32.gmra.mrb[0].mxu0 %v105
  %v272 = vpop.f32.mrb[0].mxu0
  %v273 = vadd.f32 %v56, %v272
  %v274 = vpop.f32.mrb[0].mxu0
  %275 = vmatprep.mubr.f32.mxu0 0.0
  %276 = vmatmul.mubr.f32.gmra.mrb[0].mxu0 %v108
  %v277 = vpop.f32.mrb[0].mxu0
  %v278 = vadd.f32 %v56, %v277
  %v279 = vpop.f32.mrb[0].mxu0
  %280 = vmatprep.mubr.f32.mxu0 0.0
  %281 = vmatmul.mubr.f32.gmra.mrb[0].mxu0 %v111
  %v282 = vpop.f32.mrb[0].mxu0
  %v283 = vadd.f32 %v56, %v282
  %v284 = vpop.f32.mrb[0].mxu0
  %285 = vmatprep.mubr.f32.mxu0 0.0
  %286 = vmatmul.mubr.f32.gmra.mrb[0].mxu0 %v114
  %v287 = vpop.f32.mrb[0].mxu0
  %v288 = vadd.f32 %v56, %v287
  %v289 = vpop.f32.mrb[0].mxu0
  %290 = vmatprep.mubr.f32.mxu0 0.0
  %291 = vmatmul.mubr.f32.gmra.mrb[0].mxu0 %v117
  %v292 = vpop.f32.mrb[0].mxu0
  %v293 = vadd.f32 %v56, %v292
  %v294 = vpop.f32.mrb[0].mxu0
  %295 = vmatprep.mubr.f32.mxu0 0.0
  %296 = vmatmul.mubr.f32.gmra.mrb[0].mxu0 %v120
  %v297 = vpop.f32.mrb[0].mxu0
  %v298 = vadd.f32 %v56, %v297
  %v299 = vpop.f32.mrb[0].mxu0
  %300 = vmatprep.mubr.f32.mxu0 0.0
  %301 = vmatmul.mubr.f32.gmra.mrb[0].mxu0 %v123
  %v302 = vpop.f32.mrb[0].mxu0
  %v303 = vadd.f32 %v56, %v302
  %v304 = vpop.f32.mrb[0].mxu0
  %305 = vmatprep.mubr.f32.mxu0 0.0
  %306 = vmatmul.mubr.f32.gmra.mrb[0].mxu0 %v126
  %v307 = vpop.f32.mrb[0].mxu0
  %v308 = vadd.f32 %v56, %v307
  %v309 = vpop.f32.mrb[0].mxu0
  %310 = vmatprep.mubr.f32.mxu0 0.0
  %311 = vmatmul.mubr.f32.gmra.mrb[0].mxu0 %v129
  %v312 = vpop.f32.mrb[0].mxu0
  %v313 = vadd.f32 %v56, %v312
  %v314 = vpop.f32.mrb[0].mxu0
  %315 = vdwg.mxu0
  %v316 = vmax.f32 %v198, 0.0
  %v317 = vmax.f32 %v203, 0.0
  %v318 = vmax.f32 %v208, 0.0
  %v319 = vmax.f32 %v213, 0.0
  %v320 = vmax.f32 %v218, 0.0
  %v321 = vmax.f32 %v223, 0.0
  %v322 = vmax.f32 %v228, 0.0
  %v323 = vmax.f32 %v233, 0.0
  %v324 = vmax.f32 %v238, 0.0
  %v325 = vmax.f32 %v243, 0.0
  %v326 = vmax.f32 %v248, 0.0
  %v327 = vmax.f32 %v253, 0.0
  %v328 = vmax.f32 %v258, 0.0
  %v329 = vmax.f32 %v263, 0.0
  %v330 = vmax.f32 %v268, 0.0
  %v331 = vmax.f32 %v273, 0.0
  %v332 = vmax.f32 %v278, 0.0
  %v333 = vmax.f32 %v283, 0.0
  %v334 = vmax.f32 %v288, 0.0
  %v335 = vmax.f32 %v293, 0.0
  %v336 = vmax.f32 %v298, 0.0
  %v337 = vmax.f32 %v303, 0.0
  %v338 = vmax.f32 %v308, 0.0
  %v339 = vmax.f32 %v313, 0.0
  %v340 = vld [vmem:[%s3] sm:$0xff]
  %v341 = vld [vmem:[%s3 + $0x8] sm:$0xff]
  %v342 = vld [vmem:[%s3 + $0x10] sm:$0xff]
  %v343 = vld [vmem:[%s3 + $0x18] sm:$0xff]
  %v344 = vld [vmem:[%s3 + $0x20] sm:$0xff]
  %v345 = vld [vmem:[%s3 + $0x28] sm:$0xff]
  %v346 = vld [vmem:[%s3 + $0x30] sm:$0xff]
  %v347 = vld [vmem:[%s3 + $0x38] sm:$0xff]
  %v348 = vld [vmem:[%s3 + $0x40] sm:$0xff]
  %v349 = vld [vmem:[%s3 + $0x48] sm:$0xff]
  %v350 = vld [vmem:[%s3 + $0x50] sm:$0xff]
  %v351 = vld [vmem:[%s3 + $0x58] sm:$0xff]
  %v352 = vld [vmem:[%s3 + $0x60] sm:$0xff]
  %v353 = vld [vmem:[%s3 + $0x68] sm:$0xff]
  %v354 = vld [vmem:[%s3 + $0x70] sm:$0xff]
  %v355 = vld [vmem:[%s3 + $0x78] sm:$0xff]
  %v356 = vld [vmem:[%s3 + $0x80] sm:$0xff]
  %v357 = vld [vmem:[%s3 + $0x88] sm:$0xff]
  %v358 = vld [vmem:[%s3 + $0x90] sm:$0xff]
  %v359 = vld [vmem:[%s3 + $0x98] sm:$0xff]
  %v360 = vld [vmem:[%s3 + $0xa0] sm:$0xff]
  %v361 = vld [vmem:[%s3 + $0xa8] sm:$0xff]
  %v362 = vld [vmem:[%s3 + $0xb0] sm:$0xff]
  %v363 = vld [vmem:[%s3 + $0xb8] sm:$0xff]
  %365 = vset.pattern.permute.xlu0 0
  %366 = vperm.xlu0 %365, %v340
  %v367 = vpop.permute.xlu0 %366
  %370 = vset.pattern.permute.xlu0 0
  %371 = vperm.xlu0 %370, %v341
  %v372 = vpop.permute.xlu0 %371
  %375 = vset.pattern.permute.xlu0 0
  %376 = vperm.xlu0 %375, %v342
  %v377 = vpop.permute.xlu0 %376
  %380 = vset.pattern.permute.xlu0 0
  %381 = vperm.xlu0 %380, %v343
  %v382 = vpop.permute.xlu0 %381
  %385 = vset.pattern.permute.xlu0 0
  %386 = vperm.xlu0 %385, %v344
  %v387 = vpop.permute.xlu0 %386
  %390 = vset.pattern.permute.xlu0 0
  %391 = vperm.xlu0 %390, %v345
  %v392 = vpop.permute.xlu0 %391
  %395 = vset.pattern.permute.xlu0 0
  %396 = vperm.xlu0 %395, %v346
  %v397 = vpop.permute.xlu0 %396
  %400 = vset.pattern.permute.xlu0 0
  %401 = vperm.xlu0 %400, %v347
  %v402 = vpop.permute.xlu0 %401
  %405 = vset.pattern.permute.xlu0 0
  %406 = vperm.xlu0 %405, %v348
  %v407 = vpop.permute.xlu0 %406
  %410 = vset.pattern.permute.xlu0 0
  %411 = vperm.xlu0 %410, %v349
  %v412 = vpop.permute.xlu0 %411
  %415 = vset.pattern.permute.xlu0 0
  %416 = vperm.xlu0 %415, %v350
  %v417 = vpop.permute.xlu0 %416
  %420 = vset.pattern.permute.xlu0 0
  %421 = vperm.xlu0 %420, %v351
  %v422 = vpop.permute.xlu0 %421
  %425 = vset.pattern.permute.xlu0 0
  %426 = vperm.xlu0 %425, %v352
  %v427 = vpop.permute.xlu0 %426
  %430 = vset.pattern.permute.xlu0 0
  %431 = vperm.xlu0 %430, %v353
  %v432 = vpop.permute.xlu0 %431
  %435 = vset.pattern.permute.xlu0 0
  %436 = vperm.xlu0 %435, %v354
  %v437 = vpop.permute.xlu0 %436
  %440 = vset.pattern.permute.xlu0 0
  %441 = vperm.xlu0 %440, %v355
  %v442 = vpop.permute.xlu0 %441
  %445 = vset.pattern.permute.xlu0 0
  %446 = vperm.xlu0 %445, %v356
  %v447 = vpop.permute.xlu0 %446
  %450 = vset.pattern.permute.xlu0 0
  %451 = vperm.xlu0 %450, %v357
  %v452 = vpop.permute.xlu0 %451
  %455 = vset.pattern.permute.xlu0 0
  %456 = vperm.xlu0 %455, %v358
  %v457 = vpop.permute.xlu0 %456
  %460 = vset.pattern.permute.xlu0 0
  %461 = vperm.xlu0 %460, %v359
  %v462 = vpop.permute.xlu0 %461
  %465 = vset.pattern.permute.xlu0 0
  %466 = vperm.xlu0 %465, %v360
  %v467 = vpop.permute.xlu0 %466
  %470 = vset.pattern.permute.xlu0 0
  %471 = vperm.xlu0 %470, %v361
  %v472 = vpop.permute.xlu0 %471
  %475 = vset.pattern.permute.xlu0 0
  %476 = vperm.xlu0 %475, %v362
  %v477 = vpop.permute.xlu0 %476
  %480 = vset.pattern.permute.xlu0 0
  %481 = vperm.xlu0 %480, %v363
  %v482 = vpop.permute.xlu0 %481
  %v484 = vmul.f32 %v316, %v367
  %v485 = vmul.f32 %v317, %v372
  %v486 = vmul.f32 %v318, %v377
  %v487 = vmul.f32 %v319, %v382
  %v488 = vmul.f32 %v320, %v387
  %v489 = vmul.f32 %v321, %v392
  %v490 = vmul.f32 %v322, %v397
  %v491 = vmul.f32 %v323, %v402
  %v492 = vmul.f32 %v324, %v407
  %v493 = vmul.f32 %v325, %v412
  %v494 = vmul.f32 %v326, %v417
  %v495 = vmul.f32 %v327, %v422
  %v496 = vmul.f32 %v328, %v427
  %v497 = vmul.f32 %v329, %v432
  %v498 = vmul.f32 %v330, %v437
  %v499 = vmul.f32 %v331, %v442
  %v500 = vmul.f32 %v332, %v447
  %v501 = vmul.f32 %v333, %v452
  %v502 = vmul.f32 %v334, %v457
  %v503 = vmul.f32 %v335, %v462
  %v504 = vmul.f32 %v336, %v467
  %v505 = vmul.f32 %v337, %v472
  %v506 = vmul.f32 %v338, %v477
  %v507 = vmul.f32 %v339, %v482
  %v508 = vadd.f32 %v484, %v23
  %v509 = vadd.f32 %v485, %v24
  %v510 = vadd.f32 %v486, %v25
  %v511 = vadd.f32 %v487, %v26
  %v512 = vadd.f32 %v488, %v27
  %v513 = vadd.f32 %v489, %v28
  %v514 = vadd.f32 %v490, %v29
  %v515 = vadd.f32 %v491, %v30
  %v516 = vadd.f32 %v492, %v31
  %v517 = vadd.f32 %v493, %v32
  %v518 = vadd.f32 %v494, %v33
  %v519 = vadd.f32 %v495, %v34
  %v520 = vadd.f32 %v496, %v35
  %v521 = vadd.f32 %v497, %v36
  %v522 = vadd.f32 %v498, %v37
  %v523 = vadd.f32 %v499, %v38
  %v524 = vadd.f32 %v500, %v39
  %v525 = vadd.f32 %v501, %v40
  %v526 = vadd.f32 %v502, %v41
  %v527 = vadd.f32 %v503, %v42
  %v528 = vadd.f32 %v504, %v43
  %v529 = vadd.f32 %v505, %v44
  %v530 = vadd.f32 %v506, %v45
  %v531 = vadd.f32 %v507, %v46
  %v532 = vsel %vm58, %v508, 0.0
  %533 = vadd.xlane.f32.xlu0 %v532
  %v534 = vpop.xlane.xlu0 %533
  %v535 = vsel %vm58, %v509, 0.0
  %536 = vadd.xlane.f32.xlu0 %v535
  %v537 = vpop.xlane.xlu0 %536
  %v538 = vsel %vm58, %v510, 0.0
  %539 = vadd.xlane.f32.xlu0 %v538
  %v540 = vpop.xlane.xlu0 %539
  %v541 = vsel %vm58, %v511, 0.0
  %542 = vadd.xlane.f32.xlu0 %v541
  %v543 = vpop.xlane.xlu0 %542
  %v544 = vsel %vm58, %v512, 0.0
  %545 = vadd.xlane.f32.xlu0 %v544
  %v546 = vpop.xlane.xlu0 %545
  %v547 = vsel %vm58, %v513, 0.0
  %548 = vadd.xlane.f32.xlu0 %v547
  %v549 = vpop.xlane.xlu0 %548
  %v550 = vsel %vm58, %v514, 0.0
  %551 = vadd.xlane.f32.xlu0 %v550
  %v552 = vpop.xlane.xlu0 %551
  %v553 = vsel %vm58, %v515, 0.0
  %554 = vadd.xlane.f32.xlu0 %v553
  %v555 = vpop.xlane.xlu0 %554
  %v556 = vsel %vm58, %v516, 0.0
  %557 = vadd.xlane.f32.xlu0 %v556
  %v558 = vpop.xlane.xlu0 %557
  %v559 = vsel %vm58, %v517, 0.0
  %560 = vadd.xlane.f32.xlu0 %v559
  %v561 = vpop.xlane.xlu0 %560
  %v562 = vsel %vm58, %v518, 0.0
  %563 = vadd.xlane.f32.xlu0 %v562
  %v564 = vpop.xlane.xlu0 %563
  %v565 = vsel %vm58, %v519, 0.0
  %566 = vadd.xlane.f32.xlu0 %v565
  %v567 = vpop.xlane.xlu0 %566
  %v568 = vsel %vm58, %v520, 0.0
  %569 = vadd.xlane.f32.xlu0 %v568
  %v570 = vpop.xlane.xlu0 %569
  %v571 = vsel %vm58, %v521, 0.0
  %572 = vadd.xlane.f32.xlu0 %v571
  %v573 = vpop.xlane.xlu0 %572
  %v574 = vsel %vm58, %v522, 0.0
  %575 = vadd.xlane.f32.xlu0 %v574
  %v576 = vpop.xlane.xlu0 %575
  %v577 = vsel %vm58, %v523, 0.0
  %578 = vadd.xlane.f32.xlu0 %v577
  %v579 = vpop.xlane.xlu0 %578
  %v580 = vsel %vm58, %v524, 0.0
  %581 = vadd.xlane.f32.xlu0 %v580
  %v582 = vpop.xlane.xlu0 %581
  %v583 = vsel %vm58, %v525, 0.0
  %584 = vadd.xlane.f32.xlu0 %v583
  %v585 = vpop.xlane.xlu0 %584
  %v586 = vsel %vm58, %v526, 0.0
  %587 = vadd.xlane.f32.xlu0 %v586
  %v588 = vpop.xlane.xlu0 %587
  %v589 = vsel %vm58, %v527, 0.0
  %590 = vadd.xlane.f32.xlu0 %v589
  %v591 = vpop.xlane.xlu0 %590
  %v592 = vsel %vm58, %v528, 0.0
  %593 = vadd.xlane.f32.xlu0 %v592
  %v594 = vpop.xlane.xlu0 %593
  %v595 = vsel %vm58, %v529, 0.0
  %596 = vadd.xlane.f32.xlu0 %v595
  %v597 = vpop.xlane.xlu0 %596
  %v598 = vsel %vm58, %v530, 0.0
  %599 = vadd.xlane.f32.xlu0 %v598
  %v600 = vpop.xlane.xlu0 %599
  %v601 = vsel %vm58, %v531, 0.0
  %602 = vadd.xlane.f32.xlu0 %v601
  %v603 = vpop.xlane.xlu0 %602
  %v604 = vrcp.pop 32.0
  %v605 = vmul.f32 %v534, %v604
  %v606 = vmul.f32 %v537, %v604
  %v607 = vmul.f32 %v540, %v604
  %v608 = vmul.f32 %v543, %v604
  %v609 = vmul.f32 %v546, %v604
  %v610 = vmul.f32 %v549, %v604
  %v611 = vmul.f32 %v552, %v604
  %v612 = vmul.f32 %v555, %v604
  %v613 = vmul.f32 %v558, %v604
  %v614 = vmul.f32 %v561, %v604
  %v615 = vmul.f32 %v564, %v604
  %v616 = vmul.f32 %v567, %v604
  %v617 = vmul.f32 %v570, %v604
  %v618 = vmul.f32 %v573, %v604
  %v619 = vmul.f32 %v576, %v604
  %v620 = vmul.f32 %v579, %v604
  %v621 = vmul.f32 %v582, %v604
  %v622 = vmul.f32 %v585, %v604
  %v623 = vmul.f32 %v588, %v604
  %v624 = vmul.f32 %v591, %v604
  %v625 = vmul.f32 %v594, %v604
  %v626 = vmul.f32 %v597, %v604
  %v627 = vmul.f32 %v600, %v604
  %v628 = vmul.f32 %v603, %v604
  %v629 = vsub.f32 %v508, %v605
  %v630 = vsub.f32 %v509, %v606
  %v631 = vsub.f32 %v510, %v607
  %v632 = vsub.f32 %v511, %v608
  %v633 = vsub.f32 %v512, %v609
  %v634 = vsub.f32 %v513, %v610
  %v635 = vsub.f32 %v514, %v611
  %v636 = vsub.f32 %v515, %v612
  %v637 = vsub.f32 %v516, %v613
  %v638 = vsub.f32 %v517, %v614
  %v639 = vsub.f32 %v518, %v615
  %v640 = vsub.f32 %v519, %v616
  %v641 = vsub.f32 %v520, %v617
  %v642 = vsub.f32 %v521, %v618
  %v643 = vsub.f32 %v522, %v619
  %v644 = vsub.f32 %v523, %v620
  %v645 = vsub.f32 %v524, %v621
  %v646 = vsub.f32 %v525, %v622
  %v647 = vsub.f32 %v526, %v623
  %v648 = vsub.f32 %v527, %v624
  %v649 = vsub.f32 %v528, %v625
  %v650 = vsub.f32 %v529, %v626
  %v651 = vsub.f32 %v530, %v627
  %v652 = vsub.f32 %v531, %v628
  %v653 = vmul.f32 %v629, %v629
  %v654 = vmul.f32 %v630, %v630
  %v655 = vmul.f32 %v631, %v631
  %v656 = vmul.f32 %v632, %v632
  %v657 = vmul.f32 %v633, %v633
  %v658 = vmul.f32 %v634, %v634
  %v659 = vmul.f32 %v635, %v635
  %v660 = vmul.f32 %v636, %v636
  %v661 = vmul.f32 %v637, %v637
  %v662 = vmul.f32 %v638, %v638
  %v663 = vmul.f32 %v639, %v639
  %v664 = vmul.f32 %v640, %v640
  %v665 = vmul.f32 %v641, %v641
  %v666 = vmul.f32 %v642, %v642
  %v667 = vmul.f32 %v643, %v643
  %v668 = vmul.f32 %v644, %v644
  %v669 = vmul.f32 %v645, %v645
  %v670 = vmul.f32 %v646, %v646
  %v671 = vmul.f32 %v647, %v647
  %v672 = vmul.f32 %v648, %v648
  %v673 = vmul.f32 %v649, %v649
  %v674 = vmul.f32 %v650, %v650
  %v675 = vmul.f32 %v651, %v651
  %v676 = vmul.f32 %v652, %v652
  %v677 = vsel %vm58, %v653, 0.0
  %678 = vadd.xlane.f32.xlu0 %v677
  %v679 = vpop.xlane.xlu0 %678
  %v680 = vsel %vm58, %v654, 0.0
  %681 = vadd.xlane.f32.xlu0 %v680
  %v682 = vpop.xlane.xlu0 %681
  %v683 = vsel %vm58, %v655, 0.0
  %684 = vadd.xlane.f32.xlu0 %v683
  %v685 = vpop.xlane.xlu0 %684
  %v686 = vsel %vm58, %v656, 0.0
  %687 = vadd.xlane.f32.xlu0 %v686
  %v688 = vpop.xlane.xlu0 %687
  %v689 = vsel %vm58, %v657, 0.0
  %690 = vadd.xlane.f32.xlu0 %v689
  %v691 = vpop.xlane.xlu0 %690
  %v692 = vsel %vm58, %v658, 0.0
  %693 = vadd.xlane.f32.xlu0 %v692
  %v694 = vpop.xlane.xlu0 %693
  %v695 = vsel %vm58, %v659, 0.0
  %696 = vadd.xlane.f32.xlu0 %v695
  %v697 = vpop.xlane.xlu0 %696
  %v698 = vsel %vm58, %v660, 0.0
  %699 = vadd.xlane.f32.xlu0 %v698
  %v700 = vpop.xlane.xlu0 %699
  %v701 = vsel %vm58, %v661, 0.0
  %702 = vadd.xlane.f32.xlu0 %v701
  %v703 = vpop.xlane.xlu0 %702
  %v704 = vsel %vm58, %v662, 0.0
  %705 = vadd.xlane.f32.xlu0 %v704
  %v706 = vpop.xlane.xlu0 %705
  %v707 = vsel %vm58, %v663, 0.0
  %708 = vadd.xlane.f32.xlu0 %v707
  %v709 = vpop.xlane.xlu0 %708
  %v710 = vsel %vm58, %v664, 0.0
  %711 = vadd.xlane.f32.xlu0 %v710
  %v712 = vpop.xlane.xlu0 %711
  %v713 = vsel %vm58, %v665, 0.0
  %714 = vadd.xlane.f32.xlu0 %v713
  %v715 = vpop.xlane.xlu0 %714
  %v716 = vsel %vm58, %v666, 0.0
  %717 = vadd.xlane.f32.xlu0 %v716
  %v718 = vpop.xlane.xlu0 %717
  %v719 = vsel %vm58, %v667, 0.0
  %720 = vadd.xlane.f32.xlu0 %v719
  %v721 = vpop.xlane.xlu0 %720
  %v722 = vsel %vm58, %v668, 0.0
  %723 = vadd.xlane.f32.xlu0 %v722
  %v724 = vpop.xlane.xlu0 %723
  %v725 = vsel %vm58, %v669, 0.0
  %726 = vadd.xlane.f32.xlu0 %v725
  %v727 = vpop.xlane.xlu0 %726
  %v728 = vsel %vm58, %v670, 0.0
  %729 = vadd.xlane.f32.xlu0 %v728
  %v730 = vpop.xlane.xlu0 %729
  %v731 = vsel %vm58, %v671, 0.0
  %732 = vadd.xlane.f32.xlu0 %v731
  %v733 = vpop.xlane.xlu0 %732
  %v734 = vsel %vm58, %v672, 0.0
  %735 = vadd.xlane.f32.xlu0 %v734
  %v736 = vpop.xlane.xlu0 %735
  %v737 = vsel %vm58, %v673, 0.0
  %738 = vadd.xlane.f32.xlu0 %v737
  %v739 = vpop.xlane.xlu0 %738
  %v740 = vsel %vm58, %v674, 0.0
  %741 = vadd.xlane.f32.xlu0 %v740
  %v742 = vpop.xlane.xlu0 %741
  %v743 = vsel %vm58, %v675, 0.0
  %744 = vadd.xlane.f32.xlu0 %v743
  %v745 = vpop.xlane.xlu0 %744
  %v746 = vsel %vm58, %v676, 0.0
  %747 = vadd.xlane.f32.xlu0 %v746
  %v748 = vpop.xlane.xlu0 %747
  %v749 = vmul.f32 %v679, %v604
  %v750 = vmul.f32 %v682, %v604
  %v751 = vmul.f32 %v685, %v604
  %v752 = vmul.f32 %v688, %v604
  %v753 = vmul.f32 %v691, %v604
  %v754 = vmul.f32 %v694, %v604
  %v755 = vmul.f32 %v697, %v604
  %v756 = vmul.f32 %v700, %v604
  %v757 = vmul.f32 %v703, %v604
  %v758 = vmul.f32 %v706, %v604
  %v759 = vmul.f32 %v709, %v604
  %v760 = vmul.f32 %v712, %v604
  %v761 = vmul.f32 %v715, %v604
  %v762 = vmul.f32 %v718, %v604
  %v763 = vmul.f32 %v721, %v604
  %v764 = vmul.f32 %v724, %v604
  %v765 = vmul.f32 %v727, %v604
  %v766 = vmul.f32 %v730, %v604
  %v767 = vmul.f32 %v733, %v604
  %v768 = vmul.f32 %v736, %v604
  %v769 = vmul.f32 %v739, %v604
  %v770 = vmul.f32 %v742, %v604
  %v771 = vmul.f32 %v745, %v604
  %v772 = vmul.f32 %v748, %v604
  %v773 = vadd.f32 %v749, 1e-05
  %v774 = vadd.f32 %v750, 1e-05
  %v775 = vadd.f32 %v751, 1e-05
  %v776 = vadd.f32 %v752, 1e-05
  %v777 = vadd.f32 %v753, 1e-05
  %v778 = vadd.f32 %v754, 1e-05
  %v779 = vadd.f32 %v755, 1e-05
  %v780 = vadd.f32 %v756, 1e-05
  %v781 = vadd.f32 %v757, 1e-05
  %v782 = vadd.f32 %v758, 1e-05
  %v783 = vadd.f32 %v759, 1e-05
  %v784 = vadd.f32 %v760, 1e-05
  %v785 = vadd.f32 %v761, 1e-05
  %v786 = vadd.f32 %v762, 1e-05
  %v787 = vadd.f32 %v763, 1e-05
  %v788 = vadd.f32 %v764, 1e-05
  %v789 = vadd.f32 %v765, 1e-05
  %v790 = vadd.f32 %v766, 1e-05
  %v791 = vadd.f32 %v767, 1e-05
  %v792 = vadd.f32 %v768, 1e-05
  %v793 = vadd.f32 %v769, 1e-05
  %v794 = vadd.f32 %v770, 1e-05
  %v795 = vadd.f32 %v771, 1e-05
  %v796 = vadd.f32 %v772, 1e-05
  %v797 = vrsqrt.pop %v773
  %v798 = vrsqrt.pop %v774
  %v799 = vrsqrt.pop %v775
  %v800 = vrsqrt.pop %v776
  %v801 = vrsqrt.pop %v777
  %v802 = vrsqrt.pop %v778
  %v803 = vrsqrt.pop %v779
  %v804 = vrsqrt.pop %v780
  %v805 = vrsqrt.pop %v781
  %v806 = vrsqrt.pop %v782
  %v807 = vrsqrt.pop %v783
  %v808 = vrsqrt.pop %v784
  %v809 = vrsqrt.pop %v785
  %v810 = vrsqrt.pop %v786
  %v811 = vrsqrt.pop %v787
  %v812 = vrsqrt.pop %v788
  %v813 = vrsqrt.pop %v789
  %v814 = vrsqrt.pop %v790
  %v815 = vrsqrt.pop %v791
  %v816 = vrsqrt.pop %v792
  %v817 = vrsqrt.pop %v793
  %v818 = vrsqrt.pop %v794
  %v819 = vrsqrt.pop %v795
  %v820 = vrsqrt.pop %v796
  %v821 = vmul.f32 %v629, %v797
  %v822 = vmul.f32 %v630, %v798
  %v823 = vmul.f32 %v631, %v799
  %v824 = vmul.f32 %v632, %v800
  %v825 = vmul.f32 %v633, %v801
  %v826 = vmul.f32 %v634, %v802
  %v827 = vmul.f32 %v635, %v803
  %v828 = vmul.f32 %v636, %v804
  %v829 = vmul.f32 %v637, %v805
  %v830 = vmul.f32 %v638, %v806
  %v831 = vmul.f32 %v639, %v807
  %v832 = vmul.f32 %v640, %v808
  %v833 = vmul.f32 %v641, %v809
  %v834 = vmul.f32 %v642, %v810
  %v835 = vmul.f32 %v643, %v811
  %v836 = vmul.f32 %v644, %v812
  %v837 = vmul.f32 %v645, %v813
  %v838 = vmul.f32 %v646, %v814
  %v839 = vmul.f32 %v647, %v815
  %v840 = vmul.f32 %v648, %v816
  %v841 = vmul.f32 %v649, %v817
  %v842 = vmul.f32 %v650, %v818
  %v843 = vmul.f32 %v651, %v819
  %v844 = vmul.f32 %v652, %v820
  %v845 = vld [vmem:[%s4] sm:$0x1]
  %v847 = vlaneseq
  %v848 = vshrl.u32 %v847, 7
  %v849 = vsub.s32 0, %v848
  %v850 = vrot.slane %v845, %v849
  %v852 = vmul.f32 %v821, %v850
  %v853 = vmul.f32 %v822, %v850
  %v854 = vmul.f32 %v823, %v850
  %v855 = vmul.f32 %v824, %v850
  %v856 = vmul.f32 %v825, %v850
  %v857 = vmul.f32 %v826, %v850
  %v858 = vmul.f32 %v827, %v850
  %v859 = vmul.f32 %v828, %v850
  %v860 = vmul.f32 %v829, %v850
  %v861 = vmul.f32 %v830, %v850
  %v862 = vmul.f32 %v831, %v850
  %v863 = vmul.f32 %v832, %v850
  %v864 = vmul.f32 %v833, %v850
  %v865 = vmul.f32 %v834, %v850
  %v866 = vmul.f32 %v835, %v850
  %v867 = vmul.f32 %v836, %v850
  %v868 = vmul.f32 %v837, %v850
  %v869 = vmul.f32 %v838, %v850
  %v870 = vmul.f32 %v839, %v850
  %v871 = vmul.f32 %v840, %v850
  %v872 = vmul.f32 %v841, %v850
  %v873 = vmul.f32 %v842, %v850
  %v874 = vmul.f32 %v843, %v850
  %v875 = vmul.f32 %v844, %v850
  %v876 = vld [vmem:[%s5] sm:$0x1]
  %v878 = vlaneseq
  %v879 = vshrl.u32 %v878, 7
  %v880 = vsub.s32 0, %v879
  %v881 = vrot.slane %v876, %v880
  %v883 = vadd.f32 %v852, %v881
  %v884 = vadd.f32 %v853, %v881
  %v885 = vadd.f32 %v854, %v881
  %v886 = vadd.f32 %v855, %v881
  %v887 = vadd.f32 %v856, %v881
  %v888 = vadd.f32 %v857, %v881
  %v889 = vadd.f32 %v858, %v881
  %v890 = vadd.f32 %v859, %v881
  %v891 = vadd.f32 %v860, %v881
  %v892 = vadd.f32 %v861, %v881
  %v893 = vadd.f32 %v862, %v881
  %v894 = vadd.f32 %v863, %v881
  %v895 = vadd.f32 %v864, %v881
  %v896 = vadd.f32 %v865, %v881
  %v897 = vadd.f32 %v866, %v881
  %v898 = vadd.f32 %v867, %v881
  %v899 = vadd.f32 %v868, %v881
  %v900 = vadd.f32 %v869, %v881
  %v901 = vadd.f32 %v870, %v881
  %v902 = vadd.f32 %v871, %v881
  %v903 = vadd.f32 %v872, %v881
  %v904 = vadd.f32 %v873, %v881
  %v905 = vadd.f32 %v874, %v881
  %v906 = vadd.f32 %v875, %v881
  %907 = vst.msk [vmem:[%s6] sm:$0xff] %vm58, %v883
  %908 = vst.msk [vmem:[%s6 + $0x8] sm:$0xff] %vm58, %v884
  %909 = vst.msk [vmem:[%s6 + $0x10] sm:$0xff] %vm58, %v885
  %910 = vst.msk [vmem:[%s6 + $0x18] sm:$0xff] %vm58, %v886
  %911 = vst.msk [vmem:[%s6 + $0x20] sm:$0xff] %vm58, %v887
  %912 = vst.msk [vmem:[%s6 + $0x28] sm:$0xff] %vm58, %v888
  %913 = vst.msk [vmem:[%s6 + $0x30] sm:$0xff] %vm58, %v889
  %914 = vst.msk [vmem:[%s6 + $0x38] sm:$0xff] %vm58, %v890
  %915 = vst.msk [vmem:[%s6 + $0x40] sm:$0xff] %vm58, %v891
  %916 = vst.msk [vmem:[%s6 + $0x48] sm:$0xff] %vm58, %v892
  %917 = vst.msk [vmem:[%s6 + $0x50] sm:$0xff] %vm58, %v893
  %918 = vst.msk [vmem:[%s6 + $0x58] sm:$0xff] %vm58, %v894
  %919 = vst.msk [vmem:[%s6 + $0x60] sm:$0xff] %vm58, %v895
  %920 = vst.msk [vmem:[%s6 + $0x68] sm:$0xff] %vm58, %v896
  %921 = vst.msk [vmem:[%s6 + $0x70] sm:$0xff] %vm58, %v897
  %922 = vst.msk [vmem:[%s6 + $0x78] sm:$0xff] %vm58, %v898
  %923 = vst.msk [vmem:[%s6 + $0x80] sm:$0xff] %vm58, %v899
  %924 = vst.msk [vmem:[%s6 + $0x88] sm:$0xff] %vm58, %v900
  %925 = vst.msk [vmem:[%s6 + $0x90] sm:$0xff] %vm58, %v901
  %926 = vst.msk [vmem:[%s6 + $0x98] sm:$0xff] %vm58, %v902
  %927 = vst.msk [vmem:[%s6 + $0xa0] sm:$0xff] %vm58, %v903
  %928 = vst.msk [vmem:[%s6 + $0xa8] sm:$0xff] %vm58, %v904
  %929 = vst.msk [vmem:[%s6 + $0xb0] sm:$0xff] %vm58, %v905
  %930 = vst.msk [vmem:[%s6 + $0xb8] sm:$0xff] %vm58, %v906
  // Predicated region
  $region26: #{forward.22} parent=0 // pred_check
    _
  $region27: #{forward.22} parent=0 // pred_check_branch
    %932 = sbr.rel (0) target = $region29
  $region28: #{forward.22} parent=0 // pred_region
    _
  $region29: #{forward.22} parent=0 // pred_fallthru
    _
  // Predicated region
  $region30: #{forward.22} parent=0 // pred_check
    _
  $region31: #{forward.22} parent=0 // pred_check_branch
    %934 = sbr.rel (0) target = $region33
  $region32: #{forward.22} parent=0 // pred_region
    _
  $region33: #{forward.22} parent=0 // pred_fallthru
    _

// kernel: forward.23
$region0: #{forward.23}
  #allocation0 [shape = 'u32[]', space=smem, size = 0x4, offset = 0x4, fixed_abs, tag = 'smem constant byte address 0x4 - core index']
  #allocation1 [shape = 'u32[144,128]{1,0:T(1,128)}', space=vmem, size = 0x12000, scoped, tag = 'internal scratch']
  #allocation2 [shape = 'f32[1,1]{1,0:T(1,128)S(1)}', space=vmem, size = 0x200, scoped, tag = 'scoped memory for forward.23']
  %s0 = inlined_call_operand.vmem [shape: f32[192,32], index: 0, kind: input, shape index: {}]
  %s1 = inlined_call_operand.vmem [shape: f32[192,32], index: 1, kind: input, shape index: {}]
  %s2 = inlined_call_operand.vmem [shape: f32[192,1], index: 2, kind: input, shape index: {}]
  %s3 = inlined_call_operand.vmem [shape: f32[32,1], index: 3, kind: input, shape index: {}]
  %s4 = inlined_call_operand.<no memory space> [shape: f32[1,1], index: 4, kind: input, shape index: {}]
  %s5 = inlined_call_operand.vmem [shape: f32[192,1], index: 5, kind: output, shape index: {}]
  %s6 = sld [smem:[#allocation0]]
  $region30: #{forward.23} parent=0
    _
  %s8 = ssub.s32 1, %s6
  %s9 = scalar_select 0, %s8, %s6
  %v10 = vstv %s4
  %11 = vst [vmem:[#allocation2] sm:$0x1] %v10
  // Predicated region
  $region2: #{forward.23} parent=0 // pred_check
    _
  $region3: #{forward.23} parent=0 // pred_check_branch
    %13 = sbr.rel (0) target = $region5
  $region4: #{forward.23} parent=0 // pred_region
    _
  $region5: #{forward.23} parent=0 // pred_fallthru
    _
  // Predicated region
  $region6: #{forward.23} parent=0 // pred_check
    _
  $region7: #{forward.23} parent=0 // pred_check_branch
    %15 = sbr.rel (0) target = $region9
  $region8: #{forward.23} parent=0 // pred_region
    _
  $region9: #{forward.23} parent=0 // pred_fallthru
    _
  // Predicated region
  $region10: #{forward.23} parent=0 // pred_check
    _
  $region11: #{forward.23} parent=0 // pred_check_branch
    %17 = sbr.rel (0) target = $region13
  $region12: #{forward.23} parent=0 // pred_region
    _
  $region13: #{forward.23} parent=0 // pred_fallthru
    _
  // Predicated region
  $region14: #{forward.23} parent=0 // pred_check
    _
  $region15: #{forward.23} parent=0 // pred_check_branch
    %19 = sbr.rel (0) target = $region17
  $region16: #{forward.23} parent=0 // pred_region
    _
  $region17: #{forward.23} parent=0 // pred_fallthru
    _
  // Predicated region
  $region18: #{forward.23} parent=0 // pred_check
    _
  $region19: #{forward.23} parent=0 // pred_check_branch
    %21 = sbr.rel (0) target = $region21
  $region20: #{forward.23} parent=0 // pred_region
    _
  $region21: #{forward.23} parent=0 // pred_fallthru
    _
  %v22 = vld [vmem:[%s0] sm:$0xff]
  %v23 = vld [vmem:[%s0 + $0x8] sm:$0xff]
  %v24 = vld [vmem:[%s0 + $0x10] sm:$0xff]
  %v25 = vld [vmem:[%s0 + $0x18] sm:$0xff]
  %v26 = vld [vmem:[%s0 + $0x20] sm:$0xff]
  %v27 = vld [vmem:[%s0 + $0x28] sm:$0xff]
  %v28 = vld [vmem:[%s0 + $0x30] sm:$0xff]
  %v29 = vld [vmem:[%s0 + $0x38] sm:$0xff]
  %v30 = vld [vmem:[%s0 + $0x40] sm:$0xff]
  %v31 = vld [vmem:[%s0 + $0x48] sm:$0xff]
  %v32 = vld [vmem:[%s0 + $0x50] sm:$0xff]
  %v33 = vld [vmem:[%s0 + $0x58] sm:$0xff]
  %v34 = vld [vmem:[%s0 + $0x60] sm:$0xff]
  %v35 = vld [vmem:[%s0 + $0x68] sm:$0xff]
  %v36 = vld [vmem:[%s0 + $0x70] sm:$0xff]
  %v37 = vld [vmem:[%s0 + $0x78] sm:$0xff]
  %v38 = vld [vmem:[%s0 + $0x80] sm:$0xff]
  %v39 = vld [vmem:[%s0 + $0x88] sm:$0xff]
  %v40 = vld [vmem:[%s0 + $0x90] sm:$0xff]
  %v41 = vld [vmem:[%s0 + $0x98] sm:$0xff]
  %v42 = vld [vmem:[%s0 + $0xa0] sm:$0xff]
  %v43 = vld [vmem:[%s0 + $0xa8] sm:$0xff]
  %v44 = vld [vmem:[%s0 + $0xb0] sm:$0xff]
  %v45 = vld [vmem:[%s0 + $0xb8] sm:$0xff]
  %v46 = vld [vmem:[%s1] sm:$0xff]
  %v47 = vld [vmem:[%s1 + $0x8] sm:$0xff]
  %v48 = vld [vmem:[%s1 + $0x10] sm:$0xff]
  %v49 = vld [vmem:[%s1 + $0x18] sm:$0xff]
  %v50 = vld [vmem:[%s1 + $0x20] sm:$0xff]
  %v51 = vld [vmem:[%s1 + $0x28] sm:$0xff]
  %v52 = vld [vmem:[%s1 + $0x30] sm:$0xff]
  %v53 = vld [vmem:[%s1 + $0x38] sm:$0xff]
  %v54 = vld [vmem:[%s1 + $0x40] sm:$0xff]
  %v55 = vld [vmem:[%s1 + $0x48] sm:$0xff]
  %v56 = vld [vmem:[%s1 + $0x50] sm:$0xff]
  %v57 = vld [vmem:[%s1 + $0x58] sm:$0xff]
  %v58 = vld [vmem:[%s1 + $0x60] sm:$0xff]
  %v59 = vld [vmem:[%s1 + $0x68] sm:$0xff]
  %v60 = vld [vmem:[%s1 + $0x70] sm:$0xff]
  %v61 = vld [vmem:[%s1 + $0x78] sm:$0xff]
  %v62 = vld [vmem:[%s1 + $0x80] sm:$0xff]
  %v63 = vld [vmem:[%s1 + $0x88] sm:$0xff]
  %v64 = vld [vmem:[%s1 + $0x90] sm:$0xff]
  %v65 = vld [vmem:[%s1 + $0x98] sm:$0xff]
  %v66 = vld [vmem:[%s1 + $0xa0] sm:$0xff]
  %v67 = vld [vmem:[%s1 + $0xa8] sm:$0xff]
  %v68 = vld [vmem:[%s1 + $0xb0] sm:$0xff]
  %v69 = vld [vmem:[%s1 + $0xb8] sm:$0xff]
  %v70 = vadd.f32 %v22, %v46
  %v71 = vadd.f32 %v23, %v47
  %v72 = vadd.f32 %v24, %v48
  %v73 = vadd.f32 %v25, %v49
  %v74 = vadd.f32 %v26, %v50
  %v75 = vadd.f32 %v27, %v51
  %v76 = vadd.f32 %v28, %v52
  %v77 = vadd.f32 %v29, %v53
  %v78 = vadd.f32 %v30, %v54
  %v79 = vadd.f32 %v31, %v55
  %v80 = vadd.f32 %v32, %v56
  %v81 = vadd.f32 %v33, %v57
  %v82 = vadd.f32 %v34, %v58
  %v83 = vadd.f32 %v35, %v59
  %v84 = vadd.f32 %v36, %v60
  %v85 = vadd.f32 %v37, %v61
  %v86 = vadd.f32 %v38, %v62
  %v87 = vadd.f32 %v39, %v63
  %v88 = vadd.f32 %v40, %v64
  %v89 = vadd.f32 %v41, %v65
  %v90 = vadd.f32 %v42, %v66
  %v91 = vadd.f32 %v43, %v67
  %v92 = vadd.f32 %v44, %v68
  %v93 = vadd.f32 %v45, %v69
  %v94 = vld [vmem:[%s2] sm:$0xff]
  %v95 = vld [vmem:[%s2 + $0x8] sm:$0xff]
  %v96 = vld [vmem:[%s2 + $0x10] sm:$0xff]
  %v97 = vld [vmem:[%s2 + $0x18] sm:$0xff]
  %v98 = vld [vmem:[%s2 + $0x20] sm:$0xff]
  %v99 = vld [vmem:[%s2 + $0x28] sm:$0xff]
  %v100 = vld [vmem:[%s2 + $0x30] sm:$0xff]
  %v101 = vld [vmem:[%s2 + $0x38] sm:$0xff]
  %v102 = vld [vmem:[%s2 + $0x40] sm:$0xff]
  %v103 = vld [vmem:[%s2 + $0x48] sm:$0xff]
  %v104 = vld [vmem:[%s2 + $0x50] sm:$0xff]
  %v105 = vld [vmem:[%s2 + $0x58] sm:$0xff]
  %v106 = vld [vmem:[%s2 + $0x60] sm:$0xff]
  %v107 = vld [vmem:[%s2 + $0x68] sm:$0xff]
  %v108 = vld [vmem:[%s2 + $0x70] sm:$0xff]
  %v109 = vld [vmem:[%s2 + $0x78] sm:$0xff]
  %v110 = vld [vmem:[%s2 + $0x80] sm:$0xff]
  %v111 = vld [vmem:[%s2 + $0x88] sm:$0xff]
  %v112 = vld [vmem:[%s2 + $0x90] sm:$0xff]
  %v113 = vld [vmem:[%s2 + $0x98] sm:$0xff]
  %v114 = vld [vmem:[%s2 + $0xa0] sm:$0xff]
  %v115 = vld [vmem:[%s2 + $0xa8] sm:$0xff]
  %v116 = vld [vmem:[%s2 + $0xb0] sm:$0xff]
  %v117 = vld [vmem:[%s2 + $0xb8] sm:$0xff]
  %119 = vset.pattern.permute.xlu0 0
  %120 = vperm.xlu0 %119, %v94
  %v121 = vpop.permute.xlu0 %120
  %124 = vset.pattern.permute.xlu0 0
  %125 = vperm.xlu0 %124, %v95
  %v126 = vpop.permute.xlu0 %125
  %129 = vset.pattern.permute.xlu0 0
  %130 = vperm.xlu0 %129, %v96
  %v131 = vpop.permute.xlu0 %130
  %134 = vset.pattern.permute.xlu0 0
  %135 = vperm.xlu0 %134, %v97
  %v136 = vpop.permute.xlu0 %135
  %139 = vset.pattern.permute.xlu0 0
  %140 = vperm.xlu0 %139, %v98
  %v141 = vpop.permute.xlu0 %140
  %144 = vset.pattern.permute.xlu0 0
  %145 = vperm.xlu0 %144, %v99
  %v146 = vpop.permute.xlu0 %145
  %149 = vset.pattern.permute.xlu0 0
  %150 = vperm.xlu0 %149, %v100
  %v151 = vpop.permute.xlu0 %150
  %154 = vset.pattern.permute.xlu0 0
  %155 = vperm.xlu0 %154, %v101
  %v156 = vpop.permute.xlu0 %155
  %159 = vset.pattern.permute.xlu0 0
  %160 = vperm.xlu0 %159, %v102
  %v161 = vpop.permute.xlu0 %160
  %164 = vset.pattern.permute.xlu0 0
  %165 = vperm.xlu0 %164, %v103
  %v166 = vpop.permute.xlu0 %165
  %169 = vset.pattern.permute.xlu0 0
  %170 = vperm.xlu0 %169, %v104
  %v171 = vpop.permute.xlu0 %170
  %174 = vset.pattern.permute.xlu0 0
  %175 = vperm.xlu0 %174, %v105
  %v176 = vpop.permute.xlu0 %175
  %179 = vset.pattern.permute.xlu0 0
  %180 = vperm.xlu0 %179, %v106
  %v181 = vpop.permute.xlu0 %180
  %184 = vset.pattern.permute.xlu0 0
  %185 = vperm.xlu0 %184, %v107
  %v186 = vpop.permute.xlu0 %185
  %189 = vset.pattern.permute.xlu0 0
  %190 = vperm.xlu0 %189, %v108
  %v191 = vpop.permute.xlu0 %190
  %194 = vset.pattern.permute.xlu0 0
  %195 = vperm.xlu0 %194, %v109
  %v196 = vpop.permute.xlu0 %195
  %199 = vset.pattern.permute.xlu0 0
  %200 = vperm.xlu0 %199, %v110
  %v201 = vpop.permute.xlu0 %200
  %204 = vset.pattern.permute.xlu0 0
  %205 = vperm.xlu0 %204, %v111
  %v206 = vpop.permute.xlu0 %205
  %209 = vset.pattern.permute.xlu0 0
  %210 = vperm.xlu0 %209, %v112
  %v211 = vpop.permute.xlu0 %210
  %214 = vset.pattern.permute.xlu0 0
  %215 = vperm.xlu0 %214, %v113
  %v216 = vpop.permute.xlu0 %215
  %219 = vset.pattern.permute.xlu0 0
  %220 = vperm.xlu0 %219, %v114
  %v221 = vpop.permute.xlu0 %220
  %224 = vset.pattern.permute.xlu0 0
  %225 = vperm.xlu0 %224, %v115
  %v226 = vpop.permute.xlu0 %225
  %229 = vset.pattern.permute.xlu0 0
  %230 = vperm.xlu0 %229, %v116
  %v231 = vpop.permute.xlu0 %230
  %234 = vset.pattern.permute.xlu0 0
  %235 = vperm.xlu0 %234, %v117
  %v236 = vpop.permute.xlu0 %235
  %v238 = vadd.f32 %v70, %v121
  %v239 = vadd.f32 %v71, %v126
  %v240 = vadd.f32 %v72, %v131
  %v241 = vadd.f32 %v73, %v136
  %v242 = vadd.f32 %v74, %v141
  %v243 = vadd.f32 %v75, %v146
  %v244 = vadd.f32 %v76, %v151
  %v245 = vadd.f32 %v77, %v156
  %v246 = vadd.f32 %v78, %v161
  %v247 = vadd.f32 %v79, %v166
  %v248 = vadd.f32 %v80, %v171
  %v249 = vadd.f32 %v81, %v176
  %v250 = vadd.f32 %v82, %v181
  %v251 = vadd.f32 %v83, %v186
  %v252 = vadd.f32 %v84, %v191
  %v253 = vadd.f32 %v85, %v196
  %v254 = vadd.f32 %v86, %v201
  %v255 = vadd.f32 %v87, %v206
  %v256 = vadd.f32 %v88, %v211
  %v257 = vadd.f32 %v89, %v216
  %v258 = vadd.f32 %v90, %v221
  %v259 = vadd.f32 %v91, %v226
  %v260 = vadd.f32 %v92, %v231
  %v261 = vadd.f32 %v93, %v236
  %v262 = vld [vmem:[%s3] sm:$0xff]
  %v263 = vld [vmem:[%s3 + $0x8] sm:$0xff]
  %v264 = vld [vmem:[%s3 + $0x10] sm:$0xff]
  %v265 = vld [vmem:[%s3 + $0x18] sm:$0xff]
  %v266 = vld [vmem:[#allocation2] sm:$0x1]
  %v268 = vlaneseq
  %v269 = vshrl.u32 %v268, 7
  %v270 = vsub.s32 0, %v269
  %v271 = vrot.slane %v266, %v270
  %vm273 = vcmask 261120
  %v275 = vsel %vm273, %v238, 0
  %v278 = vsel %vm273, %v239, 0
  %v281 = vsel %vm273, %v240, 0
  %v284 = vsel %vm273, %v241, 0
  %v287 = vsel %vm273, %v242, 0
  %v290 = vsel %vm273, %v243, 0
  %v293 = vsel %vm273, %v244, 0
  %v296 = vsel %vm273, %v245, 0
  %v299 = vsel %vm273, %v246, 0
  %v302 = vsel %vm273, %v247, 0
  %v305 = vsel %vm273, %v248, 0
  %v308 = vsel %vm273, %v249, 0
  %v311 = vsel %vm273, %v250, 0
  %v314 = vsel %vm273, %v251, 0
  %v317 = vsel %vm273, %v252, 0
  %v320 = vsel %vm273, %v253, 0
  %v323 = vsel %vm273, %v254, 0
  %v326 = vsel %vm273, %v255, 0
  %v329 = vsel %vm273, %v256, 0
  %v332 = vsel %vm273, %v257, 0
  %v335 = vsel %vm273, %v258, 0
  %v338 = vsel %vm273, %v259, 0
  %v341 = vsel %vm273, %v260, 0
  %v344 = vsel %vm273, %v261, 0
  %346 = vmatprep.subr.mxu0 0.0
  %347 = vmatpush1.msra.mxu0 %v262
  %348 = vmatprep.subr.mxu0 0.0
  %349 = vmatpush1.msra.mxu0 %v263
  %350 = vmatprep.subr.mxu0 0.0
  %351 = vmatpush1.msra.mxu0 %v264
  %352 = vmatprep.subr.mxu0 0.0
  %353 = vmatpush1.msra.mxu0 %v265
  %354 = vmatprep.subr.mxu0 0.0
  %355 = vmatpush1.msra.mxu0 0.0
  %356 = vmatprep.subr.mxu0 0.0
  %357 = vmatpush1.msra.mxu0 0.0
  %358 = vmatprep.subr.mxu0 0.0
  %359 = vmatpush1.msra.mxu0 0.0
  %360 = vmatprep.subr.mxu0 0.0
  %361 = vmatpush1.msra.mxu0 0.0
  %362 = vmatprep.subr.mxu0 0.0
  %363 = vmatpush1.msra.mxu0 0.0
  %364 = vmatprep.subr.mxu0 0.0
  %365 = vmatpush1.msra.mxu0 0.0
  %366 = vmatprep.subr.mxu0 0.0
  %367 = vmatpush1.msra.mxu0 0.0
  %368 = vmatprep.subr.mxu0 0.0
  %369 = vmatpush1.msra.mxu0 0.0
  %370 = vmatprep.subr.mxu0 0.0
  %371 = vmatpush1.msra.mxu0 0.0
  %372 = vmatprep.subr.mxu0 0.0
  %373 = vmatpush1.msra.mxu0 0.0
  %374 = vmatprep.subr.mxu0 0.0
  %375 = vmatpush1.msra.mxu0 0.0
  %376 = vmatprep.subr.mxu0 0.0
  %377 = vmatpush1.msra.mxu0 0.0
  %378 = vmatprep.subr.mxu0 0.0
  %379 = vmatpush1.msra.mxu0 0.0
  %380 = vmatprep.subr.mxu0 0.0
  %381 = vmatpush1.msra.mxu0 0.0
  %382 = vmatprep.subr.mxu0 0.0
  %383 = vmatpush1.msra.mxu0 0.0
  %384 = vmatprep.subr.mxu0 0.0
  %385 = vmatpush1.msra.mxu0 0.0
  %386 = vmatprep.subr.mxu0 0.0
  %387 = vmatpush1.msra.mxu0 0.0
  %388 = vmatprep.subr.mxu0 0.0
  %389 = vmatpush1.msra.mxu0 0.0
  %390 = vmatprep.subr.mxu0 0.0
  %391 = vmatpush1.msra.mxu0 0.0
  %392 = vmatprep.subr.mxu0 0.0
  %393 = vmatpush1.msra.mxu0 0.0
  %394 = vmatprep.subr.mxu0 0.0
  %395 = vmatpush1.msra.mxu0 0.0
  %396 = vmatprep.subr.mxu0 0.0
  %397 = vmatpush1.msra.mxu0 0.0
  %398 = vmatprep.subr.mxu0 0.0
  %399 = vmatpush1.msra.mxu0 0.0
  %400 = vmatprep.subr.mxu0 0.0
  %401 = vmatpush1.msra.mxu0 0.0
  %402 = vmatprep.subr.mxu0 0.0
  %403 = vmatpush1.msra.mxu0 0.0
  %404 = vmatprep.subr.mxu0 0.0
  %405 = vmatpush1.msra.mxu0 0.0
  %406 = vmatprep.subr.mxu0 0.0
  %407 = vmatpush1.msra.mxu0 0.0
  %408 = vmatprep.subr.mxu0 0.0
  %409 = vmatpush1.msra.mxu0 0.0
  %410 = vmatprep.mubr.f32.mxu0 0.0
  %411 = vmatmul.mubr.f32.gmra.mrb[0].mxu0 %v275
  %v412 = vpop.f32.mrb[0].mxu0
  %v413 = vadd.f32 %v271, %v412
  %v414 = vpop.f32.mrb[0].mxu0
  %415 = vmatprep.mubr.f32.mxu0 0.0
  %416 = vmatmul.mubr.f32.gmra.mrb[0].mxu0 %v278
  %v417 = vpop.f32.mrb[0].mxu0
  %v418 = vadd.f32 %v271, %v417
  %v419 = vpop.f32.mrb[0].mxu0
  %420 = vmatprep.mubr.f32.mxu0 0.0
  %421 = vmatmul.mubr.f32.gmra.mrb[0].mxu0 %v281
  %v422 = vpop.f32.mrb[0].mxu0
  %v423 = vadd.f32 %v271, %v422
  %v424 = vpop.f32.mrb[0].mxu0
  %425 = vmatprep.mubr.f32.mxu0 0.0
  %426 = vmatmul.mubr.f32.gmra.mrb[0].mxu0 %v284
  %v427 = vpop.f32.mrb[0].mxu0
  %v428 = vadd.f32 %v271, %v427
  %v429 = vpop.f32.mrb[0].mxu0
  %430 = vmatprep.mubr.f32.mxu0 0.0
  %431 = vmatmul.mubr.f32.gmra.mrb[0].mxu0 %v287
  %v432 = vpop.f32.mrb[0].mxu0
  %v433 = vadd.f32 %v271, %v432
  %v434 = vpop.f32.mrb[0].mxu0
  %435 = vmatprep.mubr.f32.mxu0 0.0
  %436 = vmatmul.mubr.f32.gmra.mrb[0].mxu0 %v290
  %v437 = vpop.f32.mrb[0].mxu0
  %v438 = vadd.f32 %v271, %v437
  %v439 = vpop.f32.mrb[0].mxu0
  %440 = vmatprep.mubr.f32.mxu0 0.0
  %441 = vmatmul.mubr.f32.gmra.mrb[0].mxu0 %v293
  %v442 = vpop.f32.mrb[0].mxu0
  %v443 = vadd.f32 %v271, %v442
  %v444 = vpop.f32.mrb[0].mxu0
  %445 = vmatprep.mubr.f32.mxu0 0.0
  %446 = vmatmul.mubr.f32.gmra.mrb[0].mxu0 %v296
  %v447 = vpop.f32.mrb[0].mxu0
  %v448 = vadd.f32 %v271, %v447
  %v449 = vpop.f32.mrb[0].mxu0
  %450 = vmatprep.mubr.f32.mxu0 0.0
  %451 = vmatmul.mubr.f32.gmra.mrb[0].mxu0 %v299
  %v452 = vpop.f32.mrb[0].mxu0
  %v453 = vadd.f32 %v271, %v452
  %v454 = vpop.f32.mrb[0].mxu0
  %455 = vmatprep.mubr.f32.mxu0 0.0
  %456 = vmatmul.mubr.f32.gmra.mrb[0].mxu0 %v302
  %v457 = vpop.f32.mrb[0].mxu0
  %v458 = vadd.f32 %v271, %v457
  %v459 = vpop.f32.mrb[0].mxu0
  %460 = vmatprep.mubr.f32.mxu0 0.0
  %461 = vmatmul.mubr.f32.gmra.mrb[0].mxu0 %v305
  %v462 = vpop.f32.mrb[0].mxu0
  %v463 = vadd.f32 %v271, %v462
  %v464 = vpop.f32.mrb[0].mxu0
  %465 = vmatprep.mubr.f32.mxu0 0.0
  %466 = vmatmul.mubr.f32.gmra.mrb[0].mxu0 %v308
  %v467 = vpop.f32.mrb[0].mxu0
  %v468 = vadd.f32 %v271, %v467
  %v469 = vpop.f32.mrb[0].mxu0
  %470 = vmatprep.mubr.f32.mxu0 0.0
  %471 = vmatmul.mubr.f32.gmra.mrb[0].mxu0 %v311
  %v472 = vpop.f32.mrb[0].mxu0
  %v473 = vadd.f32 %v271, %v472
  %v474 = vpop.f32.mrb[0].mxu0
  %475 = vmatprep.mubr.f32.mxu0 0.0
  %476 = vmatmul.mubr.f32.gmra.mrb[0].mxu0 %v314
  %v477 = vpop.f32.mrb[0].mxu0
  %v478 = vadd.f32 %v271, %v477
  %v479 = vpop.f32.mrb[0].mxu0
  %480 = vmatprep.mubr.f32.mxu0 0.0
  %481 = vmatmul.mubr.f32.gmra.mrb[0].mxu0 %v317
  %v482 = vpop.f32.mrb[0].mxu0
  %v483 = vadd.f32 %v271, %v482
  %v484 = vpop.f32.mrb[0].mxu0
  %485 = vmatprep.mubr.f32.mxu0 0.0
  %486 = vmatmul.mubr.f32.gmra.mrb[0].mxu0 %v320
  %v487 = vpop.f32.mrb[0].mxu0
  %v488 = vadd.f32 %v271, %v487
  %v489 = vpop.f32.mrb[0].mxu0
  %490 = vmatprep.mubr.f32.mxu0 0.0
  %491 = vmatmul.mubr.f32.gmra.mrb[0].mxu0 %v323
  %v492 = vpop.f32.mrb[0].mxu0
  %v493 = vadd.f32 %v271, %v492
  %v494 = vpop.f32.mrb[0].mxu0
  %495 = vmatprep.mubr.f32.mxu0 0.0
  %496 = vmatmul.mubr.f32.gmra.mrb[0].mxu0 %v326
  %v497 = vpop.f32.mrb[0].mxu0
  %v498 = vadd.f32 %v271, %v497
  %v499 = vpop.f32.mrb[0].mxu0
  %500 = vmatprep.mubr.f32.mxu0 0.0
  %501 = vmatmul.mubr.f32.gmra.mrb[0].mxu0 %v329
  %v502 = vpop.f32.mrb[0].mxu0
  %v503 = vadd.f32 %v271, %v502
  %v504 = vpop.f32.mrb[0].mxu0
  %505 = vmatprep.mubr.f32.mxu0 0.0
  %506 = vmatmul.mubr.f32.gmra.mrb[0].mxu0 %v332
  %v507 = vpop.f32.mrb[0].mxu0
  %v508 = vadd.f32 %v271, %v507
  %v509 = vpop.f32.mrb[0].mxu0
  %510 = vmatprep.mubr.f32.mxu0 0.0
  %511 = vmatmul.mubr.f32.gmra.mrb[0].mxu0 %v335
  %v512 = vpop.f32.mrb[0].mxu0
  %v513 = vadd.f32 %v271, %v512
  %v514 = vpop.f32.mrb[0].mxu0
  %515 = vmatprep.mubr.f32.mxu0 0.0
  %516 = vmatmul.mubr.f32.gmra.mrb[0].mxu0 %v338
  %v517 = vpop.f32.mrb[0].mxu0
  %v518 = vadd.f32 %v271, %v517
  %v519 = vpop.f32.mrb[0].mxu0
  %520 = vmatprep.mubr.f32.mxu0 0.0
  %521 = vmatmul.mubr.f32.gmra.mrb[0].mxu0 %v341
  %v522 = vpop.f32.mrb[0].mxu0
  %v523 = vadd.f32 %v271, %v522
  %v524 = vpop.f32.mrb[0].mxu0
  %525 = vmatprep.mubr.f32.mxu0 0.0
  %526 = vmatmul.mubr.f32.gmra.mrb[0].mxu0 %v344
  %v527 = vpop.f32.mrb[0].mxu0
  %v528 = vadd.f32 %v271, %v527
  %v529 = vpop.f32.mrb[0].mxu0
  %530 = vdwg.mxu0
  %vm531 = vcmask 7168
  %532 = vst.msk [vmem:[%s5] sm:$0xff] %vm531, %v413
  %533 = vst.msk [vmem:[%s5 + $0x8] sm:$0xff] %vm531, %v418
  %534 = vst.msk [vmem:[%s5 + $0x10] sm:$0xff] %vm531, %v423
  %535 = vst.msk [vmem:[%s5 + $0x18] sm:$0xff] %vm531, %v428
  %536 = vst.msk [vmem:[%s5 + $0x20] sm:$0xff] %vm531, %v433
  %537 = vst.msk [vmem:[%s5 + $0x28] sm:$0xff] %vm531, %v438
  %538 = vst.msk [vmem:[%s5 + $0x30] sm:$0xff] %vm531, %v443
  %539 = vst.msk [vmem:[%s5 + $0x38] sm:$0xff] %vm531, %v448
  %540 = vst.msk [vmem:[%s5 + $0x40] sm:$0xff] %vm531, %v453
  %541 = vst.msk [vmem:[%s5 + $0x48] sm:$0xff] %vm531, %v458
  %542 = vst.msk [vmem:[%s5 + $0x50] sm:$0xff] %vm531, %v463
  %543 = vst.msk [vmem:[%s5 + $0x58] sm:$0xff] %vm531, %v468
  %544 = vst.msk [vmem:[%s5 + $0x60] sm:$0xff] %vm531, %v473
  %545 = vst.msk [vmem:[%s5 + $0x68] sm:$0xff] %vm531, %v478
  %546 = vst.msk [vmem:[%s5 + $0x70] sm:$0xff] %vm531, %v483
  %547 = vst.msk [vmem:[%s5 + $0x78] sm:$0xff] %vm531, %v488
  %548 = vst.msk [vmem:[%s5 + $0x80] sm:$0xff] %vm531, %v493
  %549 = vst.msk [vmem:[%s5 + $0x88] sm:$0xff] %vm531, %v498
  %550 = vst.msk [vmem:[%s5 + $0x90] sm:$0xff] %vm531, %v503
  %551 = vst.msk [vmem:[%s5 + $0x98] sm:$0xff] %vm531, %v508
  %552 = vst.msk [vmem:[%s5 + $0xa0] sm:$0xff] %vm531, %v513
  %553 = vst.msk [vmem:[%s5 + $0xa8] sm:$0xff] %vm531, %v518
  %554 = vst.msk [vmem:[%s5 + $0xb0] sm:$0xff] %vm531, %v523
  %555 = vst.msk [vmem:[%s5 + $0xb8] sm:$0xff] %vm531, %v528
  // Predicated region
  $region22: #{forward.23} parent=0 // pred_check
    _
  $region23: #{forward.23} parent=0 // pred_check_branch
    %557 = sbr.rel (0) target = $region25
  $region24: #{forward.23} parent=0 // pred_region
    _
  $region25: #{forward.23} parent=0 // pred_fallthru
    _
  // Predicated region
  $region26: #{forward.23} parent=0 // pred_check
    _
  $region27: #{forward.23} parent=0 // pred_check_branch
    %559 = sbr.rel (0) target = $region29
  $region28: #{forward.23} parent=0 // pred_region
    _
  $region29: #{forward.23} parent=0 // pred_fallthru
    _

</llo_original>
